<compile_context>
chip_gen: v7x
topology: tpu7x:2x2x1
jax: 0.10.0
libtpu: 0.0.40
codegen_flags: <defaults>
</compile_context>

<pallas_src>
import functools

import jax
import jax.numpy as jnp
from jax.experimental import pallas as pl
from jax.experimental.pallas import tpu as pltpu


# ---------------------------------------------------------------------------
# Fused conv3x3 + bias + ReLU + 2x2 maxpool kernel
# ---------------------------------------------------------------------------
# Layout (built once in the wrapper): the spatially padded input (H+2, W+2, Cin) is split
# by padded-column parity into two arrays of logical shape (H+3, Whp, Cin), flattened to
# (fr, Cin) with fr = (H+3)*Whp, where Whp = roundup((W+2)//2, 8) (zero-padded columns +
# one extra zero row).  With that layout, the conv output at (y, x=2q+px) for tap (dy,dx)
# reads parity array p=(px+dx)%2 at flattened row (y+dy)*Whp + q + (px+dx)//2, i.e. every
# tap is a *contiguous, sublane-aligned-start* row chunk.  Columns q >= Wo are junk and
# are discarded by the pooling slices; the extra zero row keeps the largest tap slice
# ((H+2)*Whp) in bounds.
def _conv_relu_pool_kernel(xe_ref, xo_ref, w_ref, b_ref, o_ref, *, H, Whp, Wo, Ho, cin):
    chunk_rows = H * Whp
    tn = o_ref.shape[-1]
    parity = (xe_ref, xo_ref)

    def tap_chunk(px, dy, dx):
        p = (px + dx) % 2
        start = dy * Whp + (px + dx) // 2          # static Python int
        return parity[p][start:start + chunk_rows, :]   # (chunk_rows, cin), input dtype

    if cin == 1:
        # VPU broadcast-MAC path for the 1-channel conv (K=1 would waste the MXU).
        # TODO(synk): if conv1 saturates the VALU slot at 500x500, switch to a K=16-padded
        # im2col MXU dot like the cin>1 path.
        def accumulate(px):
            acc = jnp.zeros((chunk_rows, tn), jnp.float32)
            for dy in range(3):
                for dx in range(3):
                    t = 3 * dy + dx
                    w_t = w_ref[t:t + 1, :].astype(jnp.float32)         # (1, tn)
                    acc = acc + tap_chunk(px, dy, dx).astype(jnp.float32) * w_t
            return acc
        acc_even = accumulate(0)
        acc_odd = accumulate(1)
    else:
        # MXU path: one long-K dot.  Patch = parities stacked along M, taps stacked
        # along K (order t = 3*dy+dx, matching the K-concatenated weight layout).
        patches = jnp.concatenate(
            [jnp.concatenate([tap_chunk(px, dy, dx)
                              for dy in range(3) for dx in range(3)], axis=1)
             for px in (0, 1)],
            axis=0)                                                     # (2*chunk_rows, 9*cin)
        acc = jnp.dot(patches, w_ref[...], preferred_element_type=jnp.float32)
        acc_even = acc[:chunk_rows, :]
        acc_odd = acc[chunk_rows:, :]

    # 2x2/stride-2 max-pool: max over output-column parity, bias + ReLU, then max over
    # row pairs via an aligned reshape (2*Whp % 8 == 0 so this is layout-preserving).
    m = jnp.maximum(jnp.maximum(acc_even, acc_odd) + b_ref[...], 0.0)
    m = m.reshape(Ho, 2 * Whp, tn)
    o_ref[...] = jnp.maximum(m[:, :Wo, :], m[:, Whp:Whp + Wo, :]).astype(o_ref.dtype)


def _pad_split_parity(x_nhwc, Whp):
    """Zero-pad spatially by 1, split padded W by parity, pad width to Whp, flatten rows.

    Returns two arrays of shape (N, (H+3)*Whp, C).  Pure layout plumbing.
    """
    N, H, W, C = x_nhwc.shape
    Wh = (W + 2) // 2
    xp = jnp.pad(x_nhwc, ((0, 0), (1, 1), (1, 1), (0, 0)))
    xe = jnp.pad(xp[:, :, 0::2, :], ((0, 0), (0, 1), (0, Whp - Wh), (0, 0)))
    xo = jnp.pad(xp[:, :, 1::2, :], ((0, 0), (0, 1), (0, Whp - Wh), (0, 0)))
    fr = (H + 3) * Whp
    return xe.reshape(N, fr, C), xo.reshape(N, fr, C)


def conv3x3_relu_pool(x_nhwc, wk, b, *, tn, out_dtype):
    """relu(conv3x3(x) + b) followed by 2x2/stride-2 max-pool, fused in one kernel.

    `wk` has shape (9*Cin, Cout): tap weights concatenated along K (tap order 3*dy+dx).
    """
    N, H, W, Cin = x_nhwc.shape
    Cout = wk.shape[-1]
    assert Cout % tn == 0 and H % 2 == 0 and W % 2 == 0
    Ho, Wo = H // 2, W // 2
    Wh = (W + 2) // 2
    Whp = ((Wh + 7) // 8) * 8          # sublane-aligned tap/pool slices
    fr = (H + 3) * Whp

    xe, xo = _pad_split_parity(x_nhwc, Whp)
    kernel = functools.partial(_conv_relu_pool_kernel,
                               H=H, Whp=Whp, Wo=Wo, Ho=Ho, cin=Cin)
    return pl.pallas_call(
        kernel,
        out_shape=jax.ShapeDtypeStruct((N, Ho, Wo, Cout), out_dtype),
        grid=(N, Cout // tn),
        in_specs=[
            pl.BlockSpec((None, fr, Cin), lambda n, j: (n, 0, 0)),
            pl.BlockSpec((None, fr, Cin), lambda n, j: (n, 0, 0)),
            pl.BlockSpec((9 * Cin, tn), lambda n, j: (0, j)),
            pl.BlockSpec((1, tn), lambda n, j: (0, j)),
        ],
        out_specs=pl.BlockSpec((None, Ho, Wo, tn), lambda n, j: (n, 0, 0, j)),
        compiler_params=pltpu.CompilerParams(
            dimension_semantics=("parallel", "parallel"),
            vmem_limit_bytes=32 * 1024 * 1024,
        ),
    )(xe, xo, wk, b)


# ---------------------------------------------------------------------------
# MLP head: fc1 (K-streamed) -> relu -> fc2 -> relu -> fc3 -> L2 normalize
# ---------------------------------------------------------------------------
def _head_kernel(x_ref, w1_ref, b1_ref, w2_ref, b2_ref, w3_ref, b3_ref, o_ref, acc_ref):
    k = pl.program_id(0)

    @pl.when(k == 0)
    def _():
        acc_ref[...] = jnp.zeros_like(acc_ref)

    acc_ref[...] += jnp.dot(x_ref[...], w1_ref[...], preferred_element_type=jnp.float32)

    @pl.when(k == pl.num_programs(0) - 1)
    def _():
        h = jnp.maximum(acc_ref[...] + b1_ref[...], 0.0)
        h = jnp.maximum(
            jnp.dot(h, w2_ref[...], preferred_element_type=jnp.float32) + b2_ref[...], 0.0)
        f = jnp.dot(h, w3_ref[...], preferred_element_type=jnp.float32) + b3_ref[...]
        # F.normalize(dim=1, eps=1e-12): f / max(||f||, eps) == f * rsqrt(max(ss, eps^2))
        ss = jnp.sum(f * f, axis=1, keepdims=True)
        o_ref[...] = (f * jax.lax.rsqrt(jnp.maximum(ss, 1e-24))).astype(o_ref.dtype)


def projection_head(x, w1, b1, w2, b2, w3, b3, *, tk=4096):
    N, K = x.shape
    H1, H2, feat = w1.shape[1], w2.shape[1], w3.shape[1]

    # Large, lane-aligned K tiles (~1 MiB bf16 weight blocks at tk=4096) so the fc1 HBM
    # stream is not step-overhead bound.  K % tk != 0 is handled by exact zero padding.
    tk = min(tk, K)
    if tk >= 128:
        tk = (tk // 128) * 128
    Kp = pl.cdiv(K, tk) * tk
    if Kp != K:
        # TODO(synk): hoist the w1 zero-pad into prepare_params (one-time) at the real
        # flatten size; zero rows/columns do not change the fc1 result.
        x = jnp.pad(x, ((0, 0), (0, Kp - K)))
        w1 = jnp.pad(w1, ((0, Kp - K), (0, 0)))

    return pl.pallas_call(
        _head_kernel,
        out_shape=jax.ShapeDtypeStruct((N, feat), jnp.float32),
        grid=(Kp // tk,),
        in_specs=[
            pl.BlockSpec((N, tk), lambda k: (0, k)),
            pl.BlockSpec((tk, H1), lambda k: (k, 0)),
            pl.BlockSpec((1, H1), lambda k: (0, 0)),
            pl.BlockSpec((H1, H2), lambda k: (0, 0)),
            pl.BlockSpec((1, H2), lambda k: (0, 0)),
            pl.BlockSpec((H2, feat), lambda k: (0, 0)),
            pl.BlockSpec((1, feat), lambda k: (0, 0)),
        ],
        out_specs=pl.BlockSpec((N, feat), lambda k: (0, 0)),
        scratch_shapes=[pltpu.VMEM((N, H1), jnp.float32)],
        compiler_params=pltpu.CompilerParams(
            dimension_semantics=("arbitrary",),
            vmem_limit_bytes=32 * 1024 * 1024,
        ),
    )(x, w1, b1, w2, b2, w3, b3)


# ---------------------------------------------------------------------------
# Forward pass and parameter preparation (one-time layout plumbing)
# ---------------------------------------------------------------------------
def custom_cnn_forward(prepared, x_nchw):
    x = jnp.transpose(x_nchw, (0, 2, 3, 1)).astype(jnp.float32)          # NCHW -> NHWC
    y = conv3x3_relu_pool(x, prepared["conv1_wk"], prepared["conv1_b"],
                          tn=256, out_dtype=jnp.bfloat16)                # (N, H/2, W/2, 256)
    y = conv3x3_relu_pool(y, prepared["conv2_wk"], prepared["conv2_b"],
                          tn=128, out_dtype=jnp.bfloat16)                # (N, H/4, W/4, 128)
    flat = y.reshape(y.shape[0], -1)     # NHWC flatten; fc1 weights are pre-permuted to match
    return projection_head(flat,
                           prepared["fc1_w"], prepared["fc1_b"],
                           prepared["fc2_w"], prepared["fc2_b"],
                           prepared["fc3_w"], prepared["fc3_b"])


def prepare_params(p, pooled_hw):
    """Convert PyTorch-convention params into kernel layouts (done once)."""
    def conv_wk(w):  # (O, I, 3, 3) -> (9*I, O); tap t = 3*dy + dx, row = t*I + c
        o, i = w.shape[0], w.shape[1]
        return jnp.transpose(w, (2, 3, 1, 0)).reshape(9 * i, o)

    C2 = p["conv2_w"].shape[0]
    flat_dim = p["fc1_w"].shape[1]
    # Permute fc1 columns from PyTorch (C,H,W) flatten order to NHWC flatten order.
    fc1 = p["fc1_w"].reshape(-1, C2, pooled_hw, pooled_hw)
    fc1 = jnp.transpose(fc1, (0, 2, 3, 1)).reshape(-1, flat_dim)

    return {
        "conv1_wk": conv_wk(p["conv1_w"]).astype(jnp.float32),        # (9, 256)
        "conv1_b": p["conv1_b"].reshape(1, -1).astype(jnp.float32),
        "conv2_wk": conv_wk(p["conv2_w"]).astype(jnp.bfloat16),       # (2304, 128)
        "conv2_b": p["conv2_b"].reshape(1, -1).astype(jnp.float32),
        "fc1_w": jnp.transpose(fc1).astype(jnp.bfloat16),             # (flatten, 128)
        "fc1_b": p["fc1_b"].reshape(1, -1).astype(jnp.float32),
        "fc2_w": jnp.transpose(p["fc2_w"]).astype(jnp.float32),       # (128, 64)
        "fc2_b": p["fc2_b"].reshape(1, -1).astype(jnp.float32),
        "fc3_w": jnp.transpose(p["fc3_w"]).astype(jnp.float32),       # (64, feat)
        "fc3_b": p["fc3_b"].reshape(1, -1).astype(jnp.float32),
    }


def init_params(key, feat_dim=64, input_hw=16):
    # NOTE: the original module hard-codes flatten_dim = 128*125*125 (500x500 inputs);
    # this demo uses 16x16 inputs and derives flatten_dim from the spatial size.
    hw_after = input_hw // 4
    flatten_dim = 128 * hw_after * hw_after
    ks = jax.random.split(key, 10)

    def he(k, shape, fan_in):
        return jax.random.normal(k, shape, jnp.float32) * jnp.sqrt(2.0 / fan_in)

    def small(k, shape):
        return jax.random.normal(k, shape, jnp.float32) * 0.01

    return {
        "conv1_w": he(ks[0], (256, 1, 3, 3), 9 * 1),
        "conv1_b": small(ks[1], (256,)),
        "conv2_w": he(ks[2], (128, 256, 3, 3), 9 * 256),
        "conv2_b": small(ks[3], (128,)),
        "fc1_w": he(ks[4], (128, flatten_dim), flatten_dim),
        "fc1_b": small(ks[5], (128,)),
        "fc2_w": he(ks[6], (64, 128), 128),
        "fc2_b": small(ks[7], (64,)),
        "fc3_w": he(ks[8], (feat_dim, 64), 64),
        "fc3_b": small(ks[9], (feat_dim,)),
    }


# ---------------------------------------------------------------------------
# Pure-JAX reference (PyTorch-convention params) for validation
# ---------------------------------------------------------------------------
def reference_forward(params, x_nchw):
    dn = ("NCHW", "OIHW", "NCHW")
    y = jax.lax.conv_general_dilated(x_nchw, params["conv1_w"], (1, 1), "SAME",
                                     dimension_numbers=dn)
    y = jnp.maximum(y + params["conv1_b"][None, :, None, None], 0.0)
    y = jax.lax.reduce_window(y, -jnp.inf, jax.lax.max, (1, 1, 2, 2), (1, 1, 2, 2), "VALID")
    y = jax.lax.conv_general_dilated(y, params["conv2_w"], (1, 1), "SAME",
                                     dimension_numbers=dn)
    y = jnp.maximum(y + params["conv2_b"][None, :, None, None], 0.0)
    y = jax.lax.reduce_window(y, -jnp.inf, jax.lax.max, (1, 1, 2, 2), (1, 1, 2, 2), "VALID")
    flat = y.reshape(y.shape[0], -1)
    h = jnp.maximum(flat @ params["fc1_w"].T + params["fc1_b"], 0.0)
    h = jnp.maximum(h @ params["fc2_w"].T + params["fc2_b"], 0.0)
    f = h @ params["fc3_w"].T + params["fc3_b"]
    n = jnp.sqrt(jnp.sum(f * f, axis=1, keepdims=True))
    return f / jnp.maximum(n, 1e-12)


if __name__ == "__main__":
    key = jax.random.PRNGKey(0)
    pk, xk = jax.random.split(key)
    params = init_params(pk, feat_dim=64, input_hw=16)
    x = jax.random.normal(xk, (2, 1, 16, 16), jnp.float32)

    prepared = prepare_params(params, pooled_hw=16 // 4)
    fwd = jax.jit(custom_cnn_forward)
    feat = jax.block_until_ready(fwd(prepared, x))
    ref = jax.block_until_ready(reference_forward(params, x))

    assert feat.shape == (2, 64), feat.shape
    assert bool(jnp.all(jnp.isfinite(feat)))
    assert bool(jnp.allclose(jnp.linalg.norm(feat, axis=1), 1.0, atol=1e-3))
    # bf16 matmul paths (conv2, fc1) are compared against the full-f32 reference.
    assert bool(jnp.allclose(feat, ref, atol=5e-2, rtol=5e-2))
    print("KERNEL_OK")
</pallas_src>

<mosaic_0001>
module attributes {stable_mosaic.version = 11 : i64} {
  func.func @_conv_relu_pool_kernel(%arg0: i32, %arg1: i32, %arg2: memref<1x304x1xf32, #tpu.memory_space<vmem>>, %arg3: memref<1x304x1xf32, #tpu.memory_space<vmem>>, %arg4: memref<9x256xf32, #tpu.memory_space<vmem>>, %arg5: memref<1x256xf32, #tpu.memory_space<vmem>>, %arg6: memref<1x8x8x256xbf16, #tpu.memory_space<vmem>>) attributes {dimension_semantics = [#tpu.dimension_semantics<parallel>, #tpu.dimension_semantics<parallel>], iteration_bounds = array<i64: 2, 1>, scalar_prefetch = 0 : i64, scratch_operands = 0 : i64, tpu.core_type = #tpu.core_type<tc>, window_params = [{transform_indices = @transform_0, window_bounds = array<i64: 1, 304, 1>}, {transform_indices = @transform_1, window_bounds = array<i64: 1, 304, 1>}, {transform_indices = @transform_2, window_bounds = array<i64: 9, 256>}, {transform_indices = @transform_3, window_bounds = array<i64: 1, 256>}, {transform_indices = @transform_4, window_bounds = array<i64: 1, 8, 8, 256>}]} {
    %cst = arith.constant 0.000000e+00 : f32
    %0 = vector.broadcast %cst : f32 to vector<256x256xf32>
    %c0 = arith.constant 0 : index
    %c0_0 = arith.constant 0 : index
    %1 = vector.load %arg4[%c0, %c0_0] : memref<9x256xf32, #tpu.memory_space<vmem>>, vector<1x256xf32>
    %c0_1 = arith.constant 0 : index
    %c0_2 = arith.constant 0 : index
    %c0_3 = arith.constant 0 : index
    %2 = vector.load %arg2[%c0_1, %c0_2, %c0_3] : memref<1x304x1xf32, #tpu.memory_space<vmem>>, vector<1x256x1xf32>
    %3 = vector.shape_cast %2 : vector<1x256x1xf32> to vector<256x1xf32>
    %4 = vector.broadcast %3 : vector<256x1xf32> to vector<256x256xf32>
    %5 = vector.broadcast %1 : vector<1x256xf32> to vector<256x256xf32>
    %6 = arith.mulf %4, %5 : vector<256x256xf32>
    %7 = arith.addf %0, %6 : vector<256x256xf32>
    %c1 = arith.constant 1 : index
    %c0_4 = arith.constant 0 : index
    %8 = vector.load %arg4[%c1, %c0_4] : memref<9x256xf32, #tpu.memory_space<vmem>>, vector<1x256xf32>
    %c0_5 = arith.constant 0 : index
    %c0_6 = arith.constant 0 : index
    %c0_7 = arith.constant 0 : index
    %9 = vector.load %arg3[%c0_5, %c0_6, %c0_7] : memref<1x304x1xf32, #tpu.memory_space<vmem>>, vector<1x256x1xf32>
    %10 = vector.shape_cast %9 : vector<1x256x1xf32> to vector<256x1xf32>
    %11 = vector.broadcast %10 : vector<256x1xf32> to vector<256x256xf32>
    %12 = vector.broadcast %8 : vector<1x256xf32> to vector<256x256xf32>
    %13 = arith.mulf %11, %12 : vector<256x256xf32>
    %14 = arith.addf %7, %13 : vector<256x256xf32>
    %c2 = arith.constant 2 : index
    %c0_8 = arith.constant 0 : index
    %15 = vector.load %arg4[%c2, %c0_8] : memref<9x256xf32, #tpu.memory_space<vmem>>, vector<1x256xf32>
    %c0_9 = arith.constant 0 : index
    %c1_10 = arith.constant 1 : index
    %c0_11 = arith.constant 0 : index
    %16 = vector.load %arg2[%c0_9, %c1_10, %c0_11] : memref<1x304x1xf32, #tpu.memory_space<vmem>>, vector<1x256x1xf32>
    %17 = vector.shape_cast %16 : vector<1x256x1xf32> to vector<256x1xf32>
    %18 = vector.broadcast %17 : vector<256x1xf32> to vector<256x256xf32>
    %19 = vector.broadcast %15 : vector<1x256xf32> to vector<256x256xf32>
    %20 = arith.mulf %18, %19 : vector<256x256xf32>
    %21 = arith.addf %14, %20 : vector<256x256xf32>
    %c3 = arith.constant 3 : index
    %c0_12 = arith.constant 0 : index
    %22 = vector.load %arg4[%c3, %c0_12] : memref<9x256xf32, #tpu.memory_space<vmem>>, vector<1x256xf32>
    %c0_13 = arith.constant 0 : index
    %c16 = arith.constant 16 : index
    %c0_14 = arith.constant 0 : index
    %23 = vector.load %arg2[%c0_13, %c16, %c0_14] : memref<1x304x1xf32, #tpu.memory_space<vmem>>, vector<1x256x1xf32>
    %24 = vector.shape_cast %23 : vector<1x256x1xf32> to vector<256x1xf32>
    %25 = vector.broadcast %24 : vector<256x1xf32> to vector<256x256xf32>
    %26 = vector.broadcast %22 : vector<1x256xf32> to vector<256x256xf32>
    %27 = arith.mulf %25, %26 : vector<256x256xf32>
    %28 = arith.addf %21, %27 : vector<256x256xf32>
    %c4 = arith.constant 4 : index
    %c0_15 = arith.constant 0 : index
    %29 = vector.load %arg4[%c4, %c0_15] : memref<9x256xf32, #tpu.memory_space<vmem>>, vector<1x256xf32>
    %c0_16 = arith.constant 0 : index
    %c16_17 = arith.constant 16 : index
    %c0_18 = arith.constant 0 : index
    %30 = vector.load %arg3[%c0_16, %c16_17, %c0_18] : memref<1x304x1xf32, #tpu.memory_space<vmem>>, vector<1x256x1xf32>
    %31 = vector.shape_cast %30 : vector<1x256x1xf32> to vector<256x1xf32>
    %32 = vector.broadcast %31 : vector<256x1xf32> to vector<256x256xf32>
    %33 = vector.broadcast %29 : vector<1x256xf32> to vector<256x256xf32>
    %34 = arith.mulf %32, %33 : vector<256x256xf32>
    %35 = arith.addf %28, %34 : vector<256x256xf32>
    %c5 = arith.constant 5 : index
    %c0_19 = arith.constant 0 : index
    %36 = vector.load %arg4[%c5, %c0_19] : memref<9x256xf32, #tpu.memory_space<vmem>>, vector<1x256xf32>
    %c0_20 = arith.constant 0 : index
    %c17 = arith.constant 17 : index
    %c0_21 = arith.constant 0 : index
    %37 = vector.load %arg2[%c0_20, %c17, %c0_21] : memref<1x304x1xf32, #tpu.memory_space<vmem>>, vector<1x256x1xf32>
    %38 = vector.shape_cast %37 : vector<1x256x1xf32> to vector<256x1xf32>
    %39 = vector.broadcast %38 : vector<256x1xf32> to vector<256x256xf32>
    %40 = vector.broadcast %36 : vector<1x256xf32> to vector<256x256xf32>
    %41 = arith.mulf %39, %40 : vector<256x256xf32>
    %42 = arith.addf %35, %41 : vector<256x256xf32>
    %c6 = arith.constant 6 : index
    %c0_22 = arith.constant 0 : index
    %43 = vector.load %arg4[%c6, %c0_22] : memref<9x256xf32, #tpu.memory_space<vmem>>, vector<1x256xf32>
    %c0_23 = arith.constant 0 : index
    %c32 = arith.constant 32 : index
    %c0_24 = arith.constant 0 : index
    %44 = vector.load %arg2[%c0_23, %c32, %c0_24] : memref<1x304x1xf32, #tpu.memory_space<vmem>>, vector<1x256x1xf32>
    %45 = vector.shape_cast %44 : vector<1x256x1xf32> to vector<256x1xf32>
    %46 = vector.broadcast %45 : vector<256x1xf32> to vector<256x256xf32>
    %47 = vector.broadcast %43 : vector<1x256xf32> to vector<256x256xf32>
    %48 = arith.mulf %46, %47 : vector<256x256xf32>
    %49 = arith.addf %42, %48 : vector<256x256xf32>
    %c7 = arith.constant 7 : index
    %c0_25 = arith.constant 0 : index
    %50 = vector.load %arg4[%c7, %c0_25] : memref<9x256xf32, #tpu.memory_space<vmem>>, vector<1x256xf32>
    %c0_26 = arith.constant 0 : index
    %c32_27 = arith.constant 32 : index
    %c0_28 = arith.constant 0 : index
    %51 = vector.load %arg3[%c0_26, %c32_27, %c0_28] : memref<1x304x1xf32, #tpu.memory_space<vmem>>, vector<1x256x1xf32>
    %52 = vector.shape_cast %51 : vector<1x256x1xf32> to vector<256x1xf32>
    %53 = vector.broadcast %52 : vector<256x1xf32> to vector<256x256xf32>
    %54 = vector.broadcast %50 : vector<1x256xf32> to vector<256x256xf32>
    %55 = arith.mulf %53, %54 : vector<256x256xf32>
    %56 = arith.addf %49, %55 : vector<256x256xf32>
    %c8 = arith.constant 8 : index
    %c0_29 = arith.constant 0 : index
    %57 = vector.load %arg4[%c8, %c0_29] : memref<9x256xf32, #tpu.memory_space<vmem>>, vector<1x256xf32>
    %c0_30 = arith.constant 0 : index
    %c33 = arith.constant 33 : index
    %c0_31 = arith.constant 0 : index
    %58 = vector.load %arg2[%c0_30, %c33, %c0_31] : memref<1x304x1xf32, #tpu.memory_space<vmem>>, vector<1x256x1xf32>
    %59 = vector.shape_cast %58 : vector<1x256x1xf32> to vector<256x1xf32>
    %60 = vector.broadcast %59 : vector<256x1xf32> to vector<256x256xf32>
    %61 = vector.broadcast %57 : vector<1x256xf32> to vector<256x256xf32>
    %62 = arith.mulf %60, %61 : vector<256x256xf32>
    %63 = arith.addf %56, %62 : vector<256x256xf32>
    %cst_32 = arith.constant 0.000000e+00 : f32
    %64 = vector.broadcast %cst_32 : f32 to vector<256x256xf32>
    %c0_33 = arith.constant 0 : index
    %c0_34 = arith.constant 0 : index
    %65 = vector.load %arg4[%c0_33, %c0_34] : memref<9x256xf32, #tpu.memory_space<vmem>>, vector<1x256xf32>
    %c0_35 = arith.constant 0 : index
    %c0_36 = arith.constant 0 : index
    %c0_37 = arith.constant 0 : index
    %66 = vector.load %arg3[%c0_35, %c0_36, %c0_37] : memref<1x304x1xf32, #tpu.memory_space<vmem>>, vector<1x256x1xf32>
    %67 = vector.shape_cast %66 : vector<1x256x1xf32> to vector<256x1xf32>
    %68 = vector.broadcast %67 : vector<256x1xf32> to vector<256x256xf32>
    %69 = vector.broadcast %65 : vector<1x256xf32> to vector<256x256xf32>
    %70 = arith.mulf %68, %69 : vector<256x256xf32>
    %71 = arith.addf %64, %70 : vector<256x256xf32>
    %c1_38 = arith.constant 1 : index
    %c0_39 = arith.constant 0 : index
    %72 = vector.load %arg4[%c1_38, %c0_39] : memref<9x256xf32, #tpu.memory_space<vmem>>, vector<1x256xf32>
    %c0_40 = arith.constant 0 : index
    %c1_41 = arith.constant 1 : index
    %c0_42 = arith.constant 0 : index
    %73 = vector.load %arg2[%c0_40, %c1_41, %c0_42] : memref<1x304x1xf32, #tpu.memory_space<vmem>>, vector<1x256x1xf32>
    %74 = vector.shape_cast %73 : vector<1x256x1xf32> to vector<256x1xf32>
    %75 = vector.broadcast %74 : vector<256x1xf32> to vector<256x256xf32>
    %76 = vector.broadcast %72 : vector<1x256xf32> to vector<256x256xf32>
    %77 = arith.mulf %75, %76 : vector<256x256xf32>
    %78 = arith.addf %71, %77 : vector<256x256xf32>
    %c2_43 = arith.constant 2 : index
    %c0_44 = arith.constant 0 : index
    %79 = vector.load %arg4[%c2_43, %c0_44] : memref<9x256xf32, #tpu.memory_space<vmem>>, vector<1x256xf32>
    %c0_45 = arith.constant 0 : index
    %c1_46 = arith.constant 1 : index
    %c0_47 = arith.constant 0 : index
    %80 = vector.load %arg3[%c0_45, %c1_46, %c0_47] : memref<1x304x1xf32, #tpu.memory_space<vmem>>, vector<1x256x1xf32>
    %81 = vector.shape_cast %80 : vector<1x256x1xf32> to vector<256x1xf32>
    %82 = vector.broadcast %81 : vector<256x1xf32> to vector<256x256xf32>
    %83 = vector.broadcast %79 : vector<1x256xf32> to vector<256x256xf32>
    %84 = arith.mulf %82, %83 : vector<256x256xf32>
    %85 = arith.addf %78, %84 : vector<256x256xf32>
    %c3_48 = arith.constant 3 : index
    %c0_49 = arith.constant 0 : index
    %86 = vector.load %arg4[%c3_48, %c0_49] : memref<9x256xf32, #tpu.memory_space<vmem>>, vector<1x256xf32>
    %c0_50 = arith.constant 0 : index
    %c16_51 = arith.constant 16 : index
    %c0_52 = arith.constant 0 : index
    %87 = vector.load %arg3[%c0_50, %c16_51, %c0_52] : memref<1x304x1xf32, #tpu.memory_space<vmem>>, vector<1x256x1xf32>
    %88 = vector.shape_cast %87 : vector<1x256x1xf32> to vector<256x1xf32>
    %89 = vector.broadcast %88 : vector<256x1xf32> to vector<256x256xf32>
    %90 = vector.broadcast %86 : vector<1x256xf32> to vector<256x256xf32>
    %91 = arith.mulf %89, %90 : vector<256x256xf32>
    %92 = arith.addf %85, %91 : vector<256x256xf32>
    %c4_53 = arith.constant 4 : index
    %c0_54 = arith.constant 0 : index
    %93 = vector.load %arg4[%c4_53, %c0_54] : memref<9x256xf32, #tpu.memory_space<vmem>>, vector<1x256xf32>
    %c0_55 = arith.constant 0 : index
    %c17_56 = arith.constant 17 : index
    %c0_57 = arith.constant 0 : index
    %94 = vector.load %arg2[%c0_55, %c17_56, %c0_57] : memref<1x304x1xf32, #tpu.memory_space<vmem>>, vector<1x256x1xf32>
    %95 = vector.shape_cast %94 : vector<1x256x1xf32> to vector<256x1xf32>
    %96 = vector.broadcast %95 : vector<256x1xf32> to vector<256x256xf32>
    %97 = vector.broadcast %93 : vector<1x256xf32> to vector<256x256xf32>
    %98 = arith.mulf %96, %97 : vector<256x256xf32>
    %99 = arith.addf %92, %98 : vector<256x256xf32>
    %c5_58 = arith.constant 5 : index
    %c0_59 = arith.constant 0 : index
    %100 = vector.load %arg4[%c5_58, %c0_59] : memref<9x256xf32, #tpu.memory_space<vmem>>, vector<1x256xf32>
    %c0_60 = arith.constant 0 : index
    %c17_61 = arith.constant 17 : index
    %c0_62 = arith.constant 0 : index
    %101 = vector.load %arg3[%c0_60, %c17_61, %c0_62] : memref<1x304x1xf32, #tpu.memory_space<vmem>>, vector<1x256x1xf32>
    %102 = vector.shape_cast %101 : vector<1x256x1xf32> to vector<256x1xf32>
    %103 = vector.broadcast %102 : vector<256x1xf32> to vector<256x256xf32>
    %104 = vector.broadcast %100 : vector<1x256xf32> to vector<256x256xf32>
    %105 = arith.mulf %103, %104 : vector<256x256xf32>
    %106 = arith.addf %99, %105 : vector<256x256xf32>
    %c6_63 = arith.constant 6 : index
    %c0_64 = arith.constant 0 : index
    %107 = vector.load %arg4[%c6_63, %c0_64] : memref<9x256xf32, #tpu.memory_space<vmem>>, vector<1x256xf32>
    %c0_65 = arith.constant 0 : index
    %c32_66 = arith.constant 32 : index
    %c0_67 = arith.constant 0 : index
    %108 = vector.load %arg3[%c0_65, %c32_66, %c0_67] : memref<1x304x1xf32, #tpu.memory_space<vmem>>, vector<1x256x1xf32>
    %109 = vector.shape_cast %108 : vector<1x256x1xf32> to vector<256x1xf32>
    %110 = vector.broadcast %109 : vector<256x1xf32> to vector<256x256xf32>
    %111 = vector.broadcast %107 : vector<1x256xf32> to vector<256x256xf32>
    %112 = arith.mulf %110, %111 : vector<256x256xf32>
    %113 = arith.addf %106, %112 : vector<256x256xf32>
    %c7_68 = arith.constant 7 : index
    %c0_69 = arith.constant 0 : index
    %114 = vector.load %arg4[%c7_68, %c0_69] : memref<9x256xf32, #tpu.memory_space<vmem>>, vector<1x256xf32>
    %c0_70 = arith.constant 0 : index
    %c33_71 = arith.constant 33 : index
    %c0_72 = arith.constant 0 : index
    %115 = vector.load %arg2[%c0_70, %c33_71, %c0_72] : memref<1x304x1xf32, #tpu.memory_space<vmem>>, vector<1x256x1xf32>
    %116 = vector.shape_cast %115 : vector<1x256x1xf32> to vector<256x1xf32>
    %117 = vector.broadcast %116 : vector<256x1xf32> to vector<256x256xf32>
    %118 = vector.broadcast %114 : vector<1x256xf32> to vector<256x256xf32>
    %119 = arith.mulf %117, %118 : vector<256x256xf32>
    %120 = arith.addf %113, %119 : vector<256x256xf32>
    %c8_73 = arith.constant 8 : index
    %c0_74 = arith.constant 0 : index
    %121 = vector.load %arg4[%c8_73, %c0_74] : memref<9x256xf32, #tpu.memory_space<vmem>>, vector<1x256xf32>
    %c0_75 = arith.constant 0 : index
    %c33_76 = arith.constant 33 : index
    %c0_77 = arith.constant 0 : index
    %122 = vector.load %arg3[%c0_75, %c33_76, %c0_77] : memref<1x304x1xf32, #tpu.memory_space<vmem>>, vector<1x256x1xf32>
    %123 = vector.shape_cast %122 : vector<1x256x1xf32> to vector<256x1xf32>
    %124 = vector.broadcast %123 : vector<256x1xf32> to vector<256x256xf32>
    %125 = vector.broadcast %121 : vector<1x256xf32> to vector<256x256xf32>
    %126 = arith.mulf %124, %125 : vector<256x256xf32>
    %127 = arith.addf %120, %126 : vector<256x256xf32>
    %128 = arith.maximumf %63, %127 : vector<256x256xf32>
    %c0_78 = arith.constant 0 : index
    %c0_79 = arith.constant 0 : index
    %129 = vector.load %arg5[%c0_78, %c0_79] : memref<1x256xf32, #tpu.memory_space<vmem>>, vector<1x256xf32>
    %130 = vector.broadcast %129 : vector<1x256xf32> to vector<256x256xf32>
    %131 = arith.addf %128, %130 : vector<256x256xf32>
    %cst_80 = arith.constant 0.000000e+00 : f32
    %132 = vector.broadcast %cst_80 : f32 to vector<256x256xf32>
    %133 = arith.maximumf %131, %132 : vector<256x256xf32>
    %134 = vector.shape_cast %133 : vector<256x256xf32> to vector<8x32x256xf32>
    %135 = vector.extract_strided_slice %134 {offsets = [0, 0, 0], sizes = [8, 8, 256], strides = [1, 1, 1]} : vector<8x32x256xf32> to vector<8x8x256xf32>
    %136 = vector.extract_strided_slice %134 {offsets = [0, 16, 0], sizes = [8, 8, 256], strides = [1, 1, 1]} : vector<8x32x256xf32> to vector<8x8x256xf32>
    %137 = arith.maximumf %135, %136 : vector<8x8x256xf32>
    %138 = arith.truncf %137 : vector<8x8x256xf32> to vector<8x8x256xbf16>
    %c0_81 = arith.constant 0 : index
    %c0_82 = arith.constant 0 : index
    %c0_83 = arith.constant 0 : index
    %c0_84 = arith.constant 0 : index
    %139 = vector.load %arg6[%c0_81, %c0_82, %c0_83, %c0_84] : memref<1x8x8x256xbf16, #tpu.memory_space<vmem>>, vector<1x8x8x256xbf16>
    %140 = vector.shape_cast %139 : vector<1x8x8x256xbf16> to vector<8x8x256xbf16>
    %141 = vector.shape_cast %138 : vector<8x8x256xbf16> to vector<1x8x8x256xbf16>
    tpu.vector_store %arg6[%c0_81, %c0_82, %c0_83, %c0_84], %141 {strides = array<i32>} : memref<1x8x8x256xbf16, #tpu.memory_space<vmem>>, vector<1x8x8x256xbf16>,
    return
  }
  func.func @transform_0(%arg0: i32, %arg1: i32) -> (i32, i32, i32) {
    %c0_i32 = arith.constant 0 : i32
    %c0_i32_0 = arith.constant 0 : i32
    %c0_i32_1 = arith.constant 0 : i32
    return %arg0, %c0_i32, %c0_i32_0 : i32, i32, i32
  }
  func.func @transform_1(%arg0: i32, %arg1: i32) -> (i32, i32, i32) {
    %c0_i32 = arith.constant 0 : i32
    %c0_i32_0 = arith.constant 0 : i32
    %c0_i32_1 = arith.constant 0 : i32
    return %arg0, %c0_i32, %c0_i32_0 : i32, i32, i32
  }
  func.func @transform_2(%arg0: i32, %arg1: i32) -> (i32, i32) {
    %c0_i32 = arith.constant 0 : i32
    %c0_i32_0 = arith.constant 0 : i32
    return %c0_i32, %arg1 : i32, i32
  }
  func.func @transform_3(%arg0: i32, %arg1: i32) -> (i32, i32) {
    %c0_i32 = arith.constant 0 : i32
    %c0_i32_0 = arith.constant 0 : i32
    return %c0_i32, %arg1 : i32, i32
  }
  func.func @transform_4(%arg0: i32, %arg1: i32) -> (i32, i32, i32, i32) {
    %c0_i32 = arith.constant 0 : i32
    %c0_i32_0 = arith.constant 0 : i32
    %c0_i32_1 = arith.constant 0 : i32
    return %arg0, %c0_i32, %c0_i32_0, %arg1 : i32, i32, i32, i32
  }
}

module attributes {stable_mosaic.version = 11 : i64} {
  func.func @_conv_relu_pool_kernel(%arg0: i32, %arg1: i32, %arg2: memref<1x88x256xbf16, #tpu.memory_space<vmem>>, %arg3: memref<1x88x256xbf16, #tpu.memory_space<vmem>>, %arg4: memref<2304x128xbf16, #tpu.memory_space<vmem>>, %arg5: memref<1x128xf32, #tpu.memory_space<vmem>>, %arg6: memref<1x4x4x128xbf16, #tpu.memory_space<vmem>>) attributes {dimension_semantics = [#tpu.dimension_semantics<parallel>, #tpu.dimension_semantics<parallel>], iteration_bounds = array<i64: 2, 1>, scalar_prefetch = 0 : i64, scratch_operands = 0 : i64, tpu.core_type = #tpu.core_type<tc>, window_params = [{transform_indices = @transform_0, window_bounds = array<i64: 1, 88, 256>}, {transform_indices = @transform_1, window_bounds = array<i64: 1, 88, 256>}, {transform_indices = @transform_2, window_bounds = array<i64: 2304, 128>}, {transform_indices = @transform_3, window_bounds = array<i64: 1, 128>}, {transform_indices = @transform_4, window_bounds = array<i64: 1, 4, 4, 128>}]} {
    %c0 = arith.constant 0 : index
    %c0_0 = arith.constant 0 : index
    %c0_1 = arith.constant 0 : index
    %0 = vector.load %arg2[%c0, %c0_0, %c0_1] : memref<1x88x256xbf16, #tpu.memory_space<vmem>>, vector<1x64x256xbf16>
    %1 = vector.shape_cast %0 : vector<1x64x256xbf16> to vector<64x256xbf16>
    %c0_2 = arith.constant 0 : index
    %c0_3 = arith.constant 0 : index
    %c0_4 = arith.constant 0 : index
    %2 = vector.load %arg3[%c0_2, %c0_3, %c0_4] : memref<1x88x256xbf16, #tpu.memory_space<vmem>>, vector<1x64x256xbf16>
    %3 = vector.shape_cast %2 : vector<1x64x256xbf16> to vector<64x256xbf16>
    %c0_5 = arith.constant 0 : index
    %c1 = arith.constant 1 : index
    %c0_6 = arith.constant 0 : index
    %4 = vector.load %arg2[%c0_5, %c1, %c0_6] : memref<1x88x256xbf16, #tpu.memory_space<vmem>>, vector<1x64x256xbf16>
    %5 = vector.shape_cast %4 : vector<1x64x256xbf16> to vector<64x256xbf16>
    %c0_7 = arith.constant 0 : index
    %c8 = arith.constant 8 : index
    %c0_8 = arith.constant 0 : index
    %6 = vector.load %arg2[%c0_7, %c8, %c0_8] : memref<1x88x256xbf16, #tpu.memory_space<vmem>>, vector<1x64x256xbf16>
    %7 = vector.shape_cast %6 : vector<1x64x256xbf16> to vector<64x256xbf16>
    %c0_9 = arith.constant 0 : index
    %c8_10 = arith.constant 8 : index
    %c0_11 = arith.constant 0 : index
    %8 = vector.load %arg3[%c0_9, %c8_10, %c0_11] : memref<1x88x256xbf16, #tpu.memory_space<vmem>>, vector<1x64x256xbf16>
    %9 = vector.shape_cast %8 : vector<1x64x256xbf16> to vector<64x256xbf16>
    %c0_12 = arith.constant 0 : index
    %c9 = arith.constant 9 : index
    %c0_13 = arith.constant 0 : index
    %10 = vector.load %arg2[%c0_12, %c9, %c0_13] : memref<1x88x256xbf16, #tpu.memory_space<vmem>>, vector<1x64x256xbf16>
    %11 = vector.shape_cast %10 : vector<1x64x256xbf16> to vector<64x256xbf16>
    %c0_14 = arith.constant 0 : index
    %c16 = arith.constant 16 : index
    %c0_15 = arith.constant 0 : index
    %12 = vector.load %arg2[%c0_14, %c16, %c0_15] : memref<1x88x256xbf16, #tpu.memory_space<vmem>>, vector<1x64x256xbf16>
    %13 = vector.shape_cast %12 : vector<1x64x256xbf16> to vector<64x256xbf16>
    %c0_16 = arith.constant 0 : index
    %c16_17 = arith.constant 16 : index
    %c0_18 = arith.constant 0 : index
    %14 = vector.load %arg3[%c0_16, %c16_17, %c0_18] : memref<1x88x256xbf16, #tpu.memory_space<vmem>>, vector<1x64x256xbf16>
    %15 = vector.shape_cast %14 : vector<1x64x256xbf16> to vector<64x256xbf16>
    %c0_19 = arith.constant 0 : index
    %c17 = arith.constant 17 : index
    %c0_20 = arith.constant 0 : index
    %16 = vector.load %arg2[%c0_19, %c17, %c0_20] : memref<1x88x256xbf16, #tpu.memory_space<vmem>>, vector<1x64x256xbf16>
    %17 = vector.shape_cast %16 : vector<1x64x256xbf16> to vector<64x256xbf16>
    %18 = tpu.concatenate %1, %3, %5, %7, %9, %11, %13, %15, %17 in 1 : vector<64x256xbf16>, vector<64x256xbf16>, vector<64x256xbf16>, vector<64x256xbf16>, vector<64x256xbf16>, vector<64x256xbf16>, vector<64x256xbf16>, vector<64x256xbf16>, vector<64x256xbf16> -> vector<64x2304xbf16>
    %c0_21 = arith.constant 0 : index
    %c0_22 = arith.constant 0 : index
    %c0_23 = arith.constant 0 : index
    %19 = vector.load %arg3[%c0_21, %c0_22, %c0_23] : memref<1x88x256xbf16, #tpu.memory_space<vmem>>, vector<1x64x256xbf16>
    %20 = vector.shape_cast %19 : vector<1x64x256xbf16> to vector<64x256xbf16>
    %c0_24 = arith.constant 0 : index
    %c1_25 = arith.constant 1 : index
    %c0_26 = arith.constant 0 : index
    %21 = vector.load %arg2[%c0_24, %c1_25, %c0_26] : memref<1x88x256xbf16, #tpu.memory_space<vmem>>, vector<1x64x256xbf16>
    %22 = vector.shape_cast %21 : vector<1x64x256xbf16> to vector<64x256xbf16>
    %c0_27 = arith.constant 0 : index
    %c1_28 = arith.constant 1 : index
    %c0_29 = arith.constant 0 : index
    %23 = vector.load %arg3[%c0_27, %c1_28, %c0_29] : memref<1x88x256xbf16, #tpu.memory_space<vmem>>, vector<1x64x256xbf16>
    %24 = vector.shape_cast %23 : vector<1x64x256xbf16> to vector<64x256xbf16>
    %c0_30 = arith.constant 0 : index
    %c8_31 = arith.constant 8 : index
    %c0_32 = arith.constant 0 : index
    %25 = vector.load %arg3[%c0_30, %c8_31, %c0_32] : memref<1x88x256xbf16, #tpu.memory_space<vmem>>, vector<1x64x256xbf16>
    %26 = vector.shape_cast %25 : vector<1x64x256xbf16> to vector<64x256xbf16>
    %c0_33 = arith.constant 0 : index
    %c9_34 = arith.constant 9 : index
    %c0_35 = arith.constant 0 : index
    %27 = vector.load %arg2[%c0_33, %c9_34, %c0_35] : memref<1x88x256xbf16, #tpu.memory_space<vmem>>, vector<1x64x256xbf16>
    %28 = vector.shape_cast %27 : vector<1x64x256xbf16> to vector<64x256xbf16>
    %c0_36 = arith.constant 0 : index
    %c9_37 = arith.constant 9 : index
    %c0_38 = arith.constant 0 : index
    %29 = vector.load %arg3[%c0_36, %c9_37, %c0_38] : memref<1x88x256xbf16, #tpu.memory_space<vmem>>, vector<1x64x256xbf16>
    %30 = vector.shape_cast %29 : vector<1x64x256xbf16> to vector<64x256xbf16>
    %c0_39 = arith.constant 0 : index
    %c16_40 = arith.constant 16 : index
    %c0_41 = arith.constant 0 : index
    %31 = vector.load %arg3[%c0_39, %c16_40, %c0_41] : memref<1x88x256xbf16, #tpu.memory_space<vmem>>, vector<1x64x256xbf16>
    %32 = vector.shape_cast %31 : vector<1x64x256xbf16> to vector<64x256xbf16>
    %c0_42 = arith.constant 0 : index
    %c17_43 = arith.constant 17 : index
    %c0_44 = arith.constant 0 : index
    %33 = vector.load %arg2[%c0_42, %c17_43, %c0_44] : memref<1x88x256xbf16, #tpu.memory_space<vmem>>, vector<1x64x256xbf16>
    %34 = vector.shape_cast %33 : vector<1x64x256xbf16> to vector<64x256xbf16>
    %c0_45 = arith.constant 0 : index
    %c17_46 = arith.constant 17 : index
    %c0_47 = arith.constant 0 : index
    %35 = vector.load %arg3[%c0_45, %c17_46, %c0_47] : memref<1x88x256xbf16, #tpu.memory_space<vmem>>, vector<1x64x256xbf16>
    %36 = vector.shape_cast %35 : vector<1x64x256xbf16> to vector<64x256xbf16>
    %37 = tpu.concatenate %20, %22, %24, %26, %28, %30, %32, %34, %36 in 1 : vector<64x256xbf16>, vector<64x256xbf16>, vector<64x256xbf16>, vector<64x256xbf16>, vector<64x256xbf16>, vector<64x256xbf16>, vector<64x256xbf16>, vector<64x256xbf16>, vector<64x256xbf16> -> vector<64x2304xbf16>
    %38 = tpu.concatenate %18, %37 in 0 : vector<64x2304xbf16>, vector<64x2304xbf16> -> vector<128x2304xbf16>
    %c0_48 = arith.constant 0 : index
    %c0_49 = arith.constant 0 : index
    %39 = vector.load %arg4[%c0_48, %c0_49] : memref<2304x128xbf16, #tpu.memory_space<vmem>>, vector<2304x128xbf16>
    %cst = arith.constant dense<0.000000e+00> : vector<128x128xf32>
    %40 = tpu.matmul %38, %39, %cst {dimension_numbers = #tpu.dot_dimension_numbers<[1], [0], [0], [1], [0, 0, 1, 1], [], []>} : vector<128x2304xbf16>, vector<2304x128xbf16>, vector<128x128xf32> -> vector<128x128xf32>
    %41 = vector.extract_strided_slice %40 {offsets = [0, 0], sizes = [64, 128], strides = [1, 1]} : vector<128x128xf32> to vector<64x128xf32>
    %42 = vector.extract_strided_slice %40 {offsets = [64, 0], sizes = [64, 128], strides = [1, 1]} : vector<128x128xf32> to vector<64x128xf32>
    %43 = arith.maximumf %41, %42 : vector<64x128xf32>
    %c0_50 = arith.constant 0 : index
    %c0_51 = arith.constant 0 : index
    %44 = vector.load %arg5[%c0_50, %c0_51] : memref<1x128xf32, #tpu.memory_space<vmem>>, vector<1x128xf32>
    %45 = vector.broadcast %44 : vector<1x128xf32> to vector<64x128xf32>
    %46 = arith.addf %43, %45 : vector<64x128xf32>
    %cst_52 = arith.constant 0.000000e+00 : f32
    %47 = vector.broadcast %cst_52 : f32 to vector<64x128xf32>
    %48 = arith.maximumf %46, %47 : vector<64x128xf32>
    %49 = vector.shape_cast %48 : vector<64x128xf32> to vector<4x16x128xf32>
    %50 = vector.extract_strided_slice %49 {offsets = [0, 0, 0], sizes = [4, 4, 128], strides = [1, 1, 1]} : vector<4x16x128xf32> to vector<4x4x128xf32>
    %51 = vector.extract_strided_slice %49 {offsets = [0, 8, 0], sizes = [4, 4, 128], strides = [1, 1, 1]} : vector<4x16x128xf32> to vector<4x4x128xf32>
    %52 = arith.maximumf %50, %51 : vector<4x4x128xf32>
    %53 = arith.truncf %52 : vector<4x4x128xf32> to vector<4x4x128xbf16>
    %c0_53 = arith.constant 0 : index
    %c0_54 = arith.constant 0 : index
    %c0_55 = arith.constant 0 : index
    %c0_56 = arith.constant 0 : index
    %54 = vector.load %arg6[%c0_53, %c0_54, %c0_55, %c0_56] : memref<1x4x4x128xbf16, #tpu.memory_space<vmem>>, vector<1x4x4x128xbf16>
    %55 = vector.shape_cast %54 : vector<1x4x4x128xbf16> to vector<4x4x128xbf16>
    %56 = vector.shape_cast %53 : vector<4x4x128xbf16> to vector<1x4x4x128xbf16>
    tpu.vector_store %arg6[%c0_53, %c0_54, %c0_55, %c0_56], %56 {strides = array<i32>} : memref<1x4x4x128xbf16, #tpu.memory_space<vmem>>, vector<1x4x4x128xbf16>,
    return
  }
  func.func @transform_0(%arg0: i32, %arg1: i32) -> (i32, i32, i32) {
    %c0_i32 = arith.constant 0 : i32
    %c0_i32_0 = arith.constant 0 : i32
    %c0_i32_1 = arith.constant 0 : i32
    return %arg0, %c0_i32, %c0_i32_0 : i32, i32, i32
  }
  func.func @transform_1(%arg0: i32, %arg1: i32) -> (i32, i32, i32) {
    %c0_i32 = arith.constant 0 : i32
    %c0_i32_0 = arith.constant 0 : i32
    %c0_i32_1 = arith.constant 0 : i32
    return %arg0, %c0_i32, %c0_i32_0 : i32, i32, i32
  }
  func.func @transform_2(%arg0: i32, %arg1: i32) -> (i32, i32) {
    %c0_i32 = arith.constant 0 : i32
    %c0_i32_0 = arith.constant 0 : i32
    return %c0_i32, %arg1 : i32, i32
  }
  func.func @transform_3(%arg0: i32, %arg1: i32) -> (i32, i32) {
    %c0_i32 = arith.constant 0 : i32
    %c0_i32_0 = arith.constant 0 : i32
    return %c0_i32, %arg1 : i32, i32
  }
  func.func @transform_4(%arg0: i32, %arg1: i32) -> (i32, i32, i32, i32) {
    %c0_i32 = arith.constant 0 : i32
    %c0_i32_0 = arith.constant 0 : i32
    %c0_i32_1 = arith.constant 0 : i32
    return %arg0, %c0_i32, %c0_i32_0, %arg1 : i32, i32, i32, i32
  }
}

module attributes {stable_mosaic.version = 11 : i64} {
  func.func @_head_kernel(%arg0: i32, %arg1: memref<2x2048xbf16, #tpu.memory_space<vmem>>, %arg2: memref<2048x128xbf16, #tpu.memory_space<vmem>>, %arg3: memref<1x128xf32, #tpu.memory_space<vmem>>, %arg4: memref<128x64xf32, #tpu.memory_space<vmem>>, %arg5: memref<1x64xf32, #tpu.memory_space<vmem>>, %arg6: memref<64x64xf32, #tpu.memory_space<vmem>>, %arg7: memref<1x64xf32, #tpu.memory_space<vmem>>, %arg8: memref<2x64xf32, #tpu.memory_space<vmem>>, %arg9: memref<2x128xf32, #tpu.memory_space<vmem>>) attributes {dimension_semantics = [#tpu.dimension_semantics<arbitrary>], iteration_bounds = array<i64: 1>, scalar_prefetch = 0 : i64, scratch_operands = 1 : i64, tpu.core_type = #tpu.core_type<tc>, window_params = [{transform_indices = @transform_0, window_bounds = array<i64: 2, 2048>}, {transform_indices = @transform_1, window_bounds = array<i64: 2048, 128>}, {pipeline_mode = #tpu.pipeline_mode<synchronous>, transform_indices = @transform_2, window_bounds = array<i64: 1, 128>}, {pipeline_mode = #tpu.pipeline_mode<synchronous>, transform_indices = @transform_3, window_bounds = array<i64: 128, 64>}, {pipeline_mode = #tpu.pipeline_mode<synchronous>, transform_indices = @transform_4, window_bounds = array<i64: 1, 64>}, {pipeline_mode = #tpu.pipeline_mode<synchronous>, transform_indices = @transform_5, window_bounds = array<i64: 64, 64>}, {pipeline_mode = #tpu.pipeline_mode<synchronous>, transform_indices = @transform_6, window_bounds = array<i64: 1, 64>}, {pipeline_mode = #tpu.pipeline_mode<synchronous>, transform_indices = @transform_7, window_bounds = array<i64: 2, 64>}]} {
    %c0_i32 = arith.constant 0 : i32
    %0 = arith.cmpi eq, %arg0, %c0_i32 : i32
    %1 = arith.extui %0 : i1 to i32
    %c0_i32_0 = arith.constant 0 : i32
    %2 = arith.cmpi ne, %1, %c0_i32_0 : i32
    scf.if %2 {
      %cst_10 = arith.constant 0.000000e+00 : f32
      %12 = vector.broadcast %cst_10 : f32 to vector<2x128xf32>
      %c0_11 = arith.constant 0 : index
      %c0_12 = arith.constant 0 : index
      %13 = vector.load %arg9[%c0_11, %c0_12] : memref<2x128xf32, #tpu.memory_space<vmem>>, vector<2x128xf32>
      tpu.vector_store %arg9[%c0_11, %c0_12], %12 {strides = array<i32>} : memref<2x128xf32, #tpu.memory_space<vmem>>, vector<2x128xf32>,
    } else {
    }
    %c0 = arith.constant 0 : index
    %c0_1 = arith.constant 0 : index
    %3 = vector.load %arg9[%c0, %c0_1] : memref<2x128xf32, #tpu.memory_space<vmem>>, vector<2x128xf32>
    %c0_2 = arith.constant 0 : index
    %c0_3 = arith.constant 0 : index
    %4 = vector.load %arg1[%c0_2, %c0_3] : memref<2x2048xbf16, #tpu.memory_space<vmem>>, vector<2x2048xbf16>
    %c0_4 = arith.constant 0 : index
    %c0_5 = arith.constant 0 : index
    %5 = vector.load %arg2[%c0_4, %c0_5] : memref<2048x128xbf16, #tpu.memory_space<vmem>>, vector<2048x128xbf16>
    %cst = arith.constant dense<0.000000e+00> : vector<2x128xf32>
    %6 = tpu.matmul %4, %5, %cst {dimension_numbers = #tpu.dot_dimension_numbers<[1], [0], [0], [1], [0, 0, 1, 1], [], []>} : vector<2x2048xbf16>, vector<2048x128xbf16>, vector<2x128xf32> -> vector<2x128xf32>
    %7 = arith.addf %3, %6 : vector<2x128xf32>
    %c0_6 = arith.constant 0 : index
    %c0_7 = arith.constant 0 : index
    %8 = vector.load %arg9[%c0_6, %c0_7] : memref<2x128xf32, #tpu.memory_space<vmem>>, vector<2x128xf32>
    tpu.vector_store %arg9[%c0_6, %c0_7], %7 {strides = array<i32>} : memref<2x128xf32, #tpu.memory_space<vmem>>, vector<2x128xf32>,
    %c0_i32_8 = arith.constant 0 : i32
    %9 = arith.cmpi eq, %arg0, %c0_i32_8 : i32
    %10 = arith.extui %9 : i1 to i32
    %c0_i32_9 = arith.constant 0 : i32
    %11 = arith.cmpi ne, %10, %c0_i32_9 : i32
    scf.if %11 {
      %c0_10 = arith.constant 0 : index
      %c0_11 = arith.constant 0 : index
      %12 = vector.load %arg9[%c0_10, %c0_11] : memref<2x128xf32, #tpu.memory_space<vmem>>, vector<2x128xf32>
      %c0_12 = arith.constant 0 : index
      %c0_13 = arith.constant 0 : index
      %13 = vector.load %arg3[%c0_12, %c0_13] : memref<1x128xf32, #tpu.memory_space<vmem>>, vector<1x128xf32>
      %14 = vector.broadcast %13 : vector<1x128xf32> to vector<2x128xf32>
      %15 = arith.addf %12, %14 : vector<2x128xf32>
      %cst_14 = arith.constant 0.000000e+00 : f32
      %16 = vector.broadcast %cst_14 : f32 to vector<2x128xf32>
      %17 = arith.maximumf %15, %16 : vector<2x128xf32>
      %c0_15 = arith.constant 0 : index
      %c0_16 = arith.constant 0 : index
      %18 = vector.load %arg4[%c0_15, %c0_16] : memref<128x64xf32, #tpu.memory_space<vmem>>, vector<128x64xf32>
      %cst_17 = arith.constant dense<0.000000e+00> : vector<2x64xf32>
      %19 = tpu.matmul %17, %18, %cst_17 {dimension_numbers = #tpu.dot_dimension_numbers<[1], [0], [0], [1], [0, 0, 1, 1], [], []>} : vector<2x128xf32>, vector<128x64xf32>, vector<2x64xf32> -> vector<2x64xf32>
      %c0_18 = arith.constant 0 : index
      %c0_19 = arith.constant 0 : index
      %20 = vector.load %arg5[%c0_18, %c0_19] : memref<1x64xf32, #tpu.memory_space<vmem>>, vector<1x64xf32>
      %21 = vector.broadcast %20 : vector<1x64xf32> to vector<2x64xf32>
      %22 = arith.addf %19, %21 : vector<2x64xf32>
      %cst_20 = arith.constant 0.000000e+00 : f32
      %23 = vector.broadcast %cst_20 : f32 to vector<2x64xf32>
      %24 = arith.maximumf %22, %23 : vector<2x64xf32>
      %c0_21 = arith.constant 0 : index
      %c0_22 = arith.constant 0 : index
      %25 = vector.load %arg6[%c0_21, %c0_22] : memref<64x64xf32, #tpu.memory_space<vmem>>, vector<64x64xf32>
      %cst_23 = arith.constant dense<0.000000e+00> : vector<2x64xf32>
      %26 = tpu.matmul %24, %25, %cst_23 {dimension_numbers = #tpu.dot_dimension_numbers<[1], [0], [0], [1], [0, 0, 1, 1], [], []>} : vector<2x64xf32>, vector<64x64xf32>, vector<2x64xf32> -> vector<2x64xf32>
      %c0_24 = arith.constant 0 : index
      %c0_25 = arith.constant 0 : index
      %27 = vector.load %arg7[%c0_24, %c0_25] : memref<1x64xf32, #tpu.memory_space<vmem>>, vector<1x64xf32>
      %28 = vector.broadcast %27 : vector<1x64xf32> to vector<2x64xf32>
      %29 = arith.addf %26, %28 : vector<2x64xf32>
      %30 = arith.mulf %29, %29 : vector<2x64xf32>
      %cst_26 = arith.constant dense<0.000000e+00> : vector<2xf32>
      %31 = vector.multi_reduction <add>, %30, %cst_26 [1] : vector<2x64xf32> to vector<2xf32>
      %32 = vector.shape_cast %31 : vector<2xf32> to vector<2x1xf32>
      %cst_27 = arith.constant 1.000000e-24 : f32
      %33 = vector.broadcast %cst_27 : f32 to vector<2x1xf32>
      %34 = arith.maximumf %32, %33 : vector<2x1xf32>
      %35 = math.rsqrt %34 : vector<2x1xf32>
      %36 = vector.broadcast %35 : vector<2x1xf32> to vector<2x64xf32>
      %37 = arith.mulf %29, %36 : vector<2x64xf32>
      %c0_28 = arith.constant 0 : index
      %c0_29 = arith.constant 0 : index
      %38 = vector.load %arg8[%c0_28, %c0_29] : memref<2x64xf32, #tpu.memory_space<vmem>>, vector<2x64xf32>
      tpu.vector_store %arg8[%c0_28, %c0_29], %37 {strides = array<i32>} : memref<2x64xf32, #tpu.memory_space<vmem>>, vector<2x64xf32>,
    } else {
    }
    return
  }
  func.func @transform_0(%arg0: i32) -> (i32, i32) {
    %c0_i32 = arith.constant 0 : i32
    %c0_i32_0 = arith.constant 0 : i32
    return %c0_i32, %arg0 : i32, i32
  }
  func.func @transform_1(%arg0: i32) -> (i32, i32) {
    %c0_i32 = arith.constant 0 : i32
    %c0_i32_0 = arith.constant 0 : i32
    return %arg0, %c0_i32 : i32, i32
  }
  func.func @transform_2(%arg0: i32) -> (i32, i32) {
    %c0_i32 = arith.constant 0 : i32
    %c0_i32_0 = arith.constant 0 : i32
    %c0_i32_1 = arith.constant 0 : i32
    return %c0_i32, %c0_i32_0 : i32, i32
  }
  func.func @transform_3(%arg0: i32) -> (i32, i32) {
    %c0_i32 = arith.constant 0 : i32
    %c0_i32_0 = arith.constant 0 : i32
    %c0_i32_1 = arith.constant 0 : i32
    return %c0_i32, %c0_i32_0 : i32, i32
  }
  func.func @transform_4(%arg0: i32) -> (i32, i32) {
    %c0_i32 = arith.constant 0 : i32
    %c0_i32_0 = arith.constant 0 : i32
    %c0_i32_1 = arith.constant 0 : i32
    return %c0_i32, %c0_i32_0 : i32, i32
  }
  func.func @transform_5(%arg0: i32) -> (i32, i32) {
    %c0_i32 = arith.constant 0 : i32
    %c0_i32_0 = arith.constant 0 : i32
    %c0_i32_1 = arith.constant 0 : i32
    return %c0_i32, %c0_i32_0 : i32, i32
  }
  func.func @transform_6(%arg0: i32) -> (i32, i32) {
    %c0_i32 = arith.constant 0 : i32
    %c0_i32_0 = arith.constant 0 : i32
    %c0_i32_1 = arith.constant 0 : i32
    return %c0_i32, %c0_i32_0 : i32, i32
  }
  func.func @transform_7(%arg0: i32) -> (i32, i32) {
    %c0_i32 = arith.constant 0 : i32
    %c0_i32_0 = arith.constant 0 : i32
    %c0_i32_1 = arith.constant 0 : i32
    return %c0_i32, %c0_i32_0 : i32, i32
  }
}

</mosaic_0001>

<llo_original>
// kernel: custom_cnn_forward.5
$region0: #{custom_cnn_forward.5}
  #allocation0 [shape = 'u32[]', space=smem, size = 0x4, offset = 0x4, fixed_abs, tag = 'smem constant byte address 0x4 - core index']
  #allocation1 [shape = 'u32[144,128]{1,0:T(1,128)}', space=vmem, size = 0x12000, scoped, tag = 'internal scratch']
  #allocation2 [shape = 'f32[2,128]{1,0:T(2,128)}', space=vmem, size = 0x400, scoped, tag = 'scratch operand']
  %s0 = inlined_call_operand.vmem [shape: bf16[2,2048], index: 0, kind: input, shape index: {}]
  %s1 = inlined_call_operand.vmem [shape: bf16[2048,128], index: 1, kind: input, shape index: {}]
  %s2 = inlined_call_operand.vmem [shape: f32[1,128], index: 2, kind: input, shape index: {}]
  %s3 = inlined_call_operand.vmem [shape: f32[128,64], index: 3, kind: input, shape index: {}]
  %s4 = inlined_call_operand.vmem [shape: f32[1,64], index: 4, kind: input, shape index: {}]
  %s5 = inlined_call_operand.vmem [shape: f32[64,64], index: 5, kind: input, shape index: {}]
  %s6 = inlined_call_operand.vmem [shape: f32[1,64], index: 6, kind: input, shape index: {}]
  %s7 = inlined_call_operand.hbm [shape: f32[2,64], index: 7, kind: output, shape index: {}]
  %s8 = sld [smem:[#allocation0]]
  $region46: #{custom_cnn_forward.5} parent=0
    _
  %s10 = ssub.s32 1, %s8
  %s11 = scalar_select 0, %s10, %s8
  $region1: #{custom_cnn_forward.5} parent=0
    #allocation3 [shape = 'u8[1024]{0}', space=vmem, size = 0x400, scoped, tag = 'output window, operand 0, single buffered']
    #allocation4 [shape = 's32[1]{0}', space=sflag, size = 0x4, scoped, tag = 'scoped memory for custom_cnn_forward.5']
    %12 = vsyncpa [#allocation4], 0
    // Predicated region
    $region2: #{custom_cnn_forward.5} parent=1 // pred_check
      _
    $region3: #{custom_cnn_forward.5} parent=1 // pred_check_branch
      %14 = sbr.rel (0) target = $region5
    $region4: #{custom_cnn_forward.5} parent=1 // pred_region
      _
    $region5: #{custom_cnn_forward.5} parent=1 // pred_fallthru
      _
    // Predicated region
    $region6: #{custom_cnn_forward.5} parent=1 // pred_check
      _
    $region7: #{custom_cnn_forward.5} parent=1 // pred_check_branch
      %16 = sbr.rel (0) target = $region9
    $region8: #{custom_cnn_forward.5} parent=1 // pred_region
      _
    $region9: #{custom_cnn_forward.5} parent=1 // pred_fallthru
      _
    // Predicated region
    $region10: #{custom_cnn_forward.5} parent=1 // pred_check
      _
    $region11: #{custom_cnn_forward.5} parent=1 // pred_check_branch
      %18 = sbr.rel (0) target = $region13
    $region12: #{custom_cnn_forward.5} parent=1 // pred_region
      _
    $region13: #{custom_cnn_forward.5} parent=1 // pred_fallthru
      _
    // Predicated region
    $region14: #{custom_cnn_forward.5} parent=1 // pred_check
      _
    $region15: #{custom_cnn_forward.5} parent=1 // pred_check_branch
      %20 = sbr.rel (0) target = $region17
    $region16: #{custom_cnn_forward.5} parent=1 // pred_region
      _
    $region17: #{custom_cnn_forward.5} parent=1 // pred_fallthru
      _
    // Predicated region
    $region18: #{custom_cnn_forward.5} parent=1 // pred_check
      _
    $region19: #{custom_cnn_forward.5} parent=1 // pred_check_branch
      %22 = sbr.rel (0) target = $region21
    $region20: #{custom_cnn_forward.5} parent=1 // pred_region
      _
    $region21: #{custom_cnn_forward.5} parent=1 // pred_fallthru
      _
    // Predicated region
    $region22: #{custom_cnn_forward.5} parent=1 // pred_check
      _
    $region23: #{custom_cnn_forward.5} parent=1 // pred_check_branch
      %24 = sbr.rel (0) target = $region25
    $region24: #{custom_cnn_forward.5} parent=1 // pred_region
      _
    $region25: #{custom_cnn_forward.5} parent=1 // pred_fallthru
      _
    // Predicated region
    $region26: #{custom_cnn_forward.5} parent=1 // pred_check
      _
    $region27: #{custom_cnn_forward.5} parent=1 // pred_check_branch
      %26 = sbr.rel (0) target = $region29
    $region28: #{custom_cnn_forward.5} parent=1 // pred_region
      _
    $region29: #{custom_cnn_forward.5} parent=1 // pred_fallthru
      _
    %p28 = scmp.eq.s32.totalorder 0, 0
    // Predicated region
    $region30: #{custom_cnn_forward.5} parent=1 // pred_check
      %p29 = pneg %p28
    $region31: #{custom_cnn_forward.5} parent=1 // pred_check_branch
      %31 = sbr.rel (%p29) target = $region33
    $region32: #{custom_cnn_forward.5} parent=1 // pred_region
      %32 = vst [vmem:[#allocation2] sm:$0x3] 0.0
    $region33: #{custom_cnn_forward.5} parent=1 // pred_fallthru
      _
    %v33 = vld [vmem:[#allocation2] sm:$0x3]
    %v34 = vld [vmem:[%s0] sm:$0xff]
    %v35 = vld [vmem:[%s0 + $0x8] sm:$0xff]
    %v36 = vld [vmem:[%s1] sm:$0xf]
    %v37 = vld [vmem:[%s1 + $0x4] sm:$0xf]
    %v38 = vld [vmem:[%s1 + $0x8] sm:$0xf]
    %v39 = vld [vmem:[%s1 + $0xc] sm:$0xf]
    %v40 = vld [vmem:[%s1 + $0x10] sm:$0xf]
    %v41 = vld [vmem:[%s1 + $0x14] sm:$0xf]
    %v42 = vld [vmem:[%s1 + $0x18] sm:$0xf]
    %v43 = vld [vmem:[%s1 + $0x1c] sm:$0xf]
    %v44 = vld [vmem:[%s1 + $0x20] sm:$0xf]
    %v45 = vld [vmem:[%s1 + $0x24] sm:$0xf]
    %v46 = vld [vmem:[%s1 + $0x28] sm:$0xf]
    %v47 = vld [vmem:[%s1 + $0x2c] sm:$0xf]
    %v48 = vld [vmem:[%s1 + $0x30] sm:$0xf]
    %v49 = vld [vmem:[%s1 + $0x34] sm:$0xf]
    %v50 = vld [vmem:[%s1 + $0x38] sm:$0xf]
    %v51 = vld [vmem:[%s1 + $0x3c] sm:$0xf]
    %v52 = vld [vmem:[%s1 + $0x40] sm:$0xf]
    %v53 = vld [vmem:[%s1 + $0x44] sm:$0xf]
    %v54 = vld [vmem:[%s1 + $0x48] sm:$0xf]
    %v55 = vld [vmem:[%s1 + $0x4c] sm:$0xf]
    %v56 = vld [vmem:[%s1 + $0x50] sm:$0xf]
    %v57 = vld [vmem:[%s1 + $0x54] sm:$0xf]
    %v58 = vld [vmem:[%s1 + $0x58] sm:$0xf]
    %v59 = vld [vmem:[%s1 + $0x5c] sm:$0xf]
    %v60 = vld [vmem:[%s1 + $0x60] sm:$0xf]
    %v61 = vld [vmem:[%s1 + $0x64] sm:$0xf]
    %v62 = vld [vmem:[%s1 + $0x68] sm:$0xf]
    %v63 = vld [vmem:[%s1 + $0x6c] sm:$0xf]
    %v64 = vld [vmem:[%s1 + $0x70] sm:$0xf]
    %v65 = vld [vmem:[%s1 + $0x74] sm:$0xf]
    %v66 = vld [vmem:[%s1 + $0x78] sm:$0xf]
    %v67 = vld [vmem:[%s1 + $0x7c] sm:$0xf]
    %v68 = vld [vmem:[%s1 + $0x80] sm:$0xf]
    %v69 = vld [vmem:[%s1 + $0x84] sm:$0xf]
    %v70 = vld [vmem:[%s1 + $0x88] sm:$0xf]
    %v71 = vld [vmem:[%s1 + $0x8c] sm:$0xf]
    %v72 = vld [vmem:[%s1 + $0x90] sm:$0xf]
    %v73 = vld [vmem:[%s1 + $0x94] sm:$0xf]
    %v74 = vld [vmem:[%s1 + $0x98] sm:$0xf]
    %v75 = vld [vmem:[%s1 + $0x9c] sm:$0xf]
    %v76 = vld [vmem:[%s1 + $0xa0] sm:$0xf]
    %v77 = vld [vmem:[%s1 + $0xa4] sm:$0xf]
    %v78 = vld [vmem:[%s1 + $0xa8] sm:$0xf]
    %v79 = vld [vmem:[%s1 + $0xac] sm:$0xf]
    %v80 = vld [vmem:[%s1 + $0xb0] sm:$0xf]
    %v81 = vld [vmem:[%s1 + $0xb4] sm:$0xf]
    %v82 = vld [vmem:[%s1 + $0xb8] sm:$0xf]
    %v83 = vld [vmem:[%s1 + $0xbc] sm:$0xf]
    %v84 = vld [vmem:[%s1 + $0xc0] sm:$0xf]
    %v85 = vld [vmem:[%s1 + $0xc4] sm:$0xf]
    %v86 = vld [vmem:[%s1 + $0xc8] sm:$0xf]
    %v87 = vld [vmem:[%s1 + $0xcc] sm:$0xf]
    %v88 = vld [vmem:[%s1 + $0xd0] sm:$0xf]
    %v89 = vld [vmem:[%s1 + $0xd4] sm:$0xf]
    %v90 = vld [vmem:[%s1 + $0xd8] sm:$0xf]
    %v91 = vld [vmem:[%s1 + $0xdc] sm:$0xf]
    %v92 = vld [vmem:[%s1 + $0xe0] sm:$0xf]
    %v93 = vld [vmem:[%s1 + $0xe4] sm:$0xf]
    %v94 = vld [vmem:[%s1 + $0xe8] sm:$0xf]
    %v95 = vld [vmem:[%s1 + $0xec] sm:$0xf]
    %v96 = vld [vmem:[%s1 + $0xf0] sm:$0xf]
    %v97 = vld [vmem:[%s1 + $0xf4] sm:$0xf]
    %v98 = vld [vmem:[%s1 + $0xf8] sm:$0xf]
    %v99 = vld [vmem:[%s1 + $0xfc] sm:$0xf]
    %v100 = vld [vmem:[%s1 + $0x100] sm:$0xf]
    %v101 = vld [vmem:[%s1 + $0x104] sm:$0xf]
    %v102 = vld [vmem:[%s1 + $0x108] sm:$0xf]
    %v103 = vld [vmem:[%s1 + $0x10c] sm:$0xf]
    %v104 = vld [vmem:[%s1 + $0x110] sm:$0xf]
    %v105 = vld [vmem:[%s1 + $0x114] sm:$0xf]
    %v106 = vld [vmem:[%s1 + $0x118] sm:$0xf]
    %v107 = vld [vmem:[%s1 + $0x11c] sm:$0xf]
    %v108 = vld [vmem:[%s1 + $0x120] sm:$0xf]
    %v109 = vld [vmem:[%s1 + $0x124] sm:$0xf]
    %v110 = vld [vmem:[%s1 + $0x128] sm:$0xf]
    %v111 = vld [vmem:[%s1 + $0x12c] sm:$0xf]
    %v112 = vld [vmem:[%s1 + $0x130] sm:$0xf]
    %v113 = vld [vmem:[%s1 + $0x134] sm:$0xf]
    %v114 = vld [vmem:[%s1 + $0x138] sm:$0xf]
    %v115 = vld [vmem:[%s1 + $0x13c] sm:$0xf]
    %v116 = vld [vmem:[%s1 + $0x140] sm:$0xf]
    %v117 = vld [vmem:[%s1 + $0x144] sm:$0xf]
    %v118 = vld [vmem:[%s1 + $0x148] sm:$0xf]
    %v119 = vld [vmem:[%s1 + $0x14c] sm:$0xf]
    %v120 = vld [vmem:[%s1 + $0x150] sm:$0xf]
    %v121 = vld [vmem:[%s1 + $0x154] sm:$0xf]
    %v122 = vld [vmem:[%s1 + $0x158] sm:$0xf]
    %v123 = vld [vmem:[%s1 + $0x15c] sm:$0xf]
    %v124 = vld [vmem:[%s1 + $0x160] sm:$0xf]
    %v125 = vld [vmem:[%s1 + $0x164] sm:$0xf]
    %v126 = vld [vmem:[%s1 + $0x168] sm:$0xf]
    %v127 = vld [vmem:[%s1 + $0x16c] sm:$0xf]
    %v128 = vld [vmem:[%s1 + $0x170] sm:$0xf]
    %v129 = vld [vmem:[%s1 + $0x174] sm:$0xf]
    %v130 = vld [vmem:[%s1 + $0x178] sm:$0xf]
    %v131 = vld [vmem:[%s1 + $0x17c] sm:$0xf]
    %v132 = vld [vmem:[%s1 + $0x180] sm:$0xf]
    %v133 = vld [vmem:[%s1 + $0x184] sm:$0xf]
    %v134 = vld [vmem:[%s1 + $0x188] sm:$0xf]
    %v135 = vld [vmem:[%s1 + $0x18c] sm:$0xf]
    %v136 = vld [vmem:[%s1 + $0x190] sm:$0xf]
    %v137 = vld [vmem:[%s1 + $0x194] sm:$0xf]
    %v138 = vld [vmem:[%s1 + $0x198] sm:$0xf]
    %v139 = vld [vmem:[%s1 + $0x19c] sm:$0xf]
    %v140 = vld [vmem:[%s1 + $0x1a0] sm:$0xf]
    %v141 = vld [vmem:[%s1 + $0x1a4] sm:$0xf]
    %v142 = vld [vmem:[%s1 + $0x1a8] sm:$0xf]
    %v143 = vld [vmem:[%s1 + $0x1ac] sm:$0xf]
    %v144 = vld [vmem:[%s1 + $0x1b0] sm:$0xf]
    %v145 = vld [vmem:[%s1 + $0x1b4] sm:$0xf]
    %v146 = vld [vmem:[%s1 + $0x1b8] sm:$0xf]
    %v147 = vld [vmem:[%s1 + $0x1bc] sm:$0xf]
    %v148 = vld [vmem:[%s1 + $0x1c0] sm:$0xf]
    %v149 = vld [vmem:[%s1 + $0x1c4] sm:$0xf]
    %v150 = vld [vmem:[%s1 + $0x1c8] sm:$0xf]
    %v151 = vld [vmem:[%s1 + $0x1cc] sm:$0xf]
    %v152 = vld [vmem:[%s1 + $0x1d0] sm:$0xf]
    %v153 = vld [vmem:[%s1 + $0x1d4] sm:$0xf]
    %v154 = vld [vmem:[%s1 + $0x1d8] sm:$0xf]
    %v155 = vld [vmem:[%s1 + $0x1dc] sm:$0xf]
    %v156 = vld [vmem:[%s1 + $0x1e0] sm:$0xf]
    %v157 = vld [vmem:[%s1 + $0x1e4] sm:$0xf]
    %v158 = vld [vmem:[%s1 + $0x1e8] sm:$0xf]
    %v159 = vld [vmem:[%s1 + $0x1ec] sm:$0xf]
    %v160 = vld [vmem:[%s1 + $0x1f0] sm:$0xf]
    %v161 = vld [vmem:[%s1 + $0x1f4] sm:$0xf]
    %v162 = vld [vmem:[%s1 + $0x1f8] sm:$0xf]
    %v163 = vld [vmem:[%s1 + $0x1fc] sm:$0xf]
    %v164 = vld [vmem:[%s1 + $0x200] sm:$0xf]
    %v165 = vld [vmem:[%s1 + $0x204] sm:$0xf]
    %v166 = vld [vmem:[%s1 + $0x208] sm:$0xf]
    %v167 = vld [vmem:[%s1 + $0x20c] sm:$0xf]
    %v168 = vld [vmem:[%s1 + $0x210] sm:$0xf]
    %v169 = vld [vmem:[%s1 + $0x214] sm:$0xf]
    %v170 = vld [vmem:[%s1 + $0x218] sm:$0xf]
    %v171 = vld [vmem:[%s1 + $0x21c] sm:$0xf]
    %v172 = vld [vmem:[%s1 + $0x220] sm:$0xf]
    %v173 = vld [vmem:[%s1 + $0x224] sm:$0xf]
    %v174 = vld [vmem:[%s1 + $0x228] sm:$0xf]
    %v175 = vld [vmem:[%s1 + $0x22c] sm:$0xf]
    %v176 = vld [vmem:[%s1 + $0x230] sm:$0xf]
    %v177 = vld [vmem:[%s1 + $0x234] sm:$0xf]
    %v178 = vld [vmem:[%s1 + $0x238] sm:$0xf]
    %v179 = vld [vmem:[%s1 + $0x23c] sm:$0xf]
    %v180 = vld [vmem:[%s1 + $0x240] sm:$0xf]
    %v181 = vld [vmem:[%s1 + $0x244] sm:$0xf]
    %v182 = vld [vmem:[%s1 + $0x248] sm:$0xf]
    %v183 = vld [vmem:[%s1 + $0x24c] sm:$0xf]
    %v184 = vld [vmem:[%s1 + $0x250] sm:$0xf]
    %v185 = vld [vmem:[%s1 + $0x254] sm:$0xf]
    %v186 = vld [vmem:[%s1 + $0x258] sm:$0xf]
    %v187 = vld [vmem:[%s1 + $0x25c] sm:$0xf]
    %v188 = vld [vmem:[%s1 + $0x260] sm:$0xf]
    %v189 = vld [vmem:[%s1 + $0x264] sm:$0xf]
    %v190 = vld [vmem:[%s1 + $0x268] sm:$0xf]
    %v191 = vld [vmem:[%s1 + $0x26c] sm:$0xf]
    %v192 = vld [vmem:[%s1 + $0x270] sm:$0xf]
    %v193 = vld [vmem:[%s1 + $0x274] sm:$0xf]
    %v194 = vld [vmem:[%s1 + $0x278] sm:$0xf]
    %v195 = vld [vmem:[%s1 + $0x27c] sm:$0xf]
    %v196 = vld [vmem:[%s1 + $0x280] sm:$0xf]
    %v197 = vld [vmem:[%s1 + $0x284] sm:$0xf]
    %v198 = vld [vmem:[%s1 + $0x288] sm:$0xf]
    %v199 = vld [vmem:[%s1 + $0x28c] sm:$0xf]
    %v200 = vld [vmem:[%s1 + $0x290] sm:$0xf]
    %v201 = vld [vmem:[%s1 + $0x294] sm:$0xf]
    %v202 = vld [vmem:[%s1 + $0x298] sm:$0xf]
    %v203 = vld [vmem:[%s1 + $0x29c] sm:$0xf]
    %v204 = vld [vmem:[%s1 + $0x2a0] sm:$0xf]
    %v205 = vld [vmem:[%s1 + $0x2a4] sm:$0xf]
    %v206 = vld [vmem:[%s1 + $0x2a8] sm:$0xf]
    %v207 = vld [vmem:[%s1 + $0x2ac] sm:$0xf]
    %v208 = vld [vmem:[%s1 + $0x2b0] sm:$0xf]
    %v209 = vld [vmem:[%s1 + $0x2b4] sm:$0xf]
    %v210 = vld [vmem:[%s1 + $0x2b8] sm:$0xf]
    %v211 = vld [vmem:[%s1 + $0x2bc] sm:$0xf]
    %v212 = vld [vmem:[%s1 + $0x2c0] sm:$0xf]
    %v213 = vld [vmem:[%s1 + $0x2c4] sm:$0xf]
    %v214 = vld [vmem:[%s1 + $0x2c8] sm:$0xf]
    %v215 = vld [vmem:[%s1 + $0x2cc] sm:$0xf]
    %v216 = vld [vmem:[%s1 + $0x2d0] sm:$0xf]
    %v217 = vld [vmem:[%s1 + $0x2d4] sm:$0xf]
    %v218 = vld [vmem:[%s1 + $0x2d8] sm:$0xf]
    %v219 = vld [vmem:[%s1 + $0x2dc] sm:$0xf]
    %v220 = vld [vmem:[%s1 + $0x2e0] sm:$0xf]
    %v221 = vld [vmem:[%s1 + $0x2e4] sm:$0xf]
    %v222 = vld [vmem:[%s1 + $0x2e8] sm:$0xf]
    %v223 = vld [vmem:[%s1 + $0x2ec] sm:$0xf]
    %v224 = vld [vmem:[%s1 + $0x2f0] sm:$0xf]
    %v225 = vld [vmem:[%s1 + $0x2f4] sm:$0xf]
    %v226 = vld [vmem:[%s1 + $0x2f8] sm:$0xf]
    %v227 = vld [vmem:[%s1 + $0x2fc] sm:$0xf]
    %v228 = vld [vmem:[%s1 + $0x300] sm:$0xf]
    %v229 = vld [vmem:[%s1 + $0x304] sm:$0xf]
    %v230 = vld [vmem:[%s1 + $0x308] sm:$0xf]
    %v231 = vld [vmem:[%s1 + $0x30c] sm:$0xf]
    %v232 = vld [vmem:[%s1 + $0x310] sm:$0xf]
    %v233 = vld [vmem:[%s1 + $0x314] sm:$0xf]
    %v234 = vld [vmem:[%s1 + $0x318] sm:$0xf]
    %v235 = vld [vmem:[%s1 + $0x31c] sm:$0xf]
    %v236 = vld [vmem:[%s1 + $0x320] sm:$0xf]
    %v237 = vld [vmem:[%s1 + $0x324] sm:$0xf]
    %v238 = vld [vmem:[%s1 + $0x328] sm:$0xf]
    %v239 = vld [vmem:[%s1 + $0x32c] sm:$0xf]
    %v240 = vld [vmem:[%s1 + $0x330] sm:$0xf]
    %v241 = vld [vmem:[%s1 + $0x334] sm:$0xf]
    %v242 = vld [vmem:[%s1 + $0x338] sm:$0xf]
    %v243 = vld [vmem:[%s1 + $0x33c] sm:$0xf]
    %v244 = vld [vmem:[%s1 + $0x340] sm:$0xf]
    %v245 = vld [vmem:[%s1 + $0x344] sm:$0xf]
    %v246 = vld [vmem:[%s1 + $0x348] sm:$0xf]
    %v247 = vld [vmem:[%s1 + $0x34c] sm:$0xf]
    %v248 = vld [vmem:[%s1 + $0x350] sm:$0xf]
    %v249 = vld [vmem:[%s1 + $0x354] sm:$0xf]
    %v250 = vld [vmem:[%s1 + $0x358] sm:$0xf]
    %v251 = vld [vmem:[%s1 + $0x35c] sm:$0xf]
    %v252 = vld [vmem:[%s1 + $0x360] sm:$0xf]
    %v253 = vld [vmem:[%s1 + $0x364] sm:$0xf]
    %v254 = vld [vmem:[%s1 + $0x368] sm:$0xf]
    %v255 = vld [vmem:[%s1 + $0x36c] sm:$0xf]
    %v256 = vld [vmem:[%s1 + $0x370] sm:$0xf]
    %v257 = vld [vmem:[%s1 + $0x374] sm:$0xf]
    %v258 = vld [vmem:[%s1 + $0x378] sm:$0xf]
    %v259 = vld [vmem:[%s1 + $0x37c] sm:$0xf]
    %v260 = vld [vmem:[%s1 + $0x380] sm:$0xf]
    %v261 = vld [vmem:[%s1 + $0x384] sm:$0xf]
    %v262 = vld [vmem:[%s1 + $0x388] sm:$0xf]
    %v263 = vld [vmem:[%s1 + $0x38c] sm:$0xf]
    %v264 = vld [vmem:[%s1 + $0x390] sm:$0xf]
    %v265 = vld [vmem:[%s1 + $0x394] sm:$0xf]
    %v266 = vld [vmem:[%s1 + $0x398] sm:$0xf]
    %v267 = vld [vmem:[%s1 + $0x39c] sm:$0xf]
    %v268 = vld [vmem:[%s1 + $0x3a0] sm:$0xf]
    %v269 = vld [vmem:[%s1 + $0x3a4] sm:$0xf]
    %v270 = vld [vmem:[%s1 + $0x3a8] sm:$0xf]
    %v271 = vld [vmem:[%s1 + $0x3ac] sm:$0xf]
    %v272 = vld [vmem:[%s1 + $0x3b0] sm:$0xf]
    %v273 = vld [vmem:[%s1 + $0x3b4] sm:$0xf]
    %v274 = vld [vmem:[%s1 + $0x3b8] sm:$0xf]
    %v275 = vld [vmem:[%s1 + $0x3bc] sm:$0xf]
    %v276 = vld [vmem:[%s1 + $0x3c0] sm:$0xf]
    %v277 = vld [vmem:[%s1 + $0x3c4] sm:$0xf]
    %v278 = vld [vmem:[%s1 + $0x3c8] sm:$0xf]
    %v279 = vld [vmem:[%s1 + $0x3cc] sm:$0xf]
    %v280 = vld [vmem:[%s1 + $0x3d0] sm:$0xf]
    %v281 = vld [vmem:[%s1 + $0x3d4] sm:$0xf]
    %v282 = vld [vmem:[%s1 + $0x3d8] sm:$0xf]
    %v283 = vld [vmem:[%s1 + $0x3dc] sm:$0xf]
    %v284 = vld [vmem:[%s1 + $0x3e0] sm:$0xf]
    %v285 = vld [vmem:[%s1 + $0x3e4] sm:$0xf]
    %v286 = vld [vmem:[%s1 + $0x3e8] sm:$0xf]
    %v287 = vld [vmem:[%s1 + $0x3ec] sm:$0xf]
    %v288 = vld [vmem:[%s1 + $0x3f0] sm:$0xf]
    %v289 = vld [vmem:[%s1 + $0x3f4] sm:$0xf]
    %v290 = vld [vmem:[%s1 + $0x3f8] sm:$0xf]
    %v291 = vld [vmem:[%s1 + $0x3fc] sm:$0xf]
    %v294 = vcombine.high %v34, %v34
    %v296 = vunpack.c.l.s4 1966171168
    %v297 = vunpack.c.0.s8 %v296
    %v298 = vlaneseq
    %v299 = vshrl.u32 %v298, 7
    %v300 = vsub.s32 %v297, %v299
    %v301 = vrot.slane %v34, %v300
    %v303 = vunpack.c.l.s4 1966171168
    %v304 = vunpack.c.0.s8 %v303
    %v305 = vlaneseq
    %v306 = vshrl.u32 %v305, 7
    %v307 = vsub.s32 %v304, %v306
    %v308 = vrot.slane %v294, %v307
    %v309 = vcombine.high %v301, %v301
    %v310 = vcombine.high %v308, %v308
    %v312 = vunpack.c.l.s4 1966171168
    %v313 = vunpack.c.0.s8 %v312
    %v314 = vlaneseq
    %v315 = vshrl.u32 %v314, 7
    %v316 = vsub.s32 %v313, %v315
    %v317 = vrot.slane %v301, %v316
    %v319 = vunpack.c.l.s4 1966171168
    %v320 = vunpack.c.0.s8 %v319
    %v321 = vlaneseq
    %v322 = vshrl.u32 %v321, 7
    %v323 = vsub.s32 %v320, %v322
    %v324 = vrot.slane %v308, %v323
    %v326 = vunpack.c.l.s4 1966171168
    %v327 = vunpack.c.0.s8 %v326
    %v328 = vlaneseq
    %v329 = vshrl.u32 %v328, 7
    %v330 = vsub.s32 %v327, %v329
    %v331 = vrot.slane %v309, %v330
    %v333 = vunpack.c.l.s4 1966171168
    %v334 = vunpack.c.0.s8 %v333
    %v335 = vlaneseq
    %v336 = vshrl.u32 %v335, 7
    %v337 = vsub.s32 %v334, %v336
    %v338 = vrot.slane %v310, %v337
    %v339 = vcombine.high %v317, %v317
    %v340 = vcombine.high %v324, %v324
    %v341 = vcombine.high %v331, %v331
    %v342 = vcombine.high %v338, %v338
    %v343 = vcombine.high %v35, %v35
    %v345 = vunpack.c.l.s4 1966171168
    %v346 = vunpack.c.0.s8 %v345
    %v347 = vlaneseq
    %v348 = vshrl.u32 %v347, 7
    %v349 = vsub.s32 %v346, %v348
    %v350 = vrot.slane %v35, %v349
    %v352 = vunpack.c.l.s4 1966171168
    %v353 = vunpack.c.0.s8 %v352
    %v354 = vlaneseq
    %v355 = vshrl.u32 %v354, 7
    %v356 = vsub.s32 %v353, %v355
    %v357 = vrot.slane %v343, %v356
    %v358 = vcombine.high %v350, %v350
    %v359 = vcombine.high %v357, %v357
    %v361 = vunpack.c.l.s4 1966171168
    %v362 = vunpack.c.0.s8 %v361
    %v363 = vlaneseq
    %v364 = vshrl.u32 %v363, 7
    %v365 = vsub.s32 %v362, %v364
    %v366 = vrot.slane %v350, %v365
    %v368 = vunpack.c.l.s4 1966171168
    %v369 = vunpack.c.0.s8 %v368
    %v370 = vlaneseq
    %v371 = vshrl.u32 %v370, 7
    %v372 = vsub.s32 %v369, %v371
    %v373 = vrot.slane %v357, %v372
    %v375 = vunpack.c.l.s4 1966171168
    %v376 = vunpack.c.0.s8 %v375
    %v377 = vlaneseq
    %v378 = vshrl.u32 %v377, 7
    %v379 = vsub.s32 %v376, %v378
    %v380 = vrot.slane %v358, %v379
    %v382 = vunpack.c.l.s4 1966171168
    %v383 = vunpack.c.0.s8 %v382
    %v384 = vlaneseq
    %v385 = vshrl.u32 %v384, 7
    %v386 = vsub.s32 %v383, %v385
    %v387 = vrot.slane %v359, %v386
    %v388 = vcombine.high %v366, %v366
    %v389 = vcombine.high %v373, %v373
    %v390 = vcombine.high %v380, %v380
    %v391 = vcombine.high %v387, %v387
    %v664 = vunpack.c.l.b16 %v36
    %v665 = vunpack.c.l.b16 %v37
    %v666 = vunpack.c.l.b16 %v38
    %v667 = vunpack.c.l.b16 %v39
    %v668 = vunpack.c.l.b16 %v40
    %v669 = vunpack.c.l.b16 %v41
    %v670 = vunpack.c.l.b16 %v42
    %v671 = vunpack.c.l.b16 %v43
    %v672 = vunpack.c.l.b16 %v44
    %v673 = vunpack.c.l.b16 %v45
    %v674 = vunpack.c.l.b16 %v46
    %v675 = vunpack.c.l.b16 %v47
    %v676 = vunpack.c.l.b16 %v48
    %v677 = vunpack.c.l.b16 %v49
    %v678 = vunpack.c.l.b16 %v50
    %v679 = vunpack.c.l.b16 %v51
    %v680 = vunpack.c.l.b16 %v52
    %v681 = vunpack.c.l.b16 %v53
    %v682 = vunpack.c.l.b16 %v54
    %v683 = vunpack.c.l.b16 %v55
    %v684 = vunpack.c.l.b16 %v56
    %v685 = vunpack.c.l.b16 %v57
    %v686 = vunpack.c.l.b16 %v58
    %v687 = vunpack.c.l.b16 %v59
    %v688 = vunpack.c.l.b16 %v60
    %v689 = vunpack.c.l.b16 %v61
    %v690 = vunpack.c.l.b16 %v62
    %v691 = vunpack.c.l.b16 %v63
    %v692 = vunpack.c.l.b16 %v64
    %v693 = vunpack.c.l.b16 %v65
    %v694 = vunpack.c.l.b16 %v66
    %v695 = vunpack.c.l.b16 %v67
    %v696 = vunpack.c.l.b16 %v68
    %v697 = vunpack.c.l.b16 %v69
    %v698 = vunpack.c.l.b16 %v70
    %v699 = vunpack.c.l.b16 %v71
    %v700 = vunpack.c.l.b16 %v72
    %v701 = vunpack.c.l.b16 %v73
    %v702 = vunpack.c.l.b16 %v74
    %v703 = vunpack.c.l.b16 %v75
    %v704 = vunpack.c.l.b16 %v76
    %v705 = vunpack.c.l.b16 %v77
    %v706 = vunpack.c.l.b16 %v78
    %v707 = vunpack.c.l.b16 %v79
    %v708 = vunpack.c.l.b16 %v80
    %v709 = vunpack.c.l.b16 %v81
    %v710 = vunpack.c.l.b16 %v82
    %v711 = vunpack.c.l.b16 %v83
    %v712 = vunpack.c.l.b16 %v84
    %v713 = vunpack.c.l.b16 %v85
    %v714 = vunpack.c.l.b16 %v86
    %v715 = vunpack.c.l.b16 %v87
    %v716 = vunpack.c.l.b16 %v88
    %v717 = vunpack.c.l.b16 %v89
    %v718 = vunpack.c.l.b16 %v90
    %v719 = vunpack.c.l.b16 %v91
    %v720 = vunpack.c.l.b16 %v92
    %v721 = vunpack.c.l.b16 %v93
    %v722 = vunpack.c.l.b16 %v94
    %v723 = vunpack.c.l.b16 %v95
    %v724 = vunpack.c.l.b16 %v96
    %v725 = vunpack.c.l.b16 %v97
    %v726 = vunpack.c.l.b16 %v98
    %v727 = vunpack.c.l.b16 %v99
    %v728 = vunpack.c.l.b16 %v100
    %v729 = vunpack.c.l.b16 %v101
    %v730 = vunpack.c.l.b16 %v102
    %v731 = vunpack.c.l.b16 %v103
    %v732 = vunpack.c.l.b16 %v104
    %v733 = vunpack.c.l.b16 %v105
    %v734 = vunpack.c.l.b16 %v106
    %v735 = vunpack.c.l.b16 %v107
    %v736 = vunpack.c.l.b16 %v108
    %v737 = vunpack.c.l.b16 %v109
    %v738 = vunpack.c.l.b16 %v110
    %v739 = vunpack.c.l.b16 %v111
    %v740 = vunpack.c.l.b16 %v112
    %v741 = vunpack.c.l.b16 %v113
    %v742 = vunpack.c.l.b16 %v114
    %v743 = vunpack.c.l.b16 %v115
    %v744 = vunpack.c.l.b16 %v116
    %v745 = vunpack.c.l.b16 %v117
    %v746 = vunpack.c.l.b16 %v118
    %v747 = vunpack.c.l.b16 %v119
    %v748 = vunpack.c.l.b16 %v120
    %v749 = vunpack.c.l.b16 %v121
    %v750 = vunpack.c.l.b16 %v122
    %v751 = vunpack.c.l.b16 %v123
    %v752 = vunpack.c.l.b16 %v124
    %v753 = vunpack.c.l.b16 %v125
    %v754 = vunpack.c.l.b16 %v126
    %v755 = vunpack.c.l.b16 %v127
    %v756 = vunpack.c.l.b16 %v128
    %v757 = vunpack.c.l.b16 %v129
    %v758 = vunpack.c.l.b16 %v130
    %v759 = vunpack.c.l.b16 %v131
    %v760 = vunpack.c.l.b16 %v132
    %v761 = vunpack.c.l.b16 %v133
    %v762 = vunpack.c.l.b16 %v134
    %v763 = vunpack.c.l.b16 %v135
    %v764 = vunpack.c.l.b16 %v136
    %v765 = vunpack.c.l.b16 %v137
    %v766 = vunpack.c.l.b16 %v138
    %v767 = vunpack.c.l.b16 %v139
    %v768 = vunpack.c.l.b16 %v140
    %v769 = vunpack.c.l.b16 %v141
    %v770 = vunpack.c.l.b16 %v142
    %v771 = vunpack.c.l.b16 %v143
    %v772 = vunpack.c.l.b16 %v144
    %v773 = vunpack.c.l.b16 %v145
    %v774 = vunpack.c.l.b16 %v146
    %v775 = vunpack.c.l.b16 %v147
    %v776 = vunpack.c.l.b16 %v148
    %v777 = vunpack.c.l.b16 %v149
    %v778 = vunpack.c.l.b16 %v150
    %v779 = vunpack.c.l.b16 %v151
    %v780 = vunpack.c.l.b16 %v152
    %v781 = vunpack.c.l.b16 %v153
    %v782 = vunpack.c.l.b16 %v154
    %v783 = vunpack.c.l.b16 %v155
    %v784 = vunpack.c.l.b16 %v156
    %v785 = vunpack.c.l.b16 %v157
    %v786 = vunpack.c.l.b16 %v158
    %v787 = vunpack.c.l.b16 %v159
    %v788 = vunpack.c.l.b16 %v160
    %v789 = vunpack.c.l.b16 %v161
    %v790 = vunpack.c.l.b16 %v162
    %v791 = vunpack.c.l.b16 %v163
    %v792 = vunpack.c.l.b16 %v164
    %v793 = vunpack.c.l.b16 %v165
    %v794 = vunpack.c.l.b16 %v166
    %v795 = vunpack.c.l.b16 %v167
    %v796 = vunpack.c.l.b16 %v168
    %v797 = vunpack.c.l.b16 %v169
    %v798 = vunpack.c.l.b16 %v170
    %v799 = vunpack.c.l.b16 %v171
    %v800 = vunpack.c.l.b16 %v172
    %v801 = vunpack.c.l.b16 %v173
    %v802 = vunpack.c.l.b16 %v174
    %v803 = vunpack.c.l.b16 %v175
    %v804 = vunpack.c.l.b16 %v176
    %v805 = vunpack.c.l.b16 %v177
    %v806 = vunpack.c.l.b16 %v178
    %v807 = vunpack.c.l.b16 %v179
    %v808 = vunpack.c.l.b16 %v180
    %v809 = vunpack.c.l.b16 %v181
    %v810 = vunpack.c.l.b16 %v182
    %v811 = vunpack.c.l.b16 %v183
    %v812 = vunpack.c.l.b16 %v184
    %v813 = vunpack.c.l.b16 %v185
    %v814 = vunpack.c.l.b16 %v186
    %v815 = vunpack.c.l.b16 %v187
    %v816 = vunpack.c.l.b16 %v188
    %v817 = vunpack.c.l.b16 %v189
    %v818 = vunpack.c.l.b16 %v190
    %v819 = vunpack.c.l.b16 %v191
    %v820 = vunpack.c.l.b16 %v192
    %v821 = vunpack.c.l.b16 %v193
    %v822 = vunpack.c.l.b16 %v194
    %v823 = vunpack.c.l.b16 %v195
    %v824 = vunpack.c.l.b16 %v196
    %v825 = vunpack.c.l.b16 %v197
    %v826 = vunpack.c.l.b16 %v198
    %v827 = vunpack.c.l.b16 %v199
    %v828 = vunpack.c.l.b16 %v200
    %v829 = vunpack.c.l.b16 %v201
    %v830 = vunpack.c.l.b16 %v202
    %v831 = vunpack.c.l.b16 %v203
    %v832 = vunpack.c.l.b16 %v204
    %v833 = vunpack.c.l.b16 %v205
    %v834 = vunpack.c.l.b16 %v206
    %v835 = vunpack.c.l.b16 %v207
    %v836 = vunpack.c.l.b16 %v208
    %v837 = vunpack.c.l.b16 %v209
    %v838 = vunpack.c.l.b16 %v210
    %v839 = vunpack.c.l.b16 %v211
    %v840 = vunpack.c.l.b16 %v212
    %v841 = vunpack.c.l.b16 %v213
    %v842 = vunpack.c.l.b16 %v214
    %v843 = vunpack.c.l.b16 %v215
    %v844 = vunpack.c.l.b16 %v216
    %v845 = vunpack.c.l.b16 %v217
    %v846 = vunpack.c.l.b16 %v218
    %v847 = vunpack.c.l.b16 %v219
    %v848 = vunpack.c.l.b16 %v220
    %v849 = vunpack.c.l.b16 %v221
    %v850 = vunpack.c.l.b16 %v222
    %v851 = vunpack.c.l.b16 %v223
    %v852 = vunpack.c.l.b16 %v224
    %v853 = vunpack.c.l.b16 %v225
    %v854 = vunpack.c.l.b16 %v226
    %v855 = vunpack.c.l.b16 %v227
    %v856 = vunpack.c.l.b16 %v228
    %v857 = vunpack.c.l.b16 %v229
    %v858 = vunpack.c.l.b16 %v230
    %v859 = vunpack.c.l.b16 %v231
    %v860 = vunpack.c.l.b16 %v232
    %v861 = vunpack.c.l.b16 %v233
    %v862 = vunpack.c.l.b16 %v234
    %v863 = vunpack.c.l.b16 %v235
    %v864 = vunpack.c.l.b16 %v236
    %v865 = vunpack.c.l.b16 %v237
    %v866 = vunpack.c.l.b16 %v238
    %v867 = vunpack.c.l.b16 %v239
    %v868 = vunpack.c.l.b16 %v240
    %v869 = vunpack.c.l.b16 %v241
    %v870 = vunpack.c.l.b16 %v242
    %v871 = vunpack.c.l.b16 %v243
    %v872 = vunpack.c.l.b16 %v244
    %v873 = vunpack.c.l.b16 %v245
    %v874 = vunpack.c.l.b16 %v246
    %v875 = vunpack.c.l.b16 %v247
    %v876 = vunpack.c.l.b16 %v248
    %v877 = vunpack.c.l.b16 %v249
    %v878 = vunpack.c.l.b16 %v250
    %v879 = vunpack.c.l.b16 %v251
    %v880 = vunpack.c.l.b16 %v252
    %v881 = vunpack.c.l.b16 %v253
    %v882 = vunpack.c.l.b16 %v254
    %v883 = vunpack.c.l.b16 %v255
    %v884 = vunpack.c.l.b16 %v256
    %v885 = vunpack.c.l.b16 %v257
    %v886 = vunpack.c.l.b16 %v258
    %v887 = vunpack.c.l.b16 %v259
    %v888 = vunpack.c.l.b16 %v260
    %v889 = vunpack.c.l.b16 %v261
    %v890 = vunpack.c.l.b16 %v262
    %v891 = vunpack.c.l.b16 %v263
    %v892 = vunpack.c.l.b16 %v264
    %v893 = vunpack.c.l.b16 %v265
    %v894 = vunpack.c.l.b16 %v266
    %v895 = vunpack.c.l.b16 %v267
    %v896 = vunpack.c.l.b16 %v268
    %v897 = vunpack.c.l.b16 %v269
    %v898 = vunpack.c.l.b16 %v270
    %v899 = vunpack.c.l.b16 %v271
    %v900 = vunpack.c.l.b16 %v272
    %v901 = vunpack.c.l.b16 %v273
    %v902 = vunpack.c.l.b16 %v274
    %v903 = vunpack.c.l.b16 %v275
    %v904 = vunpack.c.l.b16 %v276
    %v905 = vunpack.c.l.b16 %v277
    %v906 = vunpack.c.l.b16 %v278
    %v907 = vunpack.c.l.b16 %v279
    %v908 = vunpack.c.l.b16 %v280
    %v909 = vunpack.c.l.b16 %v281
    %v910 = vunpack.c.l.b16 %v282
    %v911 = vunpack.c.l.b16 %v283
    %v912 = vunpack.c.l.b16 %v284
    %v913 = vunpack.c.l.b16 %v285
    %v914 = vunpack.c.l.b16 %v286
    %v915 = vunpack.c.l.b16 %v287
    %v916 = vunpack.c.l.b16 %v288
    %v917 = vunpack.c.l.b16 %v289
    %v918 = vunpack.c.l.b16 %v290
    %v919 = vunpack.c.l.b16 %v291
    %v920 = vpack.c.b16 %v665, %v664
    %v921 = vpack.c.b16 %v667, %v666
    %v922 = vpack.c.b16 %v669, %v668
    %v923 = vpack.c.b16 %v671, %v670
    %v924 = vpack.c.b16 %v673, %v672
    %v925 = vpack.c.b16 %v675, %v674
    %v926 = vpack.c.b16 %v677, %v676
    %v927 = vpack.c.b16 %v679, %v678
    %v928 = vpack.c.b16 %v681, %v680
    %v929 = vpack.c.b16 %v683, %v682
    %v930 = vpack.c.b16 %v685, %v684
    %v931 = vpack.c.b16 %v687, %v686
    %v932 = vpack.c.b16 %v689, %v688
    %v933 = vpack.c.b16 %v691, %v690
    %v934 = vpack.c.b16 %v693, %v692
    %v935 = vpack.c.b16 %v695, %v694
    %v936 = vpack.c.b16 %v697, %v696
    %v937 = vpack.c.b16 %v699, %v698
    %v938 = vpack.c.b16 %v701, %v700
    %v939 = vpack.c.b16 %v703, %v702
    %v940 = vpack.c.b16 %v705, %v704
    %v941 = vpack.c.b16 %v707, %v706
    %v942 = vpack.c.b16 %v709, %v708
    %v943 = vpack.c.b16 %v711, %v710
    %v944 = vpack.c.b16 %v713, %v712
    %v945 = vpack.c.b16 %v715, %v714
    %v946 = vpack.c.b16 %v717, %v716
    %v947 = vpack.c.b16 %v719, %v718
    %v948 = vpack.c.b16 %v721, %v720
    %v949 = vpack.c.b16 %v723, %v722
    %v950 = vpack.c.b16 %v725, %v724
    %v951 = vpack.c.b16 %v727, %v726
    %v952 = vpack.c.b16 %v729, %v728
    %v953 = vpack.c.b16 %v731, %v730
    %v954 = vpack.c.b16 %v733, %v732
    %v955 = vpack.c.b16 %v735, %v734
    %v956 = vpack.c.b16 %v737, %v736
    %v957 = vpack.c.b16 %v739, %v738
    %v958 = vpack.c.b16 %v741, %v740
    %v959 = vpack.c.b16 %v743, %v742
    %v960 = vpack.c.b16 %v745, %v744
    %v961 = vpack.c.b16 %v747, %v746
    %v962 = vpack.c.b16 %v749, %v748
    %v963 = vpack.c.b16 %v751, %v750
    %v964 = vpack.c.b16 %v753, %v752
    %v965 = vpack.c.b16 %v755, %v754
    %v966 = vpack.c.b16 %v757, %v756
    %v967 = vpack.c.b16 %v759, %v758
    %v968 = vpack.c.b16 %v761, %v760
    %v969 = vpack.c.b16 %v763, %v762
    %v970 = vpack.c.b16 %v765, %v764
    %v971 = vpack.c.b16 %v767, %v766
    %v972 = vpack.c.b16 %v769, %v768
    %v973 = vpack.c.b16 %v771, %v770
    %v974 = vpack.c.b16 %v773, %v772
    %v975 = vpack.c.b16 %v775, %v774
    %v976 = vpack.c.b16 %v777, %v776
    %v977 = vpack.c.b16 %v779, %v778
    %v978 = vpack.c.b16 %v781, %v780
    %v979 = vpack.c.b16 %v783, %v782
    %v980 = vpack.c.b16 %v785, %v784
    %v981 = vpack.c.b16 %v787, %v786
    %v982 = vpack.c.b16 %v789, %v788
    %v983 = vpack.c.b16 %v791, %v790
    %v984 = vpack.c.b16 %v793, %v792
    %v985 = vpack.c.b16 %v795, %v794
    %v986 = vpack.c.b16 %v797, %v796
    %v987 = vpack.c.b16 %v799, %v798
    %v988 = vpack.c.b16 %v801, %v800
    %v989 = vpack.c.b16 %v803, %v802
    %v990 = vpack.c.b16 %v805, %v804
    %v991 = vpack.c.b16 %v807, %v806
    %v992 = vpack.c.b16 %v809, %v808
    %v993 = vpack.c.b16 %v811, %v810
    %v994 = vpack.c.b16 %v813, %v812
    %v995 = vpack.c.b16 %v815, %v814
    %v996 = vpack.c.b16 %v817, %v816
    %v997 = vpack.c.b16 %v819, %v818
    %v998 = vpack.c.b16 %v821, %v820
    %v999 = vpack.c.b16 %v823, %v822
    %v1000 = vpack.c.b16 %v825, %v824
    %v1001 = vpack.c.b16 %v827, %v826
    %v1002 = vpack.c.b16 %v829, %v828
    %v1003 = vpack.c.b16 %v831, %v830
    %v1004 = vpack.c.b16 %v833, %v832
    %v1005 = vpack.c.b16 %v835, %v834
    %v1006 = vpack.c.b16 %v837, %v836
    %v1007 = vpack.c.b16 %v839, %v838
    %v1008 = vpack.c.b16 %v841, %v840
    %v1009 = vpack.c.b16 %v843, %v842
    %v1010 = vpack.c.b16 %v845, %v844
    %v1011 = vpack.c.b16 %v847, %v846
    %v1012 = vpack.c.b16 %v849, %v848
    %v1013 = vpack.c.b16 %v851, %v850
    %v1014 = vpack.c.b16 %v853, %v852
    %v1015 = vpack.c.b16 %v855, %v854
    %v1016 = vpack.c.b16 %v857, %v856
    %v1017 = vpack.c.b16 %v859, %v858
    %v1018 = vpack.c.b16 %v861, %v860
    %v1019 = vpack.c.b16 %v863, %v862
    %v1020 = vpack.c.b16 %v865, %v864
    %v1021 = vpack.c.b16 %v867, %v866
    %v1022 = vpack.c.b16 %v869, %v868
    %v1023 = vpack.c.b16 %v871, %v870
    %v1024 = vpack.c.b16 %v873, %v872
    %v1025 = vpack.c.b16 %v875, %v874
    %v1026 = vpack.c.b16 %v877, %v876
    %v1027 = vpack.c.b16 %v879, %v878
    %v1028 = vpack.c.b16 %v881, %v880
    %v1029 = vpack.c.b16 %v883, %v882
    %v1030 = vpack.c.b16 %v885, %v884
    %v1031 = vpack.c.b16 %v887, %v886
    %v1032 = vpack.c.b16 %v889, %v888
    %v1033 = vpack.c.b16 %v891, %v890
    %v1034 = vpack.c.b16 %v893, %v892
    %v1035 = vpack.c.b16 %v895, %v894
    %v1036 = vpack.c.b16 %v897, %v896
    %v1037 = vpack.c.b16 %v899, %v898
    %v1038 = vpack.c.b16 %v901, %v900
    %v1039 = vpack.c.b16 %v903, %v902
    %v1040 = vpack.c.b16 %v905, %v904
    %v1041 = vpack.c.b16 %v907, %v906
    %v1042 = vpack.c.b16 %v909, %v908
    %v1043 = vpack.c.b16 %v911, %v910
    %v1044 = vpack.c.b16 %v913, %v912
    %v1045 = vpack.c.b16 %v915, %v914
    %v1046 = vpack.c.b16 %v917, %v916
    %v1047 = vpack.c.b16 %v919, %v918
    %1176 = vmatprep.subr.bf16.mxu0 0
    %1177 = vmatpush1.bf16.msra.mxu0 %v920
    %1178 = vmatprep.subr.bf16.mxu0 0
    %1179 = vmatpush1.bf16.msra.mxu0 %v921
    %1180 = vmatprep.subr.bf16.mxu0 0
    %1181 = vmatpush1.bf16.msra.mxu0 %v922
    %1182 = vmatprep.subr.bf16.mxu0 0
    %1183 = vmatpush1.bf16.msra.mxu0 %v923
    %1184 = vmatprep.subr.bf16.mxu0 0
    %1185 = vmatpush1.bf16.msra.mxu0 %v924
    %1186 = vmatprep.subr.bf16.mxu0 0
    %1187 = vmatpush1.bf16.msra.mxu0 %v925
    %1188 = vmatprep.subr.bf16.mxu0 0
    %1189 = vmatpush1.bf16.msra.mxu0 %v926
    %1190 = vmatprep.subr.bf16.mxu0 0
    %1191 = vmatpush1.bf16.msra.mxu0 %v927
    %1192 = vmatprep.subr.bf16.mxu0 0
    %1193 = vmatpush1.bf16.msra.mxu0 %v928
    %1194 = vmatprep.subr.bf16.mxu0 0
    %1195 = vmatpush1.bf16.msra.mxu0 %v929
    %1196 = vmatprep.subr.bf16.mxu0 0
    %1197 = vmatpush1.bf16.msra.mxu0 %v930
    %1198 = vmatprep.subr.bf16.mxu0 0
    %1199 = vmatpush1.bf16.msra.mxu0 %v931
    %1200 = vmatprep.subr.bf16.mxu0 0
    %1201 = vmatpush1.bf16.msra.mxu0 %v932
    %1202 = vmatprep.subr.bf16.mxu0 0
    %1203 = vmatpush1.bf16.msra.mxu0 %v933
    %1204 = vmatprep.subr.bf16.mxu0 0
    %1205 = vmatpush1.bf16.msra.mxu0 %v934
    %1206 = vmatprep.subr.bf16.mxu0 0
    %1207 = vmatpush1.bf16.msra.mxu0 %v935
    %1208 = vmatprep.mubr.bf16.mxu0 %v331
    %1209 = vmatmul.mubr.bf16.gmra.mrb[0].mxu0 %v317
    %v1210 = vpop.f32.mrb[0].mxu0
    %v1211 = vadd.f32 0.0, %v1210
    %v1212 = vpop.f32.mrb[0].mxu0
    %v1213 = vpop.f32.mrb[0].mxu0
    %v1214 = vpop.f32.mrb[0].mxu0
    %1215 = vdwg.mxu0
    %1216 = vmatprep.subr.bf16.mxu0 0
    %1217 = vmatpush1.bf16.msra.mxu0 %v936
    %1218 = vmatprep.subr.bf16.mxu0 0
    %1219 = vmatpush1.bf16.msra.mxu0 %v937
    %1220 = vmatprep.subr.bf16.mxu0 0
    %1221 = vmatpush1.bf16.msra.mxu0 %v938
    %1222 = vmatprep.subr.bf16.mxu0 0
    %1223 = vmatpush1.bf16.msra.mxu0 %v939
    %1224 = vmatprep.subr.bf16.mxu0 0
    %1225 = vmatpush1.bf16.msra.mxu0 %v940
    %1226 = vmatprep.subr.bf16.mxu0 0
    %1227 = vmatpush1.bf16.msra.mxu0 %v941
    %1228 = vmatprep.subr.bf16.mxu0 0
    %1229 = vmatpush1.bf16.msra.mxu0 %v942
    %1230 = vmatprep.subr.bf16.mxu0 0
    %1231 = vmatpush1.bf16.msra.mxu0 %v943
    %1232 = vmatprep.subr.bf16.mxu0 0
    %1233 = vmatpush1.bf16.msra.mxu0 %v944
    %1234 = vmatprep.subr.bf16.mxu0 0
    %1235 = vmatpush1.bf16.msra.mxu0 %v945
    %1236 = vmatprep.subr.bf16.mxu0 0
    %1237 = vmatpush1.bf16.msra.mxu0 %v946
    %1238 = vmatprep.subr.bf16.mxu0 0
    %1239 = vmatpush1.bf16.msra.mxu0 %v947
    %1240 = vmatprep.subr.bf16.mxu0 0
    %1241 = vmatpush1.bf16.msra.mxu0 %v948
    %1242 = vmatprep.subr.bf16.mxu0 0
    %1243 = vmatpush1.bf16.msra.mxu0 %v949
    %1244 = vmatprep.subr.bf16.mxu0 0
    %1245 = vmatpush1.bf16.msra.mxu0 %v950
    %1246 = vmatprep.subr.bf16.mxu0 0
    %1247 = vmatpush1.bf16.msra.mxu0 %v951
    %1248 = vmatprep.mubr.bf16.mxu0 %v341
    %1249 = vmatmul.mubr.bf16.gmra.mrb[0].mxu0 %v339
    %v1250 = vpop.f32.mrb[0].mxu0
    %v1251 = vadd.f32 %v1211, %v1250
    %v1252 = vpop.f32.mrb[0].mxu0
    %v1253 = vpop.f32.mrb[0].mxu0
    %v1254 = vpop.f32.mrb[0].mxu0
    %1255 = vdwg.mxu0
    %1256 = vmatprep.subr.bf16.mxu0 0
    %1257 = vmatpush1.bf16.msra.mxu0 %v952
    %1258 = vmatprep.subr.bf16.mxu0 0
    %1259 = vmatpush1.bf16.msra.mxu0 %v953
    %1260 = vmatprep.subr.bf16.mxu0 0
    %1261 = vmatpush1.bf16.msra.mxu0 %v954
    %1262 = vmatprep.subr.bf16.mxu0 0
    %1263 = vmatpush1.bf16.msra.mxu0 %v955
    %1264 = vmatprep.subr.bf16.mxu0 0
    %1265 = vmatpush1.bf16.msra.mxu0 %v956
    %1266 = vmatprep.subr.bf16.mxu0 0
    %1267 = vmatpush1.bf16.msra.mxu0 %v957
    %1268 = vmatprep.subr.bf16.mxu0 0
    %1269 = vmatpush1.bf16.msra.mxu0 %v958
    %1270 = vmatprep.subr.bf16.mxu0 0
    %1271 = vmatpush1.bf16.msra.mxu0 %v959
    %1272 = vmatprep.subr.bf16.mxu0 0
    %1273 = vmatpush1.bf16.msra.mxu0 %v960
    %1274 = vmatprep.subr.bf16.mxu0 0
    %1275 = vmatpush1.bf16.msra.mxu0 %v961
    %1276 = vmatprep.subr.bf16.mxu0 0
    %1277 = vmatpush1.bf16.msra.mxu0 %v962
    %1278 = vmatprep.subr.bf16.mxu0 0
    %1279 = vmatpush1.bf16.msra.mxu0 %v963
    %1280 = vmatprep.subr.bf16.mxu0 0
    %1281 = vmatpush1.bf16.msra.mxu0 %v964
    %1282 = vmatprep.subr.bf16.mxu0 0
    %1283 = vmatpush1.bf16.msra.mxu0 %v965
    %1284 = vmatprep.subr.bf16.mxu0 0
    %1285 = vmatpush1.bf16.msra.mxu0 %v966
    %1286 = vmatprep.subr.bf16.mxu0 0
    %1287 = vmatpush1.bf16.msra.mxu0 %v967
    %1288 = vmatprep.mubr.bf16.mxu0 %v338
    %1289 = vmatmul.mubr.bf16.gmra.mrb[0].mxu0 %v324
    %v1290 = vpop.f32.mrb[0].mxu0
    %v1291 = vadd.f32 %v1251, %v1290
    %v1292 = vpop.f32.mrb[0].mxu0
    %v1293 = vpop.f32.mrb[0].mxu0
    %v1294 = vpop.f32.mrb[0].mxu0
    %1295 = vdwg.mxu0
    %1296 = vmatprep.subr.bf16.mxu0 0
    %1297 = vmatpush1.bf16.msra.mxu0 %v968
    %1298 = vmatprep.subr.bf16.mxu0 0
    %1299 = vmatpush1.bf16.msra.mxu0 %v969
    %1300 = vmatprep.subr.bf16.mxu0 0
    %1301 = vmatpush1.bf16.msra.mxu0 %v970
    %1302 = vmatprep.subr.bf16.mxu0 0
    %1303 = vmatpush1.bf16.msra.mxu0 %v971
    %1304 = vmatprep.subr.bf16.mxu0 0
    %1305 = vmatpush1.bf16.msra.mxu0 %v972
    %1306 = vmatprep.subr.bf16.mxu0 0
    %1307 = vmatpush1.bf16.msra.mxu0 %v973
    %1308 = vmatprep.subr.bf16.mxu0 0
    %1309 = vmatpush1.bf16.msra.mxu0 %v974
    %1310 = vmatprep.subr.bf16.mxu0 0
    %1311 = vmatpush1.bf16.msra.mxu0 %v975
    %1312 = vmatprep.subr.bf16.mxu0 0
    %1313 = vmatpush1.bf16.msra.mxu0 %v976
    %1314 = vmatprep.subr.bf16.mxu0 0
    %1315 = vmatpush1.bf16.msra.mxu0 %v977
    %1316 = vmatprep.subr.bf16.mxu0 0
    %1317 = vmatpush1.bf16.msra.mxu0 %v978
    %1318 = vmatprep.subr.bf16.mxu0 0
    %1319 = vmatpush1.bf16.msra.mxu0 %v979
    %1320 = vmatprep.subr.bf16.mxu0 0
    %1321 = vmatpush1.bf16.msra.mxu0 %v980
    %1322 = vmatprep.subr.bf16.mxu0 0
    %1323 = vmatpush1.bf16.msra.mxu0 %v981
    %1324 = vmatprep.subr.bf16.mxu0 0
    %1325 = vmatpush1.bf16.msra.mxu0 %v982
    %1326 = vmatprep.subr.bf16.mxu0 0
    %1327 = vmatpush1.bf16.msra.mxu0 %v983
    %1328 = vmatprep.mubr.bf16.mxu0 %v342
    %1329 = vmatmul.mubr.bf16.gmra.mrb[0].mxu0 %v340
    %v1330 = vpop.f32.mrb[0].mxu0
    %v1331 = vadd.f32 %v1291, %v1330
    %v1332 = vpop.f32.mrb[0].mxu0
    %v1333 = vpop.f32.mrb[0].mxu0
    %v1334 = vpop.f32.mrb[0].mxu0
    %1335 = vdwg.mxu0
    %1336 = vmatprep.subr.bf16.mxu0 0
    %1337 = vmatpush1.bf16.msra.mxu0 %v984
    %1338 = vmatprep.subr.bf16.mxu0 0
    %1339 = vmatpush1.bf16.msra.mxu0 %v985
    %1340 = vmatprep.subr.bf16.mxu0 0
    %1341 = vmatpush1.bf16.msra.mxu0 %v986
    %1342 = vmatprep.subr.bf16.mxu0 0
    %1343 = vmatpush1.bf16.msra.mxu0 %v987
    %1344 = vmatprep.subr.bf16.mxu0 0
    %1345 = vmatpush1.bf16.msra.mxu0 %v988
    %1346 = vmatprep.subr.bf16.mxu0 0
    %1347 = vmatpush1.bf16.msra.mxu0 %v989
    %1348 = vmatprep.subr.bf16.mxu0 0
    %1349 = vmatpush1.bf16.msra.mxu0 %v990
    %1350 = vmatprep.subr.bf16.mxu0 0
    %1351 = vmatpush1.bf16.msra.mxu0 %v991
    %1352 = vmatprep.subr.bf16.mxu0 0
    %1353 = vmatpush1.bf16.msra.mxu0 %v992
    %1354 = vmatprep.subr.bf16.mxu0 0
    %1355 = vmatpush1.bf16.msra.mxu0 %v993
    %1356 = vmatprep.subr.bf16.mxu0 0
    %1357 = vmatpush1.bf16.msra.mxu0 %v994
    %1358 = vmatprep.subr.bf16.mxu0 0
    %1359 = vmatpush1.bf16.msra.mxu0 %v995
    %1360 = vmatprep.subr.bf16.mxu0 0
    %1361 = vmatpush1.bf16.msra.mxu0 %v996
    %1362 = vmatprep.subr.bf16.mxu0 0
    %1363 = vmatpush1.bf16.msra.mxu0 %v997
    %1364 = vmatprep.subr.bf16.mxu0 0
    %1365 = vmatpush1.bf16.msra.mxu0 %v998
    %1366 = vmatprep.subr.bf16.mxu0 0
    %1367 = vmatpush1.bf16.msra.mxu0 %v999
    %1368 = vmatprep.mubr.bf16.mxu0 %v380
    %1369 = vmatmul.mubr.bf16.gmra.mrb[0].mxu0 %v366
    %v1370 = vpop.f32.mrb[0].mxu0
    %v1371 = vadd.f32 %v1331, %v1370
    %v1372 = vpop.f32.mrb[0].mxu0
    %v1373 = vpop.f32.mrb[0].mxu0
    %v1374 = vpop.f32.mrb[0].mxu0
    %1375 = vdwg.mxu0
    %1376 = vmatprep.subr.bf16.mxu0 0
    %1377 = vmatpush1.bf16.msra.mxu0 %v1000
    %1378 = vmatprep.subr.bf16.mxu0 0
    %1379 = vmatpush1.bf16.msra.mxu0 %v1001
    %1380 = vmatprep.subr.bf16.mxu0 0
    %1381 = vmatpush1.bf16.msra.mxu0 %v1002
    %1382 = vmatprep.subr.bf16.mxu0 0
    %1383 = vmatpush1.bf16.msra.mxu0 %v1003
    %1384 = vmatprep.subr.bf16.mxu0 0
    %1385 = vmatpush1.bf16.msra.mxu0 %v1004
    %1386 = vmatprep.subr.bf16.mxu0 0
    %1387 = vmatpush1.bf16.msra.mxu0 %v1005
    %1388 = vmatprep.subr.bf16.mxu0 0
    %1389 = vmatpush1.bf16.msra.mxu0 %v1006
    %1390 = vmatprep.subr.bf16.mxu0 0
    %1391 = vmatpush1.bf16.msra.mxu0 %v1007
    %1392 = vmatprep.subr.bf16.mxu0 0
    %1393 = vmatpush1.bf16.msra.mxu0 %v1008
    %1394 = vmatprep.subr.bf16.mxu0 0
    %1395 = vmatpush1.bf16.msra.mxu0 %v1009
    %1396 = vmatprep.subr.bf16.mxu0 0
    %1397 = vmatpush1.bf16.msra.mxu0 %v1010
    %1398 = vmatprep.subr.bf16.mxu0 0
    %1399 = vmatpush1.bf16.msra.mxu0 %v1011
    %1400 = vmatprep.subr.bf16.mxu0 0
    %1401 = vmatpush1.bf16.msra.mxu0 %v1012
    %1402 = vmatprep.subr.bf16.mxu0 0
    %1403 = vmatpush1.bf16.msra.mxu0 %v1013
    %1404 = vmatprep.subr.bf16.mxu0 0
    %1405 = vmatpush1.bf16.msra.mxu0 %v1014
    %1406 = vmatprep.subr.bf16.mxu0 0
    %1407 = vmatpush1.bf16.msra.mxu0 %v1015
    %1408 = vmatprep.mubr.bf16.mxu0 %v390
    %1409 = vmatmul.mubr.bf16.gmra.mrb[0].mxu0 %v388
    %v1410 = vpop.f32.mrb[0].mxu0
    %v1411 = vadd.f32 %v1371, %v1410
    %v1412 = vpop.f32.mrb[0].mxu0
    %v1413 = vpop.f32.mrb[0].mxu0
    %v1414 = vpop.f32.mrb[0].mxu0
    %1415 = vdwg.mxu0
    %1416 = vmatprep.subr.bf16.mxu0 0
    %1417 = vmatpush1.bf16.msra.mxu0 %v1016
    %1418 = vmatprep.subr.bf16.mxu0 0
    %1419 = vmatpush1.bf16.msra.mxu0 %v1017
    %1420 = vmatprep.subr.bf16.mxu0 0
    %1421 = vmatpush1.bf16.msra.mxu0 %v1018
    %1422 = vmatprep.subr.bf16.mxu0 0
    %1423 = vmatpush1.bf16.msra.mxu0 %v1019
    %1424 = vmatprep.subr.bf16.mxu0 0
    %1425 = vmatpush1.bf16.msra.mxu0 %v1020
    %1426 = vmatprep.subr.bf16.mxu0 0
    %1427 = vmatpush1.bf16.msra.mxu0 %v1021
    %1428 = vmatprep.subr.bf16.mxu0 0
    %1429 = vmatpush1.bf16.msra.mxu0 %v1022
    %1430 = vmatprep.subr.bf16.mxu0 0
    %1431 = vmatpush1.bf16.msra.mxu0 %v1023
    %1432 = vmatprep.subr.bf16.mxu0 0
    %1433 = vmatpush1.bf16.msra.mxu0 %v1024
    %1434 = vmatprep.subr.bf16.mxu0 0
    %1435 = vmatpush1.bf16.msra.mxu0 %v1025
    %1436 = vmatprep.subr.bf16.mxu0 0
    %1437 = vmatpush1.bf16.msra.mxu0 %v1026
    %1438 = vmatprep.subr.bf16.mxu0 0
    %1439 = vmatpush1.bf16.msra.mxu0 %v1027
    %1440 = vmatprep.subr.bf16.mxu0 0
    %1441 = vmatpush1.bf16.msra.mxu0 %v1028
    %1442 = vmatprep.subr.bf16.mxu0 0
    %1443 = vmatpush1.bf16.msra.mxu0 %v1029
    %1444 = vmatprep.subr.bf16.mxu0 0
    %1445 = vmatpush1.bf16.msra.mxu0 %v1030
    %1446 = vmatprep.subr.bf16.mxu0 0
    %1447 = vmatpush1.bf16.msra.mxu0 %v1031
    %1448 = vmatprep.mubr.bf16.mxu0 %v387
    %1449 = vmatmul.mubr.bf16.gmra.mrb[0].mxu0 %v373
    %v1450 = vpop.f32.mrb[0].mxu0
    %v1451 = vadd.f32 %v1411, %v1450
    %v1452 = vpop.f32.mrb[0].mxu0
    %v1453 = vpop.f32.mrb[0].mxu0
    %v1454 = vpop.f32.mrb[0].mxu0
    %1455 = vdwg.mxu0
    %1456 = vmatprep.subr.bf16.mxu0 0
    %1457 = vmatpush1.bf16.msra.mxu0 %v1032
    %1458 = vmatprep.subr.bf16.mxu0 0
    %1459 = vmatpush1.bf16.msra.mxu0 %v1033
    %1460 = vmatprep.subr.bf16.mxu0 0
    %1461 = vmatpush1.bf16.msra.mxu0 %v1034
    %1462 = vmatprep.subr.bf16.mxu0 0
    %1463 = vmatpush1.bf16.msra.mxu0 %v1035
    %1464 = vmatprep.subr.bf16.mxu0 0
    %1465 = vmatpush1.bf16.msra.mxu0 %v1036
    %1466 = vmatprep.subr.bf16.mxu0 0
    %1467 = vmatpush1.bf16.msra.mxu0 %v1037
    %1468 = vmatprep.subr.bf16.mxu0 0
    %1469 = vmatpush1.bf16.msra.mxu0 %v1038
    %1470 = vmatprep.subr.bf16.mxu0 0
    %1471 = vmatpush1.bf16.msra.mxu0 %v1039
    %1472 = vmatprep.subr.bf16.mxu0 0
    %1473 = vmatpush1.bf16.msra.mxu0 %v1040
    %1474 = vmatprep.subr.bf16.mxu0 0
    %1475 = vmatpush1.bf16.msra.mxu0 %v1041
    %1476 = vmatprep.subr.bf16.mxu0 0
    %1477 = vmatpush1.bf16.msra.mxu0 %v1042
    %1478 = vmatprep.subr.bf16.mxu0 0
    %1479 = vmatpush1.bf16.msra.mxu0 %v1043
    %1480 = vmatprep.subr.bf16.mxu0 0
    %1481 = vmatpush1.bf16.msra.mxu0 %v1044
    %1482 = vmatprep.subr.bf16.mxu0 0
    %1483 = vmatpush1.bf16.msra.mxu0 %v1045
    %1484 = vmatprep.subr.bf16.mxu0 0
    %1485 = vmatpush1.bf16.msra.mxu0 %v1046
    %1486 = vmatprep.subr.bf16.mxu0 0
    %1487 = vmatpush1.bf16.msra.mxu0 %v1047
    %1488 = vmatprep.mubr.bf16.mxu0 %v391
    %1489 = vmatmul.mubr.bf16.gmra.mrb[0].mxu0 %v389
    %v1490 = vpop.f32.mrb[0].mxu0
    %v1491 = vadd.f32 %v1451, %v1490
    %v1492 = vpop.f32.mrb[0].mxu0
    %v1493 = vpop.f32.mrb[0].mxu0
    %v1494 = vpop.f32.mrb[0].mxu0
    %1495 = vdwg.mxu0
    %v1496 = vadd.f32 %v33, %v1491
    %1497 = vst [vmem:[#allocation2] sm:$0x3] %v1496
    // Predicated region
    $region34: #{custom_cnn_forward.5} parent=1 // pred_check
      %p1498 = pneg %p28
    $region35: #{custom_cnn_forward.5} parent=1 // pred_check_branch
      %1500 = sbr.rel (%p1498) target = $region37
    $region36: #{custom_cnn_forward.5} parent=1 // pred_region
      %v1501 = vld [vmem:[#allocation2] sm:$0x3]
      %v1502 = vld [vmem:[%s2] sm:$0x1]
      %v1504 = vlaneseq
      %v1505 = vshrl.u32 %v1504, 7
      %v1506 = vsub.s32 0, %v1505
      %v1507 = vrot.slane %v1502, %v1506
      %v1509 = vadd.f32 %v1501, %v1507
      %v1510 = vmax.f32 %v1509, 0.0
      %v1511 = vld [vmem:[%s3] sm:$0xff]
      %v1512 = vld [vmem:[%s3 + $0x8] sm:$0xff]
      %v1513 = vld [vmem:[%s3 + $0x10] sm:$0xff]
      %v1514 = vld [vmem:[%s3 + $0x18] sm:$0xff]
      %v1515 = vld [vmem:[%s3 + $0x20] sm:$0xff]
      %v1516 = vld [vmem:[%s3 + $0x28] sm:$0xff]
      %v1517 = vld [vmem:[%s3 + $0x30] sm:$0xff]
      %v1518 = vld [vmem:[%s3 + $0x38] sm:$0xff]
      %v1519 = vld [vmem:[%s3 + $0x40] sm:$0xff]
      %v1520 = vld [vmem:[%s3 + $0x48] sm:$0xff]
      %v1521 = vld [vmem:[%s3 + $0x50] sm:$0xff]
      %v1522 = vld [vmem:[%s3 + $0x58] sm:$0xff]
      %v1523 = vld [vmem:[%s3 + $0x60] sm:$0xff]
      %v1524 = vld [vmem:[%s3 + $0x68] sm:$0xff]
      %v1525 = vld [vmem:[%s3 + $0x70] sm:$0xff]
      %v1526 = vld [vmem:[%s3 + $0x78] sm:$0xff]
      %v1527 = vld [vmem:[%s4] sm:$0x1]
      %v1529 = vlaneseq
      %v1530 = vshrl.u32 %v1529, 7
      %v1531 = vsub.s32 0, %v1530
      %v1532 = vrot.slane %v1527, %v1531
      %1534 = vmatprep.subr.mxu0 0.0
      %1535 = vmatpush1.msra.mxu0 %v1511
      %1536 = vmatprep.subr.mxu0 0.0
      %1537 = vmatpush1.msra.mxu0 %v1512
      %1538 = vmatprep.subr.mxu0 0.0
      %1539 = vmatpush1.msra.mxu0 %v1513
      %1540 = vmatprep.subr.mxu0 0.0
      %1541 = vmatpush1.msra.mxu0 %v1514
      %1542 = vmatprep.subr.mxu0 0.0
      %1543 = vmatpush1.msra.mxu0 %v1515
      %1544 = vmatprep.subr.mxu0 0.0
      %1545 = vmatpush1.msra.mxu0 %v1516
      %1546 = vmatprep.subr.mxu0 0.0
      %1547 = vmatpush1.msra.mxu0 %v1517
      %1548 = vmatprep.subr.mxu0 0.0
      %1549 = vmatpush1.msra.mxu0 %v1518
      %1550 = vmatprep.subr.mxu0 0.0
      %1551 = vmatpush1.msra.mxu0 %v1519
      %1552 = vmatprep.subr.mxu0 0.0
      %1553 = vmatpush1.msra.mxu0 %v1520
      %1554 = vmatprep.subr.mxu0 0.0
      %1555 = vmatpush1.msra.mxu0 %v1521
      %1556 = vmatprep.subr.mxu0 0.0
      %1557 = vmatpush1.msra.mxu0 %v1522
      %1558 = vmatprep.subr.mxu0 0.0
      %1559 = vmatpush1.msra.mxu0 %v1523
      %1560 = vmatprep.subr.mxu0 0.0
      %1561 = vmatpush1.msra.mxu0 %v1524
      %1562 = vmatprep.subr.mxu0 0.0
      %1563 = vmatpush1.msra.mxu0 %v1525
      %1564 = vmatprep.subr.mxu0 0.0
      %1565 = vmatpush1.msra.mxu0 %v1526
      %1566 = vmatprep.subr.mxu0 0.0
      %1567 = vmatpush1.msra.mxu0 0.0
      %1568 = vmatprep.subr.mxu0 0.0
      %1569 = vmatpush1.msra.mxu0 0.0
      %1570 = vmatprep.subr.mxu0 0.0
      %1571 = vmatpush1.msra.mxu0 0.0
      %1572 = vmatprep.subr.mxu0 0.0
      %1573 = vmatpush1.msra.mxu0 0.0
      %1574 = vmatprep.subr.mxu0 0.0
      %1575 = vmatpush1.msra.mxu0 0.0
      %1576 = vmatprep.subr.mxu0 0.0
      %1577 = vmatpush1.msra.mxu0 0.0
      %1578 = vmatprep.subr.mxu0 0.0
      %1579 = vmatpush1.msra.mxu0 0.0
      %1580 = vmatprep.subr.mxu0 0.0
      %1581 = vmatpush1.msra.mxu0 0.0
      %1582 = vmatprep.subr.mxu0 0.0
      %1583 = vmatpush1.msra.mxu0 0.0
      %1584 = vmatprep.subr.mxu0 0.0
      %1585 = vmatpush1.msra.mxu0 0.0
      %1586 = vmatprep.subr.mxu0 0.0
      %1587 = vmatpush1.msra.mxu0 0.0
      %1588 = vmatprep.subr.mxu0 0.0
      %1589 = vmatpush1.msra.mxu0 0.0
      %1590 = vmatprep.subr.mxu0 0.0
      %1591 = vmatpush1.msra.mxu0 0.0
      %1592 = vmatprep.subr.mxu0 0.0
      %1593 = vmatpush1.msra.mxu0 0.0
      %1594 = vmatprep.subr.mxu0 0.0
      %1595 = vmatpush1.msra.mxu0 0.0
      %1596 = vmatprep.subr.mxu0 0.0
      %1597 = vmatpush1.msra.mxu0 0.0
      %1598 = vmatprep.mubr.f32.mxu0 0.0
      %1599 = vmatmul.mubr.f32.gmra.mrb[0].mxu0 %v1510
      %v1600 = vpop.f32.mrb[0].mxu0
      %v1601 = vadd.f32 %v1532, %v1600
      %v1602 = vpop.f32.mrb[0].mxu0
      %1603 = vdwg.mxu0
      %v1604 = vmax.f32 %v1601, 0.0
      %v1605 = vld [vmem:[%s5] sm:$0xff]
      %v1606 = vld [vmem:[%s5 + $0x8] sm:$0xff]
      %v1607 = vld [vmem:[%s5 + $0x10] sm:$0xff]
      %v1608 = vld [vmem:[%s5 + $0x18] sm:$0xff]
      %v1609 = vld [vmem:[%s5 + $0x20] sm:$0xff]
      %v1610 = vld [vmem:[%s5 + $0x28] sm:$0xff]
      %v1611 = vld [vmem:[%s5 + $0x30] sm:$0xff]
      %v1612 = vld [vmem:[%s5 + $0x38] sm:$0xff]
      %v1613 = vld [vmem:[%s6] sm:$0x1]
      %v1615 = vlaneseq
      %v1616 = vshrl.u32 %v1615, 7
      %v1617 = vsub.s32 0, %v1616
      %v1618 = vrot.slane %v1613, %v1617
      %vm1620 = vcmask 523264
      %v1622 = vsel %vm1620, %v1604, 0
      %1624 = vmatprep.subr.mxu0 0.0
      %1625 = vmatpush1.msra.mxu0 %v1605
      %1626 = vmatprep.subr.mxu0 0.0
      %1627 = vmatpush1.msra.mxu0 %v1606
      %1628 = vmatprep.subr.mxu0 0.0
      %1629 = vmatpush1.msra.mxu0 %v1607
      %1630 = vmatprep.subr.mxu0 0.0
      %1631 = vmatpush1.msra.mxu0 %v1608
      %1632 = vmatprep.subr.mxu0 0.0
      %1633 = vmatpush1.msra.mxu0 %v1609
      %1634 = vmatprep.subr.mxu0 0.0
      %1635 = vmatpush1.msra.mxu0 %v1610
      %1636 = vmatprep.subr.mxu0 0.0
      %1637 = vmatpush1.msra.mxu0 %v1611
      %1638 = vmatprep.subr.mxu0 0.0
      %1639 = vmatpush1.msra.mxu0 %v1612
      %1640 = vmatprep.subr.mxu0 0.0
      %1641 = vmatpush1.msra.mxu0 0.0
      %1642 = vmatprep.subr.mxu0 0.0
      %1643 = vmatpush1.msra.mxu0 0.0
      %1644 = vmatprep.subr.mxu0 0.0
      %1645 = vmatpush1.msra.mxu0 0.0
      %1646 = vmatprep.subr.mxu0 0.0
      %1647 = vmatpush1.msra.mxu0 0.0
      %1648 = vmatprep.subr.mxu0 0.0
      %1649 = vmatpush1.msra.mxu0 0.0
      %1650 = vmatprep.subr.mxu0 0.0
      %1651 = vmatpush1.msra.mxu0 0.0
      %1652 = vmatprep.subr.mxu0 0.0
      %1653 = vmatpush1.msra.mxu0 0.0
      %1654 = vmatprep.subr.mxu0 0.0
      %1655 = vmatpush1.msra.mxu0 0.0
      %1656 = vmatprep.subr.mxu0 0.0
      %1657 = vmatpush1.msra.mxu0 0.0
      %1658 = vmatprep.subr.mxu0 0.0
      %1659 = vmatpush1.msra.mxu0 0.0
      %1660 = vmatprep.subr.mxu0 0.0
      %1661 = vmatpush1.msra.mxu0 0.0
      %1662 = vmatprep.subr.mxu0 0.0
      %1663 = vmatpush1.msra.mxu0 0.0
      %1664 = vmatprep.subr.mxu0 0.0
      %1665 = vmatpush1.msra.mxu0 0.0
      %1666 = vmatprep.subr.mxu0 0.0
      %1667 = vmatpush1.msra.mxu0 0.0
      %1668 = vmatprep.subr.mxu0 0.0
      %1669 = vmatpush1.msra.mxu0 0.0
      %1670 = vmatprep.subr.mxu0 0.0
      %1671 = vmatpush1.msra.mxu0 0.0
      %1672 = vmatprep.subr.mxu0 0.0
      %1673 = vmatpush1.msra.mxu0 0.0
      %1674 = vmatprep.subr.mxu0 0.0
      %1675 = vmatpush1.msra.mxu0 0.0
      %1676 = vmatprep.subr.mxu0 0.0
      %1677 = vmatpush1.msra.mxu0 0.0
      %1678 = vmatprep.subr.mxu0 0.0
      %1679 = vmatpush1.msra.mxu0 0.0
      %1680 = vmatprep.subr.mxu0 0.0
      %1681 = vmatpush1.msra.mxu0 0.0
      %1682 = vmatprep.subr.mxu0 0.0
      %1683 = vmatpush1.msra.mxu0 0.0
      %1684 = vmatprep.subr.mxu0 0.0
      %1685 = vmatpush1.msra.mxu0 0.0
      %1686 = vmatprep.subr.mxu0 0.0
      %1687 = vmatpush1.msra.mxu0 0.0
      %1688 = vmatprep.mubr.f32.mxu0 0.0
      %1689 = vmatmul.mubr.f32.gmra.mrb[0].mxu0 %v1622
      %v1690 = vpop.f32.mrb[0].mxu0
      %v1691 = vadd.f32 %v1618, %v1690
      %v1692 = vpop.f32.mrb[0].mxu0
      %1693 = vdwg.mxu0
      %v1694 = vmul.f32 %v1691, %v1691
      %vm1695 = vcmask 517120
      %v1696 = vsel %vm1695, %v1694, 0.0
      %1697 = vadd.xlane.f32.xlu0 %v1696
      %v1698 = vpop.xlane.xlu0 %1697
      %v1699 = vmax.f32 %v1698, 1e-24
      %v1700 = vrsqrt.pop %v1699
      %v1701 = vmul.f32 %v1691, %v1700
      %1702 = vst.msk [vmem:[#allocation3] sm:$0x3] %vm1695, %v1701
    $region37: #{custom_cnn_forward.5} parent=1 // pred_fallthru
      _
    // Predicated region
    $region38: #{custom_cnn_forward.5} parent=1 // pred_check
      _
    $region39: #{custom_cnn_forward.5} parent=1 // pred_check_branch
      %1704 = sbr.rel (0) target = $region41
    $region40: #{custom_cnn_forward.5} parent=1 // pred_region
      %s1706 = ssub.s32 32, 32
      %1707 = vsyncadd [#allocation4], %s1706
      %s1709 = sshll.u32 [#allocation3], 4
      %s1710 = int_to_ptr.vmem [resolvable:$true] %s1709
      %1712 = dma.vmem_to_hbm [thread:$0]  %s1710, 32, %s7, [#allocation4]
    $region41: #{custom_cnn_forward.5} parent=1 // pred_fallthru
      _
    // Predicated region
    $region42: #{custom_cnn_forward.5} parent=1 // pred_check
      _
    $region43: #{custom_cnn_forward.5} parent=1 // pred_check_branch
      %1714 = sbr.rel (0) target = $region45
    $region44: #{custom_cnn_forward.5} parent=1 // pred_region
      %1715 = dma.done [#allocation4], 32
    $region45: #{custom_cnn_forward.5} parent=1 // pred_fallthru
      _
    %1716 = vsyncpa [#allocation4], 1

// kernel: custom_cnn_forward.3
$region0: #{custom_cnn_forward.3}
  #allocation0 [shape = 'u32[]', space=smem, size = 0x4, offset = 0x4, fixed_abs, tag = 'smem constant byte address 0x4 - core index']
  #allocation1 [shape = 'u32[144,128]{1,0:T(1,128)}', space=vmem, size = 0x12000, scoped, tag = 'internal scratch']
  %s0 = inlined_call_operand.vmem [shape: f32[2,304,1], index: 0, kind: input, shape index: {}]
  %s1 = inlined_call_operand.vmem [shape: f32[2,304,1], index: 1, kind: input, shape index: {}]
  %s2 = inlined_call_operand.vmem [shape: f32[9,256], index: 2, kind: input, shape index: {}]
  %s3 = inlined_call_operand.vmem [shape: f32[1,256], index: 3, kind: input, shape index: {}]
  %s4 = inlined_call_operand.vmem [shape: bf16[2,8,8,256], index: 4, kind: output, shape index: {}]
  %s5 = sld [smem:[#allocation0]]
  $region49: #{custom_cnn_forward.3} parent=0
    _
  %s7 = ssub.s32 1, %s5
  %s8 = scalar_select 0, %s7, %s5
  loop: start=0, step=1, limit=4
  $region2: #{custom_cnn_forward.3} parent=0 // loop_pre_header
    _
  $region3: #{custom_cnn_forward.3} parent=0 // loop_header
    %s10 = sphi 0, %s14
    %p11 = scmp.ge.s32.totalorder %s10, 4
    %s17 = sphi 0, %s29
    %s18 = sphi 0, %s25
    %s19 = sphi 0, %s17
    %s20 = sphi 0, %s18
    %s21 = sphi 0, %s19
    %s22 = sphi 0, %s20
    %s32 = sphi 0, %s34
    %s35 = sphi 0, %s32
    %s36 = sphi 0, %s35
    %s52 = sphi 0, %s36
    %s58 = sphi 0, %s60
    %s61 = sphi 0, %s58
    %s62 = sphi 0, %s61
    %s78 = sphi 0, %s62
    %s84 = sphi 0, %s86
    %s87 = sphi 0, %s84
    %s88 = sphi 0, %s87
    %s104 = sphi 0, %s88
    %s110 = sphi 0, %s112
    %s113 = sphi 0, %s110
    %s114 = sphi 0, %s113
    %s130 = sphi 0, %s114
    %s138 = sphi 0, %s140
    %s141 = sphi 0, %s138
    %s142 = sphi 0, %s141
    %s158 = sphi 0, %s142
  $region4: #{custom_cnn_forward.3} parent=0 // loop_header_branch
    %13 = sbr.rel (%p11) target = $region8
  $region5: #{custom_cnn_forward.3} parent=0 // loop_body
    %s15 = ssub.s32 %s10, 1
    %s16 = ssub.s32 %s10, 2
    %s23 = sadd.s32 1, %s18
    %p24 = scmp.ge.s32.totalorder %s23, 1
    %s25 = scalar_select %p24, 0, %s23
    %s26 = sadd.s32 1, %s17
    %s27 = scalar_select %p24, %s26, %s17
    %p28 = scmp.ge.s32.totalorder %s27, 2
    %s29 = scalar_select %p28, 0, %s27
    %s30 = ssub.s32 %s17, %s29
    %p31 = scmp.eq.s32.totalorder %s30, 0
    %s33 = sadd.s32 %s32, 1
    %s34 = scalar_select %p31, %s32, %s33
    %p37 = pneg %p31
    %p38 = scmp.eq.s32.totalorder %s10, 1
    %p39 = por %p37, %p38
    %p40 = scmp.ne.s32.totalorder %s32, %s35
    %p41 = scmp.eq.s32.totalorder %s10, 0
    %p42 = por %p40, %p41
    %p43 = scmp.ne.s32.totalorder %s32, %s35
    %p44 = scmp.eq.s32.totalorder %s15, 1
    %p45 = por %p43, %p44
    %p46 = scmp.ne.s32.totalorder %s35, %s36
    %p47 = scmp.eq.s32.totalorder %s15, 0
    %p48 = por %p46, %p47
    %p49 = scmp.ne.s32.totalorder %s35, %s36
    %p50 = scmp.eq.s32.totalorder %s16, 1
    %p51 = por %p49, %p50
    %p53 = scmp.ne.s32.totalorder %s36, %s52
    %p54 = scmp.eq.s32.totalorder %s16, 0
    %p55 = por %p53, %p54
    %s56 = ssub.s32 %s17, %s29
    %p57 = scmp.eq.s32.totalorder %s56, 0
    %s59 = sadd.s32 %s58, 1
    %s60 = scalar_select %p57, %s58, %s59
    %p63 = pneg %p57
    %p64 = scmp.eq.s32.totalorder %s10, 1
    %p65 = por %p63, %p64
    %p66 = scmp.ne.s32.totalorder %s58, %s61
    %p67 = scmp.eq.s32.totalorder %s10, 0
    %p68 = por %p66, %p67
    %p69 = scmp.ne.s32.totalorder %s58, %s61
    %p70 = scmp.eq.s32.totalorder %s15, 1
    %p71 = por %p69, %p70
    %p72 = scmp.ne.s32.totalorder %s61, %s62
    %p73 = scmp.eq.s32.totalorder %s15, 0
    %p74 = por %p72, %p73
    %p75 = scmp.ne.s32.totalorder %s61, %s62
    %p76 = scmp.eq.s32.totalorder %s16, 1
    %p77 = por %p75, %p76
    %p79 = scmp.ne.s32.totalorder %s62, %s78
    %p80 = scmp.eq.s32.totalorder %s16, 0
    %p81 = por %p79, %p80
    %s82 = ssub.s32 %s18, %s25
    %p83 = scmp.eq.s32.totalorder %s82, 0
    %s85 = sadd.s32 %s84, 1
    %s86 = scalar_select %p83, %s84, %s85
    %p89 = pneg %p83
    %p90 = scmp.eq.s32.totalorder %s10, 1
    %p91 = por %p89, %p90
    %p92 = scmp.ne.s32.totalorder %s84, %s87
    %p93 = scmp.eq.s32.totalorder %s10, 0
    %p94 = por %p92, %p93
    %p95 = scmp.ne.s32.totalorder %s84, %s87
    %p96 = scmp.eq.s32.totalorder %s15, 1
    %p97 = por %p95, %p96
    %p98 = scmp.ne.s32.totalorder %s87, %s88
    %p99 = scmp.eq.s32.totalorder %s15, 0
    %p100 = por %p98, %p99
    %p101 = scmp.ne.s32.totalorder %s87, %s88
    %p102 = scmp.eq.s32.totalorder %s16, 1
    %p103 = por %p101, %p102
    %p105 = scmp.ne.s32.totalorder %s88, %s104
    %p106 = scmp.eq.s32.totalorder %s16, 0
    %p107 = por %p105, %p106
    %s108 = ssub.s32 %s18, %s25
    %p109 = scmp.eq.s32.totalorder %s108, 0
    %s111 = sadd.s32 %s110, 1
    %s112 = scalar_select %p109, %s110, %s111
    %p115 = pneg %p109
    %p116 = scmp.eq.s32.totalorder %s10, 1
    %p117 = por %p115, %p116
    %p118 = scmp.ne.s32.totalorder %s110, %s113
    %p119 = scmp.eq.s32.totalorder %s10, 0
    %p120 = por %p118, %p119
    %p121 = scmp.ne.s32.totalorder %s110, %s113
    %p122 = scmp.eq.s32.totalorder %s15, 1
    %p123 = por %p121, %p122
    %p124 = scmp.ne.s32.totalorder %s113, %s114
    %p125 = scmp.eq.s32.totalorder %s15, 0
    %p126 = por %p124, %p125
    %p127 = scmp.ne.s32.totalorder %s113, %s114
    %p128 = scmp.eq.s32.totalorder %s16, 1
    %p129 = por %p127, %p128
    %p131 = scmp.ne.s32.totalorder %s114, %s130
    %p132 = scmp.eq.s32.totalorder %s16, 0
    %p133 = por %p131, %p132
    %s134 = ssub.s32 %s17, %s29
    %s135 = ssub.s32 %s18, %s25
    %s136 = sor.u32 %s134, %s135
    %p137 = scmp.eq.s32.totalorder %s136, 0
    %s139 = sadd.s32 %s138, 1
    %s140 = scalar_select %p137, %s138, %s139
    %p143 = pneg %p137
    %p144 = scmp.eq.s32.totalorder %s10, 1
    %p145 = por %p143, %p144
    %p146 = scmp.ne.s32.totalorder %s138, %s141
    %p147 = scmp.eq.s32.totalorder %s10, 0
    %p148 = por %p146, %p147
    %p149 = scmp.ne.s32.totalorder %s138, %s141
    %p150 = scmp.eq.s32.totalorder %s15, 1
    %p151 = por %p149, %p150
    %p152 = scmp.ne.s32.totalorder %s141, %s142
    %p153 = scmp.eq.s32.totalorder %s15, 0
    %p154 = por %p152, %p153
    %p155 = scmp.ne.s32.totalorder %s141, %s142
    %p156 = scmp.eq.s32.totalorder %s16, 1
    %p157 = por %p155, %p156
    %p159 = scmp.ne.s32.totalorder %s142, %s158
    %p160 = scmp.eq.s32.totalorder %s16, 0
    %p161 = por %p159, %p160
    %p162 = scmp.le.s32.totalorder 1, %s10
    %p163 = scmp.lt.s32.totalorder %s10, 3
    %p164 = pnand %p162, %p163
    %p165 = pneg %p164
    // Predicated region
    $region9: #{custom_cnn_forward.3} parent=5 // pred_check
      _
    $region10: #{custom_cnn_forward.3} parent=5 // pred_check_branch
      %167 = sbr.rel (%p164) target = $region12
    $region11: #{custom_cnn_forward.3} parent=5 // pred_region
      %s168 = ssub.s32 %s10, 1
      // Predicated region
      $region13: #{custom_cnn_forward.3} parent=11 // pred_check
        %p169 = pneg %p100
      $region14: #{custom_cnn_forward.3} parent=11 // pred_check_branch
        %171 = sbr.rel (%p169) target = $region16
      $region15: #{custom_cnn_forward.3} parent=11 // pred_region
        %s172 = smul.u32 2, %s20
        %p173 = scmp.lt.s32.totalorder %s172, 1
        %s174 = scalar_select %p173, %s172, 1
        %s175 = smul.addr %s174, 8
        %s176 = scalar_lea.vmem %s2, %s175
        %s177 = smul.u32 2, %s20
      $region16: #{custom_cnn_forward.3} parent=11 // pred_fallthru
        _
      // Predicated region
      $region17: #{custom_cnn_forward.3} parent=11 // pred_check
        %p178 = pneg %p126
      $region18: #{custom_cnn_forward.3} parent=11 // pred_check_branch
        %180 = sbr.rel (%p178) target = $region20
      $region19: #{custom_cnn_forward.3} parent=11 // pred_region
        %s181 = smul.u32 2, %s20
        %p182 = scmp.lt.s32.totalorder %s181, 1
        %s183 = scalar_select %p182, %s181, 1
        %s184 = scalar_lea.vmem %s3, %s183
        %s185 = smul.u32 2, %s20
      $region20: #{custom_cnn_forward.3} parent=11 // pred_fallthru
        _
    $region12: #{custom_cnn_forward.3} parent=5 // pred_fallthru
      _
    %p186 = scmp.lt.s32.totalorder %s10, 2
    // Predicated region
    $region21: #{custom_cnn_forward.3} parent=5 // pred_check
      %p187 = pneg %p186
    $region22: #{custom_cnn_forward.3} parent=5 // pred_check_branch
      %189 = sbr.rel (%p187) target = $region24
    $region23: #{custom_cnn_forward.3} parent=5 // pred_region
      // Predicated region
      $region25: #{custom_cnn_forward.3} parent=23 // pred_check
        %p190 = pneg %p42
      $region26: #{custom_cnn_forward.3} parent=23 // pred_check_branch
        %192 = sbr.rel (%p190) target = $region28
      $region27: #{custom_cnn_forward.3} parent=23 // pred_region
        %p193 = scmp.lt.s32.totalorder %s17, 1
        %s194 = scalar_select %p193, %s17, 1
        %s195 = smul.addr %s194, 38
        %s196 = smul.addr %s195, 8
        %s197 = scalar_lea.vmem %s0, %s196
      $region28: #{custom_cnn_forward.3} parent=23 // pred_fallthru
        _
      // Predicated region
      $region29: #{custom_cnn_forward.3} parent=23 // pred_check
        %p198 = pneg %p68
      $region30: #{custom_cnn_forward.3} parent=23 // pred_check_branch
        %200 = sbr.rel (%p198) target = $region32
      $region31: #{custom_cnn_forward.3} parent=23 // pred_region
        %p201 = scmp.lt.s32.totalorder %s17, 1
        %s202 = scalar_select %p201, %s17, 1
        %s203 = smul.addr %s202, 38
        %s204 = smul.addr %s203, 8
        %s205 = scalar_lea.vmem %s1, %s204
      $region32: #{custom_cnn_forward.3} parent=23 // pred_fallthru
        _
    $region24: #{custom_cnn_forward.3} parent=5 // pred_fallthru
      _
    %p206 = scmp.le.s32.totalorder 1, %s10
    %p207 = scmp.lt.s32.totalorder %s10, 3
    %p208 = pnand %p206, %p207
    %p209 = pneg %p208
    // Predicated region
    $region33: #{custom_cnn_forward.3} parent=5 // pred_check
      _
    $region34: #{custom_cnn_forward.3} parent=5 // pred_check_branch
      %211 = sbr.rel (%p208) target = $region36
    $region35: #{custom_cnn_forward.3} parent=5 // pred_region
      %s212 = ssub.s32 %s10, 1
      %p213 = scmp.lt.s32.totalorder %s19, 1
      %s214 = scalar_select %p213, %s19, 1
      %s215 = smul.addr %s214, 38
      %s216 = smul.addr %s215, 8
      %s217 = scalar_lea.vmem %s0, %s216
      %p218 = pneg %p48
      %p219 = pneg %p45
      %p220 = scmp.lt.s32.totalorder %s19, 1
      %s221 = scalar_select %p220, %s19, 1
      %s222 = smul.addr %s221, 38
      %s223 = smul.addr %s222, 8
      %s224 = scalar_lea.vmem %s1, %s223
      %p225 = pneg %p74
      %p226 = pneg %p71
      %s227 = smul.u32 2, %s20
      %p228 = scmp.lt.s32.totalorder %s227, 1
      %s229 = scalar_select %p228, %s227, 1
      %s230 = smul.addr %s229, 8
      %s231 = scalar_lea.vmem %s2, %s230
      %p232 = pneg %p100
      %p233 = pneg %p97
      %s234 = smul.u32 2, %s20
      %p235 = scmp.lt.s32.totalorder %s234, 1
      %s236 = scalar_select %p235, %s234, 1
      %s237 = scalar_lea.vmem %s3, %s236
      %p238 = pneg %p126
      %p239 = pneg %p123
      %p240 = pneg %p154
      %p241 = pneg %p151
      %s242 = smul.u32 2, %s20
      %p243 = scmp.lt.s32.totalorder %s19, 1
      %s244 = scalar_select %p243, %s19, 1
      %p245 = scmp.lt.s32.totalorder %s242, 1
      %s246 = scalar_select %p245, %s242, 1
      %s247 = smul.addr %s244, 16
      %s248 = sadd.s32 %s246, %s247
      %s249 = smul.addr %s248, 4
      %s250 = scalar_lea.vmem %s4, %s249
      %p251 = scmp.lt.s32.totalorder %s19, 1
      %s252 = scalar_select %p251, %s19, 1
      %s253 = smul.addr %s252, 38
      %s254 = smul.addr %s253, 8
      %s255 = scalar_lea.vmem %s0, %s254
      %p256 = scmp.lt.s32.totalorder %s19, 1
      %s257 = scalar_select %p256, %s19, 1
      %s258 = smul.addr %s257, 38
      %s259 = smul.addr %s258, 8
      %s260 = scalar_lea.vmem %s1, %s259
      %s261 = smul.u32 2, %s20
      %p262 = scmp.lt.s32.totalorder %s261, 1
      %s263 = scalar_select %p262, %s261, 1
      %s264 = smul.addr %s263, 8
      %s265 = scalar_lea.vmem %s2, %s264
      %s266 = smul.u32 2, %s20
      %s267 = smul.u32 2, %s20
      %p268 = scmp.lt.s32.totalorder %s267, 1
      %s269 = scalar_select %p268, %s267, 1
      %s270 = scalar_lea.vmem %s3, %s269
      %s271 = smul.u32 2, %s20
      %s272 = smul.u32 2, %s20
      %p273 = scmp.lt.s32.totalorder %s19, 1
      %s274 = scalar_select %p273, %s19, 1
      %p275 = scmp.lt.s32.totalorder %s272, 1
      %s276 = scalar_select %p275, %s272, 1
      %s277 = smul.addr %s274, 16
      %s278 = sadd.s32 %s276, %s277
      %s279 = smul.addr %s278, 4
      %s280 = scalar_lea.vmem %s4, %s279
      %s281 = smul.u32 2, %s20
      %v282 = vld [vmem:[%s265] ss:$8 sm:$0x3]
      %v283 = vld [vmem:[%s255] sm:$0xff]
      %v284 = vld [vmem:[%s255 + $0x10] sm:$0xff]
      %v285 = vld [vmem:[%s255 + $0x20] sm:$0xff]
      %v286 = vld [vmem:[%s255 + $0x30] sm:$0xff]
      %v287 = vld [vmem:[%s255 + $0x40] sm:$0xff]
      %v288 = vld [vmem:[%s255 + $0x50] sm:$0xff]
      %v289 = vld [vmem:[%s255 + $0x60] sm:$0xff]
      %v290 = vld [vmem:[%s255 + $0x70] sm:$0xff]
      %v291 = vld [vmem:[%s255 + $0x80] sm:$0xff]
      %v292 = vld [vmem:[%s255 + $0x90] sm:$0xff]
      %v293 = vld [vmem:[%s255 + $0xa0] sm:$0xff]
      %v294 = vld [vmem:[%s255 + $0xb0] sm:$0xff]
      %v295 = vld [vmem:[%s255 + $0xc0] sm:$0xff]
      %v296 = vld [vmem:[%s255 + $0xd0] sm:$0xff]
      %v297 = vld [vmem:[%s255 + $0xe0] sm:$0xff]
      %v298 = vld [vmem:[%s255 + $0xf0] sm:$0xff]
      %300 = vset.pattern.permute.xlu0 0
      %301 = vperm.xlu0 %300, %v283
      %v302 = vpop.permute.xlu0 %301
      %305 = vset.pattern.permute.xlu0 0
      %306 = vperm.xlu0 %305, %v284
      %v307 = vpop.permute.xlu0 %306
      %310 = vset.pattern.permute.xlu0 0
      %311 = vperm.xlu0 %310, %v285
      %v312 = vpop.permute.xlu0 %311
      %315 = vset.pattern.permute.xlu0 0
      %316 = vperm.xlu0 %315, %v286
      %v317 = vpop.permute.xlu0 %316
      %320 = vset.pattern.permute.xlu0 0
      %321 = vperm.xlu0 %320, %v287
      %v322 = vpop.permute.xlu0 %321
      %325 = vset.pattern.permute.xlu0 0
      %326 = vperm.xlu0 %325, %v288
      %v327 = vpop.permute.xlu0 %326
      %330 = vset.pattern.permute.xlu0 0
      %331 = vperm.xlu0 %330, %v289
      %v332 = vpop.permute.xlu0 %331
      %335 = vset.pattern.permute.xlu0 0
      %336 = vperm.xlu0 %335, %v290
      %v337 = vpop.permute.xlu0 %336
      %340 = vset.pattern.permute.xlu0 0
      %341 = vperm.xlu0 %340, %v291
      %v342 = vpop.permute.xlu0 %341
      %345 = vset.pattern.permute.xlu0 0
      %346 = vperm.xlu0 %345, %v292
      %v347 = vpop.permute.xlu0 %346
      %350 = vset.pattern.permute.xlu0 0
      %351 = vperm.xlu0 %350, %v293
      %v352 = vpop.permute.xlu0 %351
      %355 = vset.pattern.permute.xlu0 0
      %356 = vperm.xlu0 %355, %v294
      %v357 = vpop.permute.xlu0 %356
      %360 = vset.pattern.permute.xlu0 0
      %361 = vperm.xlu0 %360, %v295
      %v362 = vpop.permute.xlu0 %361
      %365 = vset.pattern.permute.xlu0 0
      %366 = vperm.xlu0 %365, %v296
      %v367 = vpop.permute.xlu0 %366
      %370 = vset.pattern.permute.xlu0 0
      %371 = vperm.xlu0 %370, %v297
      %v372 = vpop.permute.xlu0 %371
      %375 = vset.pattern.permute.xlu0 0
      %376 = vperm.xlu0 %375, %v298
      %v377 = vpop.permute.xlu0 %376
      %v380 = vlaneseq
      %v381 = vshrl.u32 %v380, 7
      %v382 = vsub.s32 0, %v381
      %v383 = vrot.slane %v282, %v382
      %v384 = vlaneseq
      %v385 = vshrl.u32 %v384, 7
      %v386 = vsub.s32 1, %v385
      %v387 = vrot.slane %v282, %v386
      %v390 = vmul.f32 %v302, %v383
      %v391 = vmul.f32 %v302, %v387
      %v392 = vmul.f32 %v307, %v383
      %v393 = vmul.f32 %v307, %v387
      %v394 = vmul.f32 %v312, %v383
      %v395 = vmul.f32 %v312, %v387
      %v396 = vmul.f32 %v317, %v383
      %v397 = vmul.f32 %v317, %v387
      %v398 = vmul.f32 %v322, %v383
      %v399 = vmul.f32 %v322, %v387
      %v400 = vmul.f32 %v327, %v383
      %v401 = vmul.f32 %v327, %v387
      %v402 = vmul.f32 %v332, %v383
      %v403 = vmul.f32 %v332, %v387
      %v404 = vmul.f32 %v337, %v383
      %v405 = vmul.f32 %v337, %v387
      %v406 = vmul.f32 %v342, %v383
      %v407 = vmul.f32 %v342, %v387
      %v408 = vmul.f32 %v347, %v383
      %v409 = vmul.f32 %v347, %v387
      %v410 = vmul.f32 %v352, %v383
      %v411 = vmul.f32 %v352, %v387
      %v412 = vmul.f32 %v357, %v383
      %v413 = vmul.f32 %v357, %v387
      %v414 = vmul.f32 %v362, %v383
      %v415 = vmul.f32 %v362, %v387
      %v416 = vmul.f32 %v367, %v383
      %v417 = vmul.f32 %v367, %v387
      %v418 = vmul.f32 %v372, %v383
      %v419 = vmul.f32 %v372, %v387
      %v420 = vmul.f32 %v377, %v383
      %v421 = vmul.f32 %v377, %v387
      %v422 = vadd.f32 %v390, 0.0
      %v423 = vadd.f32 %v391, 0.0
      %v424 = vadd.f32 %v392, 0.0
      %v425 = vadd.f32 %v393, 0.0
      %v426 = vadd.f32 %v394, 0.0
      %v427 = vadd.f32 %v395, 0.0
      %v428 = vadd.f32 %v396, 0.0
      %v429 = vadd.f32 %v397, 0.0
      %v430 = vadd.f32 %v398, 0.0
      %v431 = vadd.f32 %v399, 0.0
      %v432 = vadd.f32 %v400, 0.0
      %v433 = vadd.f32 %v401, 0.0
      %v434 = vadd.f32 %v402, 0.0
      %v435 = vadd.f32 %v403, 0.0
      %v436 = vadd.f32 %v404, 0.0
      %v437 = vadd.f32 %v405, 0.0
      %v438 = vadd.f32 %v406, 0.0
      %v439 = vadd.f32 %v407, 0.0
      %v440 = vadd.f32 %v408, 0.0
      %v441 = vadd.f32 %v409, 0.0
      %v442 = vadd.f32 %v410, 0.0
      %v443 = vadd.f32 %v411, 0.0
      %v444 = vadd.f32 %v412, 0.0
      %v445 = vadd.f32 %v413, 0.0
      %v446 = vadd.f32 %v414, 0.0
      %v447 = vadd.f32 %v415, 0.0
      %v448 = vadd.f32 %v416, 0.0
      %v449 = vadd.f32 %v417, 0.0
      %v450 = vadd.f32 %v418, 0.0
      %v451 = vadd.f32 %v419, 0.0
      %v452 = vadd.f32 %v420, 0.0
      %v453 = vadd.f32 %v421, 0.0
      %s454 = scalar_lea.vmem %s265, 1
      %v455 = vld [vmem:[%s454] ss:$8 sm:$0x3]
      %v456 = vld [vmem:[%s260] sm:$0xff]
      %v457 = vld [vmem:[%s260 + $0x10] sm:$0xff]
      %v458 = vld [vmem:[%s260 + $0x20] sm:$0xff]
      %v459 = vld [vmem:[%s260 + $0x30] sm:$0xff]
      %v460 = vld [vmem:[%s260 + $0x40] sm:$0xff]
      %v461 = vld [vmem:[%s260 + $0x50] sm:$0xff]
      %v462 = vld [vmem:[%s260 + $0x60] sm:$0xff]
      %v463 = vld [vmem:[%s260 + $0x70] sm:$0xff]
      %v464 = vld [vmem:[%s260 + $0x80] sm:$0xff]
      %v465 = vld [vmem:[%s260 + $0x90] sm:$0xff]
      %v466 = vld [vmem:[%s260 + $0xa0] sm:$0xff]
      %v467 = vld [vmem:[%s260 + $0xb0] sm:$0xff]
      %v468 = vld [vmem:[%s260 + $0xc0] sm:$0xff]
      %v469 = vld [vmem:[%s260 + $0xd0] sm:$0xff]
      %v470 = vld [vmem:[%s260 + $0xe0] sm:$0xff]
      %v471 = vld [vmem:[%s260 + $0xf0] sm:$0xff]
      %473 = vset.pattern.permute.xlu0 0
      %474 = vperm.xlu0 %473, %v456
      %v475 = vpop.permute.xlu0 %474
      %478 = vset.pattern.permute.xlu0 0
      %479 = vperm.xlu0 %478, %v457
      %v480 = vpop.permute.xlu0 %479
      %483 = vset.pattern.permute.xlu0 0
      %484 = vperm.xlu0 %483, %v458
      %v485 = vpop.permute.xlu0 %484
      %488 = vset.pattern.permute.xlu0 0
      %489 = vperm.xlu0 %488, %v459
      %v490 = vpop.permute.xlu0 %489
      %493 = vset.pattern.permute.xlu0 0
      %494 = vperm.xlu0 %493, %v460
      %v495 = vpop.permute.xlu0 %494
      %498 = vset.pattern.permute.xlu0 0
      %499 = vperm.xlu0 %498, %v461
      %v500 = vpop.permute.xlu0 %499
      %503 = vset.pattern.permute.xlu0 0
      %504 = vperm.xlu0 %503, %v462
      %v505 = vpop.permute.xlu0 %504
      %508 = vset.pattern.permute.xlu0 0
      %509 = vperm.xlu0 %508, %v463
      %v510 = vpop.permute.xlu0 %509
      %513 = vset.pattern.permute.xlu0 0
      %514 = vperm.xlu0 %513, %v464
      %v515 = vpop.permute.xlu0 %514
      %518 = vset.pattern.permute.xlu0 0
      %519 = vperm.xlu0 %518, %v465
      %v520 = vpop.permute.xlu0 %519
      %523 = vset.pattern.permute.xlu0 0
      %524 = vperm.xlu0 %523, %v466
      %v525 = vpop.permute.xlu0 %524
      %528 = vset.pattern.permute.xlu0 0
      %529 = vperm.xlu0 %528, %v467
      %v530 = vpop.permute.xlu0 %529
      %533 = vset.pattern.permute.xlu0 0
      %534 = vperm.xlu0 %533, %v468
      %v535 = vpop.permute.xlu0 %534
      %538 = vset.pattern.permute.xlu0 0
      %539 = vperm.xlu0 %538, %v469
      %v540 = vpop.permute.xlu0 %539
      %543 = vset.pattern.permute.xlu0 0
      %544 = vperm.xlu0 %543, %v470
      %v545 = vpop.permute.xlu0 %544
      %548 = vset.pattern.permute.xlu0 0
      %549 = vperm.xlu0 %548, %v471
      %v550 = vpop.permute.xlu0 %549
      %v553 = vlaneseq
      %v554 = vshrl.u32 %v553, 7
      %v555 = vsub.s32 0, %v554
      %v556 = vrot.slane %v455, %v555
      %v557 = vlaneseq
      %v558 = vshrl.u32 %v557, 7
      %v559 = vsub.s32 1, %v558
      %v560 = vrot.slane %v455, %v559
      %v563 = vmul.f32 %v475, %v556
      %v564 = vmul.f32 %v475, %v560
      %v565 = vmul.f32 %v480, %v556
      %v566 = vmul.f32 %v480, %v560
      %v567 = vmul.f32 %v485, %v556
      %v568 = vmul.f32 %v485, %v560
      %v569 = vmul.f32 %v490, %v556
      %v570 = vmul.f32 %v490, %v560
      %v571 = vmul.f32 %v495, %v556
      %v572 = vmul.f32 %v495, %v560
      %v573 = vmul.f32 %v500, %v556
      %v574 = vmul.f32 %v500, %v560
      %v575 = vmul.f32 %v505, %v556
      %v576 = vmul.f32 %v505, %v560
      %v577 = vmul.f32 %v510, %v556
      %v578 = vmul.f32 %v510, %v560
      %v579 = vmul.f32 %v515, %v556
      %v580 = vmul.f32 %v515, %v560
      %v581 = vmul.f32 %v520, %v556
      %v582 = vmul.f32 %v520, %v560
      %v583 = vmul.f32 %v525, %v556
      %v584 = vmul.f32 %v525, %v560
      %v585 = vmul.f32 %v530, %v556
      %v586 = vmul.f32 %v530, %v560
      %v587 = vmul.f32 %v535, %v556
      %v588 = vmul.f32 %v535, %v560
      %v589 = vmul.f32 %v540, %v556
      %v590 = vmul.f32 %v540, %v560
      %v591 = vmul.f32 %v545, %v556
      %v592 = vmul.f32 %v545, %v560
      %v593 = vmul.f32 %v550, %v556
      %v594 = vmul.f32 %v550, %v560
      %v595 = vadd.f32 %v422, %v563
      %v596 = vadd.f32 %v423, %v564
      %v597 = vadd.f32 %v424, %v565
      %v598 = vadd.f32 %v425, %v566
      %v599 = vadd.f32 %v426, %v567
      %v600 = vadd.f32 %v427, %v568
      %v601 = vadd.f32 %v428, %v569
      %v602 = vadd.f32 %v429, %v570
      %v603 = vadd.f32 %v430, %v571
      %v604 = vadd.f32 %v431, %v572
      %v605 = vadd.f32 %v432, %v573
      %v606 = vadd.f32 %v433, %v574
      %v607 = vadd.f32 %v434, %v575
      %v608 = vadd.f32 %v435, %v576
      %v609 = vadd.f32 %v436, %v577
      %v610 = vadd.f32 %v437, %v578
      %v611 = vadd.f32 %v438, %v579
      %v612 = vadd.f32 %v439, %v580
      %v613 = vadd.f32 %v440, %v581
      %v614 = vadd.f32 %v441, %v582
      %v615 = vadd.f32 %v442, %v583
      %v616 = vadd.f32 %v443, %v584
      %v617 = vadd.f32 %v444, %v585
      %v618 = vadd.f32 %v445, %v586
      %v619 = vadd.f32 %v446, %v587
      %v620 = vadd.f32 %v447, %v588
      %v621 = vadd.f32 %v448, %v589
      %v622 = vadd.f32 %v449, %v590
      %v623 = vadd.f32 %v450, %v591
      %v624 = vadd.f32 %v451, %v592
      %v625 = vadd.f32 %v452, %v593
      %v626 = vadd.f32 %v453, %v594
      %s627 = scalar_lea.vmem %s265, 2
      %v628 = vld [vmem:[%s627] ss:$8 sm:$0x3]
      %v629 = vld [vmem:[%s255 + $0x1] sm:$0xff]
      %v630 = vld [vmem:[%s255 + $0x11] sm:$0xff]
      %v631 = vld [vmem:[%s255 + $0x21] sm:$0xff]
      %v632 = vld [vmem:[%s255 + $0x31] sm:$0xff]
      %v633 = vld [vmem:[%s255 + $0x41] sm:$0xff]
      %v634 = vld [vmem:[%s255 + $0x51] sm:$0xff]
      %v635 = vld [vmem:[%s255 + $0x61] sm:$0xff]
      %v636 = vld [vmem:[%s255 + $0x71] sm:$0xff]
      %v637 = vld [vmem:[%s255 + $0x81] sm:$0xff]
      %v638 = vld [vmem:[%s255 + $0x91] sm:$0xff]
      %v639 = vld [vmem:[%s255 + $0xa1] sm:$0xff]
      %v640 = vld [vmem:[%s255 + $0xb1] sm:$0xff]
      %v641 = vld [vmem:[%s255 + $0xc1] sm:$0xff]
      %v642 = vld [vmem:[%s255 + $0xd1] sm:$0xff]
      %v643 = vld [vmem:[%s255 + $0xe1] sm:$0xff]
      %v644 = vld [vmem:[%s255 + $0xf1] sm:$0xff]
      %646 = vset.pattern.permute.xlu0 0
      %647 = vperm.xlu0 %646, %v629
      %v648 = vpop.permute.xlu0 %647
      %651 = vset.pattern.permute.xlu0 0
      %652 = vperm.xlu0 %651, %v630
      %v653 = vpop.permute.xlu0 %652
      %656 = vset.pattern.permute.xlu0 0
      %657 = vperm.xlu0 %656, %v631
      %v658 = vpop.permute.xlu0 %657
      %661 = vset.pattern.permute.xlu0 0
      %662 = vperm.xlu0 %661, %v632
      %v663 = vpop.permute.xlu0 %662
      %666 = vset.pattern.permute.xlu0 0
      %667 = vperm.xlu0 %666, %v633
      %v668 = vpop.permute.xlu0 %667
      %671 = vset.pattern.permute.xlu0 0
      %672 = vperm.xlu0 %671, %v634
      %v673 = vpop.permute.xlu0 %672
      %676 = vset.pattern.permute.xlu0 0
      %677 = vperm.xlu0 %676, %v635
      %v678 = vpop.permute.xlu0 %677
      %681 = vset.pattern.permute.xlu0 0
      %682 = vperm.xlu0 %681, %v636
      %v683 = vpop.permute.xlu0 %682
      %686 = vset.pattern.permute.xlu0 0
      %687 = vperm.xlu0 %686, %v637
      %v688 = vpop.permute.xlu0 %687
      %691 = vset.pattern.permute.xlu0 0
      %692 = vperm.xlu0 %691, %v638
      %v693 = vpop.permute.xlu0 %692
      %696 = vset.pattern.permute.xlu0 0
      %697 = vperm.xlu0 %696, %v639
      %v698 = vpop.permute.xlu0 %697
      %701 = vset.pattern.permute.xlu0 0
      %702 = vperm.xlu0 %701, %v640
      %v703 = vpop.permute.xlu0 %702
      %706 = vset.pattern.permute.xlu0 0
      %707 = vperm.xlu0 %706, %v641
      %v708 = vpop.permute.xlu0 %707
      %711 = vset.pattern.permute.xlu0 0
      %712 = vperm.xlu0 %711, %v642
      %v713 = vpop.permute.xlu0 %712
      %716 = vset.pattern.permute.xlu0 0
      %717 = vperm.xlu0 %716, %v643
      %v718 = vpop.permute.xlu0 %717
      %721 = vset.pattern.permute.xlu0 0
      %722 = vperm.xlu0 %721, %v644
      %v723 = vpop.permute.xlu0 %722
      %v726 = vlaneseq
      %v727 = vshrl.u32 %v726, 7
      %v728 = vsub.s32 0, %v727
      %v729 = vrot.slane %v628, %v728
      %v730 = vlaneseq
      %v731 = vshrl.u32 %v730, 7
      %v732 = vsub.s32 1, %v731
      %v733 = vrot.slane %v628, %v732
      %v736 = vmul.f32 %v648, %v729
      %v737 = vmul.f32 %v648, %v733
      %v738 = vmul.f32 %v653, %v729
      %v739 = vmul.f32 %v653, %v733
      %v740 = vmul.f32 %v658, %v729
      %v741 = vmul.f32 %v658, %v733
      %v742 = vmul.f32 %v663, %v729
      %v743 = vmul.f32 %v663, %v733
      %v744 = vmul.f32 %v668, %v729
      %v745 = vmul.f32 %v668, %v733
      %v746 = vmul.f32 %v673, %v729
      %v747 = vmul.f32 %v673, %v733
      %v748 = vmul.f32 %v678, %v729
      %v749 = vmul.f32 %v678, %v733
      %v750 = vmul.f32 %v683, %v729
      %v751 = vmul.f32 %v683, %v733
      %v752 = vmul.f32 %v688, %v729
      %v753 = vmul.f32 %v688, %v733
      %v754 = vmul.f32 %v693, %v729
      %v755 = vmul.f32 %v693, %v733
      %v756 = vmul.f32 %v698, %v729
      %v757 = vmul.f32 %v698, %v733
      %v758 = vmul.f32 %v703, %v729
      %v759 = vmul.f32 %v703, %v733
      %v760 = vmul.f32 %v708, %v729
      %v761 = vmul.f32 %v708, %v733
      %v762 = vmul.f32 %v713, %v729
      %v763 = vmul.f32 %v713, %v733
      %v764 = vmul.f32 %v718, %v729
      %v765 = vmul.f32 %v718, %v733
      %v766 = vmul.f32 %v723, %v729
      %v767 = vmul.f32 %v723, %v733
      %v768 = vadd.f32 %v595, %v736
      %v769 = vadd.f32 %v596, %v737
      %v770 = vadd.f32 %v597, %v738
      %v771 = vadd.f32 %v598, %v739
      %v772 = vadd.f32 %v599, %v740
      %v773 = vadd.f32 %v600, %v741
      %v774 = vadd.f32 %v601, %v742
      %v775 = vadd.f32 %v602, %v743
      %v776 = vadd.f32 %v603, %v744
      %v777 = vadd.f32 %v604, %v745
      %v778 = vadd.f32 %v605, %v746
      %v779 = vadd.f32 %v606, %v747
      %v780 = vadd.f32 %v607, %v748
      %v781 = vadd.f32 %v608, %v749
      %v782 = vadd.f32 %v609, %v750
      %v783 = vadd.f32 %v610, %v751
      %v784 = vadd.f32 %v611, %v752
      %v785 = vadd.f32 %v612, %v753
      %v786 = vadd.f32 %v613, %v754
      %v787 = vadd.f32 %v614, %v755
      %v788 = vadd.f32 %v615, %v756
      %v789 = vadd.f32 %v616, %v757
      %v790 = vadd.f32 %v617, %v758
      %v791 = vadd.f32 %v618, %v759
      %v792 = vadd.f32 %v619, %v760
      %v793 = vadd.f32 %v620, %v761
      %v794 = vadd.f32 %v621, %v762
      %v795 = vadd.f32 %v622, %v763
      %v796 = vadd.f32 %v623, %v764
      %v797 = vadd.f32 %v624, %v765
      %v798 = vadd.f32 %v625, %v766
      %v799 = vadd.f32 %v626, %v767
      %s800 = scalar_lea.vmem %s265, 3
      %v801 = vld [vmem:[%s800] ss:$8 sm:$0x3]
      %v802 = vld [vmem:[%s255 + $0x10] sm:$0xff]
      %v803 = vld [vmem:[%s255 + $0x20] sm:$0xff]
      %v804 = vld [vmem:[%s255 + $0x30] sm:$0xff]
      %v805 = vld [vmem:[%s255 + $0x40] sm:$0xff]
      %v806 = vld [vmem:[%s255 + $0x50] sm:$0xff]
      %v807 = vld [vmem:[%s255 + $0x60] sm:$0xff]
      %v808 = vld [vmem:[%s255 + $0x70] sm:$0xff]
      %v809 = vld [vmem:[%s255 + $0x80] sm:$0xff]
      %v810 = vld [vmem:[%s255 + $0x90] sm:$0xff]
      %v811 = vld [vmem:[%s255 + $0xa0] sm:$0xff]
      %v812 = vld [vmem:[%s255 + $0xb0] sm:$0xff]
      %v813 = vld [vmem:[%s255 + $0xc0] sm:$0xff]
      %v814 = vld [vmem:[%s255 + $0xd0] sm:$0xff]
      %v815 = vld [vmem:[%s255 + $0xe0] sm:$0xff]
      %v816 = vld [vmem:[%s255 + $0xf0] sm:$0xff]
      %v817 = vld [vmem:[%s255 + $0x100] sm:$0xff]
      %819 = vset.pattern.permute.xlu0 0
      %820 = vperm.xlu0 %819, %v802
      %v821 = vpop.permute.xlu0 %820
      %824 = vset.pattern.permute.xlu0 0
      %825 = vperm.xlu0 %824, %v803
      %v826 = vpop.permute.xlu0 %825
      %829 = vset.pattern.permute.xlu0 0
      %830 = vperm.xlu0 %829, %v804
      %v831 = vpop.permute.xlu0 %830
      %834 = vset.pattern.permute.xlu0 0
      %835 = vperm.xlu0 %834, %v805
      %v836 = vpop.permute.xlu0 %835
      %839 = vset.pattern.permute.xlu0 0
      %840 = vperm.xlu0 %839, %v806
      %v841 = vpop.permute.xlu0 %840
      %844 = vset.pattern.permute.xlu0 0
      %845 = vperm.xlu0 %844, %v807
      %v846 = vpop.permute.xlu0 %845
      %849 = vset.pattern.permute.xlu0 0
      %850 = vperm.xlu0 %849, %v808
      %v851 = vpop.permute.xlu0 %850
      %854 = vset.pattern.permute.xlu0 0
      %855 = vperm.xlu0 %854, %v809
      %v856 = vpop.permute.xlu0 %855
      %859 = vset.pattern.permute.xlu0 0
      %860 = vperm.xlu0 %859, %v810
      %v861 = vpop.permute.xlu0 %860
      %864 = vset.pattern.permute.xlu0 0
      %865 = vperm.xlu0 %864, %v811
      %v866 = vpop.permute.xlu0 %865
      %869 = vset.pattern.permute.xlu0 0
      %870 = vperm.xlu0 %869, %v812
      %v871 = vpop.permute.xlu0 %870
      %874 = vset.pattern.permute.xlu0 0
      %875 = vperm.xlu0 %874, %v813
      %v876 = vpop.permute.xlu0 %875
      %879 = vset.pattern.permute.xlu0 0
      %880 = vperm.xlu0 %879, %v814
      %v881 = vpop.permute.xlu0 %880
      %884 = vset.pattern.permute.xlu0 0
      %885 = vperm.xlu0 %884, %v815
      %v886 = vpop.permute.xlu0 %885
      %889 = vset.pattern.permute.xlu0 0
      %890 = vperm.xlu0 %889, %v816
      %v891 = vpop.permute.xlu0 %890
      %894 = vset.pattern.permute.xlu0 0
      %895 = vperm.xlu0 %894, %v817
      %v896 = vpop.permute.xlu0 %895
      %v899 = vlaneseq
      %v900 = vshrl.u32 %v899, 7
      %v901 = vsub.s32 0, %v900
      %v902 = vrot.slane %v801, %v901
      %v903 = vlaneseq
      %v904 = vshrl.u32 %v903, 7
      %v905 = vsub.s32 1, %v904
      %v906 = vrot.slane %v801, %v905
      %v909 = vmul.f32 %v821, %v902
      %v910 = vmul.f32 %v821, %v906
      %v911 = vmul.f32 %v826, %v902
      %v912 = vmul.f32 %v826, %v906
      %v913 = vmul.f32 %v831, %v902
      %v914 = vmul.f32 %v831, %v906
      %v915 = vmul.f32 %v836, %v902
      %v916 = vmul.f32 %v836, %v906
      %v917 = vmul.f32 %v841, %v902
      %v918 = vmul.f32 %v841, %v906
      %v919 = vmul.f32 %v846, %v902
      %v920 = vmul.f32 %v846, %v906
      %v921 = vmul.f32 %v851, %v902
      %v922 = vmul.f32 %v851, %v906
      %v923 = vmul.f32 %v856, %v902
      %v924 = vmul.f32 %v856, %v906
      %v925 = vmul.f32 %v861, %v902
      %v926 = vmul.f32 %v861, %v906
      %v927 = vmul.f32 %v866, %v902
      %v928 = vmul.f32 %v866, %v906
      %v929 = vmul.f32 %v871, %v902
      %v930 = vmul.f32 %v871, %v906
      %v931 = vmul.f32 %v876, %v902
      %v932 = vmul.f32 %v876, %v906
      %v933 = vmul.f32 %v881, %v902
      %v934 = vmul.f32 %v881, %v906
      %v935 = vmul.f32 %v886, %v902
      %v936 = vmul.f32 %v886, %v906
      %v937 = vmul.f32 %v891, %v902
      %v938 = vmul.f32 %v891, %v906
      %v939 = vmul.f32 %v896, %v902
      %v940 = vmul.f32 %v896, %v906
      %v941 = vadd.f32 %v768, %v909
      %v942 = vadd.f32 %v769, %v910
      %v943 = vadd.f32 %v770, %v911
      %v944 = vadd.f32 %v771, %v912
      %v945 = vadd.f32 %v772, %v913
      %v946 = vadd.f32 %v773, %v914
      %v947 = vadd.f32 %v774, %v915
      %v948 = vadd.f32 %v775, %v916
      %v949 = vadd.f32 %v776, %v917
      %v950 = vadd.f32 %v777, %v918
      %v951 = vadd.f32 %v778, %v919
      %v952 = vadd.f32 %v779, %v920
      %v953 = vadd.f32 %v780, %v921
      %v954 = vadd.f32 %v781, %v922
      %v955 = vadd.f32 %v782, %v923
      %v956 = vadd.f32 %v783, %v924
      %v957 = vadd.f32 %v784, %v925
      %v958 = vadd.f32 %v785, %v926
      %v959 = vadd.f32 %v786, %v927
      %v960 = vadd.f32 %v787, %v928
      %v961 = vadd.f32 %v788, %v929
      %v962 = vadd.f32 %v789, %v930
      %v963 = vadd.f32 %v790, %v931
      %v964 = vadd.f32 %v791, %v932
      %v965 = vadd.f32 %v792, %v933
      %v966 = vadd.f32 %v793, %v934
      %v967 = vadd.f32 %v794, %v935
      %v968 = vadd.f32 %v795, %v936
      %v969 = vadd.f32 %v796, %v937
      %v970 = vadd.f32 %v797, %v938
      %v971 = vadd.f32 %v798, %v939
      %v972 = vadd.f32 %v799, %v940
      %s973 = scalar_lea.vmem %s265, 4
      %v974 = vld [vmem:[%s973] ss:$8 sm:$0x3]
      %v975 = vld [vmem:[%s260 + $0x10] sm:$0xff]
      %v976 = vld [vmem:[%s260 + $0x20] sm:$0xff]
      %v977 = vld [vmem:[%s260 + $0x30] sm:$0xff]
      %v978 = vld [vmem:[%s260 + $0x40] sm:$0xff]
      %v979 = vld [vmem:[%s260 + $0x50] sm:$0xff]
      %v980 = vld [vmem:[%s260 + $0x60] sm:$0xff]
      %v981 = vld [vmem:[%s260 + $0x70] sm:$0xff]
      %v982 = vld [vmem:[%s260 + $0x80] sm:$0xff]
      %v983 = vld [vmem:[%s260 + $0x90] sm:$0xff]
      %v984 = vld [vmem:[%s260 + $0xa0] sm:$0xff]
      %v985 = vld [vmem:[%s260 + $0xb0] sm:$0xff]
      %v986 = vld [vmem:[%s260 + $0xc0] sm:$0xff]
      %v987 = vld [vmem:[%s260 + $0xd0] sm:$0xff]
      %v988 = vld [vmem:[%s260 + $0xe0] sm:$0xff]
      %v989 = vld [vmem:[%s260 + $0xf0] sm:$0xff]
      %v990 = vld [vmem:[%s260 + $0x100] sm:$0xff]
      %992 = vset.pattern.permute.xlu0 0
      %993 = vperm.xlu0 %992, %v975
      %v994 = vpop.permute.xlu0 %993
      %997 = vset.pattern.permute.xlu0 0
      %998 = vperm.xlu0 %997, %v976
      %v999 = vpop.permute.xlu0 %998
      %1002 = vset.pattern.permute.xlu0 0
      %1003 = vperm.xlu0 %1002, %v977
      %v1004 = vpop.permute.xlu0 %1003
      %1007 = vset.pattern.permute.xlu0 0
      %1008 = vperm.xlu0 %1007, %v978
      %v1009 = vpop.permute.xlu0 %1008
      %1012 = vset.pattern.permute.xlu0 0
      %1013 = vperm.xlu0 %1012, %v979
      %v1014 = vpop.permute.xlu0 %1013
      %1017 = vset.pattern.permute.xlu0 0
      %1018 = vperm.xlu0 %1017, %v980
      %v1019 = vpop.permute.xlu0 %1018
      %1022 = vset.pattern.permute.xlu0 0
      %1023 = vperm.xlu0 %1022, %v981
      %v1024 = vpop.permute.xlu0 %1023
      %1027 = vset.pattern.permute.xlu0 0
      %1028 = vperm.xlu0 %1027, %v982
      %v1029 = vpop.permute.xlu0 %1028
      %1032 = vset.pattern.permute.xlu0 0
      %1033 = vperm.xlu0 %1032, %v983
      %v1034 = vpop.permute.xlu0 %1033
      %1037 = vset.pattern.permute.xlu0 0
      %1038 = vperm.xlu0 %1037, %v984
      %v1039 = vpop.permute.xlu0 %1038
      %1042 = vset.pattern.permute.xlu0 0
      %1043 = vperm.xlu0 %1042, %v985
      %v1044 = vpop.permute.xlu0 %1043
      %1047 = vset.pattern.permute.xlu0 0
      %1048 = vperm.xlu0 %1047, %v986
      %v1049 = vpop.permute.xlu0 %1048
      %1052 = vset.pattern.permute.xlu0 0
      %1053 = vperm.xlu0 %1052, %v987
      %v1054 = vpop.permute.xlu0 %1053
      %1057 = vset.pattern.permute.xlu0 0
      %1058 = vperm.xlu0 %1057, %v988
      %v1059 = vpop.permute.xlu0 %1058
      %1062 = vset.pattern.permute.xlu0 0
      %1063 = vperm.xlu0 %1062, %v989
      %v1064 = vpop.permute.xlu0 %1063
      %1067 = vset.pattern.permute.xlu0 0
      %1068 = vperm.xlu0 %1067, %v990
      %v1069 = vpop.permute.xlu0 %1068
      %v1072 = vlaneseq
      %v1073 = vshrl.u32 %v1072, 7
      %v1074 = vsub.s32 0, %v1073
      %v1075 = vrot.slane %v974, %v1074
      %v1076 = vlaneseq
      %v1077 = vshrl.u32 %v1076, 7
      %v1078 = vsub.s32 1, %v1077
      %v1079 = vrot.slane %v974, %v1078
      %v1082 = vmul.f32 %v994, %v1075
      %v1083 = vmul.f32 %v994, %v1079
      %v1084 = vmul.f32 %v999, %v1075
      %v1085 = vmul.f32 %v999, %v1079
      %v1086 = vmul.f32 %v1004, %v1075
      %v1087 = vmul.f32 %v1004, %v1079
      %v1088 = vmul.f32 %v1009, %v1075
      %v1089 = vmul.f32 %v1009, %v1079
      %v1090 = vmul.f32 %v1014, %v1075
      %v1091 = vmul.f32 %v1014, %v1079
      %v1092 = vmul.f32 %v1019, %v1075
      %v1093 = vmul.f32 %v1019, %v1079
      %v1094 = vmul.f32 %v1024, %v1075
      %v1095 = vmul.f32 %v1024, %v1079
      %v1096 = vmul.f32 %v1029, %v1075
      %v1097 = vmul.f32 %v1029, %v1079
      %v1098 = vmul.f32 %v1034, %v1075
      %v1099 = vmul.f32 %v1034, %v1079
      %v1100 = vmul.f32 %v1039, %v1075
      %v1101 = vmul.f32 %v1039, %v1079
      %v1102 = vmul.f32 %v1044, %v1075
      %v1103 = vmul.f32 %v1044, %v1079
      %v1104 = vmul.f32 %v1049, %v1075
      %v1105 = vmul.f32 %v1049, %v1079
      %v1106 = vmul.f32 %v1054, %v1075
      %v1107 = vmul.f32 %v1054, %v1079
      %v1108 = vmul.f32 %v1059, %v1075
      %v1109 = vmul.f32 %v1059, %v1079
      %v1110 = vmul.f32 %v1064, %v1075
      %v1111 = vmul.f32 %v1064, %v1079
      %v1112 = vmul.f32 %v1069, %v1075
      %v1113 = vmul.f32 %v1069, %v1079
      %v1114 = vadd.f32 %v941, %v1082
      %v1115 = vadd.f32 %v942, %v1083
      %v1116 = vadd.f32 %v943, %v1084
      %v1117 = vadd.f32 %v944, %v1085
      %v1118 = vadd.f32 %v945, %v1086
      %v1119 = vadd.f32 %v946, %v1087
      %v1120 = vadd.f32 %v947, %v1088
      %v1121 = vadd.f32 %v948, %v1089
      %v1122 = vadd.f32 %v949, %v1090
      %v1123 = vadd.f32 %v950, %v1091
      %v1124 = vadd.f32 %v951, %v1092
      %v1125 = vadd.f32 %v952, %v1093
      %v1126 = vadd.f32 %v953, %v1094
      %v1127 = vadd.f32 %v954, %v1095
      %v1128 = vadd.f32 %v955, %v1096
      %v1129 = vadd.f32 %v956, %v1097
      %v1130 = vadd.f32 %v957, %v1098
      %v1131 = vadd.f32 %v958, %v1099
      %v1132 = vadd.f32 %v959, %v1100
      %v1133 = vadd.f32 %v960, %v1101
      %v1134 = vadd.f32 %v961, %v1102
      %v1135 = vadd.f32 %v962, %v1103
      %v1136 = vadd.f32 %v963, %v1104
      %v1137 = vadd.f32 %v964, %v1105
      %v1138 = vadd.f32 %v965, %v1106
      %v1139 = vadd.f32 %v966, %v1107
      %v1140 = vadd.f32 %v967, %v1108
      %v1141 = vadd.f32 %v968, %v1109
      %v1142 = vadd.f32 %v969, %v1110
      %v1143 = vadd.f32 %v970, %v1111
      %v1144 = vadd.f32 %v971, %v1112
      %v1145 = vadd.f32 %v972, %v1113
      %s1146 = scalar_lea.vmem %s265, 5
      %v1147 = vld [vmem:[%s1146] ss:$8 sm:$0x3]
      %v1148 = vld [vmem:[%s255 + $0x11] sm:$0xff]
      %v1149 = vld [vmem:[%s255 + $0x21] sm:$0xff]
      %v1150 = vld [vmem:[%s255 + $0x31] sm:$0xff]
      %v1151 = vld [vmem:[%s255 + $0x41] sm:$0xff]
      %v1152 = vld [vmem:[%s255 + $0x51] sm:$0xff]
      %v1153 = vld [vmem:[%s255 + $0x61] sm:$0xff]
      %v1154 = vld [vmem:[%s255 + $0x71] sm:$0xff]
      %v1155 = vld [vmem:[%s255 + $0x81] sm:$0xff]
      %v1156 = vld [vmem:[%s255 + $0x91] sm:$0xff]
      %v1157 = vld [vmem:[%s255 + $0xa1] sm:$0xff]
      %v1158 = vld [vmem:[%s255 + $0xb1] sm:$0xff]
      %v1159 = vld [vmem:[%s255 + $0xc1] sm:$0xff]
      %v1160 = vld [vmem:[%s255 + $0xd1] sm:$0xff]
      %v1161 = vld [vmem:[%s255 + $0xe1] sm:$0xff]
      %v1162 = vld [vmem:[%s255 + $0xf1] sm:$0xff]
      %v1163 = vld [vmem:[%s255 + $0x101] sm:$0xff]
      %1165 = vset.pattern.permute.xlu0 0
      %1166 = vperm.xlu0 %1165, %v1148
      %v1167 = vpop.permute.xlu0 %1166
      %1170 = vset.pattern.permute.xlu0 0
      %1171 = vperm.xlu0 %1170, %v1149
      %v1172 = vpop.permute.xlu0 %1171
      %1175 = vset.pattern.permute.xlu0 0
      %1176 = vperm.xlu0 %1175, %v1150
      %v1177 = vpop.permute.xlu0 %1176
      %1180 = vset.pattern.permute.xlu0 0
      %1181 = vperm.xlu0 %1180, %v1151
      %v1182 = vpop.permute.xlu0 %1181
      %1185 = vset.pattern.permute.xlu0 0
      %1186 = vperm.xlu0 %1185, %v1152
      %v1187 = vpop.permute.xlu0 %1186
      %1190 = vset.pattern.permute.xlu0 0
      %1191 = vperm.xlu0 %1190, %v1153
      %v1192 = vpop.permute.xlu0 %1191
      %1195 = vset.pattern.permute.xlu0 0
      %1196 = vperm.xlu0 %1195, %v1154
      %v1197 = vpop.permute.xlu0 %1196
      %1200 = vset.pattern.permute.xlu0 0
      %1201 = vperm.xlu0 %1200, %v1155
      %v1202 = vpop.permute.xlu0 %1201
      %1205 = vset.pattern.permute.xlu0 0
      %1206 = vperm.xlu0 %1205, %v1156
      %v1207 = vpop.permute.xlu0 %1206
      %1210 = vset.pattern.permute.xlu0 0
      %1211 = vperm.xlu0 %1210, %v1157
      %v1212 = vpop.permute.xlu0 %1211
      %1215 = vset.pattern.permute.xlu0 0
      %1216 = vperm.xlu0 %1215, %v1158
      %v1217 = vpop.permute.xlu0 %1216
      %1220 = vset.pattern.permute.xlu0 0
      %1221 = vperm.xlu0 %1220, %v1159
      %v1222 = vpop.permute.xlu0 %1221
      %1225 = vset.pattern.permute.xlu0 0
      %1226 = vperm.xlu0 %1225, %v1160
      %v1227 = vpop.permute.xlu0 %1226
      %1230 = vset.pattern.permute.xlu0 0
      %1231 = vperm.xlu0 %1230, %v1161
      %v1232 = vpop.permute.xlu0 %1231
      %1235 = vset.pattern.permute.xlu0 0
      %1236 = vperm.xlu0 %1235, %v1162
      %v1237 = vpop.permute.xlu0 %1236
      %1240 = vset.pattern.permute.xlu0 0
      %1241 = vperm.xlu0 %1240, %v1163
      %v1242 = vpop.permute.xlu0 %1241
      %v1245 = vlaneseq
      %v1246 = vshrl.u32 %v1245, 7
      %v1247 = vsub.s32 0, %v1246
      %v1248 = vrot.slane %v1147, %v1247
      %v1249 = vlaneseq
      %v1250 = vshrl.u32 %v1249, 7
      %v1251 = vsub.s32 1, %v1250
      %v1252 = vrot.slane %v1147, %v1251
      %v1255 = vmul.f32 %v1167, %v1248
      %v1256 = vmul.f32 %v1167, %v1252
      %v1257 = vmul.f32 %v1172, %v1248
      %v1258 = vmul.f32 %v1172, %v1252
      %v1259 = vmul.f32 %v1177, %v1248
      %v1260 = vmul.f32 %v1177, %v1252
      %v1261 = vmul.f32 %v1182, %v1248
      %v1262 = vmul.f32 %v1182, %v1252
      %v1263 = vmul.f32 %v1187, %v1248
      %v1264 = vmul.f32 %v1187, %v1252
      %v1265 = vmul.f32 %v1192, %v1248
      %v1266 = vmul.f32 %v1192, %v1252
      %v1267 = vmul.f32 %v1197, %v1248
      %v1268 = vmul.f32 %v1197, %v1252
      %v1269 = vmul.f32 %v1202, %v1248
      %v1270 = vmul.f32 %v1202, %v1252
      %v1271 = vmul.f32 %v1207, %v1248
      %v1272 = vmul.f32 %v1207, %v1252
      %v1273 = vmul.f32 %v1212, %v1248
      %v1274 = vmul.f32 %v1212, %v1252
      %v1275 = vmul.f32 %v1217, %v1248
      %v1276 = vmul.f32 %v1217, %v1252
      %v1277 = vmul.f32 %v1222, %v1248
      %v1278 = vmul.f32 %v1222, %v1252
      %v1279 = vmul.f32 %v1227, %v1248
      %v1280 = vmul.f32 %v1227, %v1252
      %v1281 = vmul.f32 %v1232, %v1248
      %v1282 = vmul.f32 %v1232, %v1252
      %v1283 = vmul.f32 %v1237, %v1248
      %v1284 = vmul.f32 %v1237, %v1252
      %v1285 = vmul.f32 %v1242, %v1248
      %v1286 = vmul.f32 %v1242, %v1252
      %v1287 = vadd.f32 %v1114, %v1255
      %v1288 = vadd.f32 %v1115, %v1256
      %v1289 = vadd.f32 %v1116, %v1257
      %v1290 = vadd.f32 %v1117, %v1258
      %v1291 = vadd.f32 %v1118, %v1259
      %v1292 = vadd.f32 %v1119, %v1260
      %v1293 = vadd.f32 %v1120, %v1261
      %v1294 = vadd.f32 %v1121, %v1262
      %v1295 = vadd.f32 %v1122, %v1263
      %v1296 = vadd.f32 %v1123, %v1264
      %v1297 = vadd.f32 %v1124, %v1265
      %v1298 = vadd.f32 %v1125, %v1266
      %v1299 = vadd.f32 %v1126, %v1267
      %v1300 = vadd.f32 %v1127, %v1268
      %v1301 = vadd.f32 %v1128, %v1269
      %v1302 = vadd.f32 %v1129, %v1270
      %v1303 = vadd.f32 %v1130, %v1271
      %v1304 = vadd.f32 %v1131, %v1272
      %v1305 = vadd.f32 %v1132, %v1273
      %v1306 = vadd.f32 %v1133, %v1274
      %v1307 = vadd.f32 %v1134, %v1275
      %v1308 = vadd.f32 %v1135, %v1276
      %v1309 = vadd.f32 %v1136, %v1277
      %v1310 = vadd.f32 %v1137, %v1278
      %v1311 = vadd.f32 %v1138, %v1279
      %v1312 = vadd.f32 %v1139, %v1280
      %v1313 = vadd.f32 %v1140, %v1281
      %v1314 = vadd.f32 %v1141, %v1282
      %v1315 = vadd.f32 %v1142, %v1283
      %v1316 = vadd.f32 %v1143, %v1284
      %v1317 = vadd.f32 %v1144, %v1285
      %v1318 = vadd.f32 %v1145, %v1286
      %s1319 = scalar_lea.vmem %s265, 6
      %v1320 = vld [vmem:[%s1319] ss:$8 sm:$0x3]
      %v1321 = vld [vmem:[%s255 + $0x20] sm:$0xff]
      %v1322 = vld [vmem:[%s255 + $0x30] sm:$0xff]
      %v1323 = vld [vmem:[%s255 + $0x40] sm:$0xff]
      %v1324 = vld [vmem:[%s255 + $0x50] sm:$0xff]
      %v1325 = vld [vmem:[%s255 + $0x60] sm:$0xff]
      %v1326 = vld [vmem:[%s255 + $0x70] sm:$0xff]
      %v1327 = vld [vmem:[%s255 + $0x80] sm:$0xff]
      %v1328 = vld [vmem:[%s255 + $0x90] sm:$0xff]
      %v1329 = vld [vmem:[%s255 + $0xa0] sm:$0xff]
      %v1330 = vld [vmem:[%s255 + $0xb0] sm:$0xff]
      %v1331 = vld [vmem:[%s255 + $0xc0] sm:$0xff]
      %v1332 = vld [vmem:[%s255 + $0xd0] sm:$0xff]
      %v1333 = vld [vmem:[%s255 + $0xe0] sm:$0xff]
      %v1334 = vld [vmem:[%s255 + $0xf0] sm:$0xff]
      %v1335 = vld [vmem:[%s255 + $0x100] sm:$0xff]
      %v1336 = vld [vmem:[%s255 + $0x110] sm:$0xff]
      %1338 = vset.pattern.permute.xlu0 0
      %1339 = vperm.xlu0 %1338, %v1321
      %v1340 = vpop.permute.xlu0 %1339
      %1343 = vset.pattern.permute.xlu0 0
      %1344 = vperm.xlu0 %1343, %v1322
      %v1345 = vpop.permute.xlu0 %1344
      %1348 = vset.pattern.permute.xlu0 0
      %1349 = vperm.xlu0 %1348, %v1323
      %v1350 = vpop.permute.xlu0 %1349
      %1353 = vset.pattern.permute.xlu0 0
      %1354 = vperm.xlu0 %1353, %v1324
      %v1355 = vpop.permute.xlu0 %1354
      %1358 = vset.pattern.permute.xlu0 0
      %1359 = vperm.xlu0 %1358, %v1325
      %v1360 = vpop.permute.xlu0 %1359
      %1363 = vset.pattern.permute.xlu0 0
      %1364 = vperm.xlu0 %1363, %v1326
      %v1365 = vpop.permute.xlu0 %1364
      %1368 = vset.pattern.permute.xlu0 0
      %1369 = vperm.xlu0 %1368, %v1327
      %v1370 = vpop.permute.xlu0 %1369
      %1373 = vset.pattern.permute.xlu0 0
      %1374 = vperm.xlu0 %1373, %v1328
      %v1375 = vpop.permute.xlu0 %1374
      %1378 = vset.pattern.permute.xlu0 0
      %1379 = vperm.xlu0 %1378, %v1329
      %v1380 = vpop.permute.xlu0 %1379
      %1383 = vset.pattern.permute.xlu0 0
      %1384 = vperm.xlu0 %1383, %v1330
      %v1385 = vpop.permute.xlu0 %1384
      %1388 = vset.pattern.permute.xlu0 0
      %1389 = vperm.xlu0 %1388, %v1331
      %v1390 = vpop.permute.xlu0 %1389
      %1393 = vset.pattern.permute.xlu0 0
      %1394 = vperm.xlu0 %1393, %v1332
      %v1395 = vpop.permute.xlu0 %1394
      %1398 = vset.pattern.permute.xlu0 0
      %1399 = vperm.xlu0 %1398, %v1333
      %v1400 = vpop.permute.xlu0 %1399
      %1403 = vset.pattern.permute.xlu0 0
      %1404 = vperm.xlu0 %1403, %v1334
      %v1405 = vpop.permute.xlu0 %1404
      %1408 = vset.pattern.permute.xlu0 0
      %1409 = vperm.xlu0 %1408, %v1335
      %v1410 = vpop.permute.xlu0 %1409
      %1413 = vset.pattern.permute.xlu0 0
      %1414 = vperm.xlu0 %1413, %v1336
      %v1415 = vpop.permute.xlu0 %1414
      %v1418 = vlaneseq
      %v1419 = vshrl.u32 %v1418, 7
      %v1420 = vsub.s32 0, %v1419
      %v1421 = vrot.slane %v1320, %v1420
      %v1422 = vlaneseq
      %v1423 = vshrl.u32 %v1422, 7
      %v1424 = vsub.s32 1, %v1423
      %v1425 = vrot.slane %v1320, %v1424
      %v1428 = vmul.f32 %v1340, %v1421
      %v1429 = vmul.f32 %v1340, %v1425
      %v1430 = vmul.f32 %v1345, %v1421
      %v1431 = vmul.f32 %v1345, %v1425
      %v1432 = vmul.f32 %v1350, %v1421
      %v1433 = vmul.f32 %v1350, %v1425
      %v1434 = vmul.f32 %v1355, %v1421
      %v1435 = vmul.f32 %v1355, %v1425
      %v1436 = vmul.f32 %v1360, %v1421
      %v1437 = vmul.f32 %v1360, %v1425
      %v1438 = vmul.f32 %v1365, %v1421
      %v1439 = vmul.f32 %v1365, %v1425
      %v1440 = vmul.f32 %v1370, %v1421
      %v1441 = vmul.f32 %v1370, %v1425
      %v1442 = vmul.f32 %v1375, %v1421
      %v1443 = vmul.f32 %v1375, %v1425
      %v1444 = vmul.f32 %v1380, %v1421
      %v1445 = vmul.f32 %v1380, %v1425
      %v1446 = vmul.f32 %v1385, %v1421
      %v1447 = vmul.f32 %v1385, %v1425
      %v1448 = vmul.f32 %v1390, %v1421
      %v1449 = vmul.f32 %v1390, %v1425
      %v1450 = vmul.f32 %v1395, %v1421
      %v1451 = vmul.f32 %v1395, %v1425
      %v1452 = vmul.f32 %v1400, %v1421
      %v1453 = vmul.f32 %v1400, %v1425
      %v1454 = vmul.f32 %v1405, %v1421
      %v1455 = vmul.f32 %v1405, %v1425
      %v1456 = vmul.f32 %v1410, %v1421
      %v1457 = vmul.f32 %v1410, %v1425
      %v1458 = vmul.f32 %v1415, %v1421
      %v1459 = vmul.f32 %v1415, %v1425
      %v1460 = vadd.f32 %v1287, %v1428
      %v1461 = vadd.f32 %v1288, %v1429
      %v1462 = vadd.f32 %v1289, %v1430
      %v1463 = vadd.f32 %v1290, %v1431
      %v1464 = vadd.f32 %v1291, %v1432
      %v1465 = vadd.f32 %v1292, %v1433
      %v1466 = vadd.f32 %v1293, %v1434
      %v1467 = vadd.f32 %v1294, %v1435
      %v1468 = vadd.f32 %v1295, %v1436
      %v1469 = vadd.f32 %v1296, %v1437
      %v1470 = vadd.f32 %v1297, %v1438
      %v1471 = vadd.f32 %v1298, %v1439
      %v1472 = vadd.f32 %v1299, %v1440
      %v1473 = vadd.f32 %v1300, %v1441
      %v1474 = vadd.f32 %v1301, %v1442
      %v1475 = vadd.f32 %v1302, %v1443
      %v1476 = vadd.f32 %v1303, %v1444
      %v1477 = vadd.f32 %v1304, %v1445
      %v1478 = vadd.f32 %v1305, %v1446
      %v1479 = vadd.f32 %v1306, %v1447
      %v1480 = vadd.f32 %v1307, %v1448
      %v1481 = vadd.f32 %v1308, %v1449
      %v1482 = vadd.f32 %v1309, %v1450
      %v1483 = vadd.f32 %v1310, %v1451
      %v1484 = vadd.f32 %v1311, %v1452
      %v1485 = vadd.f32 %v1312, %v1453
      %v1486 = vadd.f32 %v1313, %v1454
      %v1487 = vadd.f32 %v1314, %v1455
      %v1488 = vadd.f32 %v1315, %v1456
      %v1489 = vadd.f32 %v1316, %v1457
      %v1490 = vadd.f32 %v1317, %v1458
      %v1491 = vadd.f32 %v1318, %v1459
      %s1492 = scalar_lea.vmem %s265, 7
      %v1493 = vld [vmem:[%s1492] ss:$8 sm:$0x3]
      %v1494 = vld [vmem:[%s260 + $0x20] sm:$0xff]
      %v1495 = vld [vmem:[%s260 + $0x30] sm:$0xff]
      %v1496 = vld [vmem:[%s260 + $0x40] sm:$0xff]
      %v1497 = vld [vmem:[%s260 + $0x50] sm:$0xff]
      %v1498 = vld [vmem:[%s260 + $0x60] sm:$0xff]
      %v1499 = vld [vmem:[%s260 + $0x70] sm:$0xff]
      %v1500 = vld [vmem:[%s260 + $0x80] sm:$0xff]
      %v1501 = vld [vmem:[%s260 + $0x90] sm:$0xff]
      %v1502 = vld [vmem:[%s260 + $0xa0] sm:$0xff]
      %v1503 = vld [vmem:[%s260 + $0xb0] sm:$0xff]
      %v1504 = vld [vmem:[%s260 + $0xc0] sm:$0xff]
      %v1505 = vld [vmem:[%s260 + $0xd0] sm:$0xff]
      %v1506 = vld [vmem:[%s260 + $0xe0] sm:$0xff]
      %v1507 = vld [vmem:[%s260 + $0xf0] sm:$0xff]
      %v1508 = vld [vmem:[%s260 + $0x100] sm:$0xff]
      %v1509 = vld [vmem:[%s260 + $0x110] sm:$0xff]
      %1511 = vset.pattern.permute.xlu0 0
      %1512 = vperm.xlu0 %1511, %v1494
      %v1513 = vpop.permute.xlu0 %1512
      %1516 = vset.pattern.permute.xlu0 0
      %1517 = vperm.xlu0 %1516, %v1495
      %v1518 = vpop.permute.xlu0 %1517
      %1521 = vset.pattern.permute.xlu0 0
      %1522 = vperm.xlu0 %1521, %v1496
      %v1523 = vpop.permute.xlu0 %1522
      %1526 = vset.pattern.permute.xlu0 0
      %1527 = vperm.xlu0 %1526, %v1497
      %v1528 = vpop.permute.xlu0 %1527
      %1531 = vset.pattern.permute.xlu0 0
      %1532 = vperm.xlu0 %1531, %v1498
      %v1533 = vpop.permute.xlu0 %1532
      %1536 = vset.pattern.permute.xlu0 0
      %1537 = vperm.xlu0 %1536, %v1499
      %v1538 = vpop.permute.xlu0 %1537
      %1541 = vset.pattern.permute.xlu0 0
      %1542 = vperm.xlu0 %1541, %v1500
      %v1543 = vpop.permute.xlu0 %1542
      %1546 = vset.pattern.permute.xlu0 0
      %1547 = vperm.xlu0 %1546, %v1501
      %v1548 = vpop.permute.xlu0 %1547
      %1551 = vset.pattern.permute.xlu0 0
      %1552 = vperm.xlu0 %1551, %v1502
      %v1553 = vpop.permute.xlu0 %1552
      %1556 = vset.pattern.permute.xlu0 0
      %1557 = vperm.xlu0 %1556, %v1503
      %v1558 = vpop.permute.xlu0 %1557
      %1561 = vset.pattern.permute.xlu0 0
      %1562 = vperm.xlu0 %1561, %v1504
      %v1563 = vpop.permute.xlu0 %1562
      %1566 = vset.pattern.permute.xlu0 0
      %1567 = vperm.xlu0 %1566, %v1505
      %v1568 = vpop.permute.xlu0 %1567
      %1571 = vset.pattern.permute.xlu0 0
      %1572 = vperm.xlu0 %1571, %v1506
      %v1573 = vpop.permute.xlu0 %1572
      %1576 = vset.pattern.permute.xlu0 0
      %1577 = vperm.xlu0 %1576, %v1507
      %v1578 = vpop.permute.xlu0 %1577
      %1581 = vset.pattern.permute.xlu0 0
      %1582 = vperm.xlu0 %1581, %v1508
      %v1583 = vpop.permute.xlu0 %1582
      %1586 = vset.pattern.permute.xlu0 0
      %1587 = vperm.xlu0 %1586, %v1509
      %v1588 = vpop.permute.xlu0 %1587
      %v1591 = vlaneseq
      %v1592 = vshrl.u32 %v1591, 7
      %v1593 = vsub.s32 0, %v1592
      %v1594 = vrot.slane %v1493, %v1593
      %v1595 = vlaneseq
      %v1596 = vshrl.u32 %v1595, 7
      %v1597 = vsub.s32 1, %v1596
      %v1598 = vrot.slane %v1493, %v1597
      %v1601 = vmul.f32 %v1513, %v1594
      %v1602 = vmul.f32 %v1513, %v1598
      %v1603 = vmul.f32 %v1518, %v1594
      %v1604 = vmul.f32 %v1518, %v1598
      %v1605 = vmul.f32 %v1523, %v1594
      %v1606 = vmul.f32 %v1523, %v1598
      %v1607 = vmul.f32 %v1528, %v1594
      %v1608 = vmul.f32 %v1528, %v1598
      %v1609 = vmul.f32 %v1533, %v1594
      %v1610 = vmul.f32 %v1533, %v1598
      %v1611 = vmul.f32 %v1538, %v1594
      %v1612 = vmul.f32 %v1538, %v1598
      %v1613 = vmul.f32 %v1543, %v1594
      %v1614 = vmul.f32 %v1543, %v1598
      %v1615 = vmul.f32 %v1548, %v1594
      %v1616 = vmul.f32 %v1548, %v1598
      %v1617 = vmul.f32 %v1553, %v1594
      %v1618 = vmul.f32 %v1553, %v1598
      %v1619 = vmul.f32 %v1558, %v1594
      %v1620 = vmul.f32 %v1558, %v1598
      %v1621 = vmul.f32 %v1563, %v1594
      %v1622 = vmul.f32 %v1563, %v1598
      %v1623 = vmul.f32 %v1568, %v1594
      %v1624 = vmul.f32 %v1568, %v1598
      %v1625 = vmul.f32 %v1573, %v1594
      %v1626 = vmul.f32 %v1573, %v1598
      %v1627 = vmul.f32 %v1578, %v1594
      %v1628 = vmul.f32 %v1578, %v1598
      %v1629 = vmul.f32 %v1583, %v1594
      %v1630 = vmul.f32 %v1583, %v1598
      %v1631 = vmul.f32 %v1588, %v1594
      %v1632 = vmul.f32 %v1588, %v1598
      %v1633 = vadd.f32 %v1460, %v1601
      %v1634 = vadd.f32 %v1461, %v1602
      %v1635 = vadd.f32 %v1462, %v1603
      %v1636 = vadd.f32 %v1463, %v1604
      %v1637 = vadd.f32 %v1464, %v1605
      %v1638 = vadd.f32 %v1465, %v1606
      %v1639 = vadd.f32 %v1466, %v1607
      %v1640 = vadd.f32 %v1467, %v1608
      %v1641 = vadd.f32 %v1468, %v1609
      %v1642 = vadd.f32 %v1469, %v1610
      %v1643 = vadd.f32 %v1470, %v1611
      %v1644 = vadd.f32 %v1471, %v1612
      %v1645 = vadd.f32 %v1472, %v1613
      %v1646 = vadd.f32 %v1473, %v1614
      %v1647 = vadd.f32 %v1474, %v1615
      %v1648 = vadd.f32 %v1475, %v1616
      %v1649 = vadd.f32 %v1476, %v1617
      %v1650 = vadd.f32 %v1477, %v1618
      %v1651 = vadd.f32 %v1478, %v1619
      %v1652 = vadd.f32 %v1479, %v1620
      %v1653 = vadd.f32 %v1480, %v1621
      %v1654 = vadd.f32 %v1481, %v1622
      %v1655 = vadd.f32 %v1482, %v1623
      %v1656 = vadd.f32 %v1483, %v1624
      %v1657 = vadd.f32 %v1484, %v1625
      %v1658 = vadd.f32 %v1485, %v1626
      %v1659 = vadd.f32 %v1486, %v1627
      %v1660 = vadd.f32 %v1487, %v1628
      %v1661 = vadd.f32 %v1488, %v1629
      %v1662 = vadd.f32 %v1489, %v1630
      %v1663 = vadd.f32 %v1490, %v1631
      %v1664 = vadd.f32 %v1491, %v1632
      %s1665 = scalar_lea.vmem %s265, 16
      %v1666 = vld [vmem:[%s1665] ss:$8 sm:$0x3]
      %v1667 = vld [vmem:[%s255 + $0x21] sm:$0xff]
      %v1668 = vld [vmem:[%s255 + $0x31] sm:$0xff]
      %v1669 = vld [vmem:[%s255 + $0x41] sm:$0xff]
      %v1670 = vld [vmem:[%s255 + $0x51] sm:$0xff]
      %v1671 = vld [vmem:[%s255 + $0x61] sm:$0xff]
      %v1672 = vld [vmem:[%s255 + $0x71] sm:$0xff]
      %v1673 = vld [vmem:[%s255 + $0x81] sm:$0xff]
      %v1674 = vld [vmem:[%s255 + $0x91] sm:$0xff]
      %v1675 = vld [vmem:[%s255 + $0xa1] sm:$0xff]
      %v1676 = vld [vmem:[%s255 + $0xb1] sm:$0xff]
      %v1677 = vld [vmem:[%s255 + $0xc1] sm:$0xff]
      %v1678 = vld [vmem:[%s255 + $0xd1] sm:$0xff]
      %v1679 = vld [vmem:[%s255 + $0xe1] sm:$0xff]
      %v1680 = vld [vmem:[%s255 + $0xf1] sm:$0xff]
      %v1681 = vld [vmem:[%s255 + $0x101] sm:$0xff]
      %v1682 = vld [vmem:[%s255 + $0x111] sm:$0xff]
      %1684 = vset.pattern.permute.xlu0 0
      %1685 = vperm.xlu0 %1684, %v1667
      %v1686 = vpop.permute.xlu0 %1685
      %1689 = vset.pattern.permute.xlu0 0
      %1690 = vperm.xlu0 %1689, %v1668
      %v1691 = vpop.permute.xlu0 %1690
      %1694 = vset.pattern.permute.xlu0 0
      %1695 = vperm.xlu0 %1694, %v1669
      %v1696 = vpop.permute.xlu0 %1695
      %1699 = vset.pattern.permute.xlu0 0
      %1700 = vperm.xlu0 %1699, %v1670
      %v1701 = vpop.permute.xlu0 %1700
      %1704 = vset.pattern.permute.xlu0 0
      %1705 = vperm.xlu0 %1704, %v1671
      %v1706 = vpop.permute.xlu0 %1705
      %1709 = vset.pattern.permute.xlu0 0
      %1710 = vperm.xlu0 %1709, %v1672
      %v1711 = vpop.permute.xlu0 %1710
      %1714 = vset.pattern.permute.xlu0 0
      %1715 = vperm.xlu0 %1714, %v1673
      %v1716 = vpop.permute.xlu0 %1715
      %1719 = vset.pattern.permute.xlu0 0
      %1720 = vperm.xlu0 %1719, %v1674
      %v1721 = vpop.permute.xlu0 %1720
      %1724 = vset.pattern.permute.xlu0 0
      %1725 = vperm.xlu0 %1724, %v1675
      %v1726 = vpop.permute.xlu0 %1725
      %1729 = vset.pattern.permute.xlu0 0
      %1730 = vperm.xlu0 %1729, %v1676
      %v1731 = vpop.permute.xlu0 %1730
      %1734 = vset.pattern.permute.xlu0 0
      %1735 = vperm.xlu0 %1734, %v1677
      %v1736 = vpop.permute.xlu0 %1735
      %1739 = vset.pattern.permute.xlu0 0
      %1740 = vperm.xlu0 %1739, %v1678
      %v1741 = vpop.permute.xlu0 %1740
      %1744 = vset.pattern.permute.xlu0 0
      %1745 = vperm.xlu0 %1744, %v1679
      %v1746 = vpop.permute.xlu0 %1745
      %1749 = vset.pattern.permute.xlu0 0
      %1750 = vperm.xlu0 %1749, %v1680
      %v1751 = vpop.permute.xlu0 %1750
      %1754 = vset.pattern.permute.xlu0 0
      %1755 = vperm.xlu0 %1754, %v1681
      %v1756 = vpop.permute.xlu0 %1755
      %1759 = vset.pattern.permute.xlu0 0
      %1760 = vperm.xlu0 %1759, %v1682
      %v1761 = vpop.permute.xlu0 %1760
      %v1764 = vlaneseq
      %v1765 = vshrl.u32 %v1764, 7
      %v1766 = vsub.s32 0, %v1765
      %v1767 = vrot.slane %v1666, %v1766
      %v1768 = vlaneseq
      %v1769 = vshrl.u32 %v1768, 7
      %v1770 = vsub.s32 1, %v1769
      %v1771 = vrot.slane %v1666, %v1770
      %v1774 = vmul.f32 %v1686, %v1767
      %v1775 = vmul.f32 %v1686, %v1771
      %v1776 = vmul.f32 %v1691, %v1767
      %v1777 = vmul.f32 %v1691, %v1771
      %v1778 = vmul.f32 %v1696, %v1767
      %v1779 = vmul.f32 %v1696, %v1771
      %v1780 = vmul.f32 %v1701, %v1767
      %v1781 = vmul.f32 %v1701, %v1771
      %v1782 = vmul.f32 %v1706, %v1767
      %v1783 = vmul.f32 %v1706, %v1771
      %v1784 = vmul.f32 %v1711, %v1767
      %v1785 = vmul.f32 %v1711, %v1771
      %v1786 = vmul.f32 %v1716, %v1767
      %v1787 = vmul.f32 %v1716, %v1771
      %v1788 = vmul.f32 %v1721, %v1767
      %v1789 = vmul.f32 %v1721, %v1771
      %v1790 = vmul.f32 %v1726, %v1767
      %v1791 = vmul.f32 %v1726, %v1771
      %v1792 = vmul.f32 %v1731, %v1767
      %v1793 = vmul.f32 %v1731, %v1771
      %v1794 = vmul.f32 %v1736, %v1767
      %v1795 = vmul.f32 %v1736, %v1771
      %v1796 = vmul.f32 %v1741, %v1767
      %v1797 = vmul.f32 %v1741, %v1771
      %v1798 = vmul.f32 %v1746, %v1767
      %v1799 = vmul.f32 %v1746, %v1771
      %v1800 = vmul.f32 %v1751, %v1767
      %v1801 = vmul.f32 %v1751, %v1771
      %v1802 = vmul.f32 %v1756, %v1767
      %v1803 = vmul.f32 %v1756, %v1771
      %v1804 = vmul.f32 %v1761, %v1767
      %v1805 = vmul.f32 %v1761, %v1771
      %v1806 = vadd.f32 %v1633, %v1774
      %v1807 = vadd.f32 %v1634, %v1775
      %v1808 = vadd.f32 %v1635, %v1776
      %v1809 = vadd.f32 %v1636, %v1777
      %v1810 = vadd.f32 %v1637, %v1778
      %v1811 = vadd.f32 %v1638, %v1779
      %v1812 = vadd.f32 %v1639, %v1780
      %v1813 = vadd.f32 %v1640, %v1781
      %v1814 = vadd.f32 %v1641, %v1782
      %v1815 = vadd.f32 %v1642, %v1783
      %v1816 = vadd.f32 %v1643, %v1784
      %v1817 = vadd.f32 %v1644, %v1785
      %v1818 = vadd.f32 %v1645, %v1786
      %v1819 = vadd.f32 %v1646, %v1787
      %v1820 = vadd.f32 %v1647, %v1788
      %v1821 = vadd.f32 %v1648, %v1789
      %v1822 = vadd.f32 %v1649, %v1790
      %v1823 = vadd.f32 %v1650, %v1791
      %v1824 = vadd.f32 %v1651, %v1792
      %v1825 = vadd.f32 %v1652, %v1793
      %v1826 = vadd.f32 %v1653, %v1794
      %v1827 = vadd.f32 %v1654, %v1795
      %v1828 = vadd.f32 %v1655, %v1796
      %v1829 = vadd.f32 %v1656, %v1797
      %v1830 = vadd.f32 %v1657, %v1798
      %v1831 = vadd.f32 %v1658, %v1799
      %v1832 = vadd.f32 %v1659, %v1800
      %v1833 = vadd.f32 %v1660, %v1801
      %v1834 = vadd.f32 %v1661, %v1802
      %v1835 = vadd.f32 %v1662, %v1803
      %v1836 = vadd.f32 %v1663, %v1804
      %v1837 = vadd.f32 %v1664, %v1805
      %v1838 = vmul.f32 %v475, %v383
      %v1839 = vmul.f32 %v475, %v387
      %v1840 = vmul.f32 %v480, %v383
      %v1841 = vmul.f32 %v480, %v387
      %v1842 = vmul.f32 %v485, %v383
      %v1843 = vmul.f32 %v485, %v387
      %v1844 = vmul.f32 %v490, %v383
      %v1845 = vmul.f32 %v490, %v387
      %v1846 = vmul.f32 %v495, %v383
      %v1847 = vmul.f32 %v495, %v387
      %v1848 = vmul.f32 %v500, %v383
      %v1849 = vmul.f32 %v500, %v387
      %v1850 = vmul.f32 %v505, %v383
      %v1851 = vmul.f32 %v505, %v387
      %v1852 = vmul.f32 %v510, %v383
      %v1853 = vmul.f32 %v510, %v387
      %v1854 = vmul.f32 %v515, %v383
      %v1855 = vmul.f32 %v515, %v387
      %v1856 = vmul.f32 %v520, %v383
      %v1857 = vmul.f32 %v520, %v387
      %v1858 = vmul.f32 %v525, %v383
      %v1859 = vmul.f32 %v525, %v387
      %v1860 = vmul.f32 %v530, %v383
      %v1861 = vmul.f32 %v530, %v387
      %v1862 = vmul.f32 %v535, %v383
      %v1863 = vmul.f32 %v535, %v387
      %v1864 = vmul.f32 %v540, %v383
      %v1865 = vmul.f32 %v540, %v387
      %v1866 = vmul.f32 %v545, %v383
      %v1867 = vmul.f32 %v545, %v387
      %v1868 = vmul.f32 %v550, %v383
      %v1869 = vmul.f32 %v550, %v387
      %v1870 = vadd.f32 %v1838, 0.0
      %v1871 = vadd.f32 %v1839, 0.0
      %v1872 = vadd.f32 %v1840, 0.0
      %v1873 = vadd.f32 %v1841, 0.0
      %v1874 = vadd.f32 %v1842, 0.0
      %v1875 = vadd.f32 %v1843, 0.0
      %v1876 = vadd.f32 %v1844, 0.0
      %v1877 = vadd.f32 %v1845, 0.0
      %v1878 = vadd.f32 %v1846, 0.0
      %v1879 = vadd.f32 %v1847, 0.0
      %v1880 = vadd.f32 %v1848, 0.0
      %v1881 = vadd.f32 %v1849, 0.0
      %v1882 = vadd.f32 %v1850, 0.0
      %v1883 = vadd.f32 %v1851, 0.0
      %v1884 = vadd.f32 %v1852, 0.0
      %v1885 = vadd.f32 %v1853, 0.0
      %v1886 = vadd.f32 %v1854, 0.0
      %v1887 = vadd.f32 %v1855, 0.0
      %v1888 = vadd.f32 %v1856, 0.0
      %v1889 = vadd.f32 %v1857, 0.0
      %v1890 = vadd.f32 %v1858, 0.0
      %v1891 = vadd.f32 %v1859, 0.0
      %v1892 = vadd.f32 %v1860, 0.0
      %v1893 = vadd.f32 %v1861, 0.0
      %v1894 = vadd.f32 %v1862, 0.0
      %v1895 = vadd.f32 %v1863, 0.0
      %v1896 = vadd.f32 %v1864, 0.0
      %v1897 = vadd.f32 %v1865, 0.0
      %v1898 = vadd.f32 %v1866, 0.0
      %v1899 = vadd.f32 %v1867, 0.0
      %v1900 = vadd.f32 %v1868, 0.0
      %v1901 = vadd.f32 %v1869, 0.0
      %v1902 = vmul.f32 %v648, %v556
      %v1903 = vmul.f32 %v648, %v560
      %v1904 = vmul.f32 %v653, %v556
      %v1905 = vmul.f32 %v653, %v560
      %v1906 = vmul.f32 %v658, %v556
      %v1907 = vmul.f32 %v658, %v560
      %v1908 = vmul.f32 %v663, %v556
      %v1909 = vmul.f32 %v663, %v560
      %v1910 = vmul.f32 %v668, %v556
      %v1911 = vmul.f32 %v668, %v560
      %v1912 = vmul.f32 %v673, %v556
      %v1913 = vmul.f32 %v673, %v560
      %v1914 = vmul.f32 %v678, %v556
      %v1915 = vmul.f32 %v678, %v560
      %v1916 = vmul.f32 %v683, %v556
      %v1917 = vmul.f32 %v683, %v560
      %v1918 = vmul.f32 %v688, %v556
      %v1919 = vmul.f32 %v688, %v560
      %v1920 = vmul.f32 %v693, %v556
      %v1921 = vmul.f32 %v693, %v560
      %v1922 = vmul.f32 %v698, %v556
      %v1923 = vmul.f32 %v698, %v560
      %v1924 = vmul.f32 %v703, %v556
      %v1925 = vmul.f32 %v703, %v560
      %v1926 = vmul.f32 %v708, %v556
      %v1927 = vmul.f32 %v708, %v560
      %v1928 = vmul.f32 %v713, %v556
      %v1929 = vmul.f32 %v713, %v560
      %v1930 = vmul.f32 %v718, %v556
      %v1931 = vmul.f32 %v718, %v560
      %v1932 = vmul.f32 %v723, %v556
      %v1933 = vmul.f32 %v723, %v560
      %v1934 = vadd.f32 %v1870, %v1902
      %v1935 = vadd.f32 %v1871, %v1903
      %v1936 = vadd.f32 %v1872, %v1904
      %v1937 = vadd.f32 %v1873, %v1905
      %v1938 = vadd.f32 %v1874, %v1906
      %v1939 = vadd.f32 %v1875, %v1907
      %v1940 = vadd.f32 %v1876, %v1908
      %v1941 = vadd.f32 %v1877, %v1909
      %v1942 = vadd.f32 %v1878, %v1910
      %v1943 = vadd.f32 %v1879, %v1911
      %v1944 = vadd.f32 %v1880, %v1912
      %v1945 = vadd.f32 %v1881, %v1913
      %v1946 = vadd.f32 %v1882, %v1914
      %v1947 = vadd.f32 %v1883, %v1915
      %v1948 = vadd.f32 %v1884, %v1916
      %v1949 = vadd.f32 %v1885, %v1917
      %v1950 = vadd.f32 %v1886, %v1918
      %v1951 = vadd.f32 %v1887, %v1919
      %v1952 = vadd.f32 %v1888, %v1920
      %v1953 = vadd.f32 %v1889, %v1921
      %v1954 = vadd.f32 %v1890, %v1922
      %v1955 = vadd.f32 %v1891, %v1923
      %v1956 = vadd.f32 %v1892, %v1924
      %v1957 = vadd.f32 %v1893, %v1925
      %v1958 = vadd.f32 %v1894, %v1926
      %v1959 = vadd.f32 %v1895, %v1927
      %v1960 = vadd.f32 %v1896, %v1928
      %v1961 = vadd.f32 %v1897, %v1929
      %v1962 = vadd.f32 %v1898, %v1930
      %v1963 = vadd.f32 %v1899, %v1931
      %v1964 = vadd.f32 %v1900, %v1932
      %v1965 = vadd.f32 %v1901, %v1933
      %v1966 = vld [vmem:[%s260 + $0x1] sm:$0xff]
      %v1967 = vld [vmem:[%s260 + $0x11] sm:$0xff]
      %v1968 = vld [vmem:[%s260 + $0x21] sm:$0xff]
      %v1969 = vld [vmem:[%s260 + $0x31] sm:$0xff]
      %v1970 = vld [vmem:[%s260 + $0x41] sm:$0xff]
      %v1971 = vld [vmem:[%s260 + $0x51] sm:$0xff]
      %v1972 = vld [vmem:[%s260 + $0x61] sm:$0xff]
      %v1973 = vld [vmem:[%s260 + $0x71] sm:$0xff]
      %v1974 = vld [vmem:[%s260 + $0x81] sm:$0xff]
      %v1975 = vld [vmem:[%s260 + $0x91] sm:$0xff]
      %v1976 = vld [vmem:[%s260 + $0xa1] sm:$0xff]
      %v1977 = vld [vmem:[%s260 + $0xb1] sm:$0xff]
      %v1978 = vld [vmem:[%s260 + $0xc1] sm:$0xff]
      %v1979 = vld [vmem:[%s260 + $0xd1] sm:$0xff]
      %v1980 = vld [vmem:[%s260 + $0xe1] sm:$0xff]
      %v1981 = vld [vmem:[%s260 + $0xf1] sm:$0xff]
      %1983 = vset.pattern.permute.xlu0 0
      %1984 = vperm.xlu0 %1983, %v1966
      %v1985 = vpop.permute.xlu0 %1984
      %1988 = vset.pattern.permute.xlu0 0
      %1989 = vperm.xlu0 %1988, %v1967
      %v1990 = vpop.permute.xlu0 %1989
      %1993 = vset.pattern.permute.xlu0 0
      %1994 = vperm.xlu0 %1993, %v1968
      %v1995 = vpop.permute.xlu0 %1994
      %1998 = vset.pattern.permute.xlu0 0
      %1999 = vperm.xlu0 %1998, %v1969
      %v2000 = vpop.permute.xlu0 %1999
      %2003 = vset.pattern.permute.xlu0 0
      %2004 = vperm.xlu0 %2003, %v1970
      %v2005 = vpop.permute.xlu0 %2004
      %2008 = vset.pattern.permute.xlu0 0
      %2009 = vperm.xlu0 %2008, %v1971
      %v2010 = vpop.permute.xlu0 %2009
      %2013 = vset.pattern.permute.xlu0 0
      %2014 = vperm.xlu0 %2013, %v1972
      %v2015 = vpop.permute.xlu0 %2014
      %2018 = vset.pattern.permute.xlu0 0
      %2019 = vperm.xlu0 %2018, %v1973
      %v2020 = vpop.permute.xlu0 %2019
      %2023 = vset.pattern.permute.xlu0 0
      %2024 = vperm.xlu0 %2023, %v1974
      %v2025 = vpop.permute.xlu0 %2024
      %2028 = vset.pattern.permute.xlu0 0
      %2029 = vperm.xlu0 %2028, %v1975
      %v2030 = vpop.permute.xlu0 %2029
      %2033 = vset.pattern.permute.xlu0 0
      %2034 = vperm.xlu0 %2033, %v1976
      %v2035 = vpop.permute.xlu0 %2034
      %2038 = vset.pattern.permute.xlu0 0
      %2039 = vperm.xlu0 %2038, %v1977
      %v2040 = vpop.permute.xlu0 %2039
      %2043 = vset.pattern.permute.xlu0 0
      %2044 = vperm.xlu0 %2043, %v1978
      %v2045 = vpop.permute.xlu0 %2044
      %2048 = vset.pattern.permute.xlu0 0
      %2049 = vperm.xlu0 %2048, %v1979
      %v2050 = vpop.permute.xlu0 %2049
      %2053 = vset.pattern.permute.xlu0 0
      %2054 = vperm.xlu0 %2053, %v1980
      %v2055 = vpop.permute.xlu0 %2054
      %2058 = vset.pattern.permute.xlu0 0
      %2059 = vperm.xlu0 %2058, %v1981
      %v2060 = vpop.permute.xlu0 %2059
      %v2062 = vmul.f32 %v1985, %v729
      %v2063 = vmul.f32 %v1985, %v733
      %v2064 = vmul.f32 %v1990, %v729
      %v2065 = vmul.f32 %v1990, %v733
      %v2066 = vmul.f32 %v1995, %v729
      %v2067 = vmul.f32 %v1995, %v733
      %v2068 = vmul.f32 %v2000, %v729
      %v2069 = vmul.f32 %v2000, %v733
      %v2070 = vmul.f32 %v2005, %v729
      %v2071 = vmul.f32 %v2005, %v733
      %v2072 = vmul.f32 %v2010, %v729
      %v2073 = vmul.f32 %v2010, %v733
      %v2074 = vmul.f32 %v2015, %v729
      %v2075 = vmul.f32 %v2015, %v733
      %v2076 = vmul.f32 %v2020, %v729
      %v2077 = vmul.f32 %v2020, %v733
      %v2078 = vmul.f32 %v2025, %v729
      %v2079 = vmul.f32 %v2025, %v733
      %v2080 = vmul.f32 %v2030, %v729
      %v2081 = vmul.f32 %v2030, %v733
      %v2082 = vmul.f32 %v2035, %v729
      %v2083 = vmul.f32 %v2035, %v733
      %v2084 = vmul.f32 %v2040, %v729
      %v2085 = vmul.f32 %v2040, %v733
      %v2086 = vmul.f32 %v2045, %v729
      %v2087 = vmul.f32 %v2045, %v733
      %v2088 = vmul.f32 %v2050, %v729
      %v2089 = vmul.f32 %v2050, %v733
      %v2090 = vmul.f32 %v2055, %v729
      %v2091 = vmul.f32 %v2055, %v733
      %v2092 = vmul.f32 %v2060, %v729
      %v2093 = vmul.f32 %v2060, %v733
      %v2094 = vadd.f32 %v1934, %v2062
      %v2095 = vadd.f32 %v1935, %v2063
      %v2096 = vadd.f32 %v1936, %v2064
      %v2097 = vadd.f32 %v1937, %v2065
      %v2098 = vadd.f32 %v1938, %v2066
      %v2099 = vadd.f32 %v1939, %v2067
      %v2100 = vadd.f32 %v1940, %v2068
      %v2101 = vadd.f32 %v1941, %v2069
      %v2102 = vadd.f32 %v1942, %v2070
      %v2103 = vadd.f32 %v1943, %v2071
      %v2104 = vadd.f32 %v1944, %v2072
      %v2105 = vadd.f32 %v1945, %v2073
      %v2106 = vadd.f32 %v1946, %v2074
      %v2107 = vadd.f32 %v1947, %v2075
      %v2108 = vadd.f32 %v1948, %v2076
      %v2109 = vadd.f32 %v1949, %v2077
      %v2110 = vadd.f32 %v1950, %v2078
      %v2111 = vadd.f32 %v1951, %v2079
      %v2112 = vadd.f32 %v1952, %v2080
      %v2113 = vadd.f32 %v1953, %v2081
      %v2114 = vadd.f32 %v1954, %v2082
      %v2115 = vadd.f32 %v1955, %v2083
      %v2116 = vadd.f32 %v1956, %v2084
      %v2117 = vadd.f32 %v1957, %v2085
      %v2118 = vadd.f32 %v1958, %v2086
      %v2119 = vadd.f32 %v1959, %v2087
      %v2120 = vadd.f32 %v1960, %v2088
      %v2121 = vadd.f32 %v1961, %v2089
      %v2122 = vadd.f32 %v1962, %v2090
      %v2123 = vadd.f32 %v1963, %v2091
      %v2124 = vadd.f32 %v1964, %v2092
      %v2125 = vadd.f32 %v1965, %v2093
      %v2126 = vmul.f32 %v994, %v902
      %v2127 = vmul.f32 %v994, %v906
      %v2128 = vmul.f32 %v999, %v902
      %v2129 = vmul.f32 %v999, %v906
      %v2130 = vmul.f32 %v1004, %v902
      %v2131 = vmul.f32 %v1004, %v906
      %v2132 = vmul.f32 %v1009, %v902
      %v2133 = vmul.f32 %v1009, %v906
      %v2134 = vmul.f32 %v1014, %v902
      %v2135 = vmul.f32 %v1014, %v906
      %v2136 = vmul.f32 %v1019, %v902
      %v2137 = vmul.f32 %v1019, %v906
      %v2138 = vmul.f32 %v1024, %v902
      %v2139 = vmul.f32 %v1024, %v906
      %v2140 = vmul.f32 %v1029, %v902
      %v2141 = vmul.f32 %v1029, %v906
      %v2142 = vmul.f32 %v1034, %v902
      %v2143 = vmul.f32 %v1034, %v906
      %v2144 = vmul.f32 %v1039, %v902
      %v2145 = vmul.f32 %v1039, %v906
      %v2146 = vmul.f32 %v1044, %v902
      %v2147 = vmul.f32 %v1044, %v906
      %v2148 = vmul.f32 %v1049, %v902
      %v2149 = vmul.f32 %v1049, %v906
      %v2150 = vmul.f32 %v1054, %v902
      %v2151 = vmul.f32 %v1054, %v906
      %v2152 = vmul.f32 %v1059, %v902
      %v2153 = vmul.f32 %v1059, %v906
      %v2154 = vmul.f32 %v1064, %v902
      %v2155 = vmul.f32 %v1064, %v906
      %v2156 = vmul.f32 %v1069, %v902
      %v2157 = vmul.f32 %v1069, %v906
      %v2158 = vadd.f32 %v2094, %v2126
      %v2159 = vadd.f32 %v2095, %v2127
      %v2160 = vadd.f32 %v2096, %v2128
      %v2161 = vadd.f32 %v2097, %v2129
      %v2162 = vadd.f32 %v2098, %v2130
      %v2163 = vadd.f32 %v2099, %v2131
      %v2164 = vadd.f32 %v2100, %v2132
      %v2165 = vadd.f32 %v2101, %v2133
      %v2166 = vadd.f32 %v2102, %v2134
      %v2167 = vadd.f32 %v2103, %v2135
      %v2168 = vadd.f32 %v2104, %v2136
      %v2169 = vadd.f32 %v2105, %v2137
      %v2170 = vadd.f32 %v2106, %v2138
      %v2171 = vadd.f32 %v2107, %v2139
      %v2172 = vadd.f32 %v2108, %v2140
      %v2173 = vadd.f32 %v2109, %v2141
      %v2174 = vadd.f32 %v2110, %v2142
      %v2175 = vadd.f32 %v2111, %v2143
      %v2176 = vadd.f32 %v2112, %v2144
      %v2177 = vadd.f32 %v2113, %v2145
      %v2178 = vadd.f32 %v2114, %v2146
      %v2179 = vadd.f32 %v2115, %v2147
      %v2180 = vadd.f32 %v2116, %v2148
      %v2181 = vadd.f32 %v2117, %v2149
      %v2182 = vadd.f32 %v2118, %v2150
      %v2183 = vadd.f32 %v2119, %v2151
      %v2184 = vadd.f32 %v2120, %v2152
      %v2185 = vadd.f32 %v2121, %v2153
      %v2186 = vadd.f32 %v2122, %v2154
      %v2187 = vadd.f32 %v2123, %v2155
      %v2188 = vadd.f32 %v2124, %v2156
      %v2189 = vadd.f32 %v2125, %v2157
      %v2190 = vmul.f32 %v1167, %v1075
      %v2191 = vmul.f32 %v1167, %v1079
      %v2192 = vmul.f32 %v1172, %v1075
      %v2193 = vmul.f32 %v1172, %v1079
      %v2194 = vmul.f32 %v1177, %v1075
      %v2195 = vmul.f32 %v1177, %v1079
      %v2196 = vmul.f32 %v1182, %v1075
      %v2197 = vmul.f32 %v1182, %v1079
      %v2198 = vmul.f32 %v1187, %v1075
      %v2199 = vmul.f32 %v1187, %v1079
      %v2200 = vmul.f32 %v1192, %v1075
      %v2201 = vmul.f32 %v1192, %v1079
      %v2202 = vmul.f32 %v1197, %v1075
      %v2203 = vmul.f32 %v1197, %v1079
      %v2204 = vmul.f32 %v1202, %v1075
      %v2205 = vmul.f32 %v1202, %v1079
      %v2206 = vmul.f32 %v1207, %v1075
      %v2207 = vmul.f32 %v1207, %v1079
      %v2208 = vmul.f32 %v1212, %v1075
      %v2209 = vmul.f32 %v1212, %v1079
      %v2210 = vmul.f32 %v1217, %v1075
      %v2211 = vmul.f32 %v1217, %v1079
      %v2212 = vmul.f32 %v1222, %v1075
      %v2213 = vmul.f32 %v1222, %v1079
      %v2214 = vmul.f32 %v1227, %v1075
      %v2215 = vmul.f32 %v1227, %v1079
      %v2216 = vmul.f32 %v1232, %v1075
      %v2217 = vmul.f32 %v1232, %v1079
      %v2218 = vmul.f32 %v1237, %v1075
      %v2219 = vmul.f32 %v1237, %v1079
      %v2220 = vmul.f32 %v1242, %v1075
      %v2221 = vmul.f32 %v1242, %v1079
      %v2222 = vadd.f32 %v2158, %v2190
      %v2223 = vadd.f32 %v2159, %v2191
      %v2224 = vadd.f32 %v2160, %v2192
      %v2225 = vadd.f32 %v2161, %v2193
      %v2226 = vadd.f32 %v2162, %v2194
      %v2227 = vadd.f32 %v2163, %v2195
      %v2228 = vadd.f32 %v2164, %v2196
      %v2229 = vadd.f32 %v2165, %v2197
      %v2230 = vadd.f32 %v2166, %v2198
      %v2231 = vadd.f32 %v2167, %v2199
      %v2232 = vadd.f32 %v2168, %v2200
      %v2233 = vadd.f32 %v2169, %v2201
      %v2234 = vadd.f32 %v2170, %v2202
      %v2235 = vadd.f32 %v2171, %v2203
      %v2236 = vadd.f32 %v2172, %v2204
      %v2237 = vadd.f32 %v2173, %v2205
      %v2238 = vadd.f32 %v2174, %v2206
      %v2239 = vadd.f32 %v2175, %v2207
      %v2240 = vadd.f32 %v2176, %v2208
      %v2241 = vadd.f32 %v2177, %v2209
      %v2242 = vadd.f32 %v2178, %v2210
      %v2243 = vadd.f32 %v2179, %v2211
      %v2244 = vadd.f32 %v2180, %v2212
      %v2245 = vadd.f32 %v2181, %v2213
      %v2246 = vadd.f32 %v2182, %v2214
      %v2247 = vadd.f32 %v2183, %v2215
      %v2248 = vadd.f32 %v2184, %v2216
      %v2249 = vadd.f32 %v2185, %v2217
      %v2250 = vadd.f32 %v2186, %v2218
      %v2251 = vadd.f32 %v2187, %v2219
      %v2252 = vadd.f32 %v2188, %v2220
      %v2253 = vadd.f32 %v2189, %v2221
      %v2254 = vld [vmem:[%s260 + $0x11] sm:$0xff]
      %v2255 = vld [vmem:[%s260 + $0x21] sm:$0xff]
      %v2256 = vld [vmem:[%s260 + $0x31] sm:$0xff]
      %v2257 = vld [vmem:[%s260 + $0x41] sm:$0xff]
      %v2258 = vld [vmem:[%s260 + $0x51] sm:$0xff]
      %v2259 = vld [vmem:[%s260 + $0x61] sm:$0xff]
      %v2260 = vld [vmem:[%s260 + $0x71] sm:$0xff]
      %v2261 = vld [vmem:[%s260 + $0x81] sm:$0xff]
      %v2262 = vld [vmem:[%s260 + $0x91] sm:$0xff]
      %v2263 = vld [vmem:[%s260 + $0xa1] sm:$0xff]
      %v2264 = vld [vmem:[%s260 + $0xb1] sm:$0xff]
      %v2265 = vld [vmem:[%s260 + $0xc1] sm:$0xff]
      %v2266 = vld [vmem:[%s260 + $0xd1] sm:$0xff]
      %v2267 = vld [vmem:[%s260 + $0xe1] sm:$0xff]
      %v2268 = vld [vmem:[%s260 + $0xf1] sm:$0xff]
      %v2269 = vld [vmem:[%s260 + $0x101] sm:$0xff]
      %2271 = vset.pattern.permute.xlu0 0
      %2272 = vperm.xlu0 %2271, %v2254
      %v2273 = vpop.permute.xlu0 %2272
      %2276 = vset.pattern.permute.xlu0 0
      %2277 = vperm.xlu0 %2276, %v2255
      %v2278 = vpop.permute.xlu0 %2277
      %2281 = vset.pattern.permute.xlu0 0
      %2282 = vperm.xlu0 %2281, %v2256
      %v2283 = vpop.permute.xlu0 %2282
      %2286 = vset.pattern.permute.xlu0 0
      %2287 = vperm.xlu0 %2286, %v2257
      %v2288 = vpop.permute.xlu0 %2287
      %2291 = vset.pattern.permute.xlu0 0
      %2292 = vperm.xlu0 %2291, %v2258
      %v2293 = vpop.permute.xlu0 %2292
      %2296 = vset.pattern.permute.xlu0 0
      %2297 = vperm.xlu0 %2296, %v2259
      %v2298 = vpop.permute.xlu0 %2297
      %2301 = vset.pattern.permute.xlu0 0
      %2302 = vperm.xlu0 %2301, %v2260
      %v2303 = vpop.permute.xlu0 %2302
      %2306 = vset.pattern.permute.xlu0 0
      %2307 = vperm.xlu0 %2306, %v2261
      %v2308 = vpop.permute.xlu0 %2307
      %2311 = vset.pattern.permute.xlu0 0
      %2312 = vperm.xlu0 %2311, %v2262
      %v2313 = vpop.permute.xlu0 %2312
      %2316 = vset.pattern.permute.xlu0 0
      %2317 = vperm.xlu0 %2316, %v2263
      %v2318 = vpop.permute.xlu0 %2317
      %2321 = vset.pattern.permute.xlu0 0
      %2322 = vperm.xlu0 %2321, %v2264
      %v2323 = vpop.permute.xlu0 %2322
      %2326 = vset.pattern.permute.xlu0 0
      %2327 = vperm.xlu0 %2326, %v2265
      %v2328 = vpop.permute.xlu0 %2327
      %2331 = vset.pattern.permute.xlu0 0
      %2332 = vperm.xlu0 %2331, %v2266
      %v2333 = vpop.permute.xlu0 %2332
      %2336 = vset.pattern.permute.xlu0 0
      %2337 = vperm.xlu0 %2336, %v2267
      %v2338 = vpop.permute.xlu0 %2337
      %2341 = vset.pattern.permute.xlu0 0
      %2342 = vperm.xlu0 %2341, %v2268
      %v2343 = vpop.permute.xlu0 %2342
      %2346 = vset.pattern.permute.xlu0 0
      %2347 = vperm.xlu0 %2346, %v2269
      %v2348 = vpop.permute.xlu0 %2347
      %v2350 = vmul.f32 %v2273, %v1248
      %v2351 = vmul.f32 %v2273, %v1252
      %v2352 = vmul.f32 %v2278, %v1248
      %v2353 = vmul.f32 %v2278, %v1252
      %v2354 = vmul.f32 %v2283, %v1248
      %v2355 = vmul.f32 %v2283, %v1252
      %v2356 = vmul.f32 %v2288, %v1248
      %v2357 = vmul.f32 %v2288, %v1252
      %v2358 = vmul.f32 %v2293, %v1248
      %v2359 = vmul.f32 %v2293, %v1252
      %v2360 = vmul.f32 %v2298, %v1248
      %v2361 = vmul.f32 %v2298, %v1252
      %v2362 = vmul.f32 %v2303, %v1248
      %v2363 = vmul.f32 %v2303, %v1252
      %v2364 = vmul.f32 %v2308, %v1248
      %v2365 = vmul.f32 %v2308, %v1252
      %v2366 = vmul.f32 %v2313, %v1248
      %v2367 = vmul.f32 %v2313, %v1252
      %v2368 = vmul.f32 %v2318, %v1248
      %v2369 = vmul.f32 %v2318, %v1252
      %v2370 = vmul.f32 %v2323, %v1248
      %v2371 = vmul.f32 %v2323, %v1252
      %v2372 = vmul.f32 %v2328, %v1248
      %v2373 = vmul.f32 %v2328, %v1252
      %v2374 = vmul.f32 %v2333, %v1248
      %v2375 = vmul.f32 %v2333, %v1252
      %v2376 = vmul.f32 %v2338, %v1248
      %v2377 = vmul.f32 %v2338, %v1252
      %v2378 = vmul.f32 %v2343, %v1248
      %v2379 = vmul.f32 %v2343, %v1252
      %v2380 = vmul.f32 %v2348, %v1248
      %v2381 = vmul.f32 %v2348, %v1252
      %v2382 = vadd.f32 %v2222, %v2350
      %v2383 = vadd.f32 %v2223, %v2351
      %v2384 = vadd.f32 %v2224, %v2352
      %v2385 = vadd.f32 %v2225, %v2353
      %v2386 = vadd.f32 %v2226, %v2354
      %v2387 = vadd.f32 %v2227, %v2355
      %v2388 = vadd.f32 %v2228, %v2356
      %v2389 = vadd.f32 %v2229, %v2357
      %v2390 = vadd.f32 %v2230, %v2358
      %v2391 = vadd.f32 %v2231, %v2359
      %v2392 = vadd.f32 %v2232, %v2360
      %v2393 = vadd.f32 %v2233, %v2361
      %v2394 = vadd.f32 %v2234, %v2362
      %v2395 = vadd.f32 %v2235, %v2363
      %v2396 = vadd.f32 %v2236, %v2364
      %v2397 = vadd.f32 %v2237, %v2365
      %v2398 = vadd.f32 %v2238, %v2366
      %v2399 = vadd.f32 %v2239, %v2367
      %v2400 = vadd.f32 %v2240, %v2368
      %v2401 = vadd.f32 %v2241, %v2369
      %v2402 = vadd.f32 %v2242, %v2370
      %v2403 = vadd.f32 %v2243, %v2371
      %v2404 = vadd.f32 %v2244, %v2372
      %v2405 = vadd.f32 %v2245, %v2373
      %v2406 = vadd.f32 %v2246, %v2374
      %v2407 = vadd.f32 %v2247, %v2375
      %v2408 = vadd.f32 %v2248, %v2376
      %v2409 = vadd.f32 %v2249, %v2377
      %v2410 = vadd.f32 %v2250, %v2378
      %v2411 = vadd.f32 %v2251, %v2379
      %v2412 = vadd.f32 %v2252, %v2380
      %v2413 = vadd.f32 %v2253, %v2381
      %v2414 = vmul.f32 %v1513, %v1421
      %v2415 = vmul.f32 %v1513, %v1425
      %v2416 = vmul.f32 %v1518, %v1421
      %v2417 = vmul.f32 %v1518, %v1425
      %v2418 = vmul.f32 %v1523, %v1421
      %v2419 = vmul.f32 %v1523, %v1425
      %v2420 = vmul.f32 %v1528, %v1421
      %v2421 = vmul.f32 %v1528, %v1425
      %v2422 = vmul.f32 %v1533, %v1421
      %v2423 = vmul.f32 %v1533, %v1425
      %v2424 = vmul.f32 %v1538, %v1421
      %v2425 = vmul.f32 %v1538, %v1425
      %v2426 = vmul.f32 %v1543, %v1421
      %v2427 = vmul.f32 %v1543, %v1425
      %v2428 = vmul.f32 %v1548, %v1421
      %v2429 = vmul.f32 %v1548, %v1425
      %v2430 = vmul.f32 %v1553, %v1421
      %v2431 = vmul.f32 %v1553, %v1425
      %v2432 = vmul.f32 %v1558, %v1421
      %v2433 = vmul.f32 %v1558, %v1425
      %v2434 = vmul.f32 %v1563, %v1421
      %v2435 = vmul.f32 %v1563, %v1425
      %v2436 = vmul.f32 %v1568, %v1421
      %v2437 = vmul.f32 %v1568, %v1425
      %v2438 = vmul.f32 %v1573, %v1421
      %v2439 = vmul.f32 %v1573, %v1425
      %v2440 = vmul.f32 %v1578, %v1421
      %v2441 = vmul.f32 %v1578, %v1425
      %v2442 = vmul.f32 %v1583, %v1421
      %v2443 = vmul.f32 %v1583, %v1425
      %v2444 = vmul.f32 %v1588, %v1421
      %v2445 = vmul.f32 %v1588, %v1425
      %v2446 = vadd.f32 %v2382, %v2414
      %v2447 = vadd.f32 %v2383, %v2415
      %v2448 = vadd.f32 %v2384, %v2416
      %v2449 = vadd.f32 %v2385, %v2417
      %v2450 = vadd.f32 %v2386, %v2418
      %v2451 = vadd.f32 %v2387, %v2419
      %v2452 = vadd.f32 %v2388, %v2420
      %v2453 = vadd.f32 %v2389, %v2421
      %v2454 = vadd.f32 %v2390, %v2422
      %v2455 = vadd.f32 %v2391, %v2423
      %v2456 = vadd.f32 %v2392, %v2424
      %v2457 = vadd.f32 %v2393, %v2425
      %v2458 = vadd.f32 %v2394, %v2426
      %v2459 = vadd.f32 %v2395, %v2427
      %v2460 = vadd.f32 %v2396, %v2428
      %v2461 = vadd.f32 %v2397, %v2429
      %v2462 = vadd.f32 %v2398, %v2430
      %v2463 = vadd.f32 %v2399, %v2431
      %v2464 = vadd.f32 %v2400, %v2432
      %v2465 = vadd.f32 %v2401, %v2433
      %v2466 = vadd.f32 %v2402, %v2434
      %v2467 = vadd.f32 %v2403, %v2435
      %v2468 = vadd.f32 %v2404, %v2436
      %v2469 = vadd.f32 %v2405, %v2437
      %v2470 = vadd.f32 %v2406, %v2438
      %v2471 = vadd.f32 %v2407, %v2439
      %v2472 = vadd.f32 %v2408, %v2440
      %v2473 = vadd.f32 %v2409, %v2441
      %v2474 = vadd.f32 %v2410, %v2442
      %v2475 = vadd.f32 %v2411, %v2443
      %v2476 = vadd.f32 %v2412, %v2444
      %v2477 = vadd.f32 %v2413, %v2445
      %v2478 = vmul.f32 %v1686, %v1594
      %v2479 = vmul.f32 %v1686, %v1598
      %v2480 = vmul.f32 %v1691, %v1594
      %v2481 = vmul.f32 %v1691, %v1598
      %v2482 = vmul.f32 %v1696, %v1594
      %v2483 = vmul.f32 %v1696, %v1598
      %v2484 = vmul.f32 %v1701, %v1594
      %v2485 = vmul.f32 %v1701, %v1598
      %v2486 = vmul.f32 %v1706, %v1594
      %v2487 = vmul.f32 %v1706, %v1598
      %v2488 = vmul.f32 %v1711, %v1594
      %v2489 = vmul.f32 %v1711, %v1598
      %v2490 = vmul.f32 %v1716, %v1594
      %v2491 = vmul.f32 %v1716, %v1598
      %v2492 = vmul.f32 %v1721, %v1594
      %v2493 = vmul.f32 %v1721, %v1598
      %v2494 = vmul.f32 %v1726, %v1594
      %v2495 = vmul.f32 %v1726, %v1598
      %v2496 = vmul.f32 %v1731, %v1594
      %v2497 = vmul.f32 %v1731, %v1598
      %v2498 = vmul.f32 %v1736, %v1594
      %v2499 = vmul.f32 %v1736, %v1598
      %v2500 = vmul.f32 %v1741, %v1594
      %v2501 = vmul.f32 %v1741, %v1598
      %v2502 = vmul.f32 %v1746, %v1594
      %v2503 = vmul.f32 %v1746, %v1598
      %v2504 = vmul.f32 %v1751, %v1594
      %v2505 = vmul.f32 %v1751, %v1598
      %v2506 = vmul.f32 %v1756, %v1594
      %v2507 = vmul.f32 %v1756, %v1598
      %v2508 = vmul.f32 %v1761, %v1594
      %v2509 = vmul.f32 %v1761, %v1598
      %v2510 = vadd.f32 %v2446, %v2478
      %v2511 = vadd.f32 %v2447, %v2479
      %v2512 = vadd.f32 %v2448, %v2480
      %v2513 = vadd.f32 %v2449, %v2481
      %v2514 = vadd.f32 %v2450, %v2482
      %v2515 = vadd.f32 %v2451, %v2483
      %v2516 = vadd.f32 %v2452, %v2484
      %v2517 = vadd.f32 %v2453, %v2485
      %v2518 = vadd.f32 %v2454, %v2486
      %v2519 = vadd.f32 %v2455, %v2487
      %v2520 = vadd.f32 %v2456, %v2488
      %v2521 = vadd.f32 %v2457, %v2489
      %v2522 = vadd.f32 %v2458, %v2490
      %v2523 = vadd.f32 %v2459, %v2491
      %v2524 = vadd.f32 %v2460, %v2492
      %v2525 = vadd.f32 %v2461, %v2493
      %v2526 = vadd.f32 %v2462, %v2494
      %v2527 = vadd.f32 %v2463, %v2495
      %v2528 = vadd.f32 %v2464, %v2496
      %v2529 = vadd.f32 %v2465, %v2497
      %v2530 = vadd.f32 %v2466, %v2498
      %v2531 = vadd.f32 %v2467, %v2499
      %v2532 = vadd.f32 %v2468, %v2500
      %v2533 = vadd.f32 %v2469, %v2501
      %v2534 = vadd.f32 %v2470, %v2502
      %v2535 = vadd.f32 %v2471, %v2503
      %v2536 = vadd.f32 %v2472, %v2504
      %v2537 = vadd.f32 %v2473, %v2505
      %v2538 = vadd.f32 %v2474, %v2506
      %v2539 = vadd.f32 %v2475, %v2507
      %v2540 = vadd.f32 %v2476, %v2508
      %v2541 = vadd.f32 %v2477, %v2509
      %v2542 = vld [vmem:[%s260 + $0x21] sm:$0xff]
      %v2543 = vld [vmem:[%s260 + $0x31] sm:$0xff]
      %v2544 = vld [vmem:[%s260 + $0x41] sm:$0xff]
      %v2545 = vld [vmem:[%s260 + $0x51] sm:$0xff]
      %v2546 = vld [vmem:[%s260 + $0x61] sm:$0xff]
      %v2547 = vld [vmem:[%s260 + $0x71] sm:$0xff]
      %v2548 = vld [vmem:[%s260 + $0x81] sm:$0xff]
      %v2549 = vld [vmem:[%s260 + $0x91] sm:$0xff]
      %v2550 = vld [vmem:[%s260 + $0xa1] sm:$0xff]
      %v2551 = vld [vmem:[%s260 + $0xb1] sm:$0xff]
      %v2552 = vld [vmem:[%s260 + $0xc1] sm:$0xff]
      %v2553 = vld [vmem:[%s260 + $0xd1] sm:$0xff]
      %v2554 = vld [vmem:[%s260 + $0xe1] sm:$0xff]
      %v2555 = vld [vmem:[%s260 + $0xf1] sm:$0xff]
      %v2556 = vld [vmem:[%s260 + $0x101] sm:$0xff]
      %v2557 = vld [vmem:[%s260 + $0x111] sm:$0xff]
      %2559 = vset.pattern.permute.xlu0 0
      %2560 = vperm.xlu0 %2559, %v2542
      %v2561 = vpop.permute.xlu0 %2560
      %2564 = vset.pattern.permute.xlu0 0
      %2565 = vperm.xlu0 %2564, %v2543
      %v2566 = vpop.permute.xlu0 %2565
      %2569 = vset.pattern.permute.xlu0 0
      %2570 = vperm.xlu0 %2569, %v2544
      %v2571 = vpop.permute.xlu0 %2570
      %2574 = vset.pattern.permute.xlu0 0
      %2575 = vperm.xlu0 %2574, %v2545
      %v2576 = vpop.permute.xlu0 %2575
      %2579 = vset.pattern.permute.xlu0 0
      %2580 = vperm.xlu0 %2579, %v2546
      %v2581 = vpop.permute.xlu0 %2580
      %2584 = vset.pattern.permute.xlu0 0
      %2585 = vperm.xlu0 %2584, %v2547
      %v2586 = vpop.permute.xlu0 %2585
      %2589 = vset.pattern.permute.xlu0 0
      %2590 = vperm.xlu0 %2589, %v2548
      %v2591 = vpop.permute.xlu0 %2590
      %2594 = vset.pattern.permute.xlu0 0
      %2595 = vperm.xlu0 %2594, %v2549
      %v2596 = vpop.permute.xlu0 %2595
      %2599 = vset.pattern.permute.xlu0 0
      %2600 = vperm.xlu0 %2599, %v2550
      %v2601 = vpop.permute.xlu0 %2600
      %2604 = vset.pattern.permute.xlu0 0
      %2605 = vperm.xlu0 %2604, %v2551
      %v2606 = vpop.permute.xlu0 %2605
      %2609 = vset.pattern.permute.xlu0 0
      %2610 = vperm.xlu0 %2609, %v2552
      %v2611 = vpop.permute.xlu0 %2610
      %2614 = vset.pattern.permute.xlu0 0
      %2615 = vperm.xlu0 %2614, %v2553
      %v2616 = vpop.permute.xlu0 %2615
      %2619 = vset.pattern.permute.xlu0 0
      %2620 = vperm.xlu0 %2619, %v2554
      %v2621 = vpop.permute.xlu0 %2620
      %2624 = vset.pattern.permute.xlu0 0
      %2625 = vperm.xlu0 %2624, %v2555
      %v2626 = vpop.permute.xlu0 %2625
      %2629 = vset.pattern.permute.xlu0 0
      %2630 = vperm.xlu0 %2629, %v2556
      %v2631 = vpop.permute.xlu0 %2630
      %2634 = vset.pattern.permute.xlu0 0
      %2635 = vperm.xlu0 %2634, %v2557
      %v2636 = vpop.permute.xlu0 %2635
      %v2638 = vmul.f32 %v2561, %v1767
      %v2639 = vmul.f32 %v2561, %v1771
      %v2640 = vmul.f32 %v2566, %v1767
      %v2641 = vmul.f32 %v2566, %v1771
      %v2642 = vmul.f32 %v2571, %v1767
      %v2643 = vmul.f32 %v2571, %v1771
      %v2644 = vmul.f32 %v2576, %v1767
      %v2645 = vmul.f32 %v2576, %v1771
      %v2646 = vmul.f32 %v2581, %v1767
      %v2647 = vmul.f32 %v2581, %v1771
      %v2648 = vmul.f32 %v2586, %v1767
      %v2649 = vmul.f32 %v2586, %v1771
      %v2650 = vmul.f32 %v2591, %v1767
      %v2651 = vmul.f32 %v2591, %v1771
      %v2652 = vmul.f32 %v2596, %v1767
      %v2653 = vmul.f32 %v2596, %v1771
      %v2654 = vmul.f32 %v2601, %v1767
      %v2655 = vmul.f32 %v2601, %v1771
      %v2656 = vmul.f32 %v2606, %v1767
      %v2657 = vmul.f32 %v2606, %v1771
      %v2658 = vmul.f32 %v2611, %v1767
      %v2659 = vmul.f32 %v2611, %v1771
      %v2660 = vmul.f32 %v2616, %v1767
      %v2661 = vmul.f32 %v2616, %v1771
      %v2662 = vmul.f32 %v2621, %v1767
      %v2663 = vmul.f32 %v2621, %v1771
      %v2664 = vmul.f32 %v2626, %v1767
      %v2665 = vmul.f32 %v2626, %v1771
      %v2666 = vmul.f32 %v2631, %v1767
      %v2667 = vmul.f32 %v2631, %v1771
      %v2668 = vmul.f32 %v2636, %v1767
      %v2669 = vmul.f32 %v2636, %v1771
      %v2670 = vadd.f32 %v2510, %v2638
      %v2671 = vadd.f32 %v2511, %v2639
      %v2672 = vadd.f32 %v2512, %v2640
      %v2673 = vadd.f32 %v2513, %v2641
      %v2674 = vadd.f32 %v2514, %v2642
      %v2675 = vadd.f32 %v2515, %v2643
      %v2676 = vadd.f32 %v2516, %v2644
      %v2677 = vadd.f32 %v2517, %v2645
      %v2678 = vadd.f32 %v2518, %v2646
      %v2679 = vadd.f32 %v2519, %v2647
      %v2680 = vadd.f32 %v2520, %v2648
      %v2681 = vadd.f32 %v2521, %v2649
      %v2682 = vadd.f32 %v2522, %v2650
      %v2683 = vadd.f32 %v2523, %v2651
      %v2684 = vadd.f32 %v2524, %v2652
      %v2685 = vadd.f32 %v2525, %v2653
      %v2686 = vadd.f32 %v2526, %v2654
      %v2687 = vadd.f32 %v2527, %v2655
      %v2688 = vadd.f32 %v2528, %v2656
      %v2689 = vadd.f32 %v2529, %v2657
      %v2690 = vadd.f32 %v2530, %v2658
      %v2691 = vadd.f32 %v2531, %v2659
      %v2692 = vadd.f32 %v2532, %v2660
      %v2693 = vadd.f32 %v2533, %v2661
      %v2694 = vadd.f32 %v2534, %v2662
      %v2695 = vadd.f32 %v2535, %v2663
      %v2696 = vadd.f32 %v2536, %v2664
      %v2697 = vadd.f32 %v2537, %v2665
      %v2698 = vadd.f32 %v2538, %v2666
      %v2699 = vadd.f32 %v2539, %v2667
      %v2700 = vadd.f32 %v2540, %v2668
      %v2701 = vadd.f32 %v2541, %v2669
      %v2702 = vmax.f32 %v1806, %v2670
      %v2703 = vmax.f32 %v1807, %v2671
      %v2704 = vmax.f32 %v1808, %v2672
      %v2705 = vmax.f32 %v1809, %v2673
      %v2706 = vmax.f32 %v1810, %v2674
      %v2707 = vmax.f32 %v1811, %v2675
      %v2708 = vmax.f32 %v1812, %v2676
      %v2709 = vmax.f32 %v1813, %v2677
      %v2710 = vmax.f32 %v1814, %v2678
      %v2711 = vmax.f32 %v1815, %v2679
      %v2712 = vmax.f32 %v1816, %v2680
      %v2713 = vmax.f32 %v1817, %v2681
      %v2714 = vmax.f32 %v1818, %v2682
      %v2715 = vmax.f32 %v1819, %v2683
      %v2716 = vmax.f32 %v1820, %v2684
      %v2717 = vmax.f32 %v1821, %v2685
      %v2718 = vmax.f32 %v1822, %v2686
      %v2719 = vmax.f32 %v1823, %v2687
      %v2720 = vmax.f32 %v1824, %v2688
      %v2721 = vmax.f32 %v1825, %v2689
      %v2722 = vmax.f32 %v1826, %v2690
      %v2723 = vmax.f32 %v1827, %v2691
      %v2724 = vmax.f32 %v1828, %v2692
      %v2725 = vmax.f32 %v1829, %v2693
      %v2726 = vmax.f32 %v1830, %v2694
      %v2727 = vmax.f32 %v1831, %v2695
      %v2728 = vmax.f32 %v1832, %v2696
      %v2729 = vmax.f32 %v1833, %v2697
      %v2730 = vmax.f32 %v1834, %v2698
      %v2731 = vmax.f32 %v1835, %v2699
      %v2732 = vmax.f32 %v1836, %v2700
      %v2733 = vmax.f32 %v1837, %v2701
      %v2734 = vld [vmem:[%s270] sm:$0x3]
      %v2736 = vlaneseq
      %v2737 = vshrl.u32 %v2736, 7
      %v2738 = vsub.s32 0, %v2737
      %v2739 = vrot.slane %v2734, %v2738
      %v2740 = vlaneseq
      %v2741 = vshrl.u32 %v2740, 7
      %v2742 = vsub.s32 1, %v2741
      %v2743 = vrot.slane %v2734, %v2742
      %v2746 = vadd.f32 %v2702, %v2739
      %v2747 = vadd.f32 %v2703, %v2743
      %v2748 = vadd.f32 %v2704, %v2739
      %v2749 = vadd.f32 %v2705, %v2743
      %v2750 = vadd.f32 %v2706, %v2739
      %v2751 = vadd.f32 %v2707, %v2743
      %v2752 = vadd.f32 %v2708, %v2739
      %v2753 = vadd.f32 %v2709, %v2743
      %v2754 = vadd.f32 %v2710, %v2739
      %v2755 = vadd.f32 %v2711, %v2743
      %v2756 = vadd.f32 %v2712, %v2739
      %v2757 = vadd.f32 %v2713, %v2743
      %v2758 = vadd.f32 %v2714, %v2739
      %v2759 = vadd.f32 %v2715, %v2743
      %v2760 = vadd.f32 %v2716, %v2739
      %v2761 = vadd.f32 %v2717, %v2743
      %v2762 = vadd.f32 %v2718, %v2739
      %v2763 = vadd.f32 %v2719, %v2743
      %v2764 = vadd.f32 %v2720, %v2739
      %v2765 = vadd.f32 %v2721, %v2743
      %v2766 = vadd.f32 %v2722, %v2739
      %v2767 = vadd.f32 %v2723, %v2743
      %v2768 = vadd.f32 %v2724, %v2739
      %v2769 = vadd.f32 %v2725, %v2743
      %v2770 = vadd.f32 %v2726, %v2739
      %v2771 = vadd.f32 %v2727, %v2743
      %v2772 = vadd.f32 %v2728, %v2739
      %v2773 = vadd.f32 %v2729, %v2743
      %v2774 = vadd.f32 %v2730, %v2739
      %v2775 = vadd.f32 %v2731, %v2743
      %v2776 = vadd.f32 %v2732, %v2739
      %v2777 = vadd.f32 %v2733, %v2743
      %v2778 = vmax.f32 %v2746, 0.0
      %v2779 = vmax.f32 %v2747, 0.0
      %v2780 = vmax.f32 %v2748, 0.0
      %v2781 = vmax.f32 %v2749, 0.0
      %v2782 = vmax.f32 %v2750, 0.0
      %v2783 = vmax.f32 %v2751, 0.0
      %v2784 = vmax.f32 %v2752, 0.0
      %v2785 = vmax.f32 %v2753, 0.0
      %v2786 = vmax.f32 %v2754, 0.0
      %v2787 = vmax.f32 %v2755, 0.0
      %v2788 = vmax.f32 %v2756, 0.0
      %v2789 = vmax.f32 %v2757, 0.0
      %v2790 = vmax.f32 %v2758, 0.0
      %v2791 = vmax.f32 %v2759, 0.0
      %v2792 = vmax.f32 %v2760, 0.0
      %v2793 = vmax.f32 %v2761, 0.0
      %v2794 = vmax.f32 %v2762, 0.0
      %v2795 = vmax.f32 %v2763, 0.0
      %v2796 = vmax.f32 %v2764, 0.0
      %v2797 = vmax.f32 %v2765, 0.0
      %v2798 = vmax.f32 %v2766, 0.0
      %v2799 = vmax.f32 %v2767, 0.0
      %v2800 = vmax.f32 %v2768, 0.0
      %v2801 = vmax.f32 %v2769, 0.0
      %v2802 = vmax.f32 %v2770, 0.0
      %v2803 = vmax.f32 %v2771, 0.0
      %v2804 = vmax.f32 %v2772, 0.0
      %v2805 = vmax.f32 %v2773, 0.0
      %v2806 = vmax.f32 %v2774, 0.0
      %v2807 = vmax.f32 %v2775, 0.0
      %v2808 = vmax.f32 %v2776, 0.0
      %v2809 = vmax.f32 %v2777, 0.0
      %v2810 = vmax.f32 %v2778, %v2780
      %v2811 = vmax.f32 %v2779, %v2781
      %v2812 = vmax.f32 %v2782, %v2784
      %v2813 = vmax.f32 %v2783, %v2785
      %v2814 = vmax.f32 %v2786, %v2788
      %v2815 = vmax.f32 %v2787, %v2789
      %v2816 = vmax.f32 %v2790, %v2792
      %v2817 = vmax.f32 %v2791, %v2793
      %v2818 = vmax.f32 %v2794, %v2796
      %v2819 = vmax.f32 %v2795, %v2797
      %v2820 = vmax.f32 %v2798, %v2800
      %v2821 = vmax.f32 %v2799, %v2801
      %v2822 = vmax.f32 %v2802, %v2804
      %v2823 = vmax.f32 %v2803, %v2805
      %v2824 = vmax.f32 %v2806, %v2808
      %v2825 = vmax.f32 %v2807, %v2809
      %v2826 = vpack.c.bf16 %v2810, %v2810
      %v2827 = vpack.c.bf16 %v2811, %v2811
      %v2828 = vpack.c.bf16 %v2812, %v2812
      %v2829 = vpack.c.bf16 %v2813, %v2813
      %v2830 = vpack.c.bf16 %v2814, %v2814
      %v2831 = vpack.c.bf16 %v2815, %v2815
      %v2832 = vpack.c.bf16 %v2816, %v2816
      %v2833 = vpack.c.bf16 %v2817, %v2817
      %v2834 = vpack.c.bf16 %v2818, %v2818
      %v2835 = vpack.c.bf16 %v2819, %v2819
      %v2836 = vpack.c.bf16 %v2820, %v2820
      %v2837 = vpack.c.bf16 %v2821, %v2821
      %v2838 = vpack.c.bf16 %v2822, %v2822
      %v2839 = vpack.c.bf16 %v2823, %v2823
      %v2840 = vpack.c.bf16 %v2824, %v2824
      %v2841 = vpack.c.bf16 %v2825, %v2825
      %v2858 = vunpack.c.l.b16 %v2826
      %v2859 = vunpack.c.l.b16 %v2827
      %v2860 = vunpack.c.l.b16 %v2828
      %v2861 = vunpack.c.l.b16 %v2829
      %v2862 = vunpack.c.l.b16 %v2830
      %v2863 = vunpack.c.l.b16 %v2831
      %v2864 = vunpack.c.l.b16 %v2832
      %v2865 = vunpack.c.l.b16 %v2833
      %v2866 = vunpack.c.l.b16 %v2834
      %v2867 = vunpack.c.l.b16 %v2835
      %v2868 = vunpack.c.l.b16 %v2836
      %v2869 = vunpack.c.l.b16 %v2837
      %v2870 = vunpack.c.l.b16 %v2838
      %v2871 = vunpack.c.l.b16 %v2839
      %v2872 = vunpack.c.l.b16 %v2840
      %v2873 = vunpack.c.l.b16 %v2841
      %v2874 = vpack.c.b16 %v2859, %v2858
      %v2875 = vpack.c.b16 %v2861, %v2860
      %v2876 = vpack.c.b16 %v2863, %v2862
      %v2877 = vpack.c.b16 %v2865, %v2864
      %v2878 = vpack.c.b16 %v2867, %v2866
      %v2879 = vpack.c.b16 %v2869, %v2868
      %v2880 = vpack.c.b16 %v2871, %v2870
      %v2881 = vpack.c.b16 %v2873, %v2872
      %2890 = vst [vmem:[%s280] sm:$0xff] %v2874
      %2891 = vst [vmem:[%s280 + $0x8] sm:$0xff] %v2875
      %2892 = vst [vmem:[%s280 + $0x10] sm:$0xff] %v2876
      %2893 = vst [vmem:[%s280 + $0x18] sm:$0xff] %v2877
      %2894 = vst [vmem:[%s280 + $0x20] sm:$0xff] %v2878
      %2895 = vst [vmem:[%s280 + $0x28] sm:$0xff] %v2879
      %2896 = vst [vmem:[%s280 + $0x30] sm:$0xff] %v2880
      %2897 = vst [vmem:[%s280 + $0x38] sm:$0xff] %v2881
      %s2898 = smul.u32 2, %s20
      %p2899 = scmp.lt.s32.totalorder %s19, 1
      %s2900 = scalar_select %p2899, %s19, 1
      %p2901 = scmp.lt.s32.totalorder %s2898, 1
      %s2902 = scalar_select %p2901, %s2898, 1
      %s2903 = smul.addr %s2900, 16
      %s2904 = sadd.s32 %s2902, %s2903
      %s2905 = smul.addr %s2904, 4
      %s2906 = scalar_lea.vmem %s4, %s2905
      // Predicated region
      $region37: #{custom_cnn_forward.3} parent=35 // pred_check
        %p2907 = pneg %p151
      $region38: #{custom_cnn_forward.3} parent=35 // pred_check_branch
        %2909 = sbr.rel (%p2907) target = $region40
      $region39: #{custom_cnn_forward.3} parent=35 // pred_region
        %s2910 = smul.u32 2, %s20
      $region40: #{custom_cnn_forward.3} parent=35 // pred_fallthru
        _
    $region36: #{custom_cnn_forward.3} parent=5 // pred_fallthru
      _
    %p2911 = scmp.le.s32.totalorder 2, %s10
    // Predicated region
    $region41: #{custom_cnn_forward.3} parent=5 // pred_check
      %p2912 = pneg %p2911
    $region42: #{custom_cnn_forward.3} parent=5 // pred_check_branch
      %2914 = sbr.rel (%p2912) target = $region44
    $region43: #{custom_cnn_forward.3} parent=5 // pred_region
      %s2915 = ssub.s32 %s10, 2
      // Predicated region
      $region45: #{custom_cnn_forward.3} parent=43 // pred_check
        %p2916 = pneg %p157
      $region46: #{custom_cnn_forward.3} parent=43 // pred_check_branch
        %2918 = sbr.rel (%p2916) target = $region48
      $region47: #{custom_cnn_forward.3} parent=43 // pred_region
        %s2919 = smul.u32 2, %s22
        %p2920 = scmp.lt.s32.totalorder %s21, 1
        %s2921 = scalar_select %p2920, %s21, 1
        %p2922 = scmp.lt.s32.totalorder %s2919, 1
        %s2923 = scalar_select %p2922, %s2919, 1
        %s2924 = smul.addr %s2921, 16
        %s2925 = sadd.s32 %s2923, %s2924
        %s2926 = smul.addr %s2925, 4
        %s2927 = scalar_lea.vmem %s4, %s2926
      $region48: #{custom_cnn_forward.3} parent=43 // pred_fallthru
        _
    $region44: #{custom_cnn_forward.3} parent=5 // pred_fallthru
      _
  $region6: #{custom_cnn_forward.3} parent=0 // loop_footer
    %s14 = sadd.s32 1, %s10
  $region7: #{custom_cnn_forward.3} parent=0 // loop_footer_branch
    %9 = sbr.rel target = $region3
  $region8: #{custom_cnn_forward.3} parent=0 // loop_exit
    _

// kernel: custom_cnn_forward.4
$region0: #{custom_cnn_forward.4}
  #allocation0 [shape = 'u32[]', space=smem, size = 0x4, offset = 0x4, fixed_abs, tag = 'smem constant byte address 0x4 - core index']
  #allocation1 [shape = 'u32[144,128]{1,0:T(1,128)}', space=vmem, size = 0x12000, scoped, tag = 'internal scratch']
  %s0 = inlined_call_operand.vmem [shape: bf16[2,88,256], index: 0, kind: input, shape index: {}]
  %s1 = inlined_call_operand.vmem [shape: bf16[2,88,256], index: 1, kind: input, shape index: {}]
  %s2 = inlined_call_operand.vmem [shape: bf16[2304,128], index: 2, kind: input, shape index: {}]
  %s3 = inlined_call_operand.vmem [shape: f32[1,128], index: 3, kind: input, shape index: {}]
  %s4 = inlined_call_operand.vmem [shape: bf16[2,4,4,128], index: 4, kind: output, shape index: {}]
  %s5 = sld [smem:[#allocation0]]
  $region49: #{custom_cnn_forward.4} parent=0
    _
  %s7 = ssub.s32 1, %s5
  %s8 = scalar_select 0, %s7, %s5
  loop: start=0, step=1, limit=4
  $region2: #{custom_cnn_forward.4} parent=0 // loop_pre_header
    _
  $region3: #{custom_cnn_forward.4} parent=0 // loop_header
    %s10 = sphi 0, %s14
    %p11 = scmp.ge.s32.totalorder %s10, 4
    %s17 = sphi 0, %s29
    %s18 = sphi 0, %s25
    %s19 = sphi 0, %s17
    %s20 = sphi 0, %s18
    %s21 = sphi 0, %s19
    %s22 = sphi 0, %s20
    %s32 = sphi 0, %s34
    %s35 = sphi 0, %s32
    %s36 = sphi 0, %s35
    %s52 = sphi 0, %s36
    %s58 = sphi 0, %s60
    %s61 = sphi 0, %s58
    %s62 = sphi 0, %s61
    %s78 = sphi 0, %s62
    %s84 = sphi 0, %s86
    %s87 = sphi 0, %s84
    %s88 = sphi 0, %s87
    %s104 = sphi 0, %s88
    %s110 = sphi 0, %s112
    %s113 = sphi 0, %s110
    %s114 = sphi 0, %s113
    %s130 = sphi 0, %s114
    %s138 = sphi 0, %s140
    %s141 = sphi 0, %s138
    %s142 = sphi 0, %s141
    %s158 = sphi 0, %s142
  $region4: #{custom_cnn_forward.4} parent=0 // loop_header_branch
    %13 = sbr.rel (%p11) target = $region8
  $region5: #{custom_cnn_forward.4} parent=0 // loop_body
    %s15 = ssub.s32 %s10, 1
    %s16 = ssub.s32 %s10, 2
    %s23 = sadd.s32 1, %s18
    %p24 = scmp.ge.s32.totalorder %s23, 1
    %s25 = scalar_select %p24, 0, %s23
    %s26 = sadd.s32 1, %s17
    %s27 = scalar_select %p24, %s26, %s17
    %p28 = scmp.ge.s32.totalorder %s27, 2
    %s29 = scalar_select %p28, 0, %s27
    %s30 = ssub.s32 %s17, %s29
    %p31 = scmp.eq.s32.totalorder %s30, 0
    %s33 = sadd.s32 %s32, 1
    %s34 = scalar_select %p31, %s32, %s33
    %p37 = pneg %p31
    %p38 = scmp.eq.s32.totalorder %s10, 1
    %p39 = por %p37, %p38
    %p40 = scmp.ne.s32.totalorder %s32, %s35
    %p41 = scmp.eq.s32.totalorder %s10, 0
    %p42 = por %p40, %p41
    %p43 = scmp.ne.s32.totalorder %s32, %s35
    %p44 = scmp.eq.s32.totalorder %s15, 1
    %p45 = por %p43, %p44
    %p46 = scmp.ne.s32.totalorder %s35, %s36
    %p47 = scmp.eq.s32.totalorder %s15, 0
    %p48 = por %p46, %p47
    %p49 = scmp.ne.s32.totalorder %s35, %s36
    %p50 = scmp.eq.s32.totalorder %s16, 1
    %p51 = por %p49, %p50
    %p53 = scmp.ne.s32.totalorder %s36, %s52
    %p54 = scmp.eq.s32.totalorder %s16, 0
    %p55 = por %p53, %p54
    %s56 = ssub.s32 %s17, %s29
    %p57 = scmp.eq.s32.totalorder %s56, 0
    %s59 = sadd.s32 %s58, 1
    %s60 = scalar_select %p57, %s58, %s59
    %p63 = pneg %p57
    %p64 = scmp.eq.s32.totalorder %s10, 1
    %p65 = por %p63, %p64
    %p66 = scmp.ne.s32.totalorder %s58, %s61
    %p67 = scmp.eq.s32.totalorder %s10, 0
    %p68 = por %p66, %p67
    %p69 = scmp.ne.s32.totalorder %s58, %s61
    %p70 = scmp.eq.s32.totalorder %s15, 1
    %p71 = por %p69, %p70
    %p72 = scmp.ne.s32.totalorder %s61, %s62
    %p73 = scmp.eq.s32.totalorder %s15, 0
    %p74 = por %p72, %p73
    %p75 = scmp.ne.s32.totalorder %s61, %s62
    %p76 = scmp.eq.s32.totalorder %s16, 1
    %p77 = por %p75, %p76
    %p79 = scmp.ne.s32.totalorder %s62, %s78
    %p80 = scmp.eq.s32.totalorder %s16, 0
    %p81 = por %p79, %p80
    %s82 = ssub.s32 %s18, %s25
    %p83 = scmp.eq.s32.totalorder %s82, 0
    %s85 = sadd.s32 %s84, 1
    %s86 = scalar_select %p83, %s84, %s85
    %p89 = pneg %p83
    %p90 = scmp.eq.s32.totalorder %s10, 1
    %p91 = por %p89, %p90
    %p92 = scmp.ne.s32.totalorder %s84, %s87
    %p93 = scmp.eq.s32.totalorder %s10, 0
    %p94 = por %p92, %p93
    %p95 = scmp.ne.s32.totalorder %s84, %s87
    %p96 = scmp.eq.s32.totalorder %s15, 1
    %p97 = por %p95, %p96
    %p98 = scmp.ne.s32.totalorder %s87, %s88
    %p99 = scmp.eq.s32.totalorder %s15, 0
    %p100 = por %p98, %p99
    %p101 = scmp.ne.s32.totalorder %s87, %s88
    %p102 = scmp.eq.s32.totalorder %s16, 1
    %p103 = por %p101, %p102
    %p105 = scmp.ne.s32.totalorder %s88, %s104
    %p106 = scmp.eq.s32.totalorder %s16, 0
    %p107 = por %p105, %p106
    %s108 = ssub.s32 %s18, %s25
    %p109 = scmp.eq.s32.totalorder %s108, 0
    %s111 = sadd.s32 %s110, 1
    %s112 = scalar_select %p109, %s110, %s111
    %p115 = pneg %p109
    %p116 = scmp.eq.s32.totalorder %s10, 1
    %p117 = por %p115, %p116
    %p118 = scmp.ne.s32.totalorder %s110, %s113
    %p119 = scmp.eq.s32.totalorder %s10, 0
    %p120 = por %p118, %p119
    %p121 = scmp.ne.s32.totalorder %s110, %s113
    %p122 = scmp.eq.s32.totalorder %s15, 1
    %p123 = por %p121, %p122
    %p124 = scmp.ne.s32.totalorder %s113, %s114
    %p125 = scmp.eq.s32.totalorder %s15, 0
    %p126 = por %p124, %p125
    %p127 = scmp.ne.s32.totalorder %s113, %s114
    %p128 = scmp.eq.s32.totalorder %s16, 1
    %p129 = por %p127, %p128
    %p131 = scmp.ne.s32.totalorder %s114, %s130
    %p132 = scmp.eq.s32.totalorder %s16, 0
    %p133 = por %p131, %p132
    %s134 = ssub.s32 %s17, %s29
    %s135 = ssub.s32 %s18, %s25
    %s136 = sor.u32 %s134, %s135
    %p137 = scmp.eq.s32.totalorder %s136, 0
    %s139 = sadd.s32 %s138, 1
    %s140 = scalar_select %p137, %s138, %s139
    %p143 = pneg %p137
    %p144 = scmp.eq.s32.totalorder %s10, 1
    %p145 = por %p143, %p144
    %p146 = scmp.ne.s32.totalorder %s138, %s141
    %p147 = scmp.eq.s32.totalorder %s10, 0
    %p148 = por %p146, %p147
    %p149 = scmp.ne.s32.totalorder %s138, %s141
    %p150 = scmp.eq.s32.totalorder %s15, 1
    %p151 = por %p149, %p150
    %p152 = scmp.ne.s32.totalorder %s141, %s142
    %p153 = scmp.eq.s32.totalorder %s15, 0
    %p154 = por %p152, %p153
    %p155 = scmp.ne.s32.totalorder %s141, %s142
    %p156 = scmp.eq.s32.totalorder %s16, 1
    %p157 = por %p155, %p156
    %p159 = scmp.ne.s32.totalorder %s142, %s158
    %p160 = scmp.eq.s32.totalorder %s16, 0
    %p161 = por %p159, %p160
    %p162 = scmp.le.s32.totalorder 1, %s10
    %p163 = scmp.lt.s32.totalorder %s10, 3
    %p164 = pnand %p162, %p163
    %p165 = pneg %p164
    // Predicated region
    $region9: #{custom_cnn_forward.4} parent=5 // pred_check
      _
    $region10: #{custom_cnn_forward.4} parent=5 // pred_check_branch
      %167 = sbr.rel (%p164) target = $region12
    $region11: #{custom_cnn_forward.4} parent=5 // pred_region
      %s168 = ssub.s32 %s10, 1
      // Predicated region
      $region13: #{custom_cnn_forward.4} parent=11 // pred_check
        %p169 = pneg %p100
      $region14: #{custom_cnn_forward.4} parent=11 // pred_check_branch
        %171 = sbr.rel (%p169) target = $region16
      $region15: #{custom_cnn_forward.4} parent=11 // pred_region
        %p172 = scmp.lt.s32.totalorder %s20, 0
        %s173 = scalar_select %p172, %s20, 0
        %s174 = smul.addr %s173, 4
        %s175 = scalar_lea.vmem %s2, %s174
      $region16: #{custom_cnn_forward.4} parent=11 // pred_fallthru
        _
      // Predicated region
      $region17: #{custom_cnn_forward.4} parent=11 // pred_check
        %p176 = pneg %p126
      $region18: #{custom_cnn_forward.4} parent=11 // pred_check_branch
        %178 = sbr.rel (%p176) target = $region20
      $region19: #{custom_cnn_forward.4} parent=11 // pred_region
        %p179 = scmp.lt.s32.totalorder %s20, 0
        %s180 = scalar_select %p179, %s20, 0
        %s181 = scalar_lea.vmem %s3, %s180
      $region20: #{custom_cnn_forward.4} parent=11 // pred_fallthru
        _
    $region12: #{custom_cnn_forward.4} parent=5 // pred_fallthru
      _
    %p182 = scmp.lt.s32.totalorder %s10, 2
    // Predicated region
    $region21: #{custom_cnn_forward.4} parent=5 // pred_check
      %p183 = pneg %p182
    $region22: #{custom_cnn_forward.4} parent=5 // pred_check_branch
      %185 = sbr.rel (%p183) target = $region24
    $region23: #{custom_cnn_forward.4} parent=5 // pred_region
      // Predicated region
      $region25: #{custom_cnn_forward.4} parent=23 // pred_check
        %p186 = pneg %p42
      $region26: #{custom_cnn_forward.4} parent=23 // pred_check_branch
        %188 = sbr.rel (%p186) target = $region28
      $region27: #{custom_cnn_forward.4} parent=23 // pred_region
        %p189 = scmp.lt.s32.totalorder %s17, 1
        %s190 = scalar_select %p189, %s17, 1
        %s191 = smul.addr %s190, 22
        %s192 = smul.addr %s191, 4
        %s193 = scalar_lea.vmem %s0, %s192
      $region28: #{custom_cnn_forward.4} parent=23 // pred_fallthru
        _
      // Predicated region
      $region29: #{custom_cnn_forward.4} parent=23 // pred_check
        %p194 = pneg %p68
      $region30: #{custom_cnn_forward.4} parent=23 // pred_check_branch
        %196 = sbr.rel (%p194) target = $region32
      $region31: #{custom_cnn_forward.4} parent=23 // pred_region
        %p197 = scmp.lt.s32.totalorder %s17, 1
        %s198 = scalar_select %p197, %s17, 1
        %s199 = smul.addr %s198, 22
        %s200 = smul.addr %s199, 4
        %s201 = scalar_lea.vmem %s1, %s200
      $region32: #{custom_cnn_forward.4} parent=23 // pred_fallthru
        _
    $region24: #{custom_cnn_forward.4} parent=5 // pred_fallthru
      _
    %p202 = scmp.le.s32.totalorder 1, %s10
    %p203 = scmp.lt.s32.totalorder %s10, 3
    %p204 = pnand %p202, %p203
    %p205 = pneg %p204
    // Predicated region
    $region33: #{custom_cnn_forward.4} parent=5 // pred_check
      _
    $region34: #{custom_cnn_forward.4} parent=5 // pred_check_branch
      %207 = sbr.rel (%p204) target = $region36
    $region35: #{custom_cnn_forward.4} parent=5 // pred_region
      %s208 = ssub.s32 %s10, 1
      %p209 = scmp.lt.s32.totalorder %s19, 1
      %s210 = scalar_select %p209, %s19, 1
      %s211 = smul.addr %s210, 22
      %s212 = smul.addr %s211, 4
      %s213 = scalar_lea.vmem %s0, %s212
      %p214 = pneg %p48
      %p215 = pneg %p45
      %p216 = scmp.lt.s32.totalorder %s19, 1
      %s217 = scalar_select %p216, %s19, 1
      %s218 = smul.addr %s217, 22
      %s219 = smul.addr %s218, 4
      %s220 = scalar_lea.vmem %s1, %s219
      %p221 = pneg %p74
      %p222 = pneg %p71
      %p223 = scmp.lt.s32.totalorder %s20, 0
      %s224 = scalar_select %p223, %s20, 0
      %s225 = smul.addr %s224, 4
      %s226 = scalar_lea.vmem %s2, %s225
      %p227 = pneg %p100
      %p228 = pneg %p97
      %p229 = scmp.lt.s32.totalorder %s20, 0
      %s230 = scalar_select %p229, %s20, 0
      %s231 = scalar_lea.vmem %s3, %s230
      %p232 = pneg %p126
      %p233 = pneg %p123
      %p234 = pneg %p154
      %p235 = pneg %p151
      %p236 = scmp.lt.s32.totalorder %s19, 1
      %s237 = scalar_select %p236, %s19, 1
      %p238 = scmp.lt.s32.totalorder %s20, 0
      %s239 = scalar_select %p238, %s20, 0
      %s240 = smul.addr %s237, 4
      %s241 = sadd.s32 %s239, %s240
      %s242 = smul.addr %s241, 2
      %s243 = scalar_lea.vmem %s4, %s242
      %p244 = scmp.lt.s32.totalorder %s19, 1
      %s245 = scalar_select %p244, %s19, 1
      %s246 = smul.addr %s245, 22
      %s247 = smul.addr %s246, 4
      %s248 = scalar_lea.vmem %s0, %s247
      %p249 = scmp.lt.s32.totalorder %s19, 1
      %s250 = scalar_select %p249, %s19, 1
      %s251 = smul.addr %s250, 22
      %s252 = smul.addr %s251, 4
      %s253 = scalar_lea.vmem %s1, %s252
      %p254 = scmp.lt.s32.totalorder %s20, 0
      %s255 = scalar_select %p254, %s20, 0
      %s256 = smul.addr %s255, 4
      %s257 = scalar_lea.vmem %s2, %s256
      %p258 = scmp.lt.s32.totalorder %s20, 0
      %s259 = scalar_select %p258, %s20, 0
      %s260 = scalar_lea.vmem %s3, %s259
      %p261 = scmp.lt.s32.totalorder %s19, 1
      %s262 = scalar_select %p261, %s19, 1
      %p263 = scmp.lt.s32.totalorder %s20, 0
      %s264 = scalar_select %p263, %s20, 0
      %s265 = smul.addr %s262, 4
      %s266 = sadd.s32 %s264, %s265
      %s267 = smul.addr %s266, 2
      %s268 = scalar_lea.vmem %s4, %s267
      %v270 = vld [vmem:[%s248] sm:$0xff]
      %v271 = vld [vmem:[%s248 + $0x8] sm:$0xff]
      %v272 = vld [vmem:[%s248 + $0x10] sm:$0xff]
      %v273 = vld [vmem:[%s248 + $0x18] sm:$0xff]
      %v274 = vld [vmem:[%s248 + $0x20] sm:$0xff]
      %v275 = vld [vmem:[%s248 + $0x28] sm:$0xff]
      %v276 = vld [vmem:[%s248 + $0x30] sm:$0xff]
      %v277 = vld [vmem:[%s248 + $0x38] sm:$0xff]
      %v278 = vld [vmem:[%s253] sm:$0xff]
      %v279 = vld [vmem:[%s253 + $0x8] sm:$0xff]
      %v280 = vld [vmem:[%s253 + $0x10] sm:$0xff]
      %v281 = vld [vmem:[%s253 + $0x18] sm:$0xff]
      %v282 = vld [vmem:[%s253 + $0x20] sm:$0xff]
      %v283 = vld [vmem:[%s253 + $0x28] sm:$0xff]
      %v284 = vld [vmem:[%s253 + $0x30] sm:$0xff]
      %v285 = vld [vmem:[%s253 + $0x38] sm:$0xff]
      %v286 = vld [vmem:[%s248 + $0x40] sm:$0x11]
      %v287 = vld [vmem:[%s248 + $0x40] sm:$0xff]
      %v288 = vld [vmem:[%s253 + $0x40] sm:$0xff]
      %v289 = vld [vmem:[%s248 + $0x48] sm:$0x11]
      %v290 = vld [vmem:[%s248 + $0x48] sm:$0xff]
      %v291 = vld [vmem:[%s253 + $0x48] sm:$0xff]
      %v292 = vld [vmem:[%s248 + $0x10] sm:$0xff]
      %v293 = vld [vmem:[%s248 + $0x18] sm:$0xff]
      %v294 = vld [vmem:[%s248 + $0x20] sm:$0xff]
      %v295 = vld [vmem:[%s248 + $0x28] sm:$0xff]
      %v296 = vld [vmem:[%s248 + $0x30] sm:$0xff]
      %v297 = vld [vmem:[%s248 + $0x38] sm:$0xff]
      %v298 = vld [vmem:[%s248 + $0x40] sm:$0xff]
      %v299 = vld [vmem:[%s248 + $0x48] sm:$0xff]
      %v300 = vld [vmem:[%s248 + $0x50] sm:$0x11]
      %v309 = vunpack.c.l.b16 %v270
      %v310 = vunpack.c.h.b16 %v270
      %v311 = vunpack.c.l.b16 %v271
      %v312 = vunpack.c.h.b16 %v271
      %v313 = vunpack.c.l.b16 %v272
      %v314 = vunpack.c.h.b16 %v272
      %v315 = vunpack.c.l.b16 %v273
      %v316 = vunpack.c.h.b16 %v273
      %v317 = vunpack.c.l.b16 %v274
      %v318 = vunpack.c.h.b16 %v274
      %v319 = vunpack.c.l.b16 %v275
      %v320 = vunpack.c.h.b16 %v275
      %v321 = vunpack.c.l.b16 %v276
      %v322 = vunpack.c.h.b16 %v276
      %v323 = vunpack.c.l.b16 %v277
      %v324 = vunpack.c.h.b16 %v277
      %v325 = vpack.c.b16 %v311, %v309
      %v326 = vpack.c.b16 %v312, %v310
      %v327 = vpack.c.b16 %v315, %v313
      %v328 = vpack.c.b16 %v316, %v314
      %v329 = vpack.c.b16 %v319, %v317
      %v330 = vpack.c.b16 %v320, %v318
      %v331 = vpack.c.b16 %v323, %v321
      %v332 = vpack.c.b16 %v324, %v322
      %v349 = vunpack.c.l.b16 %v278
      %v350 = vunpack.c.h.b16 %v278
      %v351 = vunpack.c.l.b16 %v279
      %v352 = vunpack.c.h.b16 %v279
      %v353 = vunpack.c.l.b16 %v280
      %v354 = vunpack.c.h.b16 %v280
      %v355 = vunpack.c.l.b16 %v281
      %v356 = vunpack.c.h.b16 %v281
      %v357 = vunpack.c.l.b16 %v282
      %v358 = vunpack.c.h.b16 %v282
      %v359 = vunpack.c.l.b16 %v283
      %v360 = vunpack.c.h.b16 %v283
      %v361 = vunpack.c.l.b16 %v284
      %v362 = vunpack.c.h.b16 %v284
      %v363 = vunpack.c.l.b16 %v285
      %v364 = vunpack.c.h.b16 %v285
      %v365 = vpack.c.b16 %v351, %v349
      %v366 = vpack.c.b16 %v352, %v350
      %v367 = vpack.c.b16 %v355, %v353
      %v368 = vpack.c.b16 %v356, %v354
      %v369 = vpack.c.b16 %v359, %v357
      %v370 = vpack.c.b16 %v360, %v358
      %v371 = vpack.c.b16 %v363, %v361
      %v372 = vpack.c.b16 %v364, %v362
      %v382 = vunpack.c.l.b16 %v286
      %v383 = vunpack.c.h.b16 %v286
      %v384 = vpack.c.b16 %v382, %v382
      %v385 = vpack.c.b16 %v383, %v383
      %vm386 = vsmask.f32 7424
      %v388 = vshrl.u32 %v325, 16
      %v390 = vshll.u32 %v325, 16
      %v392 = vrot.slane %v390, 1
      %v393 = vor.u32 %v388, %v392
      %v395 = vshll.u32 %v327, 16
      %v397 = vrot.slane %v395, 1
      %v398 = vsel %vm386, %v393, %v397
      %v400 = vshrl.u32 %v326, 16
      %v402 = vshll.u32 %v326, 16
      %v404 = vrot.slane %v402, 1
      %v405 = vor.u32 %v400, %v404
      %v407 = vshll.u32 %v328, 16
      %v409 = vrot.slane %v407, 1
      %v410 = vsel %vm386, %v405, %v409
      %v411 = vshrl.u32 %v327, 16
      %v413 = vor.u32 %v411, %v397
      %v415 = vshll.u32 %v329, 16
      %v417 = vrot.slane %v415, 1
      %v418 = vsel %vm386, %v413, %v417
      %v419 = vshrl.u32 %v328, 16
      %v421 = vor.u32 %v419, %v409
      %v423 = vshll.u32 %v330, 16
      %v425 = vrot.slane %v423, 1
      %v426 = vsel %vm386, %v421, %v425
      %v427 = vshrl.u32 %v329, 16
      %v429 = vor.u32 %v427, %v417
      %v431 = vshll.u32 %v331, 16
      %v433 = vrot.slane %v431, 1
      %v434 = vsel %vm386, %v429, %v433
      %v435 = vshrl.u32 %v330, 16
      %v437 = vor.u32 %v435, %v425
      %v439 = vshll.u32 %v332, 16
      %v441 = vrot.slane %v439, 1
      %v442 = vsel %vm386, %v437, %v441
      %v443 = vshrl.u32 %v331, 16
      %v445 = vor.u32 %v443, %v433
      %v447 = vshll.u32 %v384, 16
      %v449 = vrot.slane %v447, 1
      %v450 = vsel %vm386, %v445, %v449
      %v451 = vshrl.u32 %v332, 16
      %v453 = vor.u32 %v451, %v441
      %v455 = vshll.u32 %v385, 16
      %v457 = vrot.slane %v455, 1
      %v458 = vsel %vm386, %v453, %v457
      %v468 = vunpack.c.l.b16 %v287
      %v469 = vunpack.c.h.b16 %v287
      %v470 = vpack.c.b16 %v313, %v311
      %v471 = vpack.c.b16 %v314, %v312
      %v472 = vpack.c.b16 %v317, %v315
      %v473 = vpack.c.b16 %v318, %v316
      %v474 = vpack.c.b16 %v321, %v319
      %v475 = vpack.c.b16 %v322, %v320
      %v476 = vpack.c.b16 %v468, %v323
      %v477 = vpack.c.b16 %v469, %v324
      %v487 = vunpack.c.l.b16 %v288
      %v488 = vunpack.c.h.b16 %v288
      %v489 = vpack.c.b16 %v353, %v351
      %v490 = vpack.c.b16 %v354, %v352
      %v491 = vpack.c.b16 %v357, %v355
      %v492 = vpack.c.b16 %v358, %v356
      %v493 = vpack.c.b16 %v361, %v359
      %v494 = vpack.c.b16 %v362, %v360
      %v495 = vpack.c.b16 %v487, %v363
      %v496 = vpack.c.b16 %v488, %v364
      %v506 = vunpack.c.l.b16 %v289
      %v507 = vunpack.c.h.b16 %v289
      %v508 = vpack.c.b16 %v506, %v506
      %v509 = vpack.c.b16 %v507, %v507
      %v511 = vshrl.u32 %v470, 16
      %v513 = vshll.u32 %v470, 16
      %v515 = vrot.slane %v513, 1
      %v516 = vor.u32 %v511, %v515
      %v518 = vshll.u32 %v472, 16
      %v520 = vrot.slane %v518, 1
      %v521 = vsel %vm386, %v516, %v520
      %v523 = vshrl.u32 %v471, 16
      %v525 = vshll.u32 %v471, 16
      %v527 = vrot.slane %v525, 1
      %v528 = vor.u32 %v523, %v527
      %v530 = vshll.u32 %v473, 16
      %v532 = vrot.slane %v530, 1
      %v533 = vsel %vm386, %v528, %v532
      %v534 = vshrl.u32 %v472, 16
      %v536 = vor.u32 %v534, %v520
      %v538 = vshll.u32 %v474, 16
      %v540 = vrot.slane %v538, 1
      %v541 = vsel %vm386, %v536, %v540
      %v542 = vshrl.u32 %v473, 16
      %v544 = vor.u32 %v542, %v532
      %v546 = vshll.u32 %v475, 16
      %v548 = vrot.slane %v546, 1
      %v549 = vsel %vm386, %v544, %v548
      %v550 = vshrl.u32 %v474, 16
      %v552 = vor.u32 %v550, %v540
      %v554 = vshll.u32 %v476, 16
      %v556 = vrot.slane %v554, 1
      %v557 = vsel %vm386, %v552, %v556
      %v558 = vshrl.u32 %v475, 16
      %v560 = vor.u32 %v558, %v548
      %v562 = vshll.u32 %v477, 16
      %v564 = vrot.slane %v562, 1
      %v565 = vsel %vm386, %v560, %v564
      %v566 = vshrl.u32 %v476, 16
      %v568 = vor.u32 %v566, %v556
      %v570 = vshll.u32 %v508, 16
      %v572 = vrot.slane %v570, 1
      %v573 = vsel %vm386, %v568, %v572
      %v574 = vshrl.u32 %v477, 16
      %v576 = vor.u32 %v574, %v564
      %v578 = vshll.u32 %v509, 16
      %v580 = vrot.slane %v578, 1
      %v581 = vsel %vm386, %v576, %v580
      %v591 = vunpack.c.l.b16 %v290
      %v592 = vunpack.c.h.b16 %v290
      %v593 = vpack.c.b16 %v591, %v468
      %v594 = vpack.c.b16 %v592, %v469
      %v598 = vunpack.c.l.b16 %v291
      %v599 = vunpack.c.h.b16 %v291
      %v600 = vpack.c.b16 %v598, %v487
      %v601 = vpack.c.b16 %v599, %v488
      %v613 = vunpack.c.l.b16 %v292
      %v614 = vunpack.c.h.b16 %v292
      %v615 = vunpack.c.l.b16 %v293
      %v616 = vunpack.c.h.b16 %v293
      %v617 = vunpack.c.l.b16 %v294
      %v618 = vunpack.c.h.b16 %v294
      %v619 = vunpack.c.l.b16 %v295
      %v620 = vunpack.c.h.b16 %v295
      %v621 = vunpack.c.l.b16 %v296
      %v622 = vunpack.c.h.b16 %v296
      %v623 = vunpack.c.l.b16 %v297
      %v624 = vunpack.c.h.b16 %v297
      %v625 = vunpack.c.l.b16 %v298
      %v626 = vunpack.c.h.b16 %v298
      %v627 = vunpack.c.l.b16 %v299
      %v628 = vunpack.c.h.b16 %v299
      %v629 = vunpack.c.l.b16 %v300
      %v630 = vunpack.c.h.b16 %v300
      %v631 = vpack.c.b16 %v615, %v613
      %v632 = vpack.c.b16 %v616, %v614
      %v633 = vpack.c.b16 %v619, %v617
      %v634 = vpack.c.b16 %v620, %v618
      %v635 = vpack.c.b16 %v623, %v621
      %v636 = vpack.c.b16 %v624, %v622
      %v637 = vpack.c.b16 %v627, %v625
      %v638 = vpack.c.b16 %v628, %v626
      %v639 = vpack.c.b16 %v629, %v629
      %v640 = vpack.c.b16 %v630, %v630
      %v642 = vshrl.u32 %v631, 16
      %v644 = vshll.u32 %v631, 16
      %v646 = vrot.slane %v644, 1
      %v647 = vor.u32 %v642, %v646
      %v649 = vshll.u32 %v633, 16
      %v651 = vrot.slane %v649, 1
      %v652 = vsel %vm386, %v647, %v651
      %v654 = vshrl.u32 %v632, 16
      %v656 = vshll.u32 %v632, 16
      %v658 = vrot.slane %v656, 1
      %v659 = vor.u32 %v654, %v658
      %v661 = vshll.u32 %v634, 16
      %v663 = vrot.slane %v661, 1
      %v664 = vsel %vm386, %v659, %v663
      %v665 = vshrl.u32 %v633, 16
      %v667 = vor.u32 %v665, %v651
      %v669 = vshll.u32 %v635, 16
      %v671 = vrot.slane %v669, 1
      %v672 = vsel %vm386, %v667, %v671
      %v673 = vshrl.u32 %v634, 16
      %v675 = vor.u32 %v673, %v663
      %v677 = vshll.u32 %v636, 16
      %v679 = vrot.slane %v677, 1
      %v680 = vsel %vm386, %v675, %v679
      %v681 = vshrl.u32 %v635, 16
      %v683 = vor.u32 %v681, %v671
      %v685 = vshll.u32 %v637, 16
      %v687 = vrot.slane %v685, 1
      %v688 = vsel %vm386, %v683, %v687
      %v689 = vshrl.u32 %v636, 16
      %v691 = vor.u32 %v689, %v679
      %v693 = vshll.u32 %v638, 16
      %v695 = vrot.slane %v693, 1
      %v696 = vsel %vm386, %v691, %v695
      %v697 = vshrl.u32 %v637, 16
      %v699 = vor.u32 %v697, %v687
      %v701 = vshll.u32 %v639, 16
      %v703 = vrot.slane %v701, 1
      %v704 = vsel %vm386, %v699, %v703
      %v705 = vshrl.u32 %v638, 16
      %v707 = vor.u32 %v705, %v695
      %v709 = vshll.u32 %v640, 16
      %v711 = vrot.slane %v709, 1
      %v712 = vsel %vm386, %v707, %v711
      %v721 = vld [vmem:[%s253 + $0x40] sm:$0x11]
      %v722 = vld [vmem:[%s253 + $0x48] sm:$0x11]
      %v723 = vld [vmem:[%s253 + $0x10] sm:$0xff]
      %v724 = vld [vmem:[%s253 + $0x18] sm:$0xff]
      %v725 = vld [vmem:[%s253 + $0x20] sm:$0xff]
      %v726 = vld [vmem:[%s253 + $0x28] sm:$0xff]
      %v727 = vld [vmem:[%s253 + $0x30] sm:$0xff]
      %v728 = vld [vmem:[%s253 + $0x38] sm:$0xff]
      %v729 = vld [vmem:[%s253 + $0x40] sm:$0xff]
      %v730 = vld [vmem:[%s253 + $0x48] sm:$0xff]
      %v731 = vld [vmem:[%s253 + $0x50] sm:$0x11]
      %v733 = vunpack.c.l.b16 %v721
      %v734 = vunpack.c.h.b16 %v721
      %v735 = vpack.c.b16 %v733, %v733
      %v736 = vpack.c.b16 %v734, %v734
      %v738 = vshrl.u32 %v365, 16
      %v740 = vshll.u32 %v365, 16
      %v742 = vrot.slane %v740, 1
      %v743 = vor.u32 %v738, %v742
      %v745 = vshll.u32 %v367, 16
      %v747 = vrot.slane %v745, 1
      %v748 = vsel %vm386, %v743, %v747
      %v750 = vshrl.u32 %v366, 16
      %v752 = vshll.u32 %v366, 16
      %v754 = vrot.slane %v752, 1
      %v755 = vor.u32 %v750, %v754
      %v757 = vshll.u32 %v368, 16
      %v759 = vrot.slane %v757, 1
      %v760 = vsel %vm386, %v755, %v759
      %v761 = vshrl.u32 %v367, 16
      %v763 = vor.u32 %v761, %v747
      %v765 = vshll.u32 %v369, 16
      %v767 = vrot.slane %v765, 1
      %v768 = vsel %vm386, %v763, %v767
      %v769 = vshrl.u32 %v368, 16
      %v771 = vor.u32 %v769, %v759
      %v773 = vshll.u32 %v370, 16
      %v775 = vrot.slane %v773, 1
      %v776 = vsel %vm386, %v771, %v775
      %v777 = vshrl.u32 %v369, 16
      %v779 = vor.u32 %v777, %v767
      %v781 = vshll.u32 %v371, 16
      %v783 = vrot.slane %v781, 1
      %v784 = vsel %vm386, %v779, %v783
      %v785 = vshrl.u32 %v370, 16
      %v787 = vor.u32 %v785, %v775
      %v789 = vshll.u32 %v372, 16
      %v791 = vrot.slane %v789, 1
      %v792 = vsel %vm386, %v787, %v791
      %v793 = vshrl.u32 %v371, 16
      %v795 = vor.u32 %v793, %v783
      %v797 = vshll.u32 %v735, 16
      %v799 = vrot.slane %v797, 1
      %v800 = vsel %vm386, %v795, %v799
      %v801 = vshrl.u32 %v372, 16
      %v803 = vor.u32 %v801, %v791
      %v805 = vshll.u32 %v736, 16
      %v807 = vrot.slane %v805, 1
      %v808 = vsel %vm386, %v803, %v807
      %v818 = vunpack.c.l.b16 %v722
      %v819 = vunpack.c.h.b16 %v722
      %v820 = vpack.c.b16 %v818, %v818
      %v821 = vpack.c.b16 %v819, %v819
      %v823 = vshrl.u32 %v489, 16
      %v825 = vshll.u32 %v489, 16
      %v827 = vrot.slane %v825, 1
      %v828 = vor.u32 %v823, %v827
      %v830 = vshll.u32 %v491, 16
      %v832 = vrot.slane %v830, 1
      %v833 = vsel %vm386, %v828, %v832
      %v835 = vshrl.u32 %v490, 16
      %v837 = vshll.u32 %v490, 16
      %v839 = vrot.slane %v837, 1
      %v840 = vor.u32 %v835, %v839
      %v842 = vshll.u32 %v492, 16
      %v844 = vrot.slane %v842, 1
      %v845 = vsel %vm386, %v840, %v844
      %v846 = vshrl.u32 %v491, 16
      %v848 = vor.u32 %v846, %v832
      %v850 = vshll.u32 %v493, 16
      %v852 = vrot.slane %v850, 1
      %v853 = vsel %vm386, %v848, %v852
      %v854 = vshrl.u32 %v492, 16
      %v856 = vor.u32 %v854, %v844
      %v858 = vshll.u32 %v494, 16
      %v860 = vrot.slane %v858, 1
      %v861 = vsel %vm386, %v856, %v860
      %v862 = vshrl.u32 %v493, 16
      %v864 = vor.u32 %v862, %v852
      %v866 = vshll.u32 %v495, 16
      %v868 = vrot.slane %v866, 1
      %v869 = vsel %vm386, %v864, %v868
      %v870 = vshrl.u32 %v494, 16
      %v872 = vor.u32 %v870, %v860
      %v874 = vshll.u32 %v496, 16
      %v876 = vrot.slane %v874, 1
      %v877 = vsel %vm386, %v872, %v876
      %v878 = vshrl.u32 %v495, 16
      %v880 = vor.u32 %v878, %v868
      %v882 = vshll.u32 %v820, 16
      %v884 = vrot.slane %v882, 1
      %v885 = vsel %vm386, %v880, %v884
      %v886 = vshrl.u32 %v496, 16
      %v888 = vor.u32 %v886, %v876
      %v890 = vshll.u32 %v821, 16
      %v892 = vrot.slane %v890, 1
      %v893 = vsel %vm386, %v888, %v892
      %v911 = vunpack.c.l.b16 %v723
      %v912 = vunpack.c.h.b16 %v723
      %v913 = vunpack.c.l.b16 %v724
      %v914 = vunpack.c.h.b16 %v724
      %v915 = vunpack.c.l.b16 %v725
      %v916 = vunpack.c.h.b16 %v725
      %v917 = vunpack.c.l.b16 %v726
      %v918 = vunpack.c.h.b16 %v726
      %v919 = vunpack.c.l.b16 %v727
      %v920 = vunpack.c.h.b16 %v727
      %v921 = vunpack.c.l.b16 %v728
      %v922 = vunpack.c.h.b16 %v728
      %v923 = vunpack.c.l.b16 %v729
      %v924 = vunpack.c.h.b16 %v729
      %v925 = vunpack.c.l.b16 %v730
      %v926 = vunpack.c.h.b16 %v730
      %v927 = vunpack.c.l.b16 %v731
      %v928 = vunpack.c.h.b16 %v731
      %v929 = vpack.c.b16 %v913, %v911
      %v930 = vpack.c.b16 %v914, %v912
      %v931 = vpack.c.b16 %v917, %v915
      %v932 = vpack.c.b16 %v918, %v916
      %v933 = vpack.c.b16 %v921, %v919
      %v934 = vpack.c.b16 %v922, %v920
      %v935 = vpack.c.b16 %v925, %v923
      %v936 = vpack.c.b16 %v926, %v924
      %v937 = vpack.c.b16 %v927, %v927
      %v938 = vpack.c.b16 %v928, %v928
      %v940 = vshrl.u32 %v929, 16
      %v942 = vshll.u32 %v929, 16
      %v944 = vrot.slane %v942, 1
      %v945 = vor.u32 %v940, %v944
      %v947 = vshll.u32 %v931, 16
      %v949 = vrot.slane %v947, 1
      %v950 = vsel %vm386, %v945, %v949
      %v952 = vshrl.u32 %v930, 16
      %v954 = vshll.u32 %v930, 16
      %v956 = vrot.slane %v954, 1
      %v957 = vor.u32 %v952, %v956
      %v959 = vshll.u32 %v932, 16
      %v961 = vrot.slane %v959, 1
      %v962 = vsel %vm386, %v957, %v961
      %v963 = vshrl.u32 %v931, 16
      %v965 = vor.u32 %v963, %v949
      %v967 = vshll.u32 %v933, 16
      %v969 = vrot.slane %v967, 1
      %v970 = vsel %vm386, %v965, %v969
      %v971 = vshrl.u32 %v932, 16
      %v973 = vor.u32 %v971, %v961
      %v975 = vshll.u32 %v934, 16
      %v977 = vrot.slane %v975, 1
      %v978 = vsel %vm386, %v973, %v977
      %v979 = vshrl.u32 %v933, 16
      %v981 = vor.u32 %v979, %v969
      %v983 = vshll.u32 %v935, 16
      %v985 = vrot.slane %v983, 1
      %v986 = vsel %vm386, %v981, %v985
      %v987 = vshrl.u32 %v934, 16
      %v989 = vor.u32 %v987, %v977
      %v991 = vshll.u32 %v936, 16
      %v993 = vrot.slane %v991, 1
      %v994 = vsel %vm386, %v989, %v993
      %v995 = vshrl.u32 %v935, 16
      %v997 = vor.u32 %v995, %v985
      %v999 = vshll.u32 %v937, 16
      %v1001 = vrot.slane %v999, 1
      %v1002 = vsel %vm386, %v997, %v1001
      %v1003 = vshrl.u32 %v936, 16
      %v1005 = vor.u32 %v1003, %v993
      %v1007 = vshll.u32 %v938, 16
      %v1009 = vrot.slane %v1007, 1
      %v1010 = vsel %vm386, %v1005, %v1009
      %v1019 = vld [vmem:[%s257] sm:$0xf]
      %v1020 = vld [vmem:[%s257 + $0x4] sm:$0xf]
      %v1021 = vld [vmem:[%s257 + $0x8] sm:$0xf]
      %v1022 = vld [vmem:[%s257 + $0xc] sm:$0xf]
      %v1023 = vld [vmem:[%s257 + $0x10] sm:$0xf]
      %v1024 = vld [vmem:[%s257 + $0x14] sm:$0xf]
      %v1025 = vld [vmem:[%s257 + $0x18] sm:$0xf]
      %v1026 = vld [vmem:[%s257 + $0x1c] sm:$0xf]
      %v1027 = vld [vmem:[%s257 + $0x20] sm:$0xf]
      %v1028 = vld [vmem:[%s257 + $0x24] sm:$0xf]
      %v1029 = vld [vmem:[%s257 + $0x28] sm:$0xf]
      %v1030 = vld [vmem:[%s257 + $0x2c] sm:$0xf]
      %v1031 = vld [vmem:[%s257 + $0x30] sm:$0xf]
      %v1032 = vld [vmem:[%s257 + $0x34] sm:$0xf]
      %v1033 = vld [vmem:[%s257 + $0x38] sm:$0xf]
      %v1034 = vld [vmem:[%s257 + $0x3c] sm:$0xf]
      %v1035 = vld [vmem:[%s257 + $0x40] sm:$0xf]
      %v1036 = vld [vmem:[%s257 + $0x44] sm:$0xf]
      %v1037 = vld [vmem:[%s257 + $0x48] sm:$0xf]
      %v1038 = vld [vmem:[%s257 + $0x4c] sm:$0xf]
      %v1039 = vld [vmem:[%s257 + $0x50] sm:$0xf]
      %v1040 = vld [vmem:[%s257 + $0x54] sm:$0xf]
      %v1041 = vld [vmem:[%s257 + $0x58] sm:$0xf]
      %v1042 = vld [vmem:[%s257 + $0x5c] sm:$0xf]
      %v1043 = vld [vmem:[%s257 + $0x60] sm:$0xf]
      %v1044 = vld [vmem:[%s257 + $0x64] sm:$0xf]
      %v1045 = vld [vmem:[%s257 + $0x68] sm:$0xf]
      %v1046 = vld [vmem:[%s257 + $0x6c] sm:$0xf]
      %v1047 = vld [vmem:[%s257 + $0x70] sm:$0xf]
      %v1048 = vld [vmem:[%s257 + $0x74] sm:$0xf]
      %v1049 = vld [vmem:[%s257 + $0x78] sm:$0xf]
      %v1050 = vld [vmem:[%s257 + $0x7c] sm:$0xf]
      %v1051 = vld [vmem:[%s257 + $0x80] sm:$0xf]
      %v1052 = vld [vmem:[%s257 + $0x84] sm:$0xf]
      %v1053 = vld [vmem:[%s257 + $0x88] sm:$0xf]
      %v1054 = vld [vmem:[%s257 + $0x8c] sm:$0xf]
      %v1055 = vld [vmem:[%s257 + $0x90] sm:$0xf]
      %v1056 = vld [vmem:[%s257 + $0x94] sm:$0xf]
      %v1057 = vld [vmem:[%s257 + $0x98] sm:$0xf]
      %v1058 = vld [vmem:[%s257 + $0x9c] sm:$0xf]
      %v1059 = vld [vmem:[%s257 + $0xa0] sm:$0xf]
      %v1060 = vld [vmem:[%s257 + $0xa4] sm:$0xf]
      %v1061 = vld [vmem:[%s257 + $0xa8] sm:$0xf]
      %v1062 = vld [vmem:[%s257 + $0xac] sm:$0xf]
      %v1063 = vld [vmem:[%s257 + $0xb0] sm:$0xf]
      %v1064 = vld [vmem:[%s257 + $0xb4] sm:$0xf]
      %v1065 = vld [vmem:[%s257 + $0xb8] sm:$0xf]
      %v1066 = vld [vmem:[%s257 + $0xbc] sm:$0xf]
      %v1067 = vld [vmem:[%s257 + $0xc0] sm:$0xf]
      %v1068 = vld [vmem:[%s257 + $0xc4] sm:$0xf]
      %v1069 = vld [vmem:[%s257 + $0xc8] sm:$0xf]
      %v1070 = vld [vmem:[%s257 + $0xcc] sm:$0xf]
      %v1071 = vld [vmem:[%s257 + $0xd0] sm:$0xf]
      %v1072 = vld [vmem:[%s257 + $0xd4] sm:$0xf]
      %v1073 = vld [vmem:[%s257 + $0xd8] sm:$0xf]
      %v1074 = vld [vmem:[%s257 + $0xdc] sm:$0xf]
      %v1075 = vld [vmem:[%s257 + $0xe0] sm:$0xf]
      %v1076 = vld [vmem:[%s257 + $0xe4] sm:$0xf]
      %v1077 = vld [vmem:[%s257 + $0xe8] sm:$0xf]
      %v1078 = vld [vmem:[%s257 + $0xec] sm:$0xf]
      %v1079 = vld [vmem:[%s257 + $0xf0] sm:$0xf]
      %v1080 = vld [vmem:[%s257 + $0xf4] sm:$0xf]
      %v1081 = vld [vmem:[%s257 + $0xf8] sm:$0xf]
      %v1082 = vld [vmem:[%s257 + $0xfc] sm:$0xf]
      %v1083 = vld [vmem:[%s257 + $0x100] sm:$0xf]
      %v1084 = vld [vmem:[%s257 + $0x104] sm:$0xf]
      %v1085 = vld [vmem:[%s257 + $0x108] sm:$0xf]
      %v1086 = vld [vmem:[%s257 + $0x10c] sm:$0xf]
      %v1087 = vld [vmem:[%s257 + $0x110] sm:$0xf]
      %v1088 = vld [vmem:[%s257 + $0x114] sm:$0xf]
      %v1089 = vld [vmem:[%s257 + $0x118] sm:$0xf]
      %v1090 = vld [vmem:[%s257 + $0x11c] sm:$0xf]
      %v1091 = vld [vmem:[%s257 + $0x120] sm:$0xf]
      %v1092 = vld [vmem:[%s257 + $0x124] sm:$0xf]
      %v1093 = vld [vmem:[%s257 + $0x128] sm:$0xf]
      %v1094 = vld [vmem:[%s257 + $0x12c] sm:$0xf]
      %v1095 = vld [vmem:[%s257 + $0x130] sm:$0xf]
      %v1096 = vld [vmem:[%s257 + $0x134] sm:$0xf]
      %v1097 = vld [vmem:[%s257 + $0x138] sm:$0xf]
      %v1098 = vld [vmem:[%s257 + $0x13c] sm:$0xf]
      %v1099 = vld [vmem:[%s257 + $0x140] sm:$0xf]
      %v1100 = vld [vmem:[%s257 + $0x144] sm:$0xf]
      %v1101 = vld [vmem:[%s257 + $0x148] sm:$0xf]
      %v1102 = vld [vmem:[%s257 + $0x14c] sm:$0xf]
      %v1103 = vld [vmem:[%s257 + $0x150] sm:$0xf]
      %v1104 = vld [vmem:[%s257 + $0x154] sm:$0xf]
      %v1105 = vld [vmem:[%s257 + $0x158] sm:$0xf]
      %v1106 = vld [vmem:[%s257 + $0x15c] sm:$0xf]
      %v1107 = vld [vmem:[%s257 + $0x160] sm:$0xf]
      %v1108 = vld [vmem:[%s257 + $0x164] sm:$0xf]
      %v1109 = vld [vmem:[%s257 + $0x168] sm:$0xf]
      %v1110 = vld [vmem:[%s257 + $0x16c] sm:$0xf]
      %v1111 = vld [vmem:[%s257 + $0x170] sm:$0xf]
      %v1112 = vld [vmem:[%s257 + $0x174] sm:$0xf]
      %v1113 = vld [vmem:[%s257 + $0x178] sm:$0xf]
      %v1114 = vld [vmem:[%s257 + $0x17c] sm:$0xf]
      %v1115 = vld [vmem:[%s257 + $0x180] sm:$0xf]
      %v1116 = vld [vmem:[%s257 + $0x184] sm:$0xf]
      %v1117 = vld [vmem:[%s257 + $0x188] sm:$0xf]
      %v1118 = vld [vmem:[%s257 + $0x18c] sm:$0xf]
      %v1119 = vld [vmem:[%s257 + $0x190] sm:$0xf]
      %v1120 = vld [vmem:[%s257 + $0x194] sm:$0xf]
      %v1121 = vld [vmem:[%s257 + $0x198] sm:$0xf]
      %v1122 = vld [vmem:[%s257 + $0x19c] sm:$0xf]
      %v1123 = vld [vmem:[%s257 + $0x1a0] sm:$0xf]
      %v1124 = vld [vmem:[%s257 + $0x1a4] sm:$0xf]
      %v1125 = vld [vmem:[%s257 + $0x1a8] sm:$0xf]
      %v1126 = vld [vmem:[%s257 + $0x1ac] sm:$0xf]
      %v1127 = vld [vmem:[%s257 + $0x1b0] sm:$0xf]
      %v1128 = vld [vmem:[%s257 + $0x1b4] sm:$0xf]
      %v1129 = vld [vmem:[%s257 + $0x1b8] sm:$0xf]
      %v1130 = vld [vmem:[%s257 + $0x1bc] sm:$0xf]
      %v1131 = vld [vmem:[%s257 + $0x1c0] sm:$0xf]
      %v1132 = vld [vmem:[%s257 + $0x1c4] sm:$0xf]
      %v1133 = vld [vmem:[%s257 + $0x1c8] sm:$0xf]
      %v1134 = vld [vmem:[%s257 + $0x1cc] sm:$0xf]
      %v1135 = vld [vmem:[%s257 + $0x1d0] sm:$0xf]
      %v1136 = vld [vmem:[%s257 + $0x1d4] sm:$0xf]
      %v1137 = vld [vmem:[%s257 + $0x1d8] sm:$0xf]
      %v1138 = vld [vmem:[%s257 + $0x1dc] sm:$0xf]
      %v1139 = vld [vmem:[%s257 + $0x1e0] sm:$0xf]
      %v1140 = vld [vmem:[%s257 + $0x1e4] sm:$0xf]
      %v1141 = vld [vmem:[%s257 + $0x1e8] sm:$0xf]
      %v1142 = vld [vmem:[%s257 + $0x1ec] sm:$0xf]
      %v1143 = vld [vmem:[%s257 + $0x1f0] sm:$0xf]
      %v1144 = vld [vmem:[%s257 + $0x1f4] sm:$0xf]
      %v1145 = vld [vmem:[%s257 + $0x1f8] sm:$0xf]
      %v1146 = vld [vmem:[%s257 + $0x1fc] sm:$0xf]
      %v1147 = vld [vmem:[%s257 + $0x200] sm:$0xf]
      %v1148 = vld [vmem:[%s257 + $0x204] sm:$0xf]
      %v1149 = vld [vmem:[%s257 + $0x208] sm:$0xf]
      %v1150 = vld [vmem:[%s257 + $0x20c] sm:$0xf]
      %v1151 = vld [vmem:[%s257 + $0x210] sm:$0xf]
      %v1152 = vld [vmem:[%s257 + $0x214] sm:$0xf]
      %v1153 = vld [vmem:[%s257 + $0x218] sm:$0xf]
      %v1154 = vld [vmem:[%s257 + $0x21c] sm:$0xf]
      %v1155 = vld [vmem:[%s257 + $0x220] sm:$0xf]
      %v1156 = vld [vmem:[%s257 + $0x224] sm:$0xf]
      %v1157 = vld [vmem:[%s257 + $0x228] sm:$0xf]
      %v1158 = vld [vmem:[%s257 + $0x22c] sm:$0xf]
      %v1159 = vld [vmem:[%s257 + $0x230] sm:$0xf]
      %v1160 = vld [vmem:[%s257 + $0x234] sm:$0xf]
      %v1161 = vld [vmem:[%s257 + $0x238] sm:$0xf]
      %v1162 = vld [vmem:[%s257 + $0x23c] sm:$0xf]
      %v1163 = vld [vmem:[%s257 + $0x240] sm:$0xf]
      %v1164 = vld [vmem:[%s257 + $0x244] sm:$0xf]
      %v1165 = vld [vmem:[%s257 + $0x248] sm:$0xf]
      %v1166 = vld [vmem:[%s257 + $0x24c] sm:$0xf]
      %v1167 = vld [vmem:[%s257 + $0x250] sm:$0xf]
      %v1168 = vld [vmem:[%s257 + $0x254] sm:$0xf]
      %v1169 = vld [vmem:[%s257 + $0x258] sm:$0xf]
      %v1170 = vld [vmem:[%s257 + $0x25c] sm:$0xf]
      %v1171 = vld [vmem:[%s257 + $0x260] sm:$0xf]
      %v1172 = vld [vmem:[%s257 + $0x264] sm:$0xf]
      %v1173 = vld [vmem:[%s257 + $0x268] sm:$0xf]
      %v1174 = vld [vmem:[%s257 + $0x26c] sm:$0xf]
      %v1175 = vld [vmem:[%s257 + $0x270] sm:$0xf]
      %v1176 = vld [vmem:[%s257 + $0x274] sm:$0xf]
      %v1177 = vld [vmem:[%s257 + $0x278] sm:$0xf]
      %v1178 = vld [vmem:[%s257 + $0x27c] sm:$0xf]
      %v1179 = vld [vmem:[%s257 + $0x280] sm:$0xf]
      %v1180 = vld [vmem:[%s257 + $0x284] sm:$0xf]
      %v1181 = vld [vmem:[%s257 + $0x288] sm:$0xf]
      %v1182 = vld [vmem:[%s257 + $0x28c] sm:$0xf]
      %v1183 = vld [vmem:[%s257 + $0x290] sm:$0xf]
      %v1184 = vld [vmem:[%s257 + $0x294] sm:$0xf]
      %v1185 = vld [vmem:[%s257 + $0x298] sm:$0xf]
      %v1186 = vld [vmem:[%s257 + $0x29c] sm:$0xf]
      %v1187 = vld [vmem:[%s257 + $0x2a0] sm:$0xf]
      %v1188 = vld [vmem:[%s257 + $0x2a4] sm:$0xf]
      %v1189 = vld [vmem:[%s257 + $0x2a8] sm:$0xf]
      %v1190 = vld [vmem:[%s257 + $0x2ac] sm:$0xf]
      %v1191 = vld [vmem:[%s257 + $0x2b0] sm:$0xf]
      %v1192 = vld [vmem:[%s257 + $0x2b4] sm:$0xf]
      %v1193 = vld [vmem:[%s257 + $0x2b8] sm:$0xf]
      %v1194 = vld [vmem:[%s257 + $0x2bc] sm:$0xf]
      %v1195 = vld [vmem:[%s257 + $0x2c0] sm:$0xf]
      %v1196 = vld [vmem:[%s257 + $0x2c4] sm:$0xf]
      %v1197 = vld [vmem:[%s257 + $0x2c8] sm:$0xf]
      %v1198 = vld [vmem:[%s257 + $0x2cc] sm:$0xf]
      %v1199 = vld [vmem:[%s257 + $0x2d0] sm:$0xf]
      %v1200 = vld [vmem:[%s257 + $0x2d4] sm:$0xf]
      %v1201 = vld [vmem:[%s257 + $0x2d8] sm:$0xf]
      %v1202 = vld [vmem:[%s257 + $0x2dc] sm:$0xf]
      %v1203 = vld [vmem:[%s257 + $0x2e0] sm:$0xf]
      %v1204 = vld [vmem:[%s257 + $0x2e4] sm:$0xf]
      %v1205 = vld [vmem:[%s257 + $0x2e8] sm:$0xf]
      %v1206 = vld [vmem:[%s257 + $0x2ec] sm:$0xf]
      %v1207 = vld [vmem:[%s257 + $0x2f0] sm:$0xf]
      %v1208 = vld [vmem:[%s257 + $0x2f4] sm:$0xf]
      %v1209 = vld [vmem:[%s257 + $0x2f8] sm:$0xf]
      %v1210 = vld [vmem:[%s257 + $0x2fc] sm:$0xf]
      %v1211 = vld [vmem:[%s257 + $0x300] sm:$0xf]
      %v1212 = vld [vmem:[%s257 + $0x304] sm:$0xf]
      %v1213 = vld [vmem:[%s257 + $0x308] sm:$0xf]
      %v1214 = vld [vmem:[%s257 + $0x30c] sm:$0xf]
      %v1215 = vld [vmem:[%s257 + $0x310] sm:$0xf]
      %v1216 = vld [vmem:[%s257 + $0x314] sm:$0xf]
      %v1217 = vld [vmem:[%s257 + $0x318] sm:$0xf]
      %v1218 = vld [vmem:[%s257 + $0x31c] sm:$0xf]
      %v1219 = vld [vmem:[%s257 + $0x320] sm:$0xf]
      %v1220 = vld [vmem:[%s257 + $0x324] sm:$0xf]
      %v1221 = vld [vmem:[%s257 + $0x328] sm:$0xf]
      %v1222 = vld [vmem:[%s257 + $0x32c] sm:$0xf]
      %v1223 = vld [vmem:[%s257 + $0x330] sm:$0xf]
      %v1224 = vld [vmem:[%s257 + $0x334] sm:$0xf]
      %v1225 = vld [vmem:[%s257 + $0x338] sm:$0xf]
      %v1226 = vld [vmem:[%s257 + $0x33c] sm:$0xf]
      %v1227 = vld [vmem:[%s257 + $0x340] sm:$0xf]
      %v1228 = vld [vmem:[%s257 + $0x344] sm:$0xf]
      %v1229 = vld [vmem:[%s257 + $0x348] sm:$0xf]
      %v1230 = vld [vmem:[%s257 + $0x34c] sm:$0xf]
      %v1231 = vld [vmem:[%s257 + $0x350] sm:$0xf]
      %v1232 = vld [vmem:[%s257 + $0x354] sm:$0xf]
      %v1233 = vld [vmem:[%s257 + $0x358] sm:$0xf]
      %v1234 = vld [vmem:[%s257 + $0x35c] sm:$0xf]
      %v1235 = vld [vmem:[%s257 + $0x360] sm:$0xf]
      %v1236 = vld [vmem:[%s257 + $0x364] sm:$0xf]
      %v1237 = vld [vmem:[%s257 + $0x368] sm:$0xf]
      %v1238 = vld [vmem:[%s257 + $0x36c] sm:$0xf]
      %v1239 = vld [vmem:[%s257 + $0x370] sm:$0xf]
      %v1240 = vld [vmem:[%s257 + $0x374] sm:$0xf]
      %v1241 = vld [vmem:[%s257 + $0x378] sm:$0xf]
      %v1242 = vld [vmem:[%s257 + $0x37c] sm:$0xf]
      %v1243 = vld [vmem:[%s257 + $0x380] sm:$0xf]
      %v1244 = vld [vmem:[%s257 + $0x384] sm:$0xf]
      %v1245 = vld [vmem:[%s257 + $0x388] sm:$0xf]
      %v1246 = vld [vmem:[%s257 + $0x38c] sm:$0xf]
      %v1247 = vld [vmem:[%s257 + $0x390] sm:$0xf]
      %v1248 = vld [vmem:[%s257 + $0x394] sm:$0xf]
      %v1249 = vld [vmem:[%s257 + $0x398] sm:$0xf]
      %v1250 = vld [vmem:[%s257 + $0x39c] sm:$0xf]
      %v1251 = vld [vmem:[%s257 + $0x3a0] sm:$0xf]
      %v1252 = vld [vmem:[%s257 + $0x3a4] sm:$0xf]
      %v1253 = vld [vmem:[%s257 + $0x3a8] sm:$0xf]
      %v1254 = vld [vmem:[%s257 + $0x3ac] sm:$0xf]
      %v1255 = vld [vmem:[%s257 + $0x3b0] sm:$0xf]
      %v1256 = vld [vmem:[%s257 + $0x3b4] sm:$0xf]
      %v1257 = vld [vmem:[%s257 + $0x3b8] sm:$0xf]
      %v1258 = vld [vmem:[%s257 + $0x3bc] sm:$0xf]
      %v1259 = vld [vmem:[%s257 + $0x3c0] sm:$0xf]
      %v1260 = vld [vmem:[%s257 + $0x3c4] sm:$0xf]
      %v1261 = vld [vmem:[%s257 + $0x3c8] sm:$0xf]
      %v1262 = vld [vmem:[%s257 + $0x3cc] sm:$0xf]
      %v1263 = vld [vmem:[%s257 + $0x3d0] sm:$0xf]
      %v1264 = vld [vmem:[%s257 + $0x3d4] sm:$0xf]
      %v1265 = vld [vmem:[%s257 + $0x3d8] sm:$0xf]
      %v1266 = vld [vmem:[%s257 + $0x3dc] sm:$0xf]
      %v1267 = vld [vmem:[%s257 + $0x3e0] sm:$0xf]
      %v1268 = vld [vmem:[%s257 + $0x3e4] sm:$0xf]
      %v1269 = vld [vmem:[%s257 + $0x3e8] sm:$0xf]
      %v1270 = vld [vmem:[%s257 + $0x3ec] sm:$0xf]
      %v1271 = vld [vmem:[%s257 + $0x3f0] sm:$0xf]
      %v1272 = vld [vmem:[%s257 + $0x3f4] sm:$0xf]
      %v1273 = vld [vmem:[%s257 + $0x3f8] sm:$0xf]
      %v1274 = vld [vmem:[%s257 + $0x3fc] sm:$0xf]
      %v1275 = vld [vmem:[%s257 + $0x400] sm:$0xf]
      %v1276 = vld [vmem:[%s257 + $0x404] sm:$0xf]
      %v1277 = vld [vmem:[%s257 + $0x408] sm:$0xf]
      %v1278 = vld [vmem:[%s257 + $0x40c] sm:$0xf]
      %v1279 = vld [vmem:[%s257 + $0x410] sm:$0xf]
      %v1280 = vld [vmem:[%s257 + $0x414] sm:$0xf]
      %v1281 = vld [vmem:[%s257 + $0x418] sm:$0xf]
      %v1282 = vld [vmem:[%s257 + $0x41c] sm:$0xf]
      %v1283 = vld [vmem:[%s257 + $0x420] sm:$0xf]
      %v1284 = vld [vmem:[%s257 + $0x424] sm:$0xf]
      %v1285 = vld [vmem:[%s257 + $0x428] sm:$0xf]
      %v1286 = vld [vmem:[%s257 + $0x42c] sm:$0xf]
      %v1287 = vld [vmem:[%s257 + $0x430] sm:$0xf]
      %v1288 = vld [vmem:[%s257 + $0x434] sm:$0xf]
      %v1289 = vld [vmem:[%s257 + $0x438] sm:$0xf]
      %v1290 = vld [vmem:[%s257 + $0x43c] sm:$0xf]
      %v1291 = vld [vmem:[%s257 + $0x440] sm:$0xf]
      %v1292 = vld [vmem:[%s257 + $0x444] sm:$0xf]
      %v1293 = vld [vmem:[%s257 + $0x448] sm:$0xf]
      %v1294 = vld [vmem:[%s257 + $0x44c] sm:$0xf]
      %v1295 = vld [vmem:[%s257 + $0x450] sm:$0xf]
      %v1296 = vld [vmem:[%s257 + $0x454] sm:$0xf]
      %v1297 = vld [vmem:[%s257 + $0x458] sm:$0xf]
      %v1298 = vld [vmem:[%s257 + $0x45c] sm:$0xf]
      %v1299 = vld [vmem:[%s257 + $0x460] sm:$0xf]
      %v1300 = vld [vmem:[%s257 + $0x464] sm:$0xf]
      %v1301 = vld [vmem:[%s257 + $0x468] sm:$0xf]
      %v1302 = vld [vmem:[%s257 + $0x46c] sm:$0xf]
      %v1303 = vld [vmem:[%s257 + $0x470] sm:$0xf]
      %v1304 = vld [vmem:[%s257 + $0x474] sm:$0xf]
      %v1305 = vld [vmem:[%s257 + $0x478] sm:$0xf]
      %v1306 = vld [vmem:[%s257 + $0x47c] sm:$0xf]
      %v1595 = vunpack.c.l.b16 %v1019
      %v1596 = vunpack.c.l.b16 %v1020
      %v1597 = vunpack.c.l.b16 %v1021
      %v1598 = vunpack.c.l.b16 %v1022
      %v1599 = vunpack.c.l.b16 %v1023
      %v1600 = vunpack.c.l.b16 %v1024
      %v1601 = vunpack.c.l.b16 %v1025
      %v1602 = vunpack.c.l.b16 %v1026
      %v1603 = vunpack.c.l.b16 %v1027
      %v1604 = vunpack.c.l.b16 %v1028
      %v1605 = vunpack.c.l.b16 %v1029
      %v1606 = vunpack.c.l.b16 %v1030
      %v1607 = vunpack.c.l.b16 %v1031
      %v1608 = vunpack.c.l.b16 %v1032
      %v1609 = vunpack.c.l.b16 %v1033
      %v1610 = vunpack.c.l.b16 %v1034
      %v1611 = vunpack.c.l.b16 %v1035
      %v1612 = vunpack.c.l.b16 %v1036
      %v1613 = vunpack.c.l.b16 %v1037
      %v1614 = vunpack.c.l.b16 %v1038
      %v1615 = vunpack.c.l.b16 %v1039
      %v1616 = vunpack.c.l.b16 %v1040
      %v1617 = vunpack.c.l.b16 %v1041
      %v1618 = vunpack.c.l.b16 %v1042
      %v1619 = vunpack.c.l.b16 %v1043
      %v1620 = vunpack.c.l.b16 %v1044
      %v1621 = vunpack.c.l.b16 %v1045
      %v1622 = vunpack.c.l.b16 %v1046
      %v1623 = vunpack.c.l.b16 %v1047
      %v1624 = vunpack.c.l.b16 %v1048
      %v1625 = vunpack.c.l.b16 %v1049
      %v1626 = vunpack.c.l.b16 %v1050
      %v1627 = vunpack.c.l.b16 %v1051
      %v1628 = vunpack.c.l.b16 %v1052
      %v1629 = vunpack.c.l.b16 %v1053
      %v1630 = vunpack.c.l.b16 %v1054
      %v1631 = vunpack.c.l.b16 %v1055
      %v1632 = vunpack.c.l.b16 %v1056
      %v1633 = vunpack.c.l.b16 %v1057
      %v1634 = vunpack.c.l.b16 %v1058
      %v1635 = vunpack.c.l.b16 %v1059
      %v1636 = vunpack.c.l.b16 %v1060
      %v1637 = vunpack.c.l.b16 %v1061
      %v1638 = vunpack.c.l.b16 %v1062
      %v1639 = vunpack.c.l.b16 %v1063
      %v1640 = vunpack.c.l.b16 %v1064
      %v1641 = vunpack.c.l.b16 %v1065
      %v1642 = vunpack.c.l.b16 %v1066
      %v1643 = vunpack.c.l.b16 %v1067
      %v1644 = vunpack.c.l.b16 %v1068
      %v1645 = vunpack.c.l.b16 %v1069
      %v1646 = vunpack.c.l.b16 %v1070
      %v1647 = vunpack.c.l.b16 %v1071
      %v1648 = vunpack.c.l.b16 %v1072
      %v1649 = vunpack.c.l.b16 %v1073
      %v1650 = vunpack.c.l.b16 %v1074
      %v1651 = vunpack.c.l.b16 %v1075
      %v1652 = vunpack.c.l.b16 %v1076
      %v1653 = vunpack.c.l.b16 %v1077
      %v1654 = vunpack.c.l.b16 %v1078
      %v1655 = vunpack.c.l.b16 %v1079
      %v1656 = vunpack.c.l.b16 %v1080
      %v1657 = vunpack.c.l.b16 %v1081
      %v1658 = vunpack.c.l.b16 %v1082
      %v1659 = vunpack.c.l.b16 %v1083
      %v1660 = vunpack.c.l.b16 %v1084
      %v1661 = vunpack.c.l.b16 %v1085
      %v1662 = vunpack.c.l.b16 %v1086
      %v1663 = vunpack.c.l.b16 %v1087
      %v1664 = vunpack.c.l.b16 %v1088
      %v1665 = vunpack.c.l.b16 %v1089
      %v1666 = vunpack.c.l.b16 %v1090
      %v1667 = vunpack.c.l.b16 %v1091
      %v1668 = vunpack.c.l.b16 %v1092
      %v1669 = vunpack.c.l.b16 %v1093
      %v1670 = vunpack.c.l.b16 %v1094
      %v1671 = vunpack.c.l.b16 %v1095
      %v1672 = vunpack.c.l.b16 %v1096
      %v1673 = vunpack.c.l.b16 %v1097
      %v1674 = vunpack.c.l.b16 %v1098
      %v1675 = vunpack.c.l.b16 %v1099
      %v1676 = vunpack.c.l.b16 %v1100
      %v1677 = vunpack.c.l.b16 %v1101
      %v1678 = vunpack.c.l.b16 %v1102
      %v1679 = vunpack.c.l.b16 %v1103
      %v1680 = vunpack.c.l.b16 %v1104
      %v1681 = vunpack.c.l.b16 %v1105
      %v1682 = vunpack.c.l.b16 %v1106
      %v1683 = vunpack.c.l.b16 %v1107
      %v1684 = vunpack.c.l.b16 %v1108
      %v1685 = vunpack.c.l.b16 %v1109
      %v1686 = vunpack.c.l.b16 %v1110
      %v1687 = vunpack.c.l.b16 %v1111
      %v1688 = vunpack.c.l.b16 %v1112
      %v1689 = vunpack.c.l.b16 %v1113
      %v1690 = vunpack.c.l.b16 %v1114
      %v1691 = vunpack.c.l.b16 %v1115
      %v1692 = vunpack.c.l.b16 %v1116
      %v1693 = vunpack.c.l.b16 %v1117
      %v1694 = vunpack.c.l.b16 %v1118
      %v1695 = vunpack.c.l.b16 %v1119
      %v1696 = vunpack.c.l.b16 %v1120
      %v1697 = vunpack.c.l.b16 %v1121
      %v1698 = vunpack.c.l.b16 %v1122
      %v1699 = vunpack.c.l.b16 %v1123
      %v1700 = vunpack.c.l.b16 %v1124
      %v1701 = vunpack.c.l.b16 %v1125
      %v1702 = vunpack.c.l.b16 %v1126
      %v1703 = vunpack.c.l.b16 %v1127
      %v1704 = vunpack.c.l.b16 %v1128
      %v1705 = vunpack.c.l.b16 %v1129
      %v1706 = vunpack.c.l.b16 %v1130
      %v1707 = vunpack.c.l.b16 %v1131
      %v1708 = vunpack.c.l.b16 %v1132
      %v1709 = vunpack.c.l.b16 %v1133
      %v1710 = vunpack.c.l.b16 %v1134
      %v1711 = vunpack.c.l.b16 %v1135
      %v1712 = vunpack.c.l.b16 %v1136
      %v1713 = vunpack.c.l.b16 %v1137
      %v1714 = vunpack.c.l.b16 %v1138
      %v1715 = vunpack.c.l.b16 %v1139
      %v1716 = vunpack.c.l.b16 %v1140
      %v1717 = vunpack.c.l.b16 %v1141
      %v1718 = vunpack.c.l.b16 %v1142
      %v1719 = vunpack.c.l.b16 %v1143
      %v1720 = vunpack.c.l.b16 %v1144
      %v1721 = vunpack.c.l.b16 %v1145
      %v1722 = vunpack.c.l.b16 %v1146
      %v1723 = vunpack.c.l.b16 %v1147
      %v1724 = vunpack.c.l.b16 %v1148
      %v1725 = vunpack.c.l.b16 %v1149
      %v1726 = vunpack.c.l.b16 %v1150
      %v1727 = vunpack.c.l.b16 %v1151
      %v1728 = vunpack.c.l.b16 %v1152
      %v1729 = vunpack.c.l.b16 %v1153
      %v1730 = vunpack.c.l.b16 %v1154
      %v1731 = vunpack.c.l.b16 %v1155
      %v1732 = vunpack.c.l.b16 %v1156
      %v1733 = vunpack.c.l.b16 %v1157
      %v1734 = vunpack.c.l.b16 %v1158
      %v1735 = vunpack.c.l.b16 %v1159
      %v1736 = vunpack.c.l.b16 %v1160
      %v1737 = vunpack.c.l.b16 %v1161
      %v1738 = vunpack.c.l.b16 %v1162
      %v1739 = vunpack.c.l.b16 %v1163
      %v1740 = vunpack.c.l.b16 %v1164
      %v1741 = vunpack.c.l.b16 %v1165
      %v1742 = vunpack.c.l.b16 %v1166
      %v1743 = vunpack.c.l.b16 %v1167
      %v1744 = vunpack.c.l.b16 %v1168
      %v1745 = vunpack.c.l.b16 %v1169
      %v1746 = vunpack.c.l.b16 %v1170
      %v1747 = vunpack.c.l.b16 %v1171
      %v1748 = vunpack.c.l.b16 %v1172
      %v1749 = vunpack.c.l.b16 %v1173
      %v1750 = vunpack.c.l.b16 %v1174
      %v1751 = vunpack.c.l.b16 %v1175
      %v1752 = vunpack.c.l.b16 %v1176
      %v1753 = vunpack.c.l.b16 %v1177
      %v1754 = vunpack.c.l.b16 %v1178
      %v1755 = vunpack.c.l.b16 %v1179
      %v1756 = vunpack.c.l.b16 %v1180
      %v1757 = vunpack.c.l.b16 %v1181
      %v1758 = vunpack.c.l.b16 %v1182
      %v1759 = vunpack.c.l.b16 %v1183
      %v1760 = vunpack.c.l.b16 %v1184
      %v1761 = vunpack.c.l.b16 %v1185
      %v1762 = vunpack.c.l.b16 %v1186
      %v1763 = vunpack.c.l.b16 %v1187
      %v1764 = vunpack.c.l.b16 %v1188
      %v1765 = vunpack.c.l.b16 %v1189
      %v1766 = vunpack.c.l.b16 %v1190
      %v1767 = vunpack.c.l.b16 %v1191
      %v1768 = vunpack.c.l.b16 %v1192
      %v1769 = vunpack.c.l.b16 %v1193
      %v1770 = vunpack.c.l.b16 %v1194
      %v1771 = vunpack.c.l.b16 %v1195
      %v1772 = vunpack.c.l.b16 %v1196
      %v1773 = vunpack.c.l.b16 %v1197
      %v1774 = vunpack.c.l.b16 %v1198
      %v1775 = vunpack.c.l.b16 %v1199
      %v1776 = vunpack.c.l.b16 %v1200
      %v1777 = vunpack.c.l.b16 %v1201
      %v1778 = vunpack.c.l.b16 %v1202
      %v1779 = vunpack.c.l.b16 %v1203
      %v1780 = vunpack.c.l.b16 %v1204
      %v1781 = vunpack.c.l.b16 %v1205
      %v1782 = vunpack.c.l.b16 %v1206
      %v1783 = vunpack.c.l.b16 %v1207
      %v1784 = vunpack.c.l.b16 %v1208
      %v1785 = vunpack.c.l.b16 %v1209
      %v1786 = vunpack.c.l.b16 %v1210
      %v1787 = vunpack.c.l.b16 %v1211
      %v1788 = vunpack.c.l.b16 %v1212
      %v1789 = vunpack.c.l.b16 %v1213
      %v1790 = vunpack.c.l.b16 %v1214
      %v1791 = vunpack.c.l.b16 %v1215
      %v1792 = vunpack.c.l.b16 %v1216
      %v1793 = vunpack.c.l.b16 %v1217
      %v1794 = vunpack.c.l.b16 %v1218
      %v1795 = vunpack.c.l.b16 %v1219
      %v1796 = vunpack.c.l.b16 %v1220
      %v1797 = vunpack.c.l.b16 %v1221
      %v1798 = vunpack.c.l.b16 %v1222
      %v1799 = vunpack.c.l.b16 %v1223
      %v1800 = vunpack.c.l.b16 %v1224
      %v1801 = vunpack.c.l.b16 %v1225
      %v1802 = vunpack.c.l.b16 %v1226
      %v1803 = vunpack.c.l.b16 %v1227
      %v1804 = vunpack.c.l.b16 %v1228
      %v1805 = vunpack.c.l.b16 %v1229
      %v1806 = vunpack.c.l.b16 %v1230
      %v1807 = vunpack.c.l.b16 %v1231
      %v1808 = vunpack.c.l.b16 %v1232
      %v1809 = vunpack.c.l.b16 %v1233
      %v1810 = vunpack.c.l.b16 %v1234
      %v1811 = vunpack.c.l.b16 %v1235
      %v1812 = vunpack.c.l.b16 %v1236
      %v1813 = vunpack.c.l.b16 %v1237
      %v1814 = vunpack.c.l.b16 %v1238
      %v1815 = vunpack.c.l.b16 %v1239
      %v1816 = vunpack.c.l.b16 %v1240
      %v1817 = vunpack.c.l.b16 %v1241
      %v1818 = vunpack.c.l.b16 %v1242
      %v1819 = vunpack.c.l.b16 %v1243
      %v1820 = vunpack.c.l.b16 %v1244
      %v1821 = vunpack.c.l.b16 %v1245
      %v1822 = vunpack.c.l.b16 %v1246
      %v1823 = vunpack.c.l.b16 %v1247
      %v1824 = vunpack.c.l.b16 %v1248
      %v1825 = vunpack.c.l.b16 %v1249
      %v1826 = vunpack.c.l.b16 %v1250
      %v1827 = vunpack.c.l.b16 %v1251
      %v1828 = vunpack.c.l.b16 %v1252
      %v1829 = vunpack.c.l.b16 %v1253
      %v1830 = vunpack.c.l.b16 %v1254
      %v1831 = vunpack.c.l.b16 %v1255
      %v1832 = vunpack.c.l.b16 %v1256
      %v1833 = vunpack.c.l.b16 %v1257
      %v1834 = vunpack.c.l.b16 %v1258
      %v1835 = vunpack.c.l.b16 %v1259
      %v1836 = vunpack.c.l.b16 %v1260
      %v1837 = vunpack.c.l.b16 %v1261
      %v1838 = vunpack.c.l.b16 %v1262
      %v1839 = vunpack.c.l.b16 %v1263
      %v1840 = vunpack.c.l.b16 %v1264
      %v1841 = vunpack.c.l.b16 %v1265
      %v1842 = vunpack.c.l.b16 %v1266
      %v1843 = vunpack.c.l.b16 %v1267
      %v1844 = vunpack.c.l.b16 %v1268
      %v1845 = vunpack.c.l.b16 %v1269
      %v1846 = vunpack.c.l.b16 %v1270
      %v1847 = vunpack.c.l.b16 %v1271
      %v1848 = vunpack.c.l.b16 %v1272
      %v1849 = vunpack.c.l.b16 %v1273
      %v1850 = vunpack.c.l.b16 %v1274
      %v1851 = vunpack.c.l.b16 %v1275
      %v1852 = vunpack.c.l.b16 %v1276
      %v1853 = vunpack.c.l.b16 %v1277
      %v1854 = vunpack.c.l.b16 %v1278
      %v1855 = vunpack.c.l.b16 %v1279
      %v1856 = vunpack.c.l.b16 %v1280
      %v1857 = vunpack.c.l.b16 %v1281
      %v1858 = vunpack.c.l.b16 %v1282
      %v1859 = vunpack.c.l.b16 %v1283
      %v1860 = vunpack.c.l.b16 %v1284
      %v1861 = vunpack.c.l.b16 %v1285
      %v1862 = vunpack.c.l.b16 %v1286
      %v1863 = vunpack.c.l.b16 %v1287
      %v1864 = vunpack.c.l.b16 %v1288
      %v1865 = vunpack.c.l.b16 %v1289
      %v1866 = vunpack.c.l.b16 %v1290
      %v1867 = vunpack.c.l.b16 %v1291
      %v1868 = vunpack.c.l.b16 %v1292
      %v1869 = vunpack.c.l.b16 %v1293
      %v1870 = vunpack.c.l.b16 %v1294
      %v1871 = vunpack.c.l.b16 %v1295
      %v1872 = vunpack.c.l.b16 %v1296
      %v1873 = vunpack.c.l.b16 %v1297
      %v1874 = vunpack.c.l.b16 %v1298
      %v1875 = vunpack.c.l.b16 %v1299
      %v1876 = vunpack.c.l.b16 %v1300
      %v1877 = vunpack.c.l.b16 %v1301
      %v1878 = vunpack.c.l.b16 %v1302
      %v1879 = vunpack.c.l.b16 %v1303
      %v1880 = vunpack.c.l.b16 %v1304
      %v1881 = vunpack.c.l.b16 %v1305
      %v1882 = vunpack.c.l.b16 %v1306
      %v1883 = vpack.c.b16 %v1596, %v1595
      %v1884 = vpack.c.b16 %v1598, %v1597
      %v1885 = vpack.c.b16 %v1600, %v1599
      %v1886 = vpack.c.b16 %v1602, %v1601
      %v1887 = vpack.c.b16 %v1604, %v1603
      %v1888 = vpack.c.b16 %v1606, %v1605
      %v1889 = vpack.c.b16 %v1608, %v1607
      %v1890 = vpack.c.b16 %v1610, %v1609
      %v1891 = vpack.c.b16 %v1612, %v1611
      %v1892 = vpack.c.b16 %v1614, %v1613
      %v1893 = vpack.c.b16 %v1616, %v1615
      %v1894 = vpack.c.b16 %v1618, %v1617
      %v1895 = vpack.c.b16 %v1620, %v1619
      %v1896 = vpack.c.b16 %v1622, %v1621
      %v1897 = vpack.c.b16 %v1624, %v1623
      %v1898 = vpack.c.b16 %v1626, %v1625
      %v1899 = vpack.c.b16 %v1628, %v1627
      %v1900 = vpack.c.b16 %v1630, %v1629
      %v1901 = vpack.c.b16 %v1632, %v1631
      %v1902 = vpack.c.b16 %v1634, %v1633
      %v1903 = vpack.c.b16 %v1636, %v1635
      %v1904 = vpack.c.b16 %v1638, %v1637
      %v1905 = vpack.c.b16 %v1640, %v1639
      %v1906 = vpack.c.b16 %v1642, %v1641
      %v1907 = vpack.c.b16 %v1644, %v1643
      %v1908 = vpack.c.b16 %v1646, %v1645
      %v1909 = vpack.c.b16 %v1648, %v1647
      %v1910 = vpack.c.b16 %v1650, %v1649
      %v1911 = vpack.c.b16 %v1652, %v1651
      %v1912 = vpack.c.b16 %v1654, %v1653
      %v1913 = vpack.c.b16 %v1656, %v1655
      %v1914 = vpack.c.b16 %v1658, %v1657
      %v1915 = vpack.c.b16 %v1660, %v1659
      %v1916 = vpack.c.b16 %v1662, %v1661
      %v1917 = vpack.c.b16 %v1664, %v1663
      %v1918 = vpack.c.b16 %v1666, %v1665
      %v1919 = vpack.c.b16 %v1668, %v1667
      %v1920 = vpack.c.b16 %v1670, %v1669
      %v1921 = vpack.c.b16 %v1672, %v1671
      %v1922 = vpack.c.b16 %v1674, %v1673
      %v1923 = vpack.c.b16 %v1676, %v1675
      %v1924 = vpack.c.b16 %v1678, %v1677
      %v1925 = vpack.c.b16 %v1680, %v1679
      %v1926 = vpack.c.b16 %v1682, %v1681
      %v1927 = vpack.c.b16 %v1684, %v1683
      %v1928 = vpack.c.b16 %v1686, %v1685
      %v1929 = vpack.c.b16 %v1688, %v1687
      %v1930 = vpack.c.b16 %v1690, %v1689
      %v1931 = vpack.c.b16 %v1692, %v1691
      %v1932 = vpack.c.b16 %v1694, %v1693
      %v1933 = vpack.c.b16 %v1696, %v1695
      %v1934 = vpack.c.b16 %v1698, %v1697
      %v1935 = vpack.c.b16 %v1700, %v1699
      %v1936 = vpack.c.b16 %v1702, %v1701
      %v1937 = vpack.c.b16 %v1704, %v1703
      %v1938 = vpack.c.b16 %v1706, %v1705
      %v1939 = vpack.c.b16 %v1708, %v1707
      %v1940 = vpack.c.b16 %v1710, %v1709
      %v1941 = vpack.c.b16 %v1712, %v1711
      %v1942 = vpack.c.b16 %v1714, %v1713
      %v1943 = vpack.c.b16 %v1716, %v1715
      %v1944 = vpack.c.b16 %v1718, %v1717
      %v1945 = vpack.c.b16 %v1720, %v1719
      %v1946 = vpack.c.b16 %v1722, %v1721
      %v1947 = vpack.c.b16 %v1724, %v1723
      %v1948 = vpack.c.b16 %v1726, %v1725
      %v1949 = vpack.c.b16 %v1728, %v1727
      %v1950 = vpack.c.b16 %v1730, %v1729
      %v1951 = vpack.c.b16 %v1732, %v1731
      %v1952 = vpack.c.b16 %v1734, %v1733
      %v1953 = vpack.c.b16 %v1736, %v1735
      %v1954 = vpack.c.b16 %v1738, %v1737
      %v1955 = vpack.c.b16 %v1740, %v1739
      %v1956 = vpack.c.b16 %v1742, %v1741
      %v1957 = vpack.c.b16 %v1744, %v1743
      %v1958 = vpack.c.b16 %v1746, %v1745
      %v1959 = vpack.c.b16 %v1748, %v1747
      %v1960 = vpack.c.b16 %v1750, %v1749
      %v1961 = vpack.c.b16 %v1752, %v1751
      %v1962 = vpack.c.b16 %v1754, %v1753
      %v1963 = vpack.c.b16 %v1756, %v1755
      %v1964 = vpack.c.b16 %v1758, %v1757
      %v1965 = vpack.c.b16 %v1760, %v1759
      %v1966 = vpack.c.b16 %v1762, %v1761
      %v1967 = vpack.c.b16 %v1764, %v1763
      %v1968 = vpack.c.b16 %v1766, %v1765
      %v1969 = vpack.c.b16 %v1768, %v1767
      %v1970 = vpack.c.b16 %v1770, %v1769
      %v1971 = vpack.c.b16 %v1772, %v1771
      %v1972 = vpack.c.b16 %v1774, %v1773
      %v1973 = vpack.c.b16 %v1776, %v1775
      %v1974 = vpack.c.b16 %v1778, %v1777
      %v1975 = vpack.c.b16 %v1780, %v1779
      %v1976 = vpack.c.b16 %v1782, %v1781
      %v1977 = vpack.c.b16 %v1784, %v1783
      %v1978 = vpack.c.b16 %v1786, %v1785
      %v1979 = vpack.c.b16 %v1788, %v1787
      %v1980 = vpack.c.b16 %v1790, %v1789
      %v1981 = vpack.c.b16 %v1792, %v1791
      %v1982 = vpack.c.b16 %v1794, %v1793
      %v1983 = vpack.c.b16 %v1796, %v1795
      %v1984 = vpack.c.b16 %v1798, %v1797
      %v1985 = vpack.c.b16 %v1800, %v1799
      %v1986 = vpack.c.b16 %v1802, %v1801
      %v1987 = vpack.c.b16 %v1804, %v1803
      %v1988 = vpack.c.b16 %v1806, %v1805
      %v1989 = vpack.c.b16 %v1808, %v1807
      %v1990 = vpack.c.b16 %v1810, %v1809
      %v1991 = vpack.c.b16 %v1812, %v1811
      %v1992 = vpack.c.b16 %v1814, %v1813
      %v1993 = vpack.c.b16 %v1816, %v1815
      %v1994 = vpack.c.b16 %v1818, %v1817
      %v1995 = vpack.c.b16 %v1820, %v1819
      %v1996 = vpack.c.b16 %v1822, %v1821
      %v1997 = vpack.c.b16 %v1824, %v1823
      %v1998 = vpack.c.b16 %v1826, %v1825
      %v1999 = vpack.c.b16 %v1828, %v1827
      %v2000 = vpack.c.b16 %v1830, %v1829
      %v2001 = vpack.c.b16 %v1832, %v1831
      %v2002 = vpack.c.b16 %v1834, %v1833
      %v2003 = vpack.c.b16 %v1836, %v1835
      %v2004 = vpack.c.b16 %v1838, %v1837
      %v2005 = vpack.c.b16 %v1840, %v1839
      %v2006 = vpack.c.b16 %v1842, %v1841
      %v2007 = vpack.c.b16 %v1844, %v1843
      %v2008 = vpack.c.b16 %v1846, %v1845
      %v2009 = vpack.c.b16 %v1848, %v1847
      %v2010 = vpack.c.b16 %v1850, %v1849
      %v2011 = vpack.c.b16 %v1852, %v1851
      %v2012 = vpack.c.b16 %v1854, %v1853
      %v2013 = vpack.c.b16 %v1856, %v1855
      %v2014 = vpack.c.b16 %v1858, %v1857
      %v2015 = vpack.c.b16 %v1860, %v1859
      %v2016 = vpack.c.b16 %v1862, %v1861
      %v2017 = vpack.c.b16 %v1864, %v1863
      %v2018 = vpack.c.b16 %v1866, %v1865
      %v2019 = vpack.c.b16 %v1868, %v1867
      %v2020 = vpack.c.b16 %v1870, %v1869
      %v2021 = vpack.c.b16 %v1872, %v1871
      %v2022 = vpack.c.b16 %v1874, %v1873
      %v2023 = vpack.c.b16 %v1876, %v1875
      %v2024 = vpack.c.b16 %v1878, %v1877
      %v2025 = vpack.c.b16 %v1880, %v1879
      %v2026 = vpack.c.b16 %v1882, %v1881
      %2171 = vmatprep.subr.bf16.mxu0 0
      %2172 = vmatpush1.bf16.msra.mxu0 %v1883
      %2173 = vmatprep.subr.bf16.mxu0 0
      %2174 = vmatpush1.bf16.msra.mxu0 %v1884
      %2175 = vmatprep.subr.bf16.mxu0 0
      %2176 = vmatpush1.bf16.msra.mxu0 %v1885
      %2177 = vmatprep.subr.bf16.mxu0 0
      %2178 = vmatpush1.bf16.msra.mxu0 %v1886
      %2179 = vmatprep.subr.bf16.mxu0 0
      %2180 = vmatpush1.bf16.msra.mxu0 %v1887
      %2181 = vmatprep.subr.bf16.mxu0 0
      %2182 = vmatpush1.bf16.msra.mxu0 %v1888
      %2183 = vmatprep.subr.bf16.mxu0 0
      %2184 = vmatpush1.bf16.msra.mxu0 %v1889
      %2185 = vmatprep.subr.bf16.mxu0 0
      %2186 = vmatpush1.bf16.msra.mxu0 %v1890
      %2187 = vmatprep.subr.bf16.mxu0 0
      %2188 = vmatpush1.bf16.msra.mxu0 %v1891
      %2189 = vmatprep.subr.bf16.mxu0 0
      %2190 = vmatpush1.bf16.msra.mxu0 %v1892
      %2191 = vmatprep.subr.bf16.mxu0 0
      %2192 = vmatpush1.bf16.msra.mxu0 %v1893
      %2193 = vmatprep.subr.bf16.mxu0 0
      %2194 = vmatpush1.bf16.msra.mxu0 %v1894
      %2195 = vmatprep.subr.bf16.mxu0 0
      %2196 = vmatpush1.bf16.msra.mxu0 %v1895
      %2197 = vmatprep.subr.bf16.mxu0 0
      %2198 = vmatpush1.bf16.msra.mxu0 %v1896
      %2199 = vmatprep.subr.bf16.mxu0 0
      %2200 = vmatpush1.bf16.msra.mxu0 %v1897
      %2201 = vmatprep.subr.bf16.mxu0 0
      %2202 = vmatpush1.bf16.msra.mxu0 %v1898
      %2203 = vmatprep.mubr.bf16.mxu0 %v326
      %2204 = vmatmul.mubr.bf16.gmra.mrb[0].mxu0 %v325
      %v2205 = vpop.f32.mrb[0].mxu0
      %v2206 = vadd.f32 0.0, %v2205
      %v2207 = vpop.f32.mrb[0].mxu0
      %v2208 = vpop.f32.mrb[0].mxu0
      %v2209 = vadd.f32 0.0, %v2208
      %v2210 = vpop.f32.mrb[0].mxu0
      %2211 = vmatprep.mubr.bf16.mxu0 %v328
      %2212 = vmatmul.mubr.bf16.gmra.mrb[0].mxu0 %v327
      %v2213 = vpop.f32.mrb[0].mxu0
      %v2214 = vadd.f32 0.0, %v2213
      %v2215 = vpop.f32.mrb[0].mxu0
      %v2216 = vpop.f32.mrb[0].mxu0
      %v2217 = vadd.f32 0.0, %v2216
      %v2218 = vpop.f32.mrb[0].mxu0
      %2219 = vmatprep.mubr.bf16.mxu0 %v330
      %2220 = vmatmul.mubr.bf16.gmra.mrb[0].mxu0 %v329
      %v2221 = vpop.f32.mrb[0].mxu0
      %v2222 = vadd.f32 0.0, %v2221
      %v2223 = vpop.f32.mrb[0].mxu0
      %v2224 = vpop.f32.mrb[0].mxu0
      %v2225 = vadd.f32 0.0, %v2224
      %v2226 = vpop.f32.mrb[0].mxu0
      %2227 = vmatprep.mubr.bf16.mxu0 %v332
      %2228 = vmatmul.mubr.bf16.gmra.mrb[0].mxu0 %v331
      %v2229 = vpop.f32.mrb[0].mxu0
      %v2230 = vadd.f32 0.0, %v2229
      %v2231 = vpop.f32.mrb[0].mxu0
      %v2232 = vpop.f32.mrb[0].mxu0
      %v2233 = vadd.f32 0.0, %v2232
      %v2234 = vpop.f32.mrb[0].mxu0
      %2235 = vmatprep.mubr.bf16.mxu0 %v366
      %2236 = vmatmul.mubr.bf16.gmra.mrb[0].mxu0 %v365
      %v2237 = vpop.f32.mrb[0].mxu0
      %v2238 = vadd.f32 0.0, %v2237
      %v2239 = vpop.f32.mrb[0].mxu0
      %v2240 = vpop.f32.mrb[0].mxu0
      %v2241 = vadd.f32 0.0, %v2240
      %v2242 = vpop.f32.mrb[0].mxu0
      %2243 = vmatprep.mubr.bf16.mxu0 %v368
      %2244 = vmatmul.mubr.bf16.gmra.mrb[0].mxu0 %v367
      %v2245 = vpop.f32.mrb[0].mxu0
      %v2246 = vadd.f32 0.0, %v2245
      %v2247 = vpop.f32.mrb[0].mxu0
      %v2248 = vpop.f32.mrb[0].mxu0
      %v2249 = vadd.f32 0.0, %v2248
      %v2250 = vpop.f32.mrb[0].mxu0
      %2251 = vmatprep.mubr.bf16.mxu0 %v370
      %2252 = vmatmul.mubr.bf16.gmra.mrb[0].mxu0 %v369
      %v2253 = vpop.f32.mrb[0].mxu0
      %v2254 = vadd.f32 0.0, %v2253
      %v2255 = vpop.f32.mrb[0].mxu0
      %v2256 = vpop.f32.mrb[0].mxu0
      %v2257 = vadd.f32 0.0, %v2256
      %v2258 = vpop.f32.mrb[0].mxu0
      %2259 = vmatprep.mubr.bf16.mxu0 %v372
      %2260 = vmatmul.mubr.bf16.gmra.mrb[0].mxu0 %v371
      %v2261 = vpop.f32.mrb[0].mxu0
      %v2262 = vadd.f32 0.0, %v2261
      %v2263 = vpop.f32.mrb[0].mxu0
      %v2264 = vpop.f32.mrb[0].mxu0
      %v2265 = vadd.f32 0.0, %v2264
      %v2266 = vpop.f32.mrb[0].mxu0
      %2267 = vdwg.mxu0
      %2268 = vmatprep.subr.bf16.mxu0 0
      %2269 = vmatpush1.bf16.msra.mxu0 %v1899
      %2270 = vmatprep.subr.bf16.mxu0 0
      %2271 = vmatpush1.bf16.msra.mxu0 %v1900
      %2272 = vmatprep.subr.bf16.mxu0 0
      %2273 = vmatpush1.bf16.msra.mxu0 %v1901
      %2274 = vmatprep.subr.bf16.mxu0 0
      %2275 = vmatpush1.bf16.msra.mxu0 %v1902
      %2276 = vmatprep.subr.bf16.mxu0 0
      %2277 = vmatpush1.bf16.msra.mxu0 %v1903
      %2278 = vmatprep.subr.bf16.mxu0 0
      %2279 = vmatpush1.bf16.msra.mxu0 %v1904
      %2280 = vmatprep.subr.bf16.mxu0 0
      %2281 = vmatpush1.bf16.msra.mxu0 %v1905
      %2282 = vmatprep.subr.bf16.mxu0 0
      %2283 = vmatpush1.bf16.msra.mxu0 %v1906
      %2284 = vmatprep.subr.bf16.mxu0 0
      %2285 = vmatpush1.bf16.msra.mxu0 %v1907
      %2286 = vmatprep.subr.bf16.mxu0 0
      %2287 = vmatpush1.bf16.msra.mxu0 %v1908
      %2288 = vmatprep.subr.bf16.mxu0 0
      %2289 = vmatpush1.bf16.msra.mxu0 %v1909
      %2290 = vmatprep.subr.bf16.mxu0 0
      %2291 = vmatpush1.bf16.msra.mxu0 %v1910
      %2292 = vmatprep.subr.bf16.mxu0 0
      %2293 = vmatpush1.bf16.msra.mxu0 %v1911
      %2294 = vmatprep.subr.bf16.mxu0 0
      %2295 = vmatpush1.bf16.msra.mxu0 %v1912
      %2296 = vmatprep.subr.bf16.mxu0 0
      %2297 = vmatpush1.bf16.msra.mxu0 %v1913
      %2298 = vmatprep.subr.bf16.mxu0 0
      %2299 = vmatpush1.bf16.msra.mxu0 %v1914
      %2300 = vmatprep.mubr.bf16.mxu0 %v366
      %2301 = vmatmul.mubr.bf16.gmra.mrb[0].mxu0 %v365
      %v2302 = vpop.f32.mrb[0].mxu0
      %v2303 = vadd.f32 %v2206, %v2302
      %v2304 = vpop.f32.mrb[0].mxu0
      %v2305 = vpop.f32.mrb[0].mxu0
      %v2306 = vadd.f32 %v2209, %v2305
      %v2307 = vpop.f32.mrb[0].mxu0
      %2308 = vmatprep.mubr.bf16.mxu0 %v368
      %2309 = vmatmul.mubr.bf16.gmra.mrb[0].mxu0 %v367
      %v2310 = vpop.f32.mrb[0].mxu0
      %v2311 = vadd.f32 %v2214, %v2310
      %v2312 = vpop.f32.mrb[0].mxu0
      %v2313 = vpop.f32.mrb[0].mxu0
      %v2314 = vadd.f32 %v2217, %v2313
      %v2315 = vpop.f32.mrb[0].mxu0
      %2316 = vmatprep.mubr.bf16.mxu0 %v370
      %2317 = vmatmul.mubr.bf16.gmra.mrb[0].mxu0 %v369
      %v2318 = vpop.f32.mrb[0].mxu0
      %v2319 = vadd.f32 %v2222, %v2318
      %v2320 = vpop.f32.mrb[0].mxu0
      %v2321 = vpop.f32.mrb[0].mxu0
      %v2322 = vadd.f32 %v2225, %v2321
      %v2323 = vpop.f32.mrb[0].mxu0
      %2324 = vmatprep.mubr.bf16.mxu0 %v372
      %2325 = vmatmul.mubr.bf16.gmra.mrb[0].mxu0 %v371
      %v2326 = vpop.f32.mrb[0].mxu0
      %v2327 = vadd.f32 %v2230, %v2326
      %v2328 = vpop.f32.mrb[0].mxu0
      %v2329 = vpop.f32.mrb[0].mxu0
      %v2330 = vadd.f32 %v2233, %v2329
      %v2331 = vpop.f32.mrb[0].mxu0
      %2332 = vmatprep.mubr.bf16.mxu0 %v410
      %2333 = vmatmul.mubr.bf16.gmra.mrb[0].mxu0 %v398
      %v2334 = vpop.f32.mrb[0].mxu0
      %v2335 = vadd.f32 %v2238, %v2334
      %v2336 = vpop.f32.mrb[0].mxu0
      %v2337 = vpop.f32.mrb[0].mxu0
      %v2338 = vadd.f32 %v2241, %v2337
      %v2339 = vpop.f32.mrb[0].mxu0
      %2340 = vmatprep.mubr.bf16.mxu0 %v426
      %2341 = vmatmul.mubr.bf16.gmra.mrb[0].mxu0 %v418
      %v2342 = vpop.f32.mrb[0].mxu0
      %v2343 = vadd.f32 %v2246, %v2342
      %v2344 = vpop.f32.mrb[0].mxu0
      %v2345 = vpop.f32.mrb[0].mxu0
      %v2346 = vadd.f32 %v2249, %v2345
      %v2347 = vpop.f32.mrb[0].mxu0
      %2348 = vmatprep.mubr.bf16.mxu0 %v442
      %2349 = vmatmul.mubr.bf16.gmra.mrb[0].mxu0 %v434
      %v2350 = vpop.f32.mrb[0].mxu0
      %v2351 = vadd.f32 %v2254, %v2350
      %v2352 = vpop.f32.mrb[0].mxu0
      %v2353 = vpop.f32.mrb[0].mxu0
      %v2354 = vadd.f32 %v2257, %v2353
      %v2355 = vpop.f32.mrb[0].mxu0
      %2356 = vmatprep.mubr.bf16.mxu0 %v458
      %2357 = vmatmul.mubr.bf16.gmra.mrb[0].mxu0 %v450
      %v2358 = vpop.f32.mrb[0].mxu0
      %v2359 = vadd.f32 %v2262, %v2358
      %v2360 = vpop.f32.mrb[0].mxu0
      %v2361 = vpop.f32.mrb[0].mxu0
      %v2362 = vadd.f32 %v2265, %v2361
      %v2363 = vpop.f32.mrb[0].mxu0
      %2364 = vdwg.mxu0
      %2365 = vmatprep.subr.bf16.mxu0 0
      %2366 = vmatpush1.bf16.msra.mxu0 %v1915
      %2367 = vmatprep.subr.bf16.mxu0 0
      %2368 = vmatpush1.bf16.msra.mxu0 %v1916
      %2369 = vmatprep.subr.bf16.mxu0 0
      %2370 = vmatpush1.bf16.msra.mxu0 %v1917
      %2371 = vmatprep.subr.bf16.mxu0 0
      %2372 = vmatpush1.bf16.msra.mxu0 %v1918
      %2373 = vmatprep.subr.bf16.mxu0 0
      %2374 = vmatpush1.bf16.msra.mxu0 %v1919
      %2375 = vmatprep.subr.bf16.mxu0 0
      %2376 = vmatpush1.bf16.msra.mxu0 %v1920
      %2377 = vmatprep.subr.bf16.mxu0 0
      %2378 = vmatpush1.bf16.msra.mxu0 %v1921
      %2379 = vmatprep.subr.bf16.mxu0 0
      %2380 = vmatpush1.bf16.msra.mxu0 %v1922
      %2381 = vmatprep.subr.bf16.mxu0 0
      %2382 = vmatpush1.bf16.msra.mxu0 %v1923
      %2383 = vmatprep.subr.bf16.mxu0 0
      %2384 = vmatpush1.bf16.msra.mxu0 %v1924
      %2385 = vmatprep.subr.bf16.mxu0 0
      %2386 = vmatpush1.bf16.msra.mxu0 %v1925
      %2387 = vmatprep.subr.bf16.mxu0 0
      %2388 = vmatpush1.bf16.msra.mxu0 %v1926
      %2389 = vmatprep.subr.bf16.mxu0 0
      %2390 = vmatpush1.bf16.msra.mxu0 %v1927
      %2391 = vmatprep.subr.bf16.mxu0 0
      %2392 = vmatpush1.bf16.msra.mxu0 %v1928
      %2393 = vmatprep.subr.bf16.mxu0 0
      %2394 = vmatpush1.bf16.msra.mxu0 %v1929
      %2395 = vmatprep.subr.bf16.mxu0 0
      %2396 = vmatpush1.bf16.msra.mxu0 %v1930
      %2397 = vmatprep.mubr.bf16.mxu0 %v410
      %2398 = vmatmul.mubr.bf16.gmra.mrb[0].mxu0 %v398
      %v2399 = vpop.f32.mrb[0].mxu0
      %v2400 = vadd.f32 %v2303, %v2399
      %v2401 = vpop.f32.mrb[0].mxu0
      %v2402 = vpop.f32.mrb[0].mxu0
      %v2403 = vadd.f32 %v2306, %v2402
      %v2404 = vpop.f32.mrb[0].mxu0
      %2405 = vmatprep.mubr.bf16.mxu0 %v426
      %2406 = vmatmul.mubr.bf16.gmra.mrb[0].mxu0 %v418
      %v2407 = vpop.f32.mrb[0].mxu0
      %v2408 = vadd.f32 %v2311, %v2407
      %v2409 = vpop.f32.mrb[0].mxu0
      %v2410 = vpop.f32.mrb[0].mxu0
      %v2411 = vadd.f32 %v2314, %v2410
      %v2412 = vpop.f32.mrb[0].mxu0
      %2413 = vmatprep.mubr.bf16.mxu0 %v442
      %2414 = vmatmul.mubr.bf16.gmra.mrb[0].mxu0 %v434
      %v2415 = vpop.f32.mrb[0].mxu0
      %v2416 = vadd.f32 %v2319, %v2415
      %v2417 = vpop.f32.mrb[0].mxu0
      %v2418 = vpop.f32.mrb[0].mxu0
      %v2419 = vadd.f32 %v2322, %v2418
      %v2420 = vpop.f32.mrb[0].mxu0
      %2421 = vmatprep.mubr.bf16.mxu0 %v458
      %2422 = vmatmul.mubr.bf16.gmra.mrb[0].mxu0 %v450
      %v2423 = vpop.f32.mrb[0].mxu0
      %v2424 = vadd.f32 %v2327, %v2423
      %v2425 = vpop.f32.mrb[0].mxu0
      %v2426 = vpop.f32.mrb[0].mxu0
      %v2427 = vadd.f32 %v2330, %v2426
      %v2428 = vpop.f32.mrb[0].mxu0
      %2429 = vmatprep.mubr.bf16.mxu0 %v760
      %2430 = vmatmul.mubr.bf16.gmra.mrb[0].mxu0 %v748
      %v2431 = vpop.f32.mrb[0].mxu0
      %v2432 = vadd.f32 %v2335, %v2431
      %v2433 = vpop.f32.mrb[0].mxu0
      %v2434 = vpop.f32.mrb[0].mxu0
      %v2435 = vadd.f32 %v2338, %v2434
      %v2436 = vpop.f32.mrb[0].mxu0
      %2437 = vmatprep.mubr.bf16.mxu0 %v776
      %2438 = vmatmul.mubr.bf16.gmra.mrb[0].mxu0 %v768
      %v2439 = vpop.f32.mrb[0].mxu0
      %v2440 = vadd.f32 %v2343, %v2439
      %v2441 = vpop.f32.mrb[0].mxu0
      %v2442 = vpop.f32.mrb[0].mxu0
      %v2443 = vadd.f32 %v2346, %v2442
      %v2444 = vpop.f32.mrb[0].mxu0
      %2445 = vmatprep.mubr.bf16.mxu0 %v792
      %2446 = vmatmul.mubr.bf16.gmra.mrb[0].mxu0 %v784
      %v2447 = vpop.f32.mrb[0].mxu0
      %v2448 = vadd.f32 %v2351, %v2447
      %v2449 = vpop.f32.mrb[0].mxu0
      %v2450 = vpop.f32.mrb[0].mxu0
      %v2451 = vadd.f32 %v2354, %v2450
      %v2452 = vpop.f32.mrb[0].mxu0
      %2453 = vmatprep.mubr.bf16.mxu0 %v808
      %2454 = vmatmul.mubr.bf16.gmra.mrb[0].mxu0 %v800
      %v2455 = vpop.f32.mrb[0].mxu0
      %v2456 = vadd.f32 %v2359, %v2455
      %v2457 = vpop.f32.mrb[0].mxu0
      %v2458 = vpop.f32.mrb[0].mxu0
      %v2459 = vadd.f32 %v2362, %v2458
      %v2460 = vpop.f32.mrb[0].mxu0
      %2461 = vdwg.mxu0
      %2462 = vmatprep.subr.bf16.mxu0 0
      %2463 = vmatpush1.bf16.msra.mxu0 %v1931
      %2464 = vmatprep.subr.bf16.mxu0 0
      %2465 = vmatpush1.bf16.msra.mxu0 %v1932
      %2466 = vmatprep.subr.bf16.mxu0 0
      %2467 = vmatpush1.bf16.msra.mxu0 %v1933
      %2468 = vmatprep.subr.bf16.mxu0 0
      %2469 = vmatpush1.bf16.msra.mxu0 %v1934
      %2470 = vmatprep.subr.bf16.mxu0 0
      %2471 = vmatpush1.bf16.msra.mxu0 %v1935
      %2472 = vmatprep.subr.bf16.mxu0 0
      %2473 = vmatpush1.bf16.msra.mxu0 %v1936
      %2474 = vmatprep.subr.bf16.mxu0 0
      %2475 = vmatpush1.bf16.msra.mxu0 %v1937
      %2476 = vmatprep.subr.bf16.mxu0 0
      %2477 = vmatpush1.bf16.msra.mxu0 %v1938
      %2478 = vmatprep.subr.bf16.mxu0 0
      %2479 = vmatpush1.bf16.msra.mxu0 %v1939
      %2480 = vmatprep.subr.bf16.mxu0 0
      %2481 = vmatpush1.bf16.msra.mxu0 %v1940
      %2482 = vmatprep.subr.bf16.mxu0 0
      %2483 = vmatpush1.bf16.msra.mxu0 %v1941
      %2484 = vmatprep.subr.bf16.mxu0 0
      %2485 = vmatpush1.bf16.msra.mxu0 %v1942
      %2486 = vmatprep.subr.bf16.mxu0 0
      %2487 = vmatpush1.bf16.msra.mxu0 %v1943
      %2488 = vmatprep.subr.bf16.mxu0 0
      %2489 = vmatpush1.bf16.msra.mxu0 %v1944
      %2490 = vmatprep.subr.bf16.mxu0 0
      %2491 = vmatpush1.bf16.msra.mxu0 %v1945
      %2492 = vmatprep.subr.bf16.mxu0 0
      %2493 = vmatpush1.bf16.msra.mxu0 %v1946
      %2494 = vmatprep.mubr.bf16.mxu0 %v471
      %2495 = vmatmul.mubr.bf16.gmra.mrb[0].mxu0 %v470
      %v2496 = vpop.f32.mrb[0].mxu0
      %v2497 = vadd.f32 %v2400, %v2496
      %v2498 = vpop.f32.mrb[0].mxu0
      %v2499 = vpop.f32.mrb[0].mxu0
      %v2500 = vadd.f32 %v2403, %v2499
      %v2501 = vpop.f32.mrb[0].mxu0
      %2502 = vmatprep.mubr.bf16.mxu0 %v473
      %2503 = vmatmul.mubr.bf16.gmra.mrb[0].mxu0 %v472
      %v2504 = vpop.f32.mrb[0].mxu0
      %v2505 = vadd.f32 %v2408, %v2504
      %v2506 = vpop.f32.mrb[0].mxu0
      %v2507 = vpop.f32.mrb[0].mxu0
      %v2508 = vadd.f32 %v2411, %v2507
      %v2509 = vpop.f32.mrb[0].mxu0
      %2510 = vmatprep.mubr.bf16.mxu0 %v475
      %2511 = vmatmul.mubr.bf16.gmra.mrb[0].mxu0 %v474
      %v2512 = vpop.f32.mrb[0].mxu0
      %v2513 = vadd.f32 %v2416, %v2512
      %v2514 = vpop.f32.mrb[0].mxu0
      %v2515 = vpop.f32.mrb[0].mxu0
      %v2516 = vadd.f32 %v2419, %v2515
      %v2517 = vpop.f32.mrb[0].mxu0
      %2518 = vmatprep.mubr.bf16.mxu0 %v477
      %2519 = vmatmul.mubr.bf16.gmra.mrb[0].mxu0 %v476
      %v2520 = vpop.f32.mrb[0].mxu0
      %v2521 = vadd.f32 %v2424, %v2520
      %v2522 = vpop.f32.mrb[0].mxu0
      %v2523 = vpop.f32.mrb[0].mxu0
      %v2524 = vadd.f32 %v2427, %v2523
      %v2525 = vpop.f32.mrb[0].mxu0
      %2526 = vmatprep.mubr.bf16.mxu0 %v490
      %2527 = vmatmul.mubr.bf16.gmra.mrb[0].mxu0 %v489
      %v2528 = vpop.f32.mrb[0].mxu0
      %v2529 = vadd.f32 %v2432, %v2528
      %v2530 = vpop.f32.mrb[0].mxu0
      %v2531 = vpop.f32.mrb[0].mxu0
      %v2532 = vadd.f32 %v2435, %v2531
      %v2533 = vpop.f32.mrb[0].mxu0
      %2534 = vmatprep.mubr.bf16.mxu0 %v492
      %2535 = vmatmul.mubr.bf16.gmra.mrb[0].mxu0 %v491
      %v2536 = vpop.f32.mrb[0].mxu0
      %v2537 = vadd.f32 %v2440, %v2536
      %v2538 = vpop.f32.mrb[0].mxu0
      %v2539 = vpop.f32.mrb[0].mxu0
      %v2540 = vadd.f32 %v2443, %v2539
      %v2541 = vpop.f32.mrb[0].mxu0
      %2542 = vmatprep.mubr.bf16.mxu0 %v494
      %2543 = vmatmul.mubr.bf16.gmra.mrb[0].mxu0 %v493
      %v2544 = vpop.f32.mrb[0].mxu0
      %v2545 = vadd.f32 %v2448, %v2544
      %v2546 = vpop.f32.mrb[0].mxu0
      %v2547 = vpop.f32.mrb[0].mxu0
      %v2548 = vadd.f32 %v2451, %v2547
      %v2549 = vpop.f32.mrb[0].mxu0
      %2550 = vmatprep.mubr.bf16.mxu0 %v496
      %2551 = vmatmul.mubr.bf16.gmra.mrb[0].mxu0 %v495
      %v2552 = vpop.f32.mrb[0].mxu0
      %v2553 = vadd.f32 %v2456, %v2552
      %v2554 = vpop.f32.mrb[0].mxu0
      %v2555 = vpop.f32.mrb[0].mxu0
      %v2556 = vadd.f32 %v2459, %v2555
      %v2557 = vpop.f32.mrb[0].mxu0
      %2558 = vdwg.mxu0
      %2559 = vmatprep.subr.bf16.mxu0 0
      %2560 = vmatpush1.bf16.msra.mxu0 %v1947
      %2561 = vmatprep.subr.bf16.mxu0 0
      %2562 = vmatpush1.bf16.msra.mxu0 %v1948
      %2563 = vmatprep.subr.bf16.mxu0 0
      %2564 = vmatpush1.bf16.msra.mxu0 %v1949
      %2565 = vmatprep.subr.bf16.mxu0 0
      %2566 = vmatpush1.bf16.msra.mxu0 %v1950
      %2567 = vmatprep.subr.bf16.mxu0 0
      %2568 = vmatpush1.bf16.msra.mxu0 %v1951
      %2569 = vmatprep.subr.bf16.mxu0 0
      %2570 = vmatpush1.bf16.msra.mxu0 %v1952
      %2571 = vmatprep.subr.bf16.mxu0 0
      %2572 = vmatpush1.bf16.msra.mxu0 %v1953
      %2573 = vmatprep.subr.bf16.mxu0 0
      %2574 = vmatpush1.bf16.msra.mxu0 %v1954
      %2575 = vmatprep.subr.bf16.mxu0 0
      %2576 = vmatpush1.bf16.msra.mxu0 %v1955
      %2577 = vmatprep.subr.bf16.mxu0 0
      %2578 = vmatpush1.bf16.msra.mxu0 %v1956
      %2579 = vmatprep.subr.bf16.mxu0 0
      %2580 = vmatpush1.bf16.msra.mxu0 %v1957
      %2581 = vmatprep.subr.bf16.mxu0 0
      %2582 = vmatpush1.bf16.msra.mxu0 %v1958
      %2583 = vmatprep.subr.bf16.mxu0 0
      %2584 = vmatpush1.bf16.msra.mxu0 %v1959
      %2585 = vmatprep.subr.bf16.mxu0 0
      %2586 = vmatpush1.bf16.msra.mxu0 %v1960
      %2587 = vmatprep.subr.bf16.mxu0 0
      %2588 = vmatpush1.bf16.msra.mxu0 %v1961
      %2589 = vmatprep.subr.bf16.mxu0 0
      %2590 = vmatpush1.bf16.msra.mxu0 %v1962
      %2591 = vmatprep.mubr.bf16.mxu0 %v490
      %2592 = vmatmul.mubr.bf16.gmra.mrb[0].mxu0 %v489
      %v2593 = vpop.f32.mrb[0].mxu0
      %v2594 = vadd.f32 %v2497, %v2593
      %v2595 = vpop.f32.mrb[0].mxu0
      %v2596 = vpop.f32.mrb[0].mxu0
      %v2597 = vadd.f32 %v2500, %v2596
      %v2598 = vpop.f32.mrb[0].mxu0
      %2599 = vmatprep.mubr.bf16.mxu0 %v492
      %2600 = vmatmul.mubr.bf16.gmra.mrb[0].mxu0 %v491
      %v2601 = vpop.f32.mrb[0].mxu0
      %v2602 = vadd.f32 %v2505, %v2601
      %v2603 = vpop.f32.mrb[0].mxu0
      %v2604 = vpop.f32.mrb[0].mxu0
      %v2605 = vadd.f32 %v2508, %v2604
      %v2606 = vpop.f32.mrb[0].mxu0
      %2607 = vmatprep.mubr.bf16.mxu0 %v494
      %2608 = vmatmul.mubr.bf16.gmra.mrb[0].mxu0 %v493
      %v2609 = vpop.f32.mrb[0].mxu0
      %v2610 = vadd.f32 %v2513, %v2609
      %v2611 = vpop.f32.mrb[0].mxu0
      %v2612 = vpop.f32.mrb[0].mxu0
      %v2613 = vadd.f32 %v2516, %v2612
      %v2614 = vpop.f32.mrb[0].mxu0
      %2615 = vmatprep.mubr.bf16.mxu0 %v496
      %2616 = vmatmul.mubr.bf16.gmra.mrb[0].mxu0 %v495
      %v2617 = vpop.f32.mrb[0].mxu0
      %v2618 = vadd.f32 %v2521, %v2617
      %v2619 = vpop.f32.mrb[0].mxu0
      %v2620 = vpop.f32.mrb[0].mxu0
      %v2621 = vadd.f32 %v2524, %v2620
      %v2622 = vpop.f32.mrb[0].mxu0
      %2623 = vmatprep.mubr.bf16.mxu0 %v533
      %2624 = vmatmul.mubr.bf16.gmra.mrb[0].mxu0 %v521
      %v2625 = vpop.f32.mrb[0].mxu0
      %v2626 = vadd.f32 %v2529, %v2625
      %v2627 = vpop.f32.mrb[0].mxu0
      %v2628 = vpop.f32.mrb[0].mxu0
      %v2629 = vadd.f32 %v2532, %v2628
      %v2630 = vpop.f32.mrb[0].mxu0
      %2631 = vmatprep.mubr.bf16.mxu0 %v549
      %2632 = vmatmul.mubr.bf16.gmra.mrb[0].mxu0 %v541
      %v2633 = vpop.f32.mrb[0].mxu0
      %v2634 = vadd.f32 %v2537, %v2633
      %v2635 = vpop.f32.mrb[0].mxu0
      %v2636 = vpop.f32.mrb[0].mxu0
      %v2637 = vadd.f32 %v2540, %v2636
      %v2638 = vpop.f32.mrb[0].mxu0
      %2639 = vmatprep.mubr.bf16.mxu0 %v565
      %2640 = vmatmul.mubr.bf16.gmra.mrb[0].mxu0 %v557
      %v2641 = vpop.f32.mrb[0].mxu0
      %v2642 = vadd.f32 %v2545, %v2641
      %v2643 = vpop.f32.mrb[0].mxu0
      %v2644 = vpop.f32.mrb[0].mxu0
      %v2645 = vadd.f32 %v2548, %v2644
      %v2646 = vpop.f32.mrb[0].mxu0
      %2647 = vmatprep.mubr.bf16.mxu0 %v581
      %2648 = vmatmul.mubr.bf16.gmra.mrb[0].mxu0 %v573
      %v2649 = vpop.f32.mrb[0].mxu0
      %v2650 = vadd.f32 %v2553, %v2649
      %v2651 = vpop.f32.mrb[0].mxu0
      %v2652 = vpop.f32.mrb[0].mxu0
      %v2653 = vadd.f32 %v2556, %v2652
      %v2654 = vpop.f32.mrb[0].mxu0
      %2655 = vdwg.mxu0
      %2656 = vmatprep.subr.bf16.mxu0 0
      %2657 = vmatpush1.bf16.msra.mxu0 %v1963
      %2658 = vmatprep.subr.bf16.mxu0 0
      %2659 = vmatpush1.bf16.msra.mxu0 %v1964
      %2660 = vmatprep.subr.bf16.mxu0 0
      %2661 = vmatpush1.bf16.msra.mxu0 %v1965
      %2662 = vmatprep.subr.bf16.mxu0 0
      %2663 = vmatpush1.bf16.msra.mxu0 %v1966
      %2664 = vmatprep.subr.bf16.mxu0 0
      %2665 = vmatpush1.bf16.msra.mxu0 %v1967
      %2666 = vmatprep.subr.bf16.mxu0 0
      %2667 = vmatpush1.bf16.msra.mxu0 %v1968
      %2668 = vmatprep.subr.bf16.mxu0 0
      %2669 = vmatpush1.bf16.msra.mxu0 %v1969
      %2670 = vmatprep.subr.bf16.mxu0 0
      %2671 = vmatpush1.bf16.msra.mxu0 %v1970
      %2672 = vmatprep.subr.bf16.mxu0 0
      %2673 = vmatpush1.bf16.msra.mxu0 %v1971
      %2674 = vmatprep.subr.bf16.mxu0 0
      %2675 = vmatpush1.bf16.msra.mxu0 %v1972
      %2676 = vmatprep.subr.bf16.mxu0 0
      %2677 = vmatpush1.bf16.msra.mxu0 %v1973
      %2678 = vmatprep.subr.bf16.mxu0 0
      %2679 = vmatpush1.bf16.msra.mxu0 %v1974
      %2680 = vmatprep.subr.bf16.mxu0 0
      %2681 = vmatpush1.bf16.msra.mxu0 %v1975
      %2682 = vmatprep.subr.bf16.mxu0 0
      %2683 = vmatpush1.bf16.msra.mxu0 %v1976
      %2684 = vmatprep.subr.bf16.mxu0 0
      %2685 = vmatpush1.bf16.msra.mxu0 %v1977
      %2686 = vmatprep.subr.bf16.mxu0 0
      %2687 = vmatpush1.bf16.msra.mxu0 %v1978
      %2688 = vmatprep.mubr.bf16.mxu0 %v533
      %2689 = vmatmul.mubr.bf16.gmra.mrb[0].mxu0 %v521
      %v2690 = vpop.f32.mrb[0].mxu0
      %v2691 = vadd.f32 %v2594, %v2690
      %v2692 = vpop.f32.mrb[0].mxu0
      %v2693 = vpop.f32.mrb[0].mxu0
      %v2694 = vadd.f32 %v2597, %v2693
      %v2695 = vpop.f32.mrb[0].mxu0
      %2696 = vmatprep.mubr.bf16.mxu0 %v549
      %2697 = vmatmul.mubr.bf16.gmra.mrb[0].mxu0 %v541
      %v2698 = vpop.f32.mrb[0].mxu0
      %v2699 = vadd.f32 %v2602, %v2698
      %v2700 = vpop.f32.mrb[0].mxu0
      %v2701 = vpop.f32.mrb[0].mxu0
      %v2702 = vadd.f32 %v2605, %v2701
      %v2703 = vpop.f32.mrb[0].mxu0
      %2704 = vmatprep.mubr.bf16.mxu0 %v565
      %2705 = vmatmul.mubr.bf16.gmra.mrb[0].mxu0 %v557
      %v2706 = vpop.f32.mrb[0].mxu0
      %v2707 = vadd.f32 %v2610, %v2706
      %v2708 = vpop.f32.mrb[0].mxu0
      %v2709 = vpop.f32.mrb[0].mxu0
      %v2710 = vadd.f32 %v2613, %v2709
      %v2711 = vpop.f32.mrb[0].mxu0
      %2712 = vmatprep.mubr.bf16.mxu0 %v581
      %2713 = vmatmul.mubr.bf16.gmra.mrb[0].mxu0 %v573
      %v2714 = vpop.f32.mrb[0].mxu0
      %v2715 = vadd.f32 %v2618, %v2714
      %v2716 = vpop.f32.mrb[0].mxu0
      %v2717 = vpop.f32.mrb[0].mxu0
      %v2718 = vadd.f32 %v2621, %v2717
      %v2719 = vpop.f32.mrb[0].mxu0
      %2720 = vmatprep.mubr.bf16.mxu0 %v845
      %2721 = vmatmul.mubr.bf16.gmra.mrb[0].mxu0 %v833
      %v2722 = vpop.f32.mrb[0].mxu0
      %v2723 = vadd.f32 %v2626, %v2722
      %v2724 = vpop.f32.mrb[0].mxu0
      %v2725 = vpop.f32.mrb[0].mxu0
      %v2726 = vadd.f32 %v2629, %v2725
      %v2727 = vpop.f32.mrb[0].mxu0
      %2728 = vmatprep.mubr.bf16.mxu0 %v861
      %2729 = vmatmul.mubr.bf16.gmra.mrb[0].mxu0 %v853
      %v2730 = vpop.f32.mrb[0].mxu0
      %v2731 = vadd.f32 %v2634, %v2730
      %v2732 = vpop.f32.mrb[0].mxu0
      %v2733 = vpop.f32.mrb[0].mxu0
      %v2734 = vadd.f32 %v2637, %v2733
      %v2735 = vpop.f32.mrb[0].mxu0
      %2736 = vmatprep.mubr.bf16.mxu0 %v877
      %2737 = vmatmul.mubr.bf16.gmra.mrb[0].mxu0 %v869
      %v2738 = vpop.f32.mrb[0].mxu0
      %v2739 = vadd.f32 %v2642, %v2738
      %v2740 = vpop.f32.mrb[0].mxu0
      %v2741 = vpop.f32.mrb[0].mxu0
      %v2742 = vadd.f32 %v2645, %v2741
      %v2743 = vpop.f32.mrb[0].mxu0
      %2744 = vmatprep.mubr.bf16.mxu0 %v893
      %2745 = vmatmul.mubr.bf16.gmra.mrb[0].mxu0 %v885
      %v2746 = vpop.f32.mrb[0].mxu0
      %v2747 = vadd.f32 %v2650, %v2746
      %v2748 = vpop.f32.mrb[0].mxu0
      %v2749 = vpop.f32.mrb[0].mxu0
      %v2750 = vadd.f32 %v2653, %v2749
      %v2751 = vpop.f32.mrb[0].mxu0
      %2752 = vdwg.mxu0
      %2753 = vmatprep.subr.bf16.mxu0 0
      %2754 = vmatpush1.bf16.msra.mxu0 %v1979
      %2755 = vmatprep.subr.bf16.mxu0 0
      %2756 = vmatpush1.bf16.msra.mxu0 %v1980
      %2757 = vmatprep.subr.bf16.mxu0 0
      %2758 = vmatpush1.bf16.msra.mxu0 %v1981
      %2759 = vmatprep.subr.bf16.mxu0 0
      %2760 = vmatpush1.bf16.msra.mxu0 %v1982
      %2761 = vmatprep.subr.bf16.mxu0 0
      %2762 = vmatpush1.bf16.msra.mxu0 %v1983
      %2763 = vmatprep.subr.bf16.mxu0 0
      %2764 = vmatpush1.bf16.msra.mxu0 %v1984
      %2765 = vmatprep.subr.bf16.mxu0 0
      %2766 = vmatpush1.bf16.msra.mxu0 %v1985
      %2767 = vmatprep.subr.bf16.mxu0 0
      %2768 = vmatpush1.bf16.msra.mxu0 %v1986
      %2769 = vmatprep.subr.bf16.mxu0 0
      %2770 = vmatpush1.bf16.msra.mxu0 %v1987
      %2771 = vmatprep.subr.bf16.mxu0 0
      %2772 = vmatpush1.bf16.msra.mxu0 %v1988
      %2773 = vmatprep.subr.bf16.mxu0 0
      %2774 = vmatpush1.bf16.msra.mxu0 %v1989
      %2775 = vmatprep.subr.bf16.mxu0 0
      %2776 = vmatpush1.bf16.msra.mxu0 %v1990
      %2777 = vmatprep.subr.bf16.mxu0 0
      %2778 = vmatpush1.bf16.msra.mxu0 %v1991
      %2779 = vmatprep.subr.bf16.mxu0 0
      %2780 = vmatpush1.bf16.msra.mxu0 %v1992
      %2781 = vmatprep.subr.bf16.mxu0 0
      %2782 = vmatpush1.bf16.msra.mxu0 %v1993
      %2783 = vmatprep.subr.bf16.mxu0 0
      %2784 = vmatpush1.bf16.msra.mxu0 %v1994
      %2785 = vmatprep.mubr.bf16.mxu0 %v328
      %2786 = vmatmul.mubr.bf16.gmra.mrb[0].mxu0 %v327
      %v2787 = vpop.f32.mrb[0].mxu0
      %v2788 = vadd.f32 %v2691, %v2787
      %v2789 = vpop.f32.mrb[0].mxu0
      %v2790 = vpop.f32.mrb[0].mxu0
      %v2791 = vadd.f32 %v2694, %v2790
      %v2792 = vpop.f32.mrb[0].mxu0
      %2793 = vmatprep.mubr.bf16.mxu0 %v330
      %2794 = vmatmul.mubr.bf16.gmra.mrb[0].mxu0 %v329
      %v2795 = vpop.f32.mrb[0].mxu0
      %v2796 = vadd.f32 %v2699, %v2795
      %v2797 = vpop.f32.mrb[0].mxu0
      %v2798 = vpop.f32.mrb[0].mxu0
      %v2799 = vadd.f32 %v2702, %v2798
      %v2800 = vpop.f32.mrb[0].mxu0
      %2801 = vmatprep.mubr.bf16.mxu0 %v332
      %2802 = vmatmul.mubr.bf16.gmra.mrb[0].mxu0 %v331
      %v2803 = vpop.f32.mrb[0].mxu0
      %v2804 = vadd.f32 %v2707, %v2803
      %v2805 = vpop.f32.mrb[0].mxu0
      %v2806 = vpop.f32.mrb[0].mxu0
      %v2807 = vadd.f32 %v2710, %v2806
      %v2808 = vpop.f32.mrb[0].mxu0
      %2809 = vmatprep.mubr.bf16.mxu0 %v594
      %2810 = vmatmul.mubr.bf16.gmra.mrb[0].mxu0 %v593
      %v2811 = vpop.f32.mrb[0].mxu0
      %v2812 = vadd.f32 %v2715, %v2811
      %v2813 = vpop.f32.mrb[0].mxu0
      %v2814 = vpop.f32.mrb[0].mxu0
      %v2815 = vadd.f32 %v2718, %v2814
      %v2816 = vpop.f32.mrb[0].mxu0
      %2817 = vmatprep.mubr.bf16.mxu0 %v368
      %2818 = vmatmul.mubr.bf16.gmra.mrb[0].mxu0 %v367
      %v2819 = vpop.f32.mrb[0].mxu0
      %v2820 = vadd.f32 %v2723, %v2819
      %v2821 = vpop.f32.mrb[0].mxu0
      %v2822 = vpop.f32.mrb[0].mxu0
      %v2823 = vadd.f32 %v2726, %v2822
      %v2824 = vpop.f32.mrb[0].mxu0
      %2825 = vmatprep.mubr.bf16.mxu0 %v370
      %2826 = vmatmul.mubr.bf16.gmra.mrb[0].mxu0 %v369
      %v2827 = vpop.f32.mrb[0].mxu0
      %v2828 = vadd.f32 %v2731, %v2827
      %v2829 = vpop.f32.mrb[0].mxu0
      %v2830 = vpop.f32.mrb[0].mxu0
      %v2831 = vadd.f32 %v2734, %v2830
      %v2832 = vpop.f32.mrb[0].mxu0
      %2833 = vmatprep.mubr.bf16.mxu0 %v372
      %2834 = vmatmul.mubr.bf16.gmra.mrb[0].mxu0 %v371
      %v2835 = vpop.f32.mrb[0].mxu0
      %v2836 = vadd.f32 %v2739, %v2835
      %v2837 = vpop.f32.mrb[0].mxu0
      %v2838 = vpop.f32.mrb[0].mxu0
      %v2839 = vadd.f32 %v2742, %v2838
      %v2840 = vpop.f32.mrb[0].mxu0
      %2841 = vmatprep.mubr.bf16.mxu0 %v601
      %2842 = vmatmul.mubr.bf16.gmra.mrb[0].mxu0 %v600
      %v2843 = vpop.f32.mrb[0].mxu0
      %v2844 = vadd.f32 %v2747, %v2843
      %v2845 = vpop.f32.mrb[0].mxu0
      %v2846 = vpop.f32.mrb[0].mxu0
      %v2847 = vadd.f32 %v2750, %v2846
      %v2848 = vpop.f32.mrb[0].mxu0
      %2849 = vdwg.mxu0
      %2850 = vmatprep.subr.bf16.mxu0 0
      %2851 = vmatpush1.bf16.msra.mxu0 %v1995
      %2852 = vmatprep.subr.bf16.mxu0 0
      %2853 = vmatpush1.bf16.msra.mxu0 %v1996
      %2854 = vmatprep.subr.bf16.mxu0 0
      %2855 = vmatpush1.bf16.msra.mxu0 %v1997
      %2856 = vmatprep.subr.bf16.mxu0 0
      %2857 = vmatpush1.bf16.msra.mxu0 %v1998
      %2858 = vmatprep.subr.bf16.mxu0 0
      %2859 = vmatpush1.bf16.msra.mxu0 %v1999
      %2860 = vmatprep.subr.bf16.mxu0 0
      %2861 = vmatpush1.bf16.msra.mxu0 %v2000
      %2862 = vmatprep.subr.bf16.mxu0 0
      %2863 = vmatpush1.bf16.msra.mxu0 %v2001
      %2864 = vmatprep.subr.bf16.mxu0 0
      %2865 = vmatpush1.bf16.msra.mxu0 %v2002
      %2866 = vmatprep.subr.bf16.mxu0 0
      %2867 = vmatpush1.bf16.msra.mxu0 %v2003
      %2868 = vmatprep.subr.bf16.mxu0 0
      %2869 = vmatpush1.bf16.msra.mxu0 %v2004
      %2870 = vmatprep.subr.bf16.mxu0 0
      %2871 = vmatpush1.bf16.msra.mxu0 %v2005
      %2872 = vmatprep.subr.bf16.mxu0 0
      %2873 = vmatpush1.bf16.msra.mxu0 %v2006
      %2874 = vmatprep.subr.bf16.mxu0 0
      %2875 = vmatpush1.bf16.msra.mxu0 %v2007
      %2876 = vmatprep.subr.bf16.mxu0 0
      %2877 = vmatpush1.bf16.msra.mxu0 %v2008
      %2878 = vmatprep.subr.bf16.mxu0 0
      %2879 = vmatpush1.bf16.msra.mxu0 %v2009
      %2880 = vmatprep.subr.bf16.mxu0 0
      %2881 = vmatpush1.bf16.msra.mxu0 %v2010
      %2882 = vmatprep.mubr.bf16.mxu0 %v368
      %2883 = vmatmul.mubr.bf16.gmra.mrb[0].mxu0 %v367
      %v2884 = vpop.f32.mrb[0].mxu0
      %v2885 = vadd.f32 %v2788, %v2884
      %v2886 = vpop.f32.mrb[0].mxu0
      %v2887 = vpop.f32.mrb[0].mxu0
      %v2888 = vadd.f32 %v2791, %v2887
      %v2889 = vpop.f32.mrb[0].mxu0
      %2890 = vmatprep.mubr.bf16.mxu0 %v370
      %2891 = vmatmul.mubr.bf16.gmra.mrb[0].mxu0 %v369
      %v2892 = vpop.f32.mrb[0].mxu0
      %v2893 = vadd.f32 %v2796, %v2892
      %v2894 = vpop.f32.mrb[0].mxu0
      %v2895 = vpop.f32.mrb[0].mxu0
      %v2896 = vadd.f32 %v2799, %v2895
      %v2897 = vpop.f32.mrb[0].mxu0
      %2898 = vmatprep.mubr.bf16.mxu0 %v372
      %2899 = vmatmul.mubr.bf16.gmra.mrb[0].mxu0 %v371
      %v2900 = vpop.f32.mrb[0].mxu0
      %v2901 = vadd.f32 %v2804, %v2900
      %v2902 = vpop.f32.mrb[0].mxu0
      %v2903 = vpop.f32.mrb[0].mxu0
      %v2904 = vadd.f32 %v2807, %v2903
      %v2905 = vpop.f32.mrb[0].mxu0
      %2906 = vmatprep.mubr.bf16.mxu0 %v601
      %2907 = vmatmul.mubr.bf16.gmra.mrb[0].mxu0 %v600
      %v2908 = vpop.f32.mrb[0].mxu0
      %v2909 = vadd.f32 %v2812, %v2908
      %v2910 = vpop.f32.mrb[0].mxu0
      %v2911 = vpop.f32.mrb[0].mxu0
      %v2912 = vadd.f32 %v2815, %v2911
      %v2913 = vpop.f32.mrb[0].mxu0
      %2914 = vmatprep.mubr.bf16.mxu0 %v664
      %2915 = vmatmul.mubr.bf16.gmra.mrb[0].mxu0 %v652
      %v2916 = vpop.f32.mrb[0].mxu0
      %v2917 = vadd.f32 %v2820, %v2916
      %v2918 = vpop.f32.mrb[0].mxu0
      %v2919 = vpop.f32.mrb[0].mxu0
      %v2920 = vadd.f32 %v2823, %v2919
      %v2921 = vpop.f32.mrb[0].mxu0
      %2922 = vmatprep.mubr.bf16.mxu0 %v680
      %2923 = vmatmul.mubr.bf16.gmra.mrb[0].mxu0 %v672
      %v2924 = vpop.f32.mrb[0].mxu0
      %v2925 = vadd.f32 %v2828, %v2924
      %v2926 = vpop.f32.mrb[0].mxu0
      %v2927 = vpop.f32.mrb[0].mxu0
      %v2928 = vadd.f32 %v2831, %v2927
      %v2929 = vpop.f32.mrb[0].mxu0
      %2930 = vmatprep.mubr.bf16.mxu0 %v696
      %2931 = vmatmul.mubr.bf16.gmra.mrb[0].mxu0 %v688
      %v2932 = vpop.f32.mrb[0].mxu0
      %v2933 = vadd.f32 %v2836, %v2932
      %v2934 = vpop.f32.mrb[0].mxu0
      %v2935 = vpop.f32.mrb[0].mxu0
      %v2936 = vadd.f32 %v2839, %v2935
      %v2937 = vpop.f32.mrb[0].mxu0
      %2938 = vmatprep.mubr.bf16.mxu0 %v712
      %2939 = vmatmul.mubr.bf16.gmra.mrb[0].mxu0 %v704
      %v2940 = vpop.f32.mrb[0].mxu0
      %v2941 = vadd.f32 %v2844, %v2940
      %v2942 = vpop.f32.mrb[0].mxu0
      %v2943 = vpop.f32.mrb[0].mxu0
      %v2944 = vadd.f32 %v2847, %v2943
      %v2945 = vpop.f32.mrb[0].mxu0
      %2946 = vdwg.mxu0
      %2947 = vmatprep.subr.bf16.mxu0 0
      %2948 = vmatpush1.bf16.msra.mxu0 %v2011
      %2949 = vmatprep.subr.bf16.mxu0 0
      %2950 = vmatpush1.bf16.msra.mxu0 %v2012
      %2951 = vmatprep.subr.bf16.mxu0 0
      %2952 = vmatpush1.bf16.msra.mxu0 %v2013
      %2953 = vmatprep.subr.bf16.mxu0 0
      %2954 = vmatpush1.bf16.msra.mxu0 %v2014
      %2955 = vmatprep.subr.bf16.mxu0 0
      %2956 = vmatpush1.bf16.msra.mxu0 %v2015
      %2957 = vmatprep.subr.bf16.mxu0 0
      %2958 = vmatpush1.bf16.msra.mxu0 %v2016
      %2959 = vmatprep.subr.bf16.mxu0 0
      %2960 = vmatpush1.bf16.msra.mxu0 %v2017
      %2961 = vmatprep.subr.bf16.mxu0 0
      %2962 = vmatpush1.bf16.msra.mxu0 %v2018
      %2963 = vmatprep.subr.bf16.mxu0 0
      %2964 = vmatpush1.bf16.msra.mxu0 %v2019
      %2965 = vmatprep.subr.bf16.mxu0 0
      %2966 = vmatpush1.bf16.msra.mxu0 %v2020
      %2967 = vmatprep.subr.bf16.mxu0 0
      %2968 = vmatpush1.bf16.msra.mxu0 %v2021
      %2969 = vmatprep.subr.bf16.mxu0 0
      %2970 = vmatpush1.bf16.msra.mxu0 %v2022
      %2971 = vmatprep.subr.bf16.mxu0 0
      %2972 = vmatpush1.bf16.msra.mxu0 %v2023
      %2973 = vmatprep.subr.bf16.mxu0 0
      %2974 = vmatpush1.bf16.msra.mxu0 %v2024
      %2975 = vmatprep.subr.bf16.mxu0 0
      %2976 = vmatpush1.bf16.msra.mxu0 %v2025
      %2977 = vmatprep.subr.bf16.mxu0 0
      %2978 = vmatpush1.bf16.msra.mxu0 %v2026
      %2979 = vmatprep.mubr.bf16.mxu0 %v664
      %2980 = vmatmul.mubr.bf16.gmra.mrb[0].mxu0 %v652
      %v2981 = vpop.f32.mrb[0].mxu0
      %v2982 = vadd.f32 %v2885, %v2981
      %v2983 = vpop.f32.mrb[0].mxu0
      %v2984 = vpop.f32.mrb[0].mxu0
      %v2985 = vadd.f32 %v2888, %v2984
      %v2986 = vpop.f32.mrb[0].mxu0
      %2987 = vmatprep.mubr.bf16.mxu0 %v680
      %2988 = vmatmul.mubr.bf16.gmra.mrb[0].mxu0 %v672
      %v2989 = vpop.f32.mrb[0].mxu0
      %v2990 = vadd.f32 %v2893, %v2989
      %v2991 = vpop.f32.mrb[0].mxu0
      %v2992 = vpop.f32.mrb[0].mxu0
      %v2993 = vadd.f32 %v2896, %v2992
      %v2994 = vpop.f32.mrb[0].mxu0
      %2995 = vmatprep.mubr.bf16.mxu0 %v696
      %2996 = vmatmul.mubr.bf16.gmra.mrb[0].mxu0 %v688
      %v2997 = vpop.f32.mrb[0].mxu0
      %v2998 = vadd.f32 %v2901, %v2997
      %v2999 = vpop.f32.mrb[0].mxu0
      %v3000 = vpop.f32.mrb[0].mxu0
      %v3001 = vadd.f32 %v2904, %v3000
      %v3002 = vpop.f32.mrb[0].mxu0
      %3003 = vmatprep.mubr.bf16.mxu0 %v712
      %3004 = vmatmul.mubr.bf16.gmra.mrb[0].mxu0 %v704
      %v3005 = vpop.f32.mrb[0].mxu0
      %v3006 = vadd.f32 %v2909, %v3005
      %v3007 = vpop.f32.mrb[0].mxu0
      %v3008 = vpop.f32.mrb[0].mxu0
      %v3009 = vadd.f32 %v2912, %v3008
      %v3010 = vpop.f32.mrb[0].mxu0
      %3011 = vmatprep.mubr.bf16.mxu0 %v962
      %3012 = vmatmul.mubr.bf16.gmra.mrb[0].mxu0 %v950
      %v3013 = vpop.f32.mrb[0].mxu0
      %v3014 = vadd.f32 %v2917, %v3013
      %v3015 = vpop.f32.mrb[0].mxu0
      %v3016 = vpop.f32.mrb[0].mxu0
      %v3017 = vadd.f32 %v2920, %v3016
      %v3018 = vpop.f32.mrb[0].mxu0
      %3019 = vmatprep.mubr.bf16.mxu0 %v978
      %3020 = vmatmul.mubr.bf16.gmra.mrb[0].mxu0 %v970
      %v3021 = vpop.f32.mrb[0].mxu0
      %v3022 = vadd.f32 %v2925, %v3021
      %v3023 = vpop.f32.mrb[0].mxu0
      %v3024 = vpop.f32.mrb[0].mxu0
      %v3025 = vadd.f32 %v2928, %v3024
      %v3026 = vpop.f32.mrb[0].mxu0
      %3027 = vmatprep.mubr.bf16.mxu0 %v994
      %3028 = vmatmul.mubr.bf16.gmra.mrb[0].mxu0 %v986
      %v3029 = vpop.f32.mrb[0].mxu0
      %v3030 = vadd.f32 %v2933, %v3029
      %v3031 = vpop.f32.mrb[0].mxu0
      %v3032 = vpop.f32.mrb[0].mxu0
      %v3033 = vadd.f32 %v2936, %v3032
      %v3034 = vpop.f32.mrb[0].mxu0
      %3035 = vmatprep.mubr.bf16.mxu0 %v1010
      %3036 = vmatmul.mubr.bf16.gmra.mrb[0].mxu0 %v1002
      %v3037 = vpop.f32.mrb[0].mxu0
      %v3038 = vadd.f32 %v2941, %v3037
      %v3039 = vpop.f32.mrb[0].mxu0
      %v3040 = vpop.f32.mrb[0].mxu0
      %v3041 = vadd.f32 %v2944, %v3040
      %v3042 = vpop.f32.mrb[0].mxu0
      %3043 = vdwg.mxu0
      %v3044 = vmax.f32 %v2982, %v3014
      %v3045 = vmax.f32 %v2985, %v3017
      %v3046 = vmax.f32 %v2990, %v3022
      %v3047 = vmax.f32 %v2993, %v3025
      %v3048 = vmax.f32 %v2998, %v3030
      %v3049 = vmax.f32 %v3001, %v3033
      %v3050 = vmax.f32 %v3006, %v3038
      %v3051 = vmax.f32 %v3009, %v3041
      %v3052 = vld [vmem:[%s260] sm:$0x1]
      %v3054 = vlaneseq
      %v3055 = vshrl.u32 %v3054, 7
      %v3056 = vsub.s32 0, %v3055
      %v3057 = vrot.slane %v3052, %v3056
      %v3059 = vadd.f32 %v3044, %v3057
      %v3060 = vadd.f32 %v3045, %v3057
      %v3061 = vadd.f32 %v3046, %v3057
      %v3062 = vadd.f32 %v3047, %v3057
      %v3063 = vadd.f32 %v3048, %v3057
      %v3064 = vadd.f32 %v3049, %v3057
      %v3065 = vadd.f32 %v3050, %v3057
      %v3066 = vadd.f32 %v3051, %v3057
      %v3067 = vmax.f32 %v3059, 0.0
      %v3068 = vmax.f32 %v3060, 0.0
      %v3069 = vmax.f32 %v3061, 0.0
      %v3070 = vmax.f32 %v3062, 0.0
      %v3071 = vmax.f32 %v3063, 0.0
      %v3072 = vmax.f32 %v3064, 0.0
      %v3073 = vmax.f32 %v3065, 0.0
      %v3074 = vmax.f32 %v3066, 0.0
      %v3075 = vmax.f32 %v3067, %v3068
      %v3076 = vmax.f32 %v3069, %v3070
      %v3077 = vmax.f32 %v3071, %v3072
      %v3078 = vmax.f32 %v3073, %v3074
      %v3079 = vpack.c.bf16 %v3075, %v3075
      %v3080 = vpack.c.bf16 %v3076, %v3076
      %v3081 = vpack.c.bf16 %v3077, %v3077
      %v3082 = vpack.c.bf16 %v3078, %v3078
      %3083 = vst [vmem:[%s268] sm:$0x3] %v3079
      %3084 = vst [vmem:[%s268 + $0x2] sm:$0x3] %v3080
      %3085 = vst [vmem:[%s268 + $0x4] sm:$0x3] %v3081
      %3086 = vst [vmem:[%s268 + $0x6] sm:$0x3] %v3082
      %p3087 = scmp.lt.s32.totalorder %s19, 1
      %s3088 = scalar_select %p3087, %s19, 1
      %p3089 = scmp.lt.s32.totalorder %s20, 0
      %s3090 = scalar_select %p3089, %s20, 0
      %s3091 = smul.addr %s3088, 4
      %s3092 = sadd.s32 %s3090, %s3091
      %s3093 = smul.addr %s3092, 2
      %s3094 = scalar_lea.vmem %s4, %s3093
      // Predicated region
      $region37: #{custom_cnn_forward.4} parent=35 // pred_check
        %p3095 = pneg %p151
      $region38: #{custom_cnn_forward.4} parent=35 // pred_check_branch
        %3097 = sbr.rel (%p3095) target = $region40
      $region39: #{custom_cnn_forward.4} parent=35 // pred_region
        _
      $region40: #{custom_cnn_forward.4} parent=35 // pred_fallthru
        _
    $region36: #{custom_cnn_forward.4} parent=5 // pred_fallthru
      _
    %p3098 = scmp.le.s32.totalorder 2, %s10
    // Predicated region
    $region41: #{custom_cnn_forward.4} parent=5 // pred_check
      %p3099 = pneg %p3098
    $region42: #{custom_cnn_forward.4} parent=5 // pred_check_branch
      %3101 = sbr.rel (%p3099) target = $region44
    $region43: #{custom_cnn_forward.4} parent=5 // pred_region
      %s3102 = ssub.s32 %s10, 2
      // Predicated region
      $region45: #{custom_cnn_forward.4} parent=43 // pred_check
        %p3103 = pneg %p157
      $region46: #{custom_cnn_forward.4} parent=43 // pred_check_branch
        %3105 = sbr.rel (%p3103) target = $region48
      $region47: #{custom_cnn_forward.4} parent=43 // pred_region
        %p3106 = scmp.lt.s32.totalorder %s21, 1
        %s3107 = scalar_select %p3106, %s21, 1
        %p3108 = scmp.lt.s32.totalorder %s22, 0
        %s3109 = scalar_select %p3108, %s22, 0
        %s3110 = smul.addr %s3107, 4
        %s3111 = sadd.s32 %s3109, %s3110
        %s3112 = smul.addr %s3111, 2
        %s3113 = scalar_lea.vmem %s4, %s3112
      $region48: #{custom_cnn_forward.4} parent=43 // pred_fallthru
        _
    $region44: #{custom_cnn_forward.4} parent=5 // pred_fallthru
      _
  $region6: #{custom_cnn_forward.4} parent=0 // loop_footer
    %s14 = sadd.s32 1, %s10
  $region7: #{custom_cnn_forward.4} parent=0 // loop_footer_branch
    %9 = sbr.rel target = $region3
  $region8: #{custom_cnn_forward.4} parent=0 // loop_exit
    _

</llo_original>
